<compile_context>
chip_gen: v5e
topology: v5e:2x2
jax: 0.10.0
libtpu: 0.0.40
codegen_flags: <defaults>
</compile_context>

<pallas_src>
import functools

import jax
import jax.numpy as jnp
from jax import lax
from jax.experimental import pallas as pl
from jax.experimental.pallas import tpu as pltpu

# 48 MiB scoped VMEM: generous on v5e/v6e (128 MiB physical), still leaves headroom on
# v7x (64 MiB physical) for the double-buffered (TM, N) slabs + resident h at TM=256.
VMEM_LIMIT_BYTES = 48 * 1024 * 1024
LANE = 128
DEFAULT_TILE_M = 256


def _round_up(n, m):
    return ((n + m - 1) // m) * m


def _pad2(a, rows, cols):
    return jnp.pad(a, ((0, rows - a.shape[0]), (0, cols - a.shape[1])))


def _compiler_params():
    # TODO(synk): on v7x (2 TensorCores/chip) switch the row axis to pltpu.CORE_PARALLEL
    # to shard the attention/decode tiles across both TCs; "parallel" kept here because
    # it is safe on every generation.
    return pltpu.CompilerParams(dimension_semantics=("parallel",),
                                vmem_limit_bytes=VMEM_LIMIT_BYTES)


# ----------------------------------------------------------------------------
# Pallas kernels
# ----------------------------------------------------------------------------
def project_kernel(x_ref, waug_ref, h_ref, f_ref, *, fout):
    """acc = x @ [W | W@a_self | W@a_neigh | 0-pad]; split into h and attention scores."""
    w = waug_ref[...]                                       # (Fin, fout + 128), matmul dtype
    x = x_ref[...].astype(w.dtype)                          # (TM, Fin)
    acc = jnp.dot(x, w, preferred_element_type=jnp.float32)
    h_ref[...] = acc[:, :fout].astype(h_ref.dtype)          # (TM, fout)  lane-dense
    f_ref[...] = acc[:, fout:]                              # (TM, 128) f32: col0=self, col1=neigh


def gat_attention_kernel(menc_ref, f_ref, fn_ref, h_ref, out_ref, *, alpha):
    """Masked softmax attention + ELU for one (TM, N) row slab.

    menc is the sign-encoded mask/proximity array: >= 0 means adj>0 (value is M),
    -1 means masked.  Every row (incl. padded rows) has at least one unmasked entry
    (self-loops added by the caller).
    """
    menc = menc_ref[...].astype(jnp.float32)                # (TM, Np)
    mask = (menc >= 0.0).astype(jnp.float32)                # adj > 0
    m_eff = jnp.maximum(menc, 0.0)                          # M where adj>0, else 0

    dense = (f_ref[:, 0:1] + fn_ref[...]) * m_eff           # (TM, Np) f32
    dense = jnp.maximum(dense, alpha * dense)               # LeakyReLU (0 < alpha < 1)

    # Row-max over the superset (masked entries are 0): exp <= 1 stays safe; zeroing
    # after exp yields the identical softmax to the -9e15 masking in the reference.
    rowmax = jnp.max(dense, axis=1, keepdims=True)
    e = jnp.exp(dense - rowmax) * mask
    denom = jnp.maximum(jnp.sum(e, axis=1, keepdims=True), 1e-12)
    attention = e * pl.reciprocal(denom, approx=True)       # EUP slot

    h = h_ref[...]                                          # (Np, Fout), matmul dtype (resident)
    h_prime = jnp.dot(attention.astype(h.dtype), h,
                      preferred_element_type=jnp.float32)   # (TM, Fout)
    out_ref[...] = jnp.where(h_prime > 0, h_prime,
                             jnp.exp(jnp.minimum(h_prime, 0.0)) - 1.0)    # ELU


def normalize_kernel(x_ref, z_ref):
    x = x_ref[...]                                          # (TM, Ep) f32
    ss = jnp.sum(x * x, axis=1, keepdims=True)
    z_ref[...] = x * lax.rsqrt(jnp.maximum(ss, 1e-24))      # == F.normalize(x, p=2, dim=1)


def decode_cluster_kernel(z_ref, zt_ref, mut_ref, musq_ref, a_pred_ref, q_ref):
    z = z_ref[...]                                          # (TM, Ep) f32
    # A_pred strip = sigmoid(z_tile @ z_full^T); approx reciprocal rides the EUP slot,
    # clamp keeps the value in [0, 1] despite the ~1e-3 relative approximation error.
    logits = jnp.dot(z, zt_ref[...], preferred_element_type=jnp.float32)   # (TM, Np)
    a_pred = pl.reciprocal(1.0 + jnp.exp(-logits), approx=True)
    a_pred_ref[...] = jnp.minimum(a_pred, 1.0).astype(a_pred_ref.dtype)

    # ||z - mu||^2 via the matmul identity (no (N, K, E) broadcast temporary).
    # Padded cluster columns carry a huge |mu|^2 so their q is ~0 and drops out of the
    # row normalization; the store stays lane-dense (Kp = 128).
    z_sq = jnp.sum(z * z, axis=1, keepdims=True)            # (TM, 1)
    cross = jnp.dot(z, mut_ref[...], preferred_element_type=jnp.float32)   # (TM, Kp)
    d2 = jnp.maximum(z_sq + musq_ref[...] - 2.0 * cross, 0.0)
    q = 1.0 / (1.0 + d2)
    # q ** ((v + 1) / 2) with v = 1 degree of freedom is the identity -> skipped.
    q_ref[...] = q / jnp.sum(q, axis=1, keepdims=True)


# ----------------------------------------------------------------------------
# Wrappers around pallas_call
# ----------------------------------------------------------------------------
def gat_layer(x_p, menc_p, W, a_self, a_neigh, *, alpha, tile_m, matmul_dtype):
    """One GraphAttentionLayer on padded inputs: (Np, Finp) f32 -> (Np, Foutp) f32."""
    Np, Finp = x_p.shape
    Fout = W.shape[1]
    Foutp = _round_up(Fout, LANE)
    n_tiles = Np // tile_m

    # W_aug = [W | W @ a_self | W @ a_neigh | 0-pad]  (tiny wrapper-side matmuls).
    w32 = _pad2(W.astype(jnp.float32), Finp, Foutp)
    a_s = _pad2(a_self.astype(jnp.float32), Foutp, 1)
    a_n = _pad2(a_neigh.astype(jnp.float32), Foutp, 1)
    score_cols = jnp.concatenate(
        [w32 @ a_s, w32 @ a_n, jnp.zeros((Finp, LANE - 2), jnp.float32)], axis=1)
    w_aug = jnp.concatenate([w32, score_cols], axis=1).astype(matmul_dtype)  # (Finp, Foutp+128)

    # Stage 1: projection (h computed ONCE per layer, row-tiled, lane-dense outputs).
    h, f = pl.pallas_call(
        functools.partial(project_kernel, fout=Foutp),
        out_shape=(jax.ShapeDtypeStruct((Np, Foutp), matmul_dtype),
                   jax.ShapeDtypeStruct((Np, LANE), jnp.float32)),
        grid=(n_tiles,),
        in_specs=[pl.BlockSpec((tile_m, Finp), lambda i: (i, 0)),
                  pl.BlockSpec((Finp, Foutp + LANE), lambda i: (0, 0))],
        out_specs=(pl.BlockSpec((tile_m, Foutp), lambda i: (i, 0)),
                   pl.BlockSpec((tile_m, LANE), lambda i: (i, 0))),
        compiler_params=_compiler_params(),
    )(x_p, w_aug)

    f_neigh_row = f[:, 1:2].T                               # (1, Np) f32, tiny XLA transpose

    # Stage 2: attention + softmax + ELU, streaming ONE (TM, Np) bf16 slab per step.
    out = pl.pallas_call(
        functools.partial(gat_attention_kernel, alpha=alpha),
        out_shape=jax.ShapeDtypeStruct((Np, Foutp), jnp.float32),
        grid=(n_tiles,),
        in_specs=[pl.BlockSpec((tile_m, Np), lambda i: (i, 0)),    # sign-encoded adj/M slab
                  pl.BlockSpec((tile_m, LANE), lambda i: (i, 0)),  # per-row self scores
                  pl.BlockSpec((1, Np), lambda i: (0, 0)),         # neighbour scores (resident)
                  pl.BlockSpec((Np, Foutp), lambda i: (0, 0))],    # h (resident, matmul dtype)
        out_specs=pl.BlockSpec((tile_m, Foutp), lambda i: (i, 0)),
        compiler_params=_compiler_params(),
    )(menc_p, f, f_neigh_row, h)
    return out


def decode_and_cluster(h3_p, cluster_layer, *, tile_m, a_pred_dtype=jnp.float32):
    Np, Ep = h3_p.shape
    K = cluster_layer.shape[0]
    Kp = _round_up(K, LANE)
    n_tiles = Np // tile_m

    z = pl.pallas_call(
        normalize_kernel,
        out_shape=jax.ShapeDtypeStruct((Np, Ep), jnp.float32),
        grid=(n_tiles,),
        in_specs=[pl.BlockSpec((tile_m, Ep), lambda i: (i, 0))],
        out_specs=pl.BlockSpec((tile_m, Ep), lambda i: (i, 0)),
        compiler_params=_compiler_params(),
    )(h3_p)

    zT = z.T                                                     # (Ep, Np), small XLA transpose
    muT = _pad2(cluster_layer.astype(jnp.float32), Kp, Ep).T     # (Ep, Kp), padded cols = 0
    musq = jnp.sum(muT * muT, axis=0, keepdims=True)             # (1, Kp)
    musq = jnp.where(jnp.arange(Kp)[None, :] >= K, jnp.float32(3e38), musq)

    a_pred, q = pl.pallas_call(
        decode_cluster_kernel,
        out_shape=(jax.ShapeDtypeStruct((Np, Np), a_pred_dtype),  # A_pred (bf16 optional)
                   jax.ShapeDtypeStruct((Np, Kp), jnp.float32)),  # q (lane-dense, padded K)
        grid=(n_tiles,),
        in_specs=[pl.BlockSpec((tile_m, Ep), lambda i: (i, 0)),
                  pl.BlockSpec((Ep, Np), lambda i: (0, 0)),       # z^T resident
                  pl.BlockSpec((Ep, Kp), lambda i: (0, 0)),       # cluster centers resident
                  pl.BlockSpec((1, Kp), lambda i: (0, 0))],       # |mu|^2 row (padded = huge)
        out_specs=(pl.BlockSpec((tile_m, Np), lambda i: (i, 0)),
                   pl.BlockSpec((tile_m, Kp), lambda i: (i, 0))),
        compiler_params=_compiler_params(),
    )(z, zT, muT, musq)
    return a_pred, z, q


def gaex_forward(x, adj, M, params, alpha, *, matmul_dtype=jnp.bfloat16,
                 tile_m=DEFAULT_TILE_M, a_pred_dtype=jnp.float32):
    N, F0 = x.shape
    E = params["W3"].shape[1]
    K = params["cluster_layer"].shape[0]

    TM = tile_m if N >= tile_m else _round_up(N, 8)
    Np = _round_up(N, TM)

    # Zero-padding is exact: padded node rows never contribute to real rows (their
    # columns are masked) and padded feature columns stay identically 0 through every
    # layer.  Padded rows get a self-loop so their softmax row is well-defined.
    x_p = _pad2(x.astype(jnp.float32), Np, _round_up(F0, LANE))
    adj_p = _pad2(adj.astype(jnp.float32), Np, Np)
    m_p = _pad2(M.astype(jnp.float32), Np, Np)
    if Np > N:
        pad_ids = jnp.arange(N, Np)
        adj_p = adj_p.at[pad_ids, pad_ids].set(1.0)

    # Sign-encoded mask + proximity (assumes M >= 0, true for the DAEGC t-order
    # proximity matrix): one N x N bf16 array instead of two -> half the HBM traffic
    # re-read by all three attention layers.
    menc_p = jnp.where(adj_p > 0, m_p, -1.0).astype(jnp.bfloat16)

    h = x_p
    for li in (1, 2, 3):
        h = gat_layer(h, menc_p,
                      params[f"W{li}"], params[f"a_self{li}"], params[f"a_neigh{li}"],
                      alpha=alpha, tile_m=TM, matmul_dtype=matmul_dtype)

    a_pred, z, q = decode_and_cluster(h, params["cluster_layer"], tile_m=TM,
                                      a_pred_dtype=a_pred_dtype)
    return a_pred[:N, :N], z[:N, :E], q[:N, :K]


# ----------------------------------------------------------------------------
# Deterministic parameter init (mirrors the PyTorch __init__ shapes)
# ----------------------------------------------------------------------------
def xavier_uniform(key, shape, gain):
    fan_in, fan_out = shape[0], shape[1]
    bound = gain * (6.0 / (fan_in + fan_out)) ** 0.5
    return jax.random.uniform(key, shape, jnp.float32, minval=-bound, maxval=bound)


def xavier_normal(key, shape, gain=1.0):
    fan_in, fan_out = shape[0], shape[1]
    std = gain * (2.0 / (fan_in + fan_out)) ** 0.5
    return std * jax.random.normal(key, shape, jnp.float32)


def init_gaex_params(key, num_features, hidden1, hidden2, embedding, num_clusters):
    keys = jax.random.split(key, 10)
    g = 1.414  # gain used in the DAEGC GAT layer init
    return {
        "W1": xavier_uniform(keys[0], (num_features, hidden1), g),
        "a_self1": xavier_uniform(keys[1], (hidden1, 1), g),
        "a_neigh1": xavier_uniform(keys[2], (hidden1, 1), g),
        "W2": xavier_uniform(keys[3], (hidden1, hidden2), g),
        "a_self2": xavier_uniform(keys[4], (hidden2, 1), g),
        "a_neigh2": xavier_uniform(keys[5], (hidden2, 1), g),
        "W3": xavier_uniform(keys[6], (hidden2, embedding), g),
        "a_self3": xavier_uniform(keys[7], (embedding, 1), g),
        "a_neigh3": xavier_uniform(keys[8], (embedding, 1), g),
        "cluster_layer": xavier_normal(keys[9], (num_clusters, embedding), 1.0),
    }


# ----------------------------------------------------------------------------
if __name__ == "__main__":
    # Deterministic problem, sized so that the row grid actually tiles (Np=512, 2 tiles
    # of 256) AND the padded-row path (rows 384..511) is exercised.
    N = 384             # number of graph nodes
    num_features = 64
    hidden1 = 64
    hidden2 = 32
    embedding = 16
    num_clusters = 4
    alpha = 0.2         # LeakyReLU negative slope

    key = jax.random.PRNGKey(0)
    k_x, k_adj, k_m, k_params = jax.random.split(key, 4)

    x = jax.random.normal(k_x, (N, num_features), jnp.float32)

    # symmetric binary adjacency with self-loops (softmax assumes >=1 nonzero per row)
    raw = jax.random.uniform(k_adj, (N, N))
    adj = ((raw + raw.T) * 0.5 > 0.6).astype(jnp.float32)
    adj = jnp.maximum(adj, jnp.eye(N, dtype=jnp.float32))

    # proximity matrix M (nonnegative weights, as in DAEGC)
    M = jax.random.uniform(k_m, (N, N), jnp.float32, minval=0.0, maxval=1.0)

    params = init_gaex_params(k_params, num_features, hidden1, hidden2,
                              embedding, num_clusters)

    fwd = jax.jit(functools.partial(gaex_forward, alpha=alpha))
    A_pred, z, q = fwd(x, adj, M, params)
    jax.block_until_ready((A_pred, z, q))

    assert A_pred.shape == (N, N)
    assert z.shape == (N, embedding)
    assert q.shape == (N, num_clusters)
    assert bool(jnp.all(jnp.isfinite(A_pred)))
    assert bool(jnp.all(jnp.isfinite(z)))
    assert bool(jnp.all(jnp.isfinite(q)))
    assert bool(jnp.all((A_pred >= 0.0) & (A_pred <= 1.0)))        # sigmoid range
    assert bool(jnp.all(jnp.abs(jnp.sum(z * z, axis=1) - 1.0) < 1e-3))   # rows unit-normalized
    assert bool(jnp.all(jnp.abs(jnp.sum(q, axis=1) - 1.0) < 1e-3))       # q rows sum to 1

    print("KERNEL_OK")
</pallas_src>

<mosaic_0001>
module attributes {stable_mosaic.version = 11 : i64} {
  func.func @project_kernel(%arg0: i32, %arg1: memref<256x128xf32, #tpu.memory_space<vmem>>, %arg2: memref<128x256xbf16, #tpu.memory_space<vmem>>, %arg3: memref<256x128xbf16, #tpu.memory_space<vmem>>, %arg4: memref<256x128xf32, #tpu.memory_space<vmem>>) attributes {dimension_semantics = [#tpu.dimension_semantics<parallel>], iteration_bounds = array<i64: 2>, scalar_prefetch = 0 : i64, scratch_operands = 0 : i64, tpu.core_type = #tpu.core_type<tc>, window_params = [{transform_indices = @transform_0, window_bounds = array<i64: 256, 128>}, {pipeline_mode = #tpu.pipeline_mode<synchronous>, transform_indices = @transform_1, window_bounds = array<i64: 128, 256>}, {transform_indices = @transform_2, window_bounds = array<i64: 256, 128>}, {transform_indices = @transform_3, window_bounds = array<i64: 256, 128>}]} {
    %c0 = arith.constant 0 : index
    %c0_0 = arith.constant 0 : index
    %0 = vector.load %arg2[%c0, %c0_0] : memref<128x256xbf16, #tpu.memory_space<vmem>>, vector<128x256xbf16>
    %c0_1 = arith.constant 0 : index
    %c0_2 = arith.constant 0 : index
    %1 = vector.load %arg1[%c0_1, %c0_2] : memref<256x128xf32, #tpu.memory_space<vmem>>, vector<256x128xf32>
    %2 = arith.truncf %1 : vector<256x128xf32> to vector<256x128xbf16>
    %cst = arith.constant dense<0.000000e+00> : vector<256x256xf32>
    %3 = tpu.matmul %2, %0, %cst {dimension_numbers = #tpu.dot_dimension_numbers<[1], [0], [0], [1], [0, 0, 1, 1], [], []>} : vector<256x128xbf16>, vector<128x256xbf16>, vector<256x256xf32> -> vector<256x256xf32>
    %4 = vector.extract_strided_slice %3 {offsets = [0, 0], sizes = [256, 128], strides = [1, 1]} : vector<256x256xf32> to vector<256x128xf32>
    %5 = arith.truncf %4 : vector<256x128xf32> to vector<256x128xbf16>
    %c0_3 = arith.constant 0 : index
    %c0_4 = arith.constant 0 : index
    %6 = vector.load %arg3[%c0_3, %c0_4] : memref<256x128xbf16, #tpu.memory_space<vmem>>, vector<256x128xbf16>
    tpu.vector_store %arg3[%c0_3, %c0_4], %5 {strides = array<i32>} : memref<256x128xbf16, #tpu.memory_space<vmem>>, vector<256x128xbf16>,
    %7 = vector.extract_strided_slice %3 {offsets = [0, 128], sizes = [256, 128], strides = [1, 1]} : vector<256x256xf32> to vector<256x128xf32>
    %c0_5 = arith.constant 0 : index
    %c0_6 = arith.constant 0 : index
    %8 = vector.load %arg4[%c0_5, %c0_6] : memref<256x128xf32, #tpu.memory_space<vmem>>, vector<256x128xf32>
    tpu.vector_store %arg4[%c0_5, %c0_6], %7 {strides = array<i32>} : memref<256x128xf32, #tpu.memory_space<vmem>>, vector<256x128xf32>,
    return
  }
  func.func @transform_0(%arg0: i32) -> (i32, i32) {
    %c0_i32 = arith.constant 0 : i32
    %c0_i32_0 = arith.constant 0 : i32
    return %arg0, %c0_i32 : i32, i32
  }
  func.func @transform_1(%arg0: i32) -> (i32, i32) {
    %c0_i32 = arith.constant 0 : i32
    %c0_i32_0 = arith.constant 0 : i32
    %c0_i32_1 = arith.constant 0 : i32
    return %c0_i32, %c0_i32_0 : i32, i32
  }
  func.func @transform_2(%arg0: i32) -> (i32, i32) {
    %c0_i32 = arith.constant 0 : i32
    %c0_i32_0 = arith.constant 0 : i32
    return %arg0, %c0_i32 : i32, i32
  }
  func.func @transform_3(%arg0: i32) -> (i32, i32) {
    %c0_i32 = arith.constant 0 : i32
    %c0_i32_0 = arith.constant 0 : i32
    return %arg0, %c0_i32 : i32, i32
  }
}

module attributes {stable_mosaic.version = 11 : i64} {
  func.func @gat_attention_kernel(%arg0: i32, %arg1: memref<256x512xbf16, #tpu.memory_space<vmem>>, %arg2: memref<256x128xf32, #tpu.memory_space<vmem>>, %arg3: memref<1x512xf32, #tpu.memory_space<vmem>>, %arg4: memref<512x128xbf16, #tpu.memory_space<vmem>>, %arg5: memref<256x128xf32, #tpu.memory_space<vmem>>) attributes {dimension_semantics = [#tpu.dimension_semantics<parallel>], iteration_bounds = array<i64: 2>, scalar_prefetch = 0 : i64, scratch_operands = 0 : i64, tpu.core_type = #tpu.core_type<tc>, window_params = [{transform_indices = @transform_0, window_bounds = array<i64: 256, 512>}, {transform_indices = @transform_1, window_bounds = array<i64: 256, 128>}, {pipeline_mode = #tpu.pipeline_mode<synchronous>, transform_indices = @transform_2, window_bounds = array<i64: 1, 512>}, {pipeline_mode = #tpu.pipeline_mode<synchronous>, transform_indices = @transform_3, window_bounds = array<i64: 512, 128>}, {transform_indices = @transform_4, window_bounds = array<i64: 256, 128>}]} {
    %c0 = arith.constant 0 : index
    %c0_0 = arith.constant 0 : index
    %0 = vector.load %arg1[%c0, %c0_0] : memref<256x512xbf16, #tpu.memory_space<vmem>>, vector<256x512xbf16>
    %1 = arith.extf %0 : vector<256x512xbf16> to vector<256x512xf32>
    %cst = arith.constant 0.000000e+00 : f32
    %2 = vector.broadcast %cst : f32 to vector<256x512xf32>
    %3 = arith.cmpf oge, %1, %2 : vector<256x512xf32>
    %4 = arith.extui %3 : vector<256x512xi1> to vector<256x512xi32>
    %5 = arith.sitofp %4 : vector<256x512xi32> to vector<256x512xf32>
    %cst_1 = arith.constant 0.000000e+00 : f32
    %6 = vector.broadcast %cst_1 : f32 to vector<256x512xf32>
    %7 = arith.maximumf %1, %6 : vector<256x512xf32>
    %c0_2 = arith.constant 0 : index
    %c0_3 = arith.constant 0 : index
    %8 = vector.load %arg2[%c0_2, %c0_3] : memref<256x128xf32, #tpu.memory_space<vmem>>, vector<256x1xf32>
    %c0_4 = arith.constant 0 : index
    %c0_5 = arith.constant 0 : index
    %9 = vector.load %arg3[%c0_4, %c0_5] : memref<1x512xf32, #tpu.memory_space<vmem>>, vector<1x512xf32>
    %10 = vector.broadcast %8 : vector<256x1xf32> to vector<256x512xf32>
    %11 = vector.broadcast %9 : vector<1x512xf32> to vector<256x512xf32>
    %12 = arith.addf %10, %11 : vector<256x512xf32>
    %13 = arith.mulf %12, %7 : vector<256x512xf32>
    %cst_6 = arith.constant 2.000000e-01 : f32
    %14 = vector.broadcast %cst_6 : f32 to vector<256x512xf32>
    %15 = arith.mulf %14, %13 : vector<256x512xf32>
    %16 = arith.maximumf %13, %15 : vector<256x512xf32>
    %cst_7 = arith.constant dense<0xFF800000> : vector<256xf32>
    %17 = vector.multi_reduction <maximumf>, %16, %cst_7 [1] : vector<256x512xf32> to vector<256xf32>
    %18 = vector.shape_cast %17 : vector<256xf32> to vector<256x1xf32>
    %19 = vector.broadcast %18 : vector<256x1xf32> to vector<256x512xf32>
    %20 = arith.subf %16, %19 : vector<256x512xf32>
    %21 = math.exp %20 : vector<256x512xf32>
    %22 = arith.mulf %21, %5 : vector<256x512xf32>
    %cst_8 = arith.constant dense<0.000000e+00> : vector<256xf32>
    %23 = vector.multi_reduction <add>, %22, %cst_8 [1] : vector<256x512xf32> to vector<256xf32>
    %24 = vector.shape_cast %23 : vector<256xf32> to vector<256x1xf32>
    %cst_9 = arith.constant 9.99999996E-13 : f32
    %25 = vector.broadcast %cst_9 : f32 to vector<256x1xf32>
    %26 = arith.maximumf %24, %25 : vector<256x1xf32>
    %27 = tpu.reciprocal %26 {approx = true} : vector<256x1xf32> -> vector<256x1xf32>
    %28 = vector.broadcast %27 : vector<256x1xf32> to vector<256x512xf32>
    %29 = arith.mulf %22, %28 : vector<256x512xf32>
    %c0_10 = arith.constant 0 : index
    %c0_11 = arith.constant 0 : index
    %30 = vector.load %arg4[%c0_10, %c0_11] : memref<512x128xbf16, #tpu.memory_space<vmem>>, vector<512x128xbf16>
    %31 = arith.truncf %29 : vector<256x512xf32> to vector<256x512xbf16>
    %cst_12 = arith.constant dense<0.000000e+00> : vector<256x128xf32>
    %32 = tpu.matmul %31, %30, %cst_12 {dimension_numbers = #tpu.dot_dimension_numbers<[1], [0], [0], [1], [0, 0, 1, 1], [], []>} : vector<256x512xbf16>, vector<512x128xbf16>, vector<256x128xf32> -> vector<256x128xf32>
    %cst_13 = arith.constant 0.000000e+00 : f32
    %33 = vector.broadcast %cst_13 : f32 to vector<256x128xf32>
    %34 = arith.cmpf ogt, %32, %33 : vector<256x128xf32>
    %cst_14 = arith.constant 0.000000e+00 : f32
    %35 = vector.broadcast %cst_14 : f32 to vector<256x128xf32>
    %36 = arith.minimumf %32, %35 : vector<256x128xf32>
    %37 = math.exp %36 : vector<256x128xf32>
    %cst_15 = arith.constant 1.000000e+00 : f32
    %38 = vector.broadcast %cst_15 : f32 to vector<256x128xf32>
    %39 = arith.subf %37, %38 : vector<256x128xf32>
    %40 = arith.select %34, %32, %39 : vector<256x128xi1>, vector<256x128xf32>
    %c0_16 = arith.constant 0 : index
    %c0_17 = arith.constant 0 : index
    %41 = vector.load %arg5[%c0_16, %c0_17] : memref<256x128xf32, #tpu.memory_space<vmem>>, vector<256x128xf32>
    tpu.vector_store %arg5[%c0_16, %c0_17], %40 {strides = array<i32>} : memref<256x128xf32, #tpu.memory_space<vmem>>, vector<256x128xf32>,
    return
  }
  func.func @transform_0(%arg0: i32) -> (i32, i32) {
    %c0_i32 = arith.constant 0 : i32
    %c0_i32_0 = arith.constant 0 : i32
    return %arg0, %c0_i32 : i32, i32
  }
  func.func @transform_1(%arg0: i32) -> (i32, i32) {
    %c0_i32 = arith.constant 0 : i32
    %c0_i32_0 = arith.constant 0 : i32
    return %arg0, %c0_i32 : i32, i32
  }
  func.func @transform_2(%arg0: i32) -> (i32, i32) {
    %c0_i32 = arith.constant 0 : i32
    %c0_i32_0 = arith.constant 0 : i32
    %c0_i32_1 = arith.constant 0 : i32
    return %c0_i32, %c0_i32_0 : i32, i32
  }
  func.func @transform_3(%arg0: i32) -> (i32, i32) {
    %c0_i32 = arith.constant 0 : i32
    %c0_i32_0 = arith.constant 0 : i32
    %c0_i32_1 = arith.constant 0 : i32
    return %c0_i32, %c0_i32_0 : i32, i32
  }
  func.func @transform_4(%arg0: i32) -> (i32, i32) {
    %c0_i32 = arith.constant 0 : i32
    %c0_i32_0 = arith.constant 0 : i32
    return %arg0, %c0_i32 : i32, i32
  }
}

module attributes {stable_mosaic.version = 11 : i64} {
  func.func @normalize_kernel(%arg0: i32, %arg1: memref<256x128xf32, #tpu.memory_space<vmem>>, %arg2: memref<256x128xf32, #tpu.memory_space<vmem>>) attributes {dimension_semantics = [#tpu.dimension_semantics<parallel>], iteration_bounds = array<i64: 2>, scalar_prefetch = 0 : i64, scratch_operands = 0 : i64, tpu.core_type = #tpu.core_type<tc>, window_params = [{transform_indices = @transform_0, window_bounds = array<i64: 256, 128>}, {transform_indices = @transform_1, window_bounds = array<i64: 256, 128>}]} {
    %c0 = arith.constant 0 : index
    %c0_0 = arith.constant 0 : index
    %0 = vector.load %arg1[%c0, %c0_0] : memref<256x128xf32, #tpu.memory_space<vmem>>, vector<256x128xf32>
    %1 = arith.mulf %0, %0 : vector<256x128xf32>
    %cst = arith.constant dense<0.000000e+00> : vector<256xf32>
    %2 = vector.multi_reduction <add>, %1, %cst [1] : vector<256x128xf32> to vector<256xf32>
    %3 = vector.shape_cast %2 : vector<256xf32> to vector<256x1xf32>
    %cst_1 = arith.constant 1.000000e-24 : f32
    %4 = vector.broadcast %cst_1 : f32 to vector<256x1xf32>
    %5 = arith.maximumf %3, %4 : vector<256x1xf32>
    %6 = math.rsqrt %5 : vector<256x1xf32>
    %7 = vector.broadcast %6 : vector<256x1xf32> to vector<256x128xf32>
    %8 = arith.mulf %0, %7 : vector<256x128xf32>
    %c0_2 = arith.constant 0 : index
    %c0_3 = arith.constant 0 : index
    %9 = vector.load %arg2[%c0_2, %c0_3] : memref<256x128xf32, #tpu.memory_space<vmem>>, vector<256x128xf32>
    tpu.vector_store %arg2[%c0_2, %c0_3], %8 {strides = array<i32>} : memref<256x128xf32, #tpu.memory_space<vmem>>, vector<256x128xf32>,
    return
  }
  func.func @transform_0(%arg0: i32) -> (i32, i32) {
    %c0_i32 = arith.constant 0 : i32
    %c0_i32_0 = arith.constant 0 : i32
    return %arg0, %c0_i32 : i32, i32
  }
  func.func @transform_1(%arg0: i32) -> (i32, i32) {
    %c0_i32 = arith.constant 0 : i32
    %c0_i32_0 = arith.constant 0 : i32
    return %arg0, %c0_i32 : i32, i32
  }
}

module attributes {stable_mosaic.version = 11 : i64} {
  func.func @decode_cluster_kernel(%arg0: i32, %arg1: memref<256x128xf32, #tpu.memory_space<vmem>>, %arg2: memref<128x512xf32, #tpu.memory_space<vmem>>, %arg3: memref<128x128xf32, #tpu.memory_space<vmem>>, %arg4: memref<1x128xf32, #tpu.memory_space<vmem>>, %arg5: memref<256x512xf32, #tpu.memory_space<vmem>>, %arg6: memref<256x128xf32, #tpu.memory_space<vmem>>) attributes {dimension_semantics = [#tpu.dimension_semantics<parallel>], iteration_bounds = array<i64: 2>, scalar_prefetch = 0 : i64, scratch_operands = 0 : i64, tpu.core_type = #tpu.core_type<tc>, window_params = [{transform_indices = @transform_0, window_bounds = array<i64: 256, 128>}, {pipeline_mode = #tpu.pipeline_mode<synchronous>, transform_indices = @transform_1, window_bounds = array<i64: 128, 512>}, {pipeline_mode = #tpu.pipeline_mode<synchronous>, transform_indices = @transform_2, window_bounds = array<i64: 128, 128>}, {pipeline_mode = #tpu.pipeline_mode<synchronous>, transform_indices = @transform_3, window_bounds = array<i64: 1, 128>}, {transform_indices = @transform_4, window_bounds = array<i64: 256, 512>}, {transform_indices = @transform_5, window_bounds = array<i64: 256, 128>}]} {
    %c0 = arith.constant 0 : index
    %c0_0 = arith.constant 0 : index
    %0 = vector.load %arg1[%c0, %c0_0] : memref<256x128xf32, #tpu.memory_space<vmem>>, vector<256x128xf32>
    %c0_1 = arith.constant 0 : index
    %c0_2 = arith.constant 0 : index
    %1 = vector.load %arg2[%c0_1, %c0_2] : memref<128x512xf32, #tpu.memory_space<vmem>>, vector<128x512xf32>
    %cst = arith.constant dense<0.000000e+00> : vector<256x512xf32>
    %2 = tpu.matmul %0, %1, %cst {dimension_numbers = #tpu.dot_dimension_numbers<[1], [0], [0], [1], [0, 0, 1, 1], [], []>} : vector<256x128xf32>, vector<128x512xf32>, vector<256x512xf32> -> vector<256x512xf32>
    %cst_3 = arith.constant 0.000000e+00 : f32
    %3 = vector.broadcast %cst_3 : f32 to vector<256x512xf32>
    %4 = arith.subf %3, %2 : vector<256x512xf32>
    %5 = math.exp %4 : vector<256x512xf32>
    %cst_4 = arith.constant 1.000000e+00 : f32
    %6 = vector.broadcast %cst_4 : f32 to vector<256x512xf32>
    %7 = arith.addf %6, %5 : vector<256x512xf32>
    %8 = tpu.reciprocal %7 {approx = true} : vector<256x512xf32> -> vector<256x512xf32>
    %cst_5 = arith.constant 1.000000e+00 : f32
    %9 = vector.broadcast %cst_5 : f32 to vector<256x512xf32>
    %10 = arith.minimumf %8, %9 : vector<256x512xf32>
    %c0_6 = arith.constant 0 : index
    %c0_7 = arith.constant 0 : index
    %11 = vector.load %arg5[%c0_6, %c0_7] : memref<256x512xf32, #tpu.memory_space<vmem>>, vector<256x512xf32>
    tpu.vector_store %arg5[%c0_6, %c0_7], %10 {strides = array<i32>} : memref<256x512xf32, #tpu.memory_space<vmem>>, vector<256x512xf32>,
    %12 = arith.mulf %0, %0 : vector<256x128xf32>
    %cst_8 = arith.constant dense<0.000000e+00> : vector<256xf32>
    %13 = vector.multi_reduction <add>, %12, %cst_8 [1] : vector<256x128xf32> to vector<256xf32>
    %14 = vector.shape_cast %13 : vector<256xf32> to vector<256x1xf32>
    %c0_9 = arith.constant 0 : index
    %c0_10 = arith.constant 0 : index
    %15 = vector.load %arg3[%c0_9, %c0_10] : memref<128x128xf32, #tpu.memory_space<vmem>>, vector<128x128xf32>
    %cst_11 = arith.constant dense<0.000000e+00> : vector<256x128xf32>
    %16 = tpu.matmul %0, %15, %cst_11 {dimension_numbers = #tpu.dot_dimension_numbers<[1], [0], [0], [1], [0, 0, 1, 1], [], []>} : vector<256x128xf32>, vector<128x128xf32>, vector<256x128xf32> -> vector<256x128xf32>
    %c0_12 = arith.constant 0 : index
    %c0_13 = arith.constant 0 : index
    %17 = vector.load %arg4[%c0_12, %c0_13] : memref<1x128xf32, #tpu.memory_space<vmem>>, vector<1x128xf32>
    %18 = vector.broadcast %14 : vector<256x1xf32> to vector<256x128xf32>
    %19 = vector.broadcast %17 : vector<1x128xf32> to vector<256x128xf32>
    %20 = arith.addf %18, %19 : vector<256x128xf32>
    %cst_14 = arith.constant 2.000000e+00 : f32
    %21 = vector.broadcast %cst_14 : f32 to vector<256x128xf32>
    %22 = arith.mulf %21, %16 : vector<256x128xf32>
    %23 = arith.subf %20, %22 : vector<256x128xf32>
    %cst_15 = arith.constant 0.000000e+00 : f32
    %24 = vector.broadcast %cst_15 : f32 to vector<256x128xf32>
    %25 = arith.maximumf %23, %24 : vector<256x128xf32>
    %cst_16 = arith.constant 1.000000e+00 : f32
    %26 = vector.broadcast %cst_16 : f32 to vector<256x128xf32>
    %27 = arith.addf %26, %25 : vector<256x128xf32>
    %cst_17 = arith.constant 1.000000e+00 : f32
    %28 = vector.broadcast %cst_17 : f32 to vector<256x128xf32>
    %29 = arith.divf %28, %27 : vector<256x128xf32>
    %cst_18 = arith.constant dense<0.000000e+00> : vector<256xf32>
    %30 = vector.multi_reduction <add>, %29, %cst_18 [1] : vector<256x128xf32> to vector<256xf32>
    %31 = vector.shape_cast %30 : vector<256xf32> to vector<256x1xf32>
    %32 = vector.broadcast %31 : vector<256x1xf32> to vector<256x128xf32>
    %33 = arith.divf %29, %32 : vector<256x128xf32>
    %c0_19 = arith.constant 0 : index
    %c0_20 = arith.constant 0 : index
    %34 = vector.load %arg6[%c0_19, %c0_20] : memref<256x128xf32, #tpu.memory_space<vmem>>, vector<256x128xf32>
    tpu.vector_store %arg6[%c0_19, %c0_20], %33 {strides = array<i32>} : memref<256x128xf32, #tpu.memory_space<vmem>>, vector<256x128xf32>,
    return
  }
  func.func @transform_0(%arg0: i32) -> (i32, i32) {
    %c0_i32 = arith.constant 0 : i32
    %c0_i32_0 = arith.constant 0 : i32
    return %arg0, %c0_i32 : i32, i32
  }
  func.func @transform_1(%arg0: i32) -> (i32, i32) {
    %c0_i32 = arith.constant 0 : i32
    %c0_i32_0 = arith.constant 0 : i32
    %c0_i32_1 = arith.constant 0 : i32
    return %c0_i32, %c0_i32_0 : i32, i32
  }
  func.func @transform_2(%arg0: i32) -> (i32, i32) {
    %c0_i32 = arith.constant 0 : i32
    %c0_i32_0 = arith.constant 0 : i32
    %c0_i32_1 = arith.constant 0 : i32
    return %c0_i32, %c0_i32_0 : i32, i32
  }
  func.func @transform_3(%arg0: i32) -> (i32, i32) {
    %c0_i32 = arith.constant 0 : i32
    %c0_i32_0 = arith.constant 0 : i32
    %c0_i32_1 = arith.constant 0 : i32
    return %c0_i32, %c0_i32_0 : i32, i32
  }
  func.func @transform_4(%arg0: i32) -> (i32, i32) {
    %c0_i32 = arith.constant 0 : i32
    %c0_i32_0 = arith.constant 0 : i32
    return %arg0, %c0_i32 : i32, i32
  }
  func.func @transform_5(%arg0: i32) -> (i32, i32) {
    %c0_i32 = arith.constant 0 : i32
    %c0_i32_0 = arith.constant 0 : i32
    return %arg0, %c0_i32 : i32, i32
  }
}

</mosaic_0001>

<llo_original>
// kernel: gaex_forward.8
$region0: #{gaex_forward.8}
  #allocation0 [shape = 'u32[]', space=smem, size = 0x4, offset = 0x4, fixed_abs, tag = 'smem constant byte address 0x4 - core index']
  #allocation1 [shape = 'u32[72,128]{1,0:T(1,128)}', space=vmem, size = 0x9000, scoped, tag = 'internal scratch']
  %s0 = inlined_call_operand.vmem [shape: f32[512,128], index: 0, kind: input, shape index: {}]
  %s1 = inlined_call_operand.vmem [shape: bf16[128,256], index: 1, kind: input, shape index: {}]
  %s2 = inlined_call_operand.vmem [shape: bf16[512,128], index: 2, kind: output, shape index: {0}]
  %s3 = inlined_call_operand.vmem [shape: f32[512,128], index: 3, kind: output, shape index: {1}]
  %4 = xla_tuple %s2, %s3
  %s5 = sld [smem:[#allocation0]]
  $region49: #{gaex_forward.8} parent=0
    _
  %s7 = ssub.s32 1, %s5
  %s8 = scalar_select 0, %s7, %s5
  loop: start=0, step=1, limit=4
  $region2: #{gaex_forward.8} parent=0 // loop_pre_header
    _
  $region3: #{gaex_forward.8} parent=0 // loop_header
    %s10 = sphi 0, %s14
    %p11 = scmp.ge.s32.totalorder %s10, 4
    %s20 = sphi 0, %s22
    %s23 = sphi 0, %s20
    %s24 = sphi 0, %s23
    %s40 = sphi 0, %s24
    %s44 = sphi 0, %s44
    %s46 = sphi 0, %s44
    %s47 = sphi 0, %s46
    %s61 = sphi 0, %s47
    %s67 = sphi 0, %s69
    %s70 = sphi 0, %s67
    %s71 = sphi 0, %s70
    %s87 = sphi 0, %s71
    %s93 = sphi 0, %s95
    %s96 = sphi 0, %s93
    %s97 = sphi 0, %s96
    %s113 = sphi 0, %s97
  $region4: #{gaex_forward.8} parent=0 // loop_header_branch
    %13 = sbr.rel (%p11) target = $region8
  $region5: #{gaex_forward.8} parent=0 // loop_body
    %s15 = ssub.s32 %s10, 1
    %s16 = ssub.s32 %s10, 2
    %s17 = sadd.s32 %s10, 1
    %s18 = ssub.s32 %s10, %s17
    %p19 = scmp.eq.s32.totalorder %s18, 0
    %s21 = sadd.s32 %s20, 1
    %s22 = scalar_select %p19, %s20, %s21
    %p25 = pneg %p19
    %p26 = scmp.eq.s32.totalorder %s10, 1
    %p27 = por %p25, %p26
    %p28 = scmp.ne.s32.totalorder %s20, %s23
    %p29 = scmp.eq.s32.totalorder %s10, 0
    %p30 = por %p28, %p29
    %p31 = scmp.ne.s32.totalorder %s20, %s23
    %p32 = scmp.eq.s32.totalorder %s15, 1
    %p33 = por %p31, %p32
    %p34 = scmp.ne.s32.totalorder %s23, %s24
    %p35 = scmp.eq.s32.totalorder %s15, 0
    %p36 = por %p34, %p35
    %p37 = scmp.ne.s32.totalorder %s23, %s24
    %p38 = scmp.eq.s32.totalorder %s16, 1
    %p39 = por %p37, %p38
    %p41 = scmp.ne.s32.totalorder %s24, %s40
    %p42 = scmp.eq.s32.totalorder %s16, 0
    %p43 = por %p41, %p42
    %s45 = sadd.s32 %s44, 1
    %p48 = scmp.eq.s32.totalorder %s10, 1
    %p49 = scmp.ne.s32.totalorder %s44, %s46
    %p50 = scmp.eq.s32.totalorder %s10, 0
    %p51 = por %p49, %p50
    %p52 = scmp.ne.s32.totalorder %s44, %s46
    %p53 = scmp.eq.s32.totalorder %s15, 1
    %p54 = por %p52, %p53
    %p55 = scmp.ne.s32.totalorder %s46, %s47
    %p56 = scmp.eq.s32.totalorder %s15, 0
    %p57 = por %p55, %p56
    %p58 = scmp.ne.s32.totalorder %s46, %s47
    %p59 = scmp.eq.s32.totalorder %s16, 1
    %p60 = por %p58, %p59
    %p62 = scmp.ne.s32.totalorder %s47, %s61
    %p63 = scmp.eq.s32.totalorder %s16, 0
    %p64 = por %p62, %p63
    %s65 = ssub.s32 %s10, %s17
    %p66 = scmp.eq.s32.totalorder %s65, 0
    %s68 = sadd.s32 %s67, 1
    %s69 = scalar_select %p66, %s67, %s68
    %p72 = pneg %p66
    %p73 = scmp.eq.s32.totalorder %s10, 1
    %p74 = por %p72, %p73
    %p75 = scmp.ne.s32.totalorder %s67, %s70
    %p76 = scmp.eq.s32.totalorder %s10, 0
    %p77 = por %p75, %p76
    %p78 = scmp.ne.s32.totalorder %s67, %s70
    %p79 = scmp.eq.s32.totalorder %s15, 1
    %p80 = por %p78, %p79
    %p81 = scmp.ne.s32.totalorder %s70, %s71
    %p82 = scmp.eq.s32.totalorder %s15, 0
    %p83 = por %p81, %p82
    %p84 = scmp.ne.s32.totalorder %s70, %s71
    %p85 = scmp.eq.s32.totalorder %s16, 1
    %p86 = por %p84, %p85
    %p88 = scmp.ne.s32.totalorder %s71, %s87
    %p89 = scmp.eq.s32.totalorder %s16, 0
    %p90 = por %p88, %p89
    %s91 = ssub.s32 %s10, %s17
    %p92 = scmp.eq.s32.totalorder %s91, 0
    %s94 = sadd.s32 %s93, 1
    %s95 = scalar_select %p92, %s93, %s94
    %p98 = pneg %p92
    %p99 = scmp.eq.s32.totalorder %s10, 1
    %p100 = por %p98, %p99
    %p101 = scmp.ne.s32.totalorder %s93, %s96
    %p102 = scmp.eq.s32.totalorder %s10, 0
    %p103 = por %p101, %p102
    %p104 = scmp.ne.s32.totalorder %s93, %s96
    %p105 = scmp.eq.s32.totalorder %s15, 1
    %p106 = por %p104, %p105
    %p107 = scmp.ne.s32.totalorder %s96, %s97
    %p108 = scmp.eq.s32.totalorder %s15, 0
    %p109 = por %p107, %p108
    %p110 = scmp.ne.s32.totalorder %s96, %s97
    %p111 = scmp.eq.s32.totalorder %s16, 1
    %p112 = por %p110, %p111
    %p114 = scmp.ne.s32.totalorder %s97, %s113
    %p115 = scmp.eq.s32.totalorder %s16, 0
    %p116 = por %p114, %p115
    %p117 = scmp.le.s32.totalorder 1, %s10
    %p118 = scmp.lt.s32.totalorder %s10, 3
    %p119 = pnand %p117, %p118
    %p120 = pneg %p119
    // Predicated region
    $region9: #{gaex_forward.8} parent=5 // pred_check
      _
    $region10: #{gaex_forward.8} parent=5 // pred_check_branch
      %122 = sbr.rel (%p119) target = $region12
    $region11: #{gaex_forward.8} parent=5 // pred_region
      %s123 = ssub.s32 %s10, 1
      // Predicated region
      $region13: #{gaex_forward.8} parent=11 // pred_check
        %p124 = pneg %p57
      $region14: #{gaex_forward.8} parent=11 // pred_check_branch
        %126 = sbr.rel (%p124) target = $region16
      $region15: #{gaex_forward.8} parent=11 // pred_region
        _
      $region16: #{gaex_forward.8} parent=11 // pred_fallthru
        _
    $region12: #{gaex_forward.8} parent=5 // pred_fallthru
      _
    %p127 = scmp.lt.s32.totalorder %s10, 2
    // Predicated region
    $region17: #{gaex_forward.8} parent=5 // pred_check
      %p128 = pneg %p127
    $region18: #{gaex_forward.8} parent=5 // pred_check_branch
      %130 = sbr.rel (%p128) target = $region20
    $region19: #{gaex_forward.8} parent=5 // pred_region
      // Predicated region
      $region21: #{gaex_forward.8} parent=19 // pred_check
        %p131 = pneg %p30
      $region22: #{gaex_forward.8} parent=19 // pred_check_branch
        %133 = sbr.rel (%p131) target = $region24
      $region23: #{gaex_forward.8} parent=19 // pred_region
        %s134 = smul.u32 32, %s10
        %p135 = scmp.lt.s32.totalorder %s134, 63
        %s136 = scalar_select %p135, %s134, 63
        %s137 = smul.addr %s136, 8
        %s138 = scalar_lea.vmem %s0, %s137
        %s139 = smul.u32 32, %s10
      $region24: #{gaex_forward.8} parent=19 // pred_fallthru
        _
    $region20: #{gaex_forward.8} parent=5 // pred_fallthru
      _
    %p140 = scmp.le.s32.totalorder 1, %s10
    %p141 = scmp.lt.s32.totalorder %s10, 3
    %p142 = pnand %p140, %p141
    %p143 = pneg %p142
    // Predicated region
    $region25: #{gaex_forward.8} parent=5 // pred_check
      _
    $region26: #{gaex_forward.8} parent=5 // pred_check_branch
      %145 = sbr.rel (%p142) target = $region28
    $region27: #{gaex_forward.8} parent=5 // pred_region
      %s146 = ssub.s32 %s10, 1
      %s147 = smul.u32 32, %s15
      %p148 = scmp.lt.s32.totalorder %s147, 63
      %s149 = scalar_select %p148, %s147, 63
      %s150 = smul.addr %s149, 8
      %s151 = scalar_lea.vmem %s0, %s150
      %p152 = pneg %p36
      %p153 = pneg %p33
      %p154 = pneg %p57
      %p155 = pneg %p54
      %p156 = pneg %p83
      %p157 = pneg %p80
      %s158 = smul.u32 32, %s15
      %p159 = scmp.lt.s32.totalorder %s158, 63
      %s160 = scalar_select %p159, %s158, 63
      %s161 = smul.addr %s160, 4
      %s162 = scalar_lea.vmem %s2, %s161
      %p163 = pneg %p109
      %p164 = pneg %p106
      %s165 = smul.u32 32, %s15
      %p166 = scmp.lt.s32.totalorder %s165, 63
      %s167 = scalar_select %p166, %s165, 63
      %s168 = smul.addr %s167, 8
      %s169 = scalar_lea.vmem %s3, %s168
      %s170 = smul.u32 32, %s15
      %p171 = scmp.lt.s32.totalorder %s170, 63
      %s172 = scalar_select %p171, %s170, 63
      %s173 = smul.addr %s172, 8
      %s174 = scalar_lea.vmem %s0, %s173
      %s175 = smul.u32 32, %s15
      %s176 = smul.u32 32, %s15
      %p177 = scmp.lt.s32.totalorder %s176, 63
      %s178 = scalar_select %p177, %s176, 63
      %s179 = smul.addr %s178, 4
      %s180 = scalar_lea.vmem %s2, %s179
      %s181 = smul.u32 32, %s15
      %s182 = smul.u32 32, %s15
      %p183 = scmp.lt.s32.totalorder %s182, 63
      %s184 = scalar_select %p183, %s182, 63
      %s185 = smul.addr %s184, 8
      %s186 = scalar_lea.vmem %s3, %s185
      %s187 = smul.u32 32, %s15
      %v188 = vld [vmem:[%s1] sm:$0xff]
      %v189 = vld [vmem:[%s1 + $0x8] sm:$0xff]
      %v190 = vld [vmem:[%s1 + $0x10] sm:$0xff]
      %v191 = vld [vmem:[%s1 + $0x18] sm:$0xff]
      %v192 = vld [vmem:[%s1 + $0x20] sm:$0xff]
      %v193 = vld [vmem:[%s1 + $0x28] sm:$0xff]
      %v194 = vld [vmem:[%s1 + $0x30] sm:$0xff]
      %v195 = vld [vmem:[%s1 + $0x38] sm:$0xff]
      %v196 = vld [vmem:[%s1 + $0x40] sm:$0xff]
      %v197 = vld [vmem:[%s1 + $0x48] sm:$0xff]
      %v198 = vld [vmem:[%s1 + $0x50] sm:$0xff]
      %v199 = vld [vmem:[%s1 + $0x58] sm:$0xff]
      %v200 = vld [vmem:[%s1 + $0x60] sm:$0xff]
      %v201 = vld [vmem:[%s1 + $0x68] sm:$0xff]
      %v202 = vld [vmem:[%s1 + $0x70] sm:$0xff]
      %v203 = vld [vmem:[%s1 + $0x78] sm:$0xff]
      %v204 = vld [vmem:[%s174] sm:$0xff]
      %v205 = vld [vmem:[%s174 + $0x8] sm:$0xff]
      %v206 = vld [vmem:[%s174 + $0x10] sm:$0xff]
      %v207 = vld [vmem:[%s174 + $0x18] sm:$0xff]
      %v208 = vld [vmem:[%s174 + $0x20] sm:$0xff]
      %v209 = vld [vmem:[%s174 + $0x28] sm:$0xff]
      %v210 = vld [vmem:[%s174 + $0x30] sm:$0xff]
      %v211 = vld [vmem:[%s174 + $0x38] sm:$0xff]
      %v212 = vld [vmem:[%s174 + $0x40] sm:$0xff]
      %v213 = vld [vmem:[%s174 + $0x48] sm:$0xff]
      %v214 = vld [vmem:[%s174 + $0x50] sm:$0xff]
      %v215 = vld [vmem:[%s174 + $0x58] sm:$0xff]
      %v216 = vld [vmem:[%s174 + $0x60] sm:$0xff]
      %v217 = vld [vmem:[%s174 + $0x68] sm:$0xff]
      %v218 = vld [vmem:[%s174 + $0x70] sm:$0xff]
      %v219 = vld [vmem:[%s174 + $0x78] sm:$0xff]
      %v220 = vld [vmem:[%s174 + $0x80] sm:$0xff]
      %v221 = vld [vmem:[%s174 + $0x88] sm:$0xff]
      %v222 = vld [vmem:[%s174 + $0x90] sm:$0xff]
      %v223 = vld [vmem:[%s174 + $0x98] sm:$0xff]
      %v224 = vld [vmem:[%s174 + $0xa0] sm:$0xff]
      %v225 = vld [vmem:[%s174 + $0xa8] sm:$0xff]
      %v226 = vld [vmem:[%s174 + $0xb0] sm:$0xff]
      %v227 = vld [vmem:[%s174 + $0xb8] sm:$0xff]
      %v228 = vld [vmem:[%s174 + $0xc0] sm:$0xff]
      %v229 = vld [vmem:[%s174 + $0xc8] sm:$0xff]
      %v230 = vld [vmem:[%s174 + $0xd0] sm:$0xff]
      %v231 = vld [vmem:[%s174 + $0xd8] sm:$0xff]
      %v232 = vld [vmem:[%s174 + $0xe0] sm:$0xff]
      %v233 = vld [vmem:[%s174 + $0xe8] sm:$0xff]
      %v234 = vld [vmem:[%s174 + $0xf0] sm:$0xff]
      %v235 = vld [vmem:[%s174 + $0xf8] sm:$0xff]
      %v236 = vpack.c.bf16 %v205, %v204
      %v237 = vpack.c.bf16 %v207, %v206
      %v238 = vpack.c.bf16 %v209, %v208
      %v239 = vpack.c.bf16 %v211, %v210
      %v240 = vpack.c.bf16 %v213, %v212
      %v241 = vpack.c.bf16 %v215, %v214
      %v242 = vpack.c.bf16 %v217, %v216
      %v243 = vpack.c.bf16 %v219, %v218
      %v244 = vpack.c.bf16 %v221, %v220
      %v245 = vpack.c.bf16 %v223, %v222
      %v246 = vpack.c.bf16 %v225, %v224
      %v247 = vpack.c.bf16 %v227, %v226
      %v248 = vpack.c.bf16 %v229, %v228
      %v249 = vpack.c.bf16 %v231, %v230
      %v250 = vpack.c.bf16 %v233, %v232
      %v251 = vpack.c.bf16 %v235, %v234
      %v268 = vunpack.c.l.b16 %v188
      %v269 = vunpack.c.h.b16 %v188
      %v270 = vunpack.c.l.b16 %v189
      %v271 = vunpack.c.h.b16 %v189
      %v272 = vunpack.c.l.b16 %v190
      %v273 = vunpack.c.h.b16 %v190
      %v274 = vunpack.c.l.b16 %v191
      %v275 = vunpack.c.h.b16 %v191
      %v276 = vunpack.c.l.b16 %v192
      %v277 = vunpack.c.h.b16 %v192
      %v278 = vunpack.c.l.b16 %v193
      %v279 = vunpack.c.h.b16 %v193
      %v280 = vunpack.c.l.b16 %v194
      %v281 = vunpack.c.h.b16 %v194
      %v282 = vunpack.c.l.b16 %v195
      %v283 = vunpack.c.h.b16 %v195
      %v284 = vunpack.c.l.b16 %v196
      %v285 = vunpack.c.h.b16 %v196
      %v286 = vunpack.c.l.b16 %v197
      %v287 = vunpack.c.h.b16 %v197
      %v288 = vunpack.c.l.b16 %v198
      %v289 = vunpack.c.h.b16 %v198
      %v290 = vunpack.c.l.b16 %v199
      %v291 = vunpack.c.h.b16 %v199
      %v292 = vunpack.c.l.b16 %v200
      %v293 = vunpack.c.h.b16 %v200
      %v294 = vunpack.c.l.b16 %v201
      %v295 = vunpack.c.h.b16 %v201
      %v296 = vunpack.c.l.b16 %v202
      %v297 = vunpack.c.h.b16 %v202
      %v298 = vunpack.c.l.b16 %v203
      %v299 = vunpack.c.h.b16 %v203
      %v300 = vpack.c.b16 %v270, %v268
      %v301 = vpack.c.b16 %v271, %v269
      %v302 = vpack.c.b16 %v274, %v272
      %v303 = vpack.c.b16 %v275, %v273
      %v304 = vpack.c.b16 %v278, %v276
      %v305 = vpack.c.b16 %v279, %v277
      %v306 = vpack.c.b16 %v282, %v280
      %v307 = vpack.c.b16 %v283, %v281
      %v308 = vpack.c.b16 %v286, %v284
      %v309 = vpack.c.b16 %v287, %v285
      %v310 = vpack.c.b16 %v290, %v288
      %v311 = vpack.c.b16 %v291, %v289
      %v312 = vpack.c.b16 %v294, %v292
      %v313 = vpack.c.b16 %v295, %v293
      %v314 = vpack.c.b16 %v298, %v296
      %v315 = vpack.c.b16 %v299, %v297
      %332 = vmatpush.bf16.msra.mxu0 %v314
      %333 = vmatpush.bf16.msra.mxu0 %v312
      %334 = vmatpush.bf16.msra.mxu0 %v310
      %335 = vmatpush.bf16.msra.mxu0 %v308
      %336 = vmatpush.bf16.msra.mxu0 %v306
      %337 = vmatpush.bf16.msra.mxu0 %v304
      %338 = vmatpush.bf16.msra.mxu0 %v302
      %339 = vmatpush.bf16.msra.mxu0 %v300
      %340 = vmatmul.bf16.gmra.mxu0 %v236
      %v341 = vpop.f32.mrf.mxu0
      %v342 = vadd.f32 0.0, %v341
      %v343 = vpop.f32.mrf.mxu0
      %v344 = vadd.f32 0.0, %v343
      %345 = vmatmul.bf16.gmra.mxu0 %v237
      %v346 = vpop.f32.mrf.mxu0
      %v347 = vadd.f32 0.0, %v346
      %v348 = vpop.f32.mrf.mxu0
      %v349 = vadd.f32 0.0, %v348
      %350 = vmatmul.bf16.gmra.mxu0 %v238
      %v351 = vpop.f32.mrf.mxu0
      %v352 = vadd.f32 0.0, %v351
      %v353 = vpop.f32.mrf.mxu0
      %v354 = vadd.f32 0.0, %v353
      %355 = vmatmul.bf16.gmra.mxu0 %v239
      %v356 = vpop.f32.mrf.mxu0
      %v357 = vadd.f32 0.0, %v356
      %v358 = vpop.f32.mrf.mxu0
      %v359 = vadd.f32 0.0, %v358
      %360 = vmatmul.bf16.gmra.mxu0 %v240
      %v361 = vpop.f32.mrf.mxu0
      %v362 = vadd.f32 0.0, %v361
      %v363 = vpop.f32.mrf.mxu0
      %v364 = vadd.f32 0.0, %v363
      %365 = vmatmul.bf16.gmra.mxu0 %v241
      %v366 = vpop.f32.mrf.mxu0
      %v367 = vadd.f32 0.0, %v366
      %v368 = vpop.f32.mrf.mxu0
      %v369 = vadd.f32 0.0, %v368
      %370 = vmatmul.bf16.gmra.mxu0 %v242
      %v371 = vpop.f32.mrf.mxu0
      %v372 = vadd.f32 0.0, %v371
      %v373 = vpop.f32.mrf.mxu0
      %v374 = vadd.f32 0.0, %v373
      %375 = vmatmul.bf16.gmra.mxu0 %v243
      %v376 = vpop.f32.mrf.mxu0
      %v377 = vadd.f32 0.0, %v376
      %v378 = vpop.f32.mrf.mxu0
      %v379 = vadd.f32 0.0, %v378
      %380 = vmatmul.bf16.gmra.mxu0 %v244
      %v381 = vpop.f32.mrf.mxu0
      %v382 = vadd.f32 0.0, %v381
      %v383 = vpop.f32.mrf.mxu0
      %v384 = vadd.f32 0.0, %v383
      %385 = vmatmul.bf16.gmra.mxu0 %v245
      %v386 = vpop.f32.mrf.mxu0
      %v387 = vadd.f32 0.0, %v386
      %v388 = vpop.f32.mrf.mxu0
      %v389 = vadd.f32 0.0, %v388
      %390 = vmatmul.bf16.gmra.mxu0 %v246
      %v391 = vpop.f32.mrf.mxu0
      %v392 = vadd.f32 0.0, %v391
      %v393 = vpop.f32.mrf.mxu0
      %v394 = vadd.f32 0.0, %v393
      %395 = vmatmul.bf16.gmra.mxu0 %v247
      %v396 = vpop.f32.mrf.mxu0
      %v397 = vadd.f32 0.0, %v396
      %v398 = vpop.f32.mrf.mxu0
      %v399 = vadd.f32 0.0, %v398
      %400 = vmatmul.bf16.gmra.mxu0 %v248
      %v401 = vpop.f32.mrf.mxu0
      %v402 = vadd.f32 0.0, %v401
      %v403 = vpop.f32.mrf.mxu0
      %v404 = vadd.f32 0.0, %v403
      %405 = vmatmul.bf16.gmra.mxu0 %v249
      %v406 = vpop.f32.mrf.mxu0
      %v407 = vadd.f32 0.0, %v406
      %v408 = vpop.f32.mrf.mxu0
      %v409 = vadd.f32 0.0, %v408
      %410 = vmatmul.bf16.gmra.mxu0 %v250
      %v411 = vpop.f32.mrf.mxu0
      %v412 = vadd.f32 0.0, %v411
      %v413 = vpop.f32.mrf.mxu0
      %v414 = vadd.f32 0.0, %v413
      %415 = vmatmul.bf16.gmra.mxu0 %v251
      %v416 = vpop.f32.mrf.mxu0
      %v417 = vadd.f32 0.0, %v416
      %v418 = vpop.f32.mrf.mxu0
      %v419 = vadd.f32 0.0, %v418
      %420 = vdwg.mxu0
      %421 = vmatpush.bf16.msra.mxu0 %v315
      %422 = vmatpush.bf16.msra.mxu0 %v313
      %423 = vmatpush.bf16.msra.mxu0 %v311
      %424 = vmatpush.bf16.msra.mxu0 %v309
      %425 = vmatpush.bf16.msra.mxu0 %v307
      %426 = vmatpush.bf16.msra.mxu0 %v305
      %427 = vmatpush.bf16.msra.mxu0 %v303
      %428 = vmatpush.bf16.msra.mxu0 %v301
      %429 = vmatmul.bf16.gmra.mxu0 %v236
      %v430 = vpop.f32.mrf.mxu0
      %v431 = vadd.f32 0.0, %v430
      %v432 = vpop.f32.mrf.mxu0
      %v433 = vadd.f32 0.0, %v432
      %434 = vmatmul.bf16.gmra.mxu0 %v237
      %v435 = vpop.f32.mrf.mxu0
      %v436 = vadd.f32 0.0, %v435
      %v437 = vpop.f32.mrf.mxu0
      %v438 = vadd.f32 0.0, %v437
      %439 = vmatmul.bf16.gmra.mxu0 %v238
      %v440 = vpop.f32.mrf.mxu0
      %v441 = vadd.f32 0.0, %v440
      %v442 = vpop.f32.mrf.mxu0
      %v443 = vadd.f32 0.0, %v442
      %444 = vmatmul.bf16.gmra.mxu0 %v239
      %v445 = vpop.f32.mrf.mxu0
      %v446 = vadd.f32 0.0, %v445
      %v447 = vpop.f32.mrf.mxu0
      %v448 = vadd.f32 0.0, %v447
      %449 = vmatmul.bf16.gmra.mxu0 %v240
      %v450 = vpop.f32.mrf.mxu0
      %v451 = vadd.f32 0.0, %v450
      %v452 = vpop.f32.mrf.mxu0
      %v453 = vadd.f32 0.0, %v452
      %454 = vmatmul.bf16.gmra.mxu0 %v241
      %v455 = vpop.f32.mrf.mxu0
      %v456 = vadd.f32 0.0, %v455
      %v457 = vpop.f32.mrf.mxu0
      %v458 = vadd.f32 0.0, %v457
      %459 = vmatmul.bf16.gmra.mxu0 %v242
      %v460 = vpop.f32.mrf.mxu0
      %v461 = vadd.f32 0.0, %v460
      %v462 = vpop.f32.mrf.mxu0
      %v463 = vadd.f32 0.0, %v462
      %464 = vmatmul.bf16.gmra.mxu0 %v243
      %v465 = vpop.f32.mrf.mxu0
      %v466 = vadd.f32 0.0, %v465
      %v467 = vpop.f32.mrf.mxu0
      %v468 = vadd.f32 0.0, %v467
      %469 = vmatmul.bf16.gmra.mxu0 %v244
      %v470 = vpop.f32.mrf.mxu0
      %v471 = vadd.f32 0.0, %v470
      %v472 = vpop.f32.mrf.mxu0
      %v473 = vadd.f32 0.0, %v472
      %474 = vmatmul.bf16.gmra.mxu0 %v245
      %v475 = vpop.f32.mrf.mxu0
      %v476 = vadd.f32 0.0, %v475
      %v477 = vpop.f32.mrf.mxu0
      %v478 = vadd.f32 0.0, %v477
      %479 = vmatmul.bf16.gmra.mxu0 %v246
      %v480 = vpop.f32.mrf.mxu0
      %v481 = vadd.f32 0.0, %v480
      %v482 = vpop.f32.mrf.mxu0
      %v483 = vadd.f32 0.0, %v482
      %484 = vmatmul.bf16.gmra.mxu0 %v247
      %v485 = vpop.f32.mrf.mxu0
      %v486 = vadd.f32 0.0, %v485
      %v487 = vpop.f32.mrf.mxu0
      %v488 = vadd.f32 0.0, %v487
      %489 = vmatmul.bf16.gmra.mxu0 %v248
      %v490 = vpop.f32.mrf.mxu0
      %v491 = vadd.f32 0.0, %v490
      %v492 = vpop.f32.mrf.mxu0
      %v493 = vadd.f32 0.0, %v492
      %494 = vmatmul.bf16.gmra.mxu0 %v249
      %v495 = vpop.f32.mrf.mxu0
      %v496 = vadd.f32 0.0, %v495
      %v497 = vpop.f32.mrf.mxu0
      %v498 = vadd.f32 0.0, %v497
      %499 = vmatmul.bf16.gmra.mxu0 %v250
      %v500 = vpop.f32.mrf.mxu0
      %v501 = vadd.f32 0.0, %v500
      %v502 = vpop.f32.mrf.mxu0
      %v503 = vadd.f32 0.0, %v502
      %504 = vmatmul.bf16.gmra.mxu0 %v251
      %v505 = vpop.f32.mrf.mxu0
      %v506 = vadd.f32 0.0, %v505
      %v507 = vpop.f32.mrf.mxu0
      %v508 = vadd.f32 0.0, %v507
      %509 = vdwg.mxu0
      %v510 = vpack.c.bf16 %v342, %v342
      %v511 = vpack.c.bf16 %v344, %v344
      %v512 = vpack.c.bf16 %v347, %v347
      %v513 = vpack.c.bf16 %v349, %v349
      %v514 = vpack.c.bf16 %v352, %v352
      %v515 = vpack.c.bf16 %v354, %v354
      %v516 = vpack.c.bf16 %v357, %v357
      %v517 = vpack.c.bf16 %v359, %v359
      %v518 = vpack.c.bf16 %v362, %v362
      %v519 = vpack.c.bf16 %v364, %v364
      %v520 = vpack.c.bf16 %v367, %v367
      %v521 = vpack.c.bf16 %v369, %v369
      %v522 = vpack.c.bf16 %v372, %v372
      %v523 = vpack.c.bf16 %v374, %v374
      %v524 = vpack.c.bf16 %v377, %v377
      %v525 = vpack.c.bf16 %v379, %v379
      %v526 = vpack.c.bf16 %v382, %v382
      %v527 = vpack.c.bf16 %v384, %v384
      %v528 = vpack.c.bf16 %v387, %v387
      %v529 = vpack.c.bf16 %v389, %v389
      %v530 = vpack.c.bf16 %v392, %v392
      %v531 = vpack.c.bf16 %v394, %v394
      %v532 = vpack.c.bf16 %v397, %v397
      %v533 = vpack.c.bf16 %v399, %v399
      %v534 = vpack.c.bf16 %v402, %v402
      %v535 = vpack.c.bf16 %v404, %v404
      %v536 = vpack.c.bf16 %v407, %v407
      %v537 = vpack.c.bf16 %v409, %v409
      %v538 = vpack.c.bf16 %v412, %v412
      %v539 = vpack.c.bf16 %v414, %v414
      %v540 = vpack.c.bf16 %v417, %v417
      %v541 = vpack.c.bf16 %v419, %v419
      %542 = vst [vmem:[%s180] sm:$0xf] %v510
      %543 = vst [vmem:[%s180 + $0x4] sm:$0xf] %v511
      %544 = vst [vmem:[%s180 + $0x8] sm:$0xf] %v512
      %545 = vst [vmem:[%s180 + $0xc] sm:$0xf] %v513
      %546 = vst [vmem:[%s180 + $0x10] sm:$0xf] %v514
      %547 = vst [vmem:[%s180 + $0x14] sm:$0xf] %v515
      %548 = vst [vmem:[%s180 + $0x18] sm:$0xf] %v516
      %549 = vst [vmem:[%s180 + $0x1c] sm:$0xf] %v517
      %550 = vst [vmem:[%s180 + $0x20] sm:$0xf] %v518
      %551 = vst [vmem:[%s180 + $0x24] sm:$0xf] %v519
      %552 = vst [vmem:[%s180 + $0x28] sm:$0xf] %v520
      %553 = vst [vmem:[%s180 + $0x2c] sm:$0xf] %v521
      %554 = vst [vmem:[%s180 + $0x30] sm:$0xf] %v522
      %555 = vst [vmem:[%s180 + $0x34] sm:$0xf] %v523
      %556 = vst [vmem:[%s180 + $0x38] sm:$0xf] %v524
      %557 = vst [vmem:[%s180 + $0x3c] sm:$0xf] %v525
      %558 = vst [vmem:[%s180 + $0x40] sm:$0xf] %v526
      %559 = vst [vmem:[%s180 + $0x44] sm:$0xf] %v527
      %560 = vst [vmem:[%s180 + $0x48] sm:$0xf] %v528
      %561 = vst [vmem:[%s180 + $0x4c] sm:$0xf] %v529
      %562 = vst [vmem:[%s180 + $0x50] sm:$0xf] %v530
      %563 = vst [vmem:[%s180 + $0x54] sm:$0xf] %v531
      %564 = vst [vmem:[%s180 + $0x58] sm:$0xf] %v532
      %565 = vst [vmem:[%s180 + $0x5c] sm:$0xf] %v533
      %566 = vst [vmem:[%s180 + $0x60] sm:$0xf] %v534
      %567 = vst [vmem:[%s180 + $0x64] sm:$0xf] %v535
      %568 = vst [vmem:[%s180 + $0x68] sm:$0xf] %v536
      %569 = vst [vmem:[%s180 + $0x6c] sm:$0xf] %v537
      %570 = vst [vmem:[%s180 + $0x70] sm:$0xf] %v538
      %571 = vst [vmem:[%s180 + $0x74] sm:$0xf] %v539
      %572 = vst [vmem:[%s180 + $0x78] sm:$0xf] %v540
      %573 = vst [vmem:[%s180 + $0x7c] sm:$0xf] %v541
      %574 = vst [vmem:[%s186] sm:$0xff] %v431
      %575 = vst [vmem:[%s186 + $0x8] sm:$0xff] %v433
      %576 = vst [vmem:[%s186 + $0x10] sm:$0xff] %v436
      %577 = vst [vmem:[%s186 + $0x18] sm:$0xff] %v438
      %578 = vst [vmem:[%s186 + $0x20] sm:$0xff] %v441
      %579 = vst [vmem:[%s186 + $0x28] sm:$0xff] %v443
      %580 = vst [vmem:[%s186 + $0x30] sm:$0xff] %v446
      %581 = vst [vmem:[%s186 + $0x38] sm:$0xff] %v448
      %582 = vst [vmem:[%s186 + $0x40] sm:$0xff] %v451
      %583 = vst [vmem:[%s186 + $0x48] sm:$0xff] %v453
      %584 = vst [vmem:[%s186 + $0x50] sm:$0xff] %v456
      %585 = vst [vmem:[%s186 + $0x58] sm:$0xff] %v458
      %586 = vst [vmem:[%s186 + $0x60] sm:$0xff] %v461
      %587 = vst [vmem:[%s186 + $0x68] sm:$0xff] %v463
      %588 = vst [vmem:[%s186 + $0x70] sm:$0xff] %v466
      %589 = vst [vmem:[%s186 + $0x78] sm:$0xff] %v468
      %590 = vst [vmem:[%s186 + $0x80] sm:$0xff] %v471
      %591 = vst [vmem:[%s186 + $0x88] sm:$0xff] %v473
      %592 = vst [vmem:[%s186 + $0x90] sm:$0xff] %v476
      %593 = vst [vmem:[%s186 + $0x98] sm:$0xff] %v478
      %594 = vst [vmem:[%s186 + $0xa0] sm:$0xff] %v481
      %595 = vst [vmem:[%s186 + $0xa8] sm:$0xff] %v483
      %596 = vst [vmem:[%s186 + $0xb0] sm:$0xff] %v486
      %597 = vst [vmem:[%s186 + $0xb8] sm:$0xff] %v488
      %598 = vst [vmem:[%s186 + $0xc0] sm:$0xff] %v491
      %599 = vst [vmem:[%s186 + $0xc8] sm:$0xff] %v493
      %600 = vst [vmem:[%s186 + $0xd0] sm:$0xff] %v496
      %601 = vst [vmem:[%s186 + $0xd8] sm:$0xff] %v498
      %602 = vst [vmem:[%s186 + $0xe0] sm:$0xff] %v501
      %603 = vst [vmem:[%s186 + $0xe8] sm:$0xff] %v503
      %604 = vst [vmem:[%s186 + $0xf0] sm:$0xff] %v506
      %605 = vst [vmem:[%s186 + $0xf8] sm:$0xff] %v508
      %s606 = smul.u32 32, %s15
      %p607 = scmp.lt.s32.totalorder %s606, 63
      %s608 = scalar_select %p607, %s606, 63
      %s609 = smul.addr %s608, 4
      %s610 = scalar_lea.vmem %s2, %s609
      %s611 = smul.u32 32, %s15
      %p612 = scmp.lt.s32.totalorder %s611, 63
      %s613 = scalar_select %p612, %s611, 63
      %s614 = smul.addr %s613, 8
      %s615 = scalar_lea.vmem %s3, %s614
      // Predicated region
      $region29: #{gaex_forward.8} parent=27 // pred_check
        %p616 = pneg %p80
      $region30: #{gaex_forward.8} parent=27 // pred_check_branch
        %618 = sbr.rel (%p616) target = $region32
      $region31: #{gaex_forward.8} parent=27 // pred_region
        %s619 = smul.u32 32, %s15
      $region32: #{gaex_forward.8} parent=27 // pred_fallthru
        _
      // Predicated region
      $region33: #{gaex_forward.8} parent=27 // pred_check
        %p620 = pneg %p106
      $region34: #{gaex_forward.8} parent=27 // pred_check_branch
        %622 = sbr.rel (%p620) target = $region36
      $region35: #{gaex_forward.8} parent=27 // pred_region
        %s623 = smul.u32 32, %s15
      $region36: #{gaex_forward.8} parent=27 // pred_fallthru
        _
    $region28: #{gaex_forward.8} parent=5 // pred_fallthru
      _
    %p624 = scmp.le.s32.totalorder 2, %s10
    // Predicated region
    $region37: #{gaex_forward.8} parent=5 // pred_check
      %p625 = pneg %p624
    $region38: #{gaex_forward.8} parent=5 // pred_check_branch
      %627 = sbr.rel (%p625) target = $region40
    $region39: #{gaex_forward.8} parent=5 // pred_region
      %s628 = ssub.s32 %s10, 2
      // Predicated region
      $region41: #{gaex_forward.8} parent=39 // pred_check
        %p629 = pneg %p86
      $region42: #{gaex_forward.8} parent=39 // pred_check_branch
        %631 = sbr.rel (%p629) target = $region44
      $region43: #{gaex_forward.8} parent=39 // pred_region
        %s632 = smul.u32 32, %s16
        %p633 = scmp.lt.s32.totalorder %s632, 63
        %s634 = scalar_select %p633, %s632, 63
        %s635 = smul.addr %s634, 4
        %s636 = scalar_lea.vmem %s2, %s635
      $region44: #{gaex_forward.8} parent=39 // pred_fallthru
        _
      // Predicated region
      $region45: #{gaex_forward.8} parent=39 // pred_check
        %p637 = pneg %p112
      $region46: #{gaex_forward.8} parent=39 // pred_check_branch
        %639 = sbr.rel (%p637) target = $region48
      $region47: #{gaex_forward.8} parent=39 // pred_region
        %s640 = smul.u32 32, %s16
        %p641 = scmp.lt.s32.totalorder %s640, 63
        %s642 = scalar_select %p641, %s640, 63
        %s643 = smul.addr %s642, 8
        %s644 = scalar_lea.vmem %s3, %s643
      $region48: #{gaex_forward.8} parent=39 // pred_fallthru
        _
    $region40: #{gaex_forward.8} parent=5 // pred_fallthru
      _
  $region6: #{gaex_forward.8} parent=0 // loop_footer
    %s14 = sadd.s32 1, %s10
  $region7: #{gaex_forward.8} parent=0 // loop_footer_branch
    %9 = sbr.rel target = $region3
  $region8: #{gaex_forward.8} parent=0 // loop_exit
    _

// kernel: gaex_forward.14
$region0: #{gaex_forward.14}
  #allocation0 [shape = 'u32[]', space=smem, size = 0x4, offset = 0x4, fixed_abs, tag = 'smem constant byte address 0x4 - core index']
  #allocation1 [shape = 'u32[72,128]{1,0:T(1,128)}', space=vmem, size = 0x9000, scoped, tag = 'internal scratch']
  %s0 = inlined_call_operand.vmem [shape: f32[512,128], index: 0, kind: input, shape index: {}]
  %s1 = inlined_call_operand.vmem [shape: f32[512,128], index: 1, kind: output, shape index: {}]
  %s2 = sld [smem:[#allocation0]]
  $region37: #{gaex_forward.14} parent=0
    _
  %s4 = ssub.s32 1, %s2
  %s5 = scalar_select 0, %s4, %s2
  loop: start=0, step=1, limit=4
  $region2: #{gaex_forward.14} parent=0 // loop_pre_header
    _
  $region3: #{gaex_forward.14} parent=0 // loop_header
    %s7 = sphi 0, %s11
    %p8 = scmp.ge.s32.totalorder %s7, 4
    %s17 = sphi 0, %s19
    %s20 = sphi 0, %s17
    %s21 = sphi 0, %s20
    %s37 = sphi 0, %s21
    %s43 = sphi 0, %s45
    %s46 = sphi 0, %s43
    %s47 = sphi 0, %s46
    %s63 = sphi 0, %s47
  $region4: #{gaex_forward.14} parent=0 // loop_header_branch
    %10 = sbr.rel (%p8) target = $region8
  $region5: #{gaex_forward.14} parent=0 // loop_body
    %s12 = ssub.s32 %s7, 1
    %s13 = ssub.s32 %s7, 2
    %s14 = sadd.s32 %s7, 1
    %s15 = ssub.s32 %s7, %s14
    %p16 = scmp.eq.s32.totalorder %s15, 0
    %s18 = sadd.s32 %s17, 1
    %s19 = scalar_select %p16, %s17, %s18
    %p22 = pneg %p16
    %p23 = scmp.eq.s32.totalorder %s7, 1
    %p24 = por %p22, %p23
    %p25 = scmp.ne.s32.totalorder %s17, %s20
    %p26 = scmp.eq.s32.totalorder %s7, 0
    %p27 = por %p25, %p26
    %p28 = scmp.ne.s32.totalorder %s17, %s20
    %p29 = scmp.eq.s32.totalorder %s12, 1
    %p30 = por %p28, %p29
    %p31 = scmp.ne.s32.totalorder %s20, %s21
    %p32 = scmp.eq.s32.totalorder %s12, 0
    %p33 = por %p31, %p32
    %p34 = scmp.ne.s32.totalorder %s20, %s21
    %p35 = scmp.eq.s32.totalorder %s13, 1
    %p36 = por %p34, %p35
    %p38 = scmp.ne.s32.totalorder %s21, %s37
    %p39 = scmp.eq.s32.totalorder %s13, 0
    %p40 = por %p38, %p39
    %s41 = ssub.s32 %s7, %s14
    %p42 = scmp.eq.s32.totalorder %s41, 0
    %s44 = sadd.s32 %s43, 1
    %s45 = scalar_select %p42, %s43, %s44
    %p48 = pneg %p42
    %p49 = scmp.eq.s32.totalorder %s7, 1
    %p50 = por %p48, %p49
    %p51 = scmp.ne.s32.totalorder %s43, %s46
    %p52 = scmp.eq.s32.totalorder %s7, 0
    %p53 = por %p51, %p52
    %p54 = scmp.ne.s32.totalorder %s43, %s46
    %p55 = scmp.eq.s32.totalorder %s12, 1
    %p56 = por %p54, %p55
    %p57 = scmp.ne.s32.totalorder %s46, %s47
    %p58 = scmp.eq.s32.totalorder %s12, 0
    %p59 = por %p57, %p58
    %p60 = scmp.ne.s32.totalorder %s46, %s47
    %p61 = scmp.eq.s32.totalorder %s13, 1
    %p62 = por %p60, %p61
    %p64 = scmp.ne.s32.totalorder %s47, %s63
    %p65 = scmp.eq.s32.totalorder %s13, 0
    %p66 = por %p64, %p65
    %p67 = scmp.le.s32.totalorder 1, %s7
    %p68 = scmp.lt.s32.totalorder %s7, 3
    %p69 = pnand %p67, %p68
    %p70 = pneg %p69
    // Predicated region
    $region9: #{gaex_forward.14} parent=5 // pred_check
      _
    $region10: #{gaex_forward.14} parent=5 // pred_check_branch
      %72 = sbr.rel (%p69) target = $region12
    $region11: #{gaex_forward.14} parent=5 // pred_region
      %s73 = ssub.s32 %s7, 1
    $region12: #{gaex_forward.14} parent=5 // pred_fallthru
      _
    %p74 = scmp.lt.s32.totalorder %s7, 2
    // Predicated region
    $region13: #{gaex_forward.14} parent=5 // pred_check
      %p75 = pneg %p74
    $region14: #{gaex_forward.14} parent=5 // pred_check_branch
      %77 = sbr.rel (%p75) target = $region16
    $region15: #{gaex_forward.14} parent=5 // pred_region
      // Predicated region
      $region17: #{gaex_forward.14} parent=15 // pred_check
        %p78 = pneg %p27
      $region18: #{gaex_forward.14} parent=15 // pred_check_branch
        %80 = sbr.rel (%p78) target = $region20
      $region19: #{gaex_forward.14} parent=15 // pred_region
        %s81 = smul.u32 32, %s7
        %p82 = scmp.lt.s32.totalorder %s81, 63
        %s83 = scalar_select %p82, %s81, 63
        %s84 = smul.addr %s83, 8
        %s85 = scalar_lea.vmem %s0, %s84
        %s86 = smul.u32 32, %s7
      $region20: #{gaex_forward.14} parent=15 // pred_fallthru
        _
    $region16: #{gaex_forward.14} parent=5 // pred_fallthru
      _
    %p87 = scmp.le.s32.totalorder 1, %s7
    %p88 = scmp.lt.s32.totalorder %s7, 3
    %p89 = pnand %p87, %p88
    %p90 = pneg %p89
    // Predicated region
    $region21: #{gaex_forward.14} parent=5 // pred_check
      _
    $region22: #{gaex_forward.14} parent=5 // pred_check_branch
      %92 = sbr.rel (%p89) target = $region24
    $region23: #{gaex_forward.14} parent=5 // pred_region
      %s93 = ssub.s32 %s7, 1
      %s94 = smul.u32 32, %s12
      %p95 = scmp.lt.s32.totalorder %s94, 63
      %s96 = scalar_select %p95, %s94, 63
      %s97 = smul.addr %s96, 8
      %s98 = scalar_lea.vmem %s0, %s97
      %p99 = pneg %p33
      %p100 = pneg %p30
      %p101 = pneg %p59
      %p102 = pneg %p56
      %s103 = smul.u32 32, %s12
      %p104 = scmp.lt.s32.totalorder %s103, 63
      %s105 = scalar_select %p104, %s103, 63
      %s106 = smul.addr %s105, 8
      %s107 = scalar_lea.vmem %s1, %s106
      %s108 = smul.u32 32, %s12
      %p109 = scmp.lt.s32.totalorder %s108, 63
      %s110 = scalar_select %p109, %s108, 63
      %s111 = smul.addr %s110, 8
      %s112 = scalar_lea.vmem %s0, %s111
      %s113 = smul.u32 32, %s12
      %s114 = smul.u32 32, %s12
      %p115 = scmp.lt.s32.totalorder %s114, 63
      %s116 = scalar_select %p115, %s114, 63
      %s117 = smul.addr %s116, 8
      %s118 = scalar_lea.vmem %s1, %s117
      %s119 = smul.u32 32, %s12
      %v120 = vld [vmem:[%s112] sm:$0xff]
      %v121 = vld [vmem:[%s112 + $0x8] sm:$0xff]
      %v122 = vld [vmem:[%s112 + $0x10] sm:$0xff]
      %v123 = vld [vmem:[%s112 + $0x18] sm:$0xff]
      %v124 = vld [vmem:[%s112 + $0x20] sm:$0xff]
      %v125 = vld [vmem:[%s112 + $0x28] sm:$0xff]
      %v126 = vld [vmem:[%s112 + $0x30] sm:$0xff]
      %v127 = vld [vmem:[%s112 + $0x38] sm:$0xff]
      %v128 = vld [vmem:[%s112 + $0x40] sm:$0xff]
      %v129 = vld [vmem:[%s112 + $0x48] sm:$0xff]
      %v130 = vld [vmem:[%s112 + $0x50] sm:$0xff]
      %v131 = vld [vmem:[%s112 + $0x58] sm:$0xff]
      %v132 = vld [vmem:[%s112 + $0x60] sm:$0xff]
      %v133 = vld [vmem:[%s112 + $0x68] sm:$0xff]
      %v134 = vld [vmem:[%s112 + $0x70] sm:$0xff]
      %v135 = vld [vmem:[%s112 + $0x78] sm:$0xff]
      %v136 = vld [vmem:[%s112 + $0x80] sm:$0xff]
      %v137 = vld [vmem:[%s112 + $0x88] sm:$0xff]
      %v138 = vld [vmem:[%s112 + $0x90] sm:$0xff]
      %v139 = vld [vmem:[%s112 + $0x98] sm:$0xff]
      %v140 = vld [vmem:[%s112 + $0xa0] sm:$0xff]
      %v141 = vld [vmem:[%s112 + $0xa8] sm:$0xff]
      %v142 = vld [vmem:[%s112 + $0xb0] sm:$0xff]
      %v143 = vld [vmem:[%s112 + $0xb8] sm:$0xff]
      %v144 = vld [vmem:[%s112 + $0xc0] sm:$0xff]
      %v145 = vld [vmem:[%s112 + $0xc8] sm:$0xff]
      %v146 = vld [vmem:[%s112 + $0xd0] sm:$0xff]
      %v147 = vld [vmem:[%s112 + $0xd8] sm:$0xff]
      %v148 = vld [vmem:[%s112 + $0xe0] sm:$0xff]
      %v149 = vld [vmem:[%s112 + $0xe8] sm:$0xff]
      %v150 = vld [vmem:[%s112 + $0xf0] sm:$0xff]
      %v151 = vld [vmem:[%s112 + $0xf8] sm:$0xff]
      %v152 = vmul.f32 %v120, %v120
      %v153 = vmul.f32 %v121, %v121
      %v154 = vmul.f32 %v122, %v122
      %v155 = vmul.f32 %v123, %v123
      %v156 = vmul.f32 %v124, %v124
      %v157 = vmul.f32 %v125, %v125
      %v158 = vmul.f32 %v126, %v126
      %v159 = vmul.f32 %v127, %v127
      %v160 = vmul.f32 %v128, %v128
      %v161 = vmul.f32 %v129, %v129
      %v162 = vmul.f32 %v130, %v130
      %v163 = vmul.f32 %v131, %v131
      %v164 = vmul.f32 %v132, %v132
      %v165 = vmul.f32 %v133, %v133
      %v166 = vmul.f32 %v134, %v134
      %v167 = vmul.f32 %v135, %v135
      %v168 = vmul.f32 %v136, %v136
      %v169 = vmul.f32 %v137, %v137
      %v170 = vmul.f32 %v138, %v138
      %v171 = vmul.f32 %v139, %v139
      %v172 = vmul.f32 %v140, %v140
      %v173 = vmul.f32 %v141, %v141
      %v174 = vmul.f32 %v142, %v142
      %v175 = vmul.f32 %v143, %v143
      %v176 = vmul.f32 %v144, %v144
      %v177 = vmul.f32 %v145, %v145
      %v178 = vmul.f32 %v146, %v146
      %v179 = vmul.f32 %v147, %v147
      %v180 = vmul.f32 %v148, %v148
      %v181 = vmul.f32 %v149, %v149
      %v182 = vmul.f32 %v150, %v150
      %v183 = vmul.f32 %v151, %v151
      %184 = vadd.xlane.f32.xlu0 %v152
      %v185 = vpop.xlane.xlu0 %184
      %186 = vadd.xlane.f32.xlu0 %v153
      %v187 = vpop.xlane.xlu0 %186
      %188 = vadd.xlane.f32.xlu0 %v154
      %v189 = vpop.xlane.xlu0 %188
      %190 = vadd.xlane.f32.xlu0 %v155
      %v191 = vpop.xlane.xlu0 %190
      %192 = vadd.xlane.f32.xlu0 %v156
      %v193 = vpop.xlane.xlu0 %192
      %194 = vadd.xlane.f32.xlu0 %v157
      %v195 = vpop.xlane.xlu0 %194
      %196 = vadd.xlane.f32.xlu0 %v158
      %v197 = vpop.xlane.xlu0 %196
      %198 = vadd.xlane.f32.xlu0 %v159
      %v199 = vpop.xlane.xlu0 %198
      %200 = vadd.xlane.f32.xlu0 %v160
      %v201 = vpop.xlane.xlu0 %200
      %202 = vadd.xlane.f32.xlu0 %v161
      %v203 = vpop.xlane.xlu0 %202
      %204 = vadd.xlane.f32.xlu0 %v162
      %v205 = vpop.xlane.xlu0 %204
      %206 = vadd.xlane.f32.xlu0 %v163
      %v207 = vpop.xlane.xlu0 %206
      %208 = vadd.xlane.f32.xlu0 %v164
      %v209 = vpop.xlane.xlu0 %208
      %210 = vadd.xlane.f32.xlu0 %v165
      %v211 = vpop.xlane.xlu0 %210
      %212 = vadd.xlane.f32.xlu0 %v166
      %v213 = vpop.xlane.xlu0 %212
      %214 = vadd.xlane.f32.xlu0 %v167
      %v215 = vpop.xlane.xlu0 %214
      %216 = vadd.xlane.f32.xlu0 %v168
      %v217 = vpop.xlane.xlu0 %216
      %218 = vadd.xlane.f32.xlu0 %v169
      %v219 = vpop.xlane.xlu0 %218
      %220 = vadd.xlane.f32.xlu0 %v170
      %v221 = vpop.xlane.xlu0 %220
      %222 = vadd.xlane.f32.xlu0 %v171
      %v223 = vpop.xlane.xlu0 %222
      %224 = vadd.xlane.f32.xlu0 %v172
      %v225 = vpop.xlane.xlu0 %224
      %226 = vadd.xlane.f32.xlu0 %v173
      %v227 = vpop.xlane.xlu0 %226
      %228 = vadd.xlane.f32.xlu0 %v174
      %v229 = vpop.xlane.xlu0 %228
      %230 = vadd.xlane.f32.xlu0 %v175
      %v231 = vpop.xlane.xlu0 %230
      %232 = vadd.xlane.f32.xlu0 %v176
      %v233 = vpop.xlane.xlu0 %232
      %234 = vadd.xlane.f32.xlu0 %v177
      %v235 = vpop.xlane.xlu0 %234
      %236 = vadd.xlane.f32.xlu0 %v178
      %v237 = vpop.xlane.xlu0 %236
      %238 = vadd.xlane.f32.xlu0 %v179
      %v239 = vpop.xlane.xlu0 %238
      %240 = vadd.xlane.f32.xlu0 %v180
      %v241 = vpop.xlane.xlu0 %240
      %242 = vadd.xlane.f32.xlu0 %v181
      %v243 = vpop.xlane.xlu0 %242
      %244 = vadd.xlane.f32.xlu0 %v182
      %v245 = vpop.xlane.xlu0 %244
      %246 = vadd.xlane.f32.xlu0 %v183
      %v247 = vpop.xlane.xlu0 %246
      %v248 = vmax.f32 %v185, 1e-24
      %v249 = vmax.f32 %v187, 1e-24
      %v250 = vmax.f32 %v189, 1e-24
      %v251 = vmax.f32 %v191, 1e-24
      %v252 = vmax.f32 %v193, 1e-24
      %v253 = vmax.f32 %v195, 1e-24
      %v254 = vmax.f32 %v197, 1e-24
      %v255 = vmax.f32 %v199, 1e-24
      %v256 = vmax.f32 %v201, 1e-24
      %v257 = vmax.f32 %v203, 1e-24
      %v258 = vmax.f32 %v205, 1e-24
      %v259 = vmax.f32 %v207, 1e-24
      %v260 = vmax.f32 %v209, 1e-24
      %v261 = vmax.f32 %v211, 1e-24
      %v262 = vmax.f32 %v213, 1e-24
      %v263 = vmax.f32 %v215, 1e-24
      %v264 = vmax.f32 %v217, 1e-24
      %v265 = vmax.f32 %v219, 1e-24
      %v266 = vmax.f32 %v221, 1e-24
      %v267 = vmax.f32 %v223, 1e-24
      %v268 = vmax.f32 %v225, 1e-24
      %v269 = vmax.f32 %v227, 1e-24
      %v270 = vmax.f32 %v229, 1e-24
      %v271 = vmax.f32 %v231, 1e-24
      %v272 = vmax.f32 %v233, 1e-24
      %v273 = vmax.f32 %v235, 1e-24
      %v274 = vmax.f32 %v237, 1e-24
      %v275 = vmax.f32 %v239, 1e-24
      %v276 = vmax.f32 %v241, 1e-24
      %v277 = vmax.f32 %v243, 1e-24
      %v278 = vmax.f32 %v245, 1e-24
      %v279 = vmax.f32 %v247, 1e-24
      %v280 = vrsqrt.pop %v248
      %v281 = vmul.f32 %v280, %v248
      %v282 = vmul.f32 %v281, %v280
      %v283 = vmul.f32 0.5, %v282
      %v284 = vsub.f32 1.5, %v283
      %v285 = vmul.f32 %v280, %v284
      %vm286 = vweird.f32 %v248
      %vm287 = vweird.f32 %v280
      %vm288 = vmor %vm286, %vm287
      %v289 = vsel %vm288, %v280, %v285
      %v290 = vrsqrt.pop %v249
      %v291 = vmul.f32 %v290, %v249
      %v292 = vmul.f32 %v291, %v290
      %v293 = vmul.f32 0.5, %v292
      %v294 = vsub.f32 1.5, %v293
      %v295 = vmul.f32 %v290, %v294
      %vm296 = vweird.f32 %v249
      %vm297 = vweird.f32 %v290
      %vm298 = vmor %vm296, %vm297
      %v299 = vsel %vm298, %v290, %v295
      %v300 = vrsqrt.pop %v250
      %v301 = vmul.f32 %v300, %v250
      %v302 = vmul.f32 %v301, %v300
      %v303 = vmul.f32 0.5, %v302
      %v304 = vsub.f32 1.5, %v303
      %v305 = vmul.f32 %v300, %v304
      %vm306 = vweird.f32 %v250
      %vm307 = vweird.f32 %v300
      %vm308 = vmor %vm306, %vm307
      %v309 = vsel %vm308, %v300, %v305
      %v310 = vrsqrt.pop %v251
      %v311 = vmul.f32 %v310, %v251
      %v312 = vmul.f32 %v311, %v310
      %v313 = vmul.f32 0.5, %v312
      %v314 = vsub.f32 1.5, %v313
      %v315 = vmul.f32 %v310, %v314
      %vm316 = vweird.f32 %v251
      %vm317 = vweird.f32 %v310
      %vm318 = vmor %vm316, %vm317
      %v319 = vsel %vm318, %v310, %v315
      %v320 = vrsqrt.pop %v252
      %v321 = vmul.f32 %v320, %v252
      %v322 = vmul.f32 %v321, %v320
      %v323 = vmul.f32 0.5, %v322
      %v324 = vsub.f32 1.5, %v323
      %v325 = vmul.f32 %v320, %v324
      %vm326 = vweird.f32 %v252
      %vm327 = vweird.f32 %v320
      %vm328 = vmor %vm326, %vm327
      %v329 = vsel %vm328, %v320, %v325
      %v330 = vrsqrt.pop %v253
      %v331 = vmul.f32 %v330, %v253
      %v332 = vmul.f32 %v331, %v330
      %v333 = vmul.f32 0.5, %v332
      %v334 = vsub.f32 1.5, %v333
      %v335 = vmul.f32 %v330, %v334
      %vm336 = vweird.f32 %v253
      %vm337 = vweird.f32 %v330
      %vm338 = vmor %vm336, %vm337
      %v339 = vsel %vm338, %v330, %v335
      %v340 = vrsqrt.pop %v254
      %v341 = vmul.f32 %v340, %v254
      %v342 = vmul.f32 %v341, %v340
      %v343 = vmul.f32 0.5, %v342
      %v344 = vsub.f32 1.5, %v343
      %v345 = vmul.f32 %v340, %v344
      %vm346 = vweird.f32 %v254
      %vm347 = vweird.f32 %v340
      %vm348 = vmor %vm346, %vm347
      %v349 = vsel %vm348, %v340, %v345
      %v350 = vrsqrt.pop %v255
      %v351 = vmul.f32 %v350, %v255
      %v352 = vmul.f32 %v351, %v350
      %v353 = vmul.f32 0.5, %v352
      %v354 = vsub.f32 1.5, %v353
      %v355 = vmul.f32 %v350, %v354
      %vm356 = vweird.f32 %v255
      %vm357 = vweird.f32 %v350
      %vm358 = vmor %vm356, %vm357
      %v359 = vsel %vm358, %v350, %v355
      %v360 = vrsqrt.pop %v256
      %v361 = vmul.f32 %v360, %v256
      %v362 = vmul.f32 %v361, %v360
      %v363 = vmul.f32 0.5, %v362
      %v364 = vsub.f32 1.5, %v363
      %v365 = vmul.f32 %v360, %v364
      %vm366 = vweird.f32 %v256
      %vm367 = vweird.f32 %v360
      %vm368 = vmor %vm366, %vm367
      %v369 = vsel %vm368, %v360, %v365
      %v370 = vrsqrt.pop %v257
      %v371 = vmul.f32 %v370, %v257
      %v372 = vmul.f32 %v371, %v370
      %v373 = vmul.f32 0.5, %v372
      %v374 = vsub.f32 1.5, %v373
      %v375 = vmul.f32 %v370, %v374
      %vm376 = vweird.f32 %v257
      %vm377 = vweird.f32 %v370
      %vm378 = vmor %vm376, %vm377
      %v379 = vsel %vm378, %v370, %v375
      %v380 = vrsqrt.pop %v258
      %v381 = vmul.f32 %v380, %v258
      %v382 = vmul.f32 %v381, %v380
      %v383 = vmul.f32 0.5, %v382
      %v384 = vsub.f32 1.5, %v383
      %v385 = vmul.f32 %v380, %v384
      %vm386 = vweird.f32 %v258
      %vm387 = vweird.f32 %v380
      %vm388 = vmor %vm386, %vm387
      %v389 = vsel %vm388, %v380, %v385
      %v390 = vrsqrt.pop %v259
      %v391 = vmul.f32 %v390, %v259
      %v392 = vmul.f32 %v391, %v390
      %v393 = vmul.f32 0.5, %v392
      %v394 = vsub.f32 1.5, %v393
      %v395 = vmul.f32 %v390, %v394
      %vm396 = vweird.f32 %v259
      %vm397 = vweird.f32 %v390
      %vm398 = vmor %vm396, %vm397
      %v399 = vsel %vm398, %v390, %v395
      %v400 = vrsqrt.pop %v260
      %v401 = vmul.f32 %v400, %v260
      %v402 = vmul.f32 %v401, %v400
      %v403 = vmul.f32 0.5, %v402
      %v404 = vsub.f32 1.5, %v403
      %v405 = vmul.f32 %v400, %v404
      %vm406 = vweird.f32 %v260
      %vm407 = vweird.f32 %v400
      %vm408 = vmor %vm406, %vm407
      %v409 = vsel %vm408, %v400, %v405
      %v410 = vrsqrt.pop %v261
      %v411 = vmul.f32 %v410, %v261
      %v412 = vmul.f32 %v411, %v410
      %v413 = vmul.f32 0.5, %v412
      %v414 = vsub.f32 1.5, %v413
      %v415 = vmul.f32 %v410, %v414
      %vm416 = vweird.f32 %v261
      %vm417 = vweird.f32 %v410
      %vm418 = vmor %vm416, %vm417
      %v419 = vsel %vm418, %v410, %v415
      %v420 = vrsqrt.pop %v262
      %v421 = vmul.f32 %v420, %v262
      %v422 = vmul.f32 %v421, %v420
      %v423 = vmul.f32 0.5, %v422
      %v424 = vsub.f32 1.5, %v423
      %v425 = vmul.f32 %v420, %v424
      %vm426 = vweird.f32 %v262
      %vm427 = vweird.f32 %v420
      %vm428 = vmor %vm426, %vm427
      %v429 = vsel %vm428, %v420, %v425
      %v430 = vrsqrt.pop %v263
      %v431 = vmul.f32 %v430, %v263
      %v432 = vmul.f32 %v431, %v430
      %v433 = vmul.f32 0.5, %v432
      %v434 = vsub.f32 1.5, %v433
      %v435 = vmul.f32 %v430, %v434
      %vm436 = vweird.f32 %v263
      %vm437 = vweird.f32 %v430
      %vm438 = vmor %vm436, %vm437
      %v439 = vsel %vm438, %v430, %v435
      %v440 = vrsqrt.pop %v264
      %v441 = vmul.f32 %v440, %v264
      %v442 = vmul.f32 %v441, %v440
      %v443 = vmul.f32 0.5, %v442
      %v444 = vsub.f32 1.5, %v443
      %v445 = vmul.f32 %v440, %v444
      %vm446 = vweird.f32 %v264
      %vm447 = vweird.f32 %v440
      %vm448 = vmor %vm446, %vm447
      %v449 = vsel %vm448, %v440, %v445
      %v450 = vrsqrt.pop %v265
      %v451 = vmul.f32 %v450, %v265
      %v452 = vmul.f32 %v451, %v450
      %v453 = vmul.f32 0.5, %v452
      %v454 = vsub.f32 1.5, %v453
      %v455 = vmul.f32 %v450, %v454
      %vm456 = vweird.f32 %v265
      %vm457 = vweird.f32 %v450
      %vm458 = vmor %vm456, %vm457
      %v459 = vsel %vm458, %v450, %v455
      %v460 = vrsqrt.pop %v266
      %v461 = vmul.f32 %v460, %v266
      %v462 = vmul.f32 %v461, %v460
      %v463 = vmul.f32 0.5, %v462
      %v464 = vsub.f32 1.5, %v463
      %v465 = vmul.f32 %v460, %v464
      %vm466 = vweird.f32 %v266
      %vm467 = vweird.f32 %v460
      %vm468 = vmor %vm466, %vm467
      %v469 = vsel %vm468, %v460, %v465
      %v470 = vrsqrt.pop %v267
      %v471 = vmul.f32 %v470, %v267
      %v472 = vmul.f32 %v471, %v470
      %v473 = vmul.f32 0.5, %v472
      %v474 = vsub.f32 1.5, %v473
      %v475 = vmul.f32 %v470, %v474
      %vm476 = vweird.f32 %v267
      %vm477 = vweird.f32 %v470
      %vm478 = vmor %vm476, %vm477
      %v479 = vsel %vm478, %v470, %v475
      %v480 = vrsqrt.pop %v268
      %v481 = vmul.f32 %v480, %v268
      %v482 = vmul.f32 %v481, %v480
      %v483 = vmul.f32 0.5, %v482
      %v484 = vsub.f32 1.5, %v483
      %v485 = vmul.f32 %v480, %v484
      %vm486 = vweird.f32 %v268
      %vm487 = vweird.f32 %v480
      %vm488 = vmor %vm486, %vm487
      %v489 = vsel %vm488, %v480, %v485
      %v490 = vrsqrt.pop %v269
      %v491 = vmul.f32 %v490, %v269
      %v492 = vmul.f32 %v491, %v490
      %v493 = vmul.f32 0.5, %v492
      %v494 = vsub.f32 1.5, %v493
      %v495 = vmul.f32 %v490, %v494
      %vm496 = vweird.f32 %v269
      %vm497 = vweird.f32 %v490
      %vm498 = vmor %vm496, %vm497
      %v499 = vsel %vm498, %v490, %v495
      %v500 = vrsqrt.pop %v270
      %v501 = vmul.f32 %v500, %v270
      %v502 = vmul.f32 %v501, %v500
      %v503 = vmul.f32 0.5, %v502
      %v504 = vsub.f32 1.5, %v503
      %v505 = vmul.f32 %v500, %v504
      %vm506 = vweird.f32 %v270
      %vm507 = vweird.f32 %v500
      %vm508 = vmor %vm506, %vm507
      %v509 = vsel %vm508, %v500, %v505
      %v510 = vrsqrt.pop %v271
      %v511 = vmul.f32 %v510, %v271
      %v512 = vmul.f32 %v511, %v510
      %v513 = vmul.f32 0.5, %v512
      %v514 = vsub.f32 1.5, %v513
      %v515 = vmul.f32 %v510, %v514
      %vm516 = vweird.f32 %v271
      %vm517 = vweird.f32 %v510
      %vm518 = vmor %vm516, %vm517
      %v519 = vsel %vm518, %v510, %v515
      %v520 = vrsqrt.pop %v272
      %v521 = vmul.f32 %v520, %v272
      %v522 = vmul.f32 %v521, %v520
      %v523 = vmul.f32 0.5, %v522
      %v524 = vsub.f32 1.5, %v523
      %v525 = vmul.f32 %v520, %v524
      %vm526 = vweird.f32 %v272
      %vm527 = vweird.f32 %v520
      %vm528 = vmor %vm526, %vm527
      %v529 = vsel %vm528, %v520, %v525
      %v530 = vrsqrt.pop %v273
      %v531 = vmul.f32 %v530, %v273
      %v532 = vmul.f32 %v531, %v530
      %v533 = vmul.f32 0.5, %v532
      %v534 = vsub.f32 1.5, %v533
      %v535 = vmul.f32 %v530, %v534
      %vm536 = vweird.f32 %v273
      %vm537 = vweird.f32 %v530
      %vm538 = vmor %vm536, %vm537
      %v539 = vsel %vm538, %v530, %v535
      %v540 = vrsqrt.pop %v274
      %v541 = vmul.f32 %v540, %v274
      %v542 = vmul.f32 %v541, %v540
      %v543 = vmul.f32 0.5, %v542
      %v544 = vsub.f32 1.5, %v543
      %v545 = vmul.f32 %v540, %v544
      %vm546 = vweird.f32 %v274
      %vm547 = vweird.f32 %v540
      %vm548 = vmor %vm546, %vm547
      %v549 = vsel %vm548, %v540, %v545
      %v550 = vrsqrt.pop %v275
      %v551 = vmul.f32 %v550, %v275
      %v552 = vmul.f32 %v551, %v550
      %v553 = vmul.f32 0.5, %v552
      %v554 = vsub.f32 1.5, %v553
      %v555 = vmul.f32 %v550, %v554
      %vm556 = vweird.f32 %v275
      %vm557 = vweird.f32 %v550
      %vm558 = vmor %vm556, %vm557
      %v559 = vsel %vm558, %v550, %v555
      %v560 = vrsqrt.pop %v276
      %v561 = vmul.f32 %v560, %v276
      %v562 = vmul.f32 %v561, %v560
      %v563 = vmul.f32 0.5, %v562
      %v564 = vsub.f32 1.5, %v563
      %v565 = vmul.f32 %v560, %v564
      %vm566 = vweird.f32 %v276
      %vm567 = vweird.f32 %v560
      %vm568 = vmor %vm566, %vm567
      %v569 = vsel %vm568, %v560, %v565
      %v570 = vrsqrt.pop %v277
      %v571 = vmul.f32 %v570, %v277
      %v572 = vmul.f32 %v571, %v570
      %v573 = vmul.f32 0.5, %v572
      %v574 = vsub.f32 1.5, %v573
      %v575 = vmul.f32 %v570, %v574
      %vm576 = vweird.f32 %v277
      %vm577 = vweird.f32 %v570
      %vm578 = vmor %vm576, %vm577
      %v579 = vsel %vm578, %v570, %v575
      %v580 = vrsqrt.pop %v278
      %v581 = vmul.f32 %v580, %v278
      %v582 = vmul.f32 %v581, %v580
      %v583 = vmul.f32 0.5, %v582
      %v584 = vsub.f32 1.5, %v583
      %v585 = vmul.f32 %v580, %v584
      %vm586 = vweird.f32 %v278
      %vm587 = vweird.f32 %v580
      %vm588 = vmor %vm586, %vm587
      %v589 = vsel %vm588, %v580, %v585
      %v590 = vrsqrt.pop %v279
      %v591 = vmul.f32 %v590, %v279
      %v592 = vmul.f32 %v591, %v590
      %v593 = vmul.f32 0.5, %v592
      %v594 = vsub.f32 1.5, %v593
      %v595 = vmul.f32 %v590, %v594
      %vm596 = vweird.f32 %v279
      %vm597 = vweird.f32 %v590
      %vm598 = vmor %vm596, %vm597
      %v599 = vsel %vm598, %v590, %v595
      %v600 = vmul.f32 %v120, %v289
      %v601 = vmul.f32 %v121, %v299
      %v602 = vmul.f32 %v122, %v309
      %v603 = vmul.f32 %v123, %v319
      %v604 = vmul.f32 %v124, %v329
      %v605 = vmul.f32 %v125, %v339
      %v606 = vmul.f32 %v126, %v349
      %v607 = vmul.f32 %v127, %v359
      %v608 = vmul.f32 %v128, %v369
      %v609 = vmul.f32 %v129, %v379
      %v610 = vmul.f32 %v130, %v389
      %v611 = vmul.f32 %v131, %v399
      %v612 = vmul.f32 %v132, %v409
      %v613 = vmul.f32 %v133, %v419
      %v614 = vmul.f32 %v134, %v429
      %v615 = vmul.f32 %v135, %v439
      %v616 = vmul.f32 %v136, %v449
      %v617 = vmul.f32 %v137, %v459
      %v618 = vmul.f32 %v138, %v469
      %v619 = vmul.f32 %v139, %v479
      %v620 = vmul.f32 %v140, %v489
      %v621 = vmul.f32 %v141, %v499
      %v622 = vmul.f32 %v142, %v509
      %v623 = vmul.f32 %v143, %v519
      %v624 = vmul.f32 %v144, %v529
      %v625 = vmul.f32 %v145, %v539
      %v626 = vmul.f32 %v146, %v549
      %v627 = vmul.f32 %v147, %v559
      %v628 = vmul.f32 %v148, %v569
      %v629 = vmul.f32 %v149, %v579
      %v630 = vmul.f32 %v150, %v589
      %v631 = vmul.f32 %v151, %v599
      %632 = vst [vmem:[%s118] sm:$0xff] %v600
      %633 = vst [vmem:[%s118 + $0x8] sm:$0xff] %v601
      %634 = vst [vmem:[%s118 + $0x10] sm:$0xff] %v602
      %635 = vst [vmem:[%s118 + $0x18] sm:$0xff] %v603
      %636 = vst [vmem:[%s118 + $0x20] sm:$0xff] %v604
      %637 = vst [vmem:[%s118 + $0x28] sm:$0xff] %v605
      %638 = vst [vmem:[%s118 + $0x30] sm:$0xff] %v606
      %639 = vst [vmem:[%s118 + $0x38] sm:$0xff] %v607
      %640 = vst [vmem:[%s118 + $0x40] sm:$0xff] %v608
      %641 = vst [vmem:[%s118 + $0x48] sm:$0xff] %v609
      %642 = vst [vmem:[%s118 + $0x50] sm:$0xff] %v610
      %643 = vst [vmem:[%s118 + $0x58] sm:$0xff] %v611
      %644 = vst [vmem:[%s118 + $0x60] sm:$0xff] %v612
      %645 = vst [vmem:[%s118 + $0x68] sm:$0xff] %v613
      %646 = vst [vmem:[%s118 + $0x70] sm:$0xff] %v614
      %647 = vst [vmem:[%s118 + $0x78] sm:$0xff] %v615
      %648 = vst [vmem:[%s118 + $0x80] sm:$0xff] %v616
      %649 = vst [vmem:[%s118 + $0x88] sm:$0xff] %v617
      %650 = vst [vmem:[%s118 + $0x90] sm:$0xff] %v618
      %651 = vst [vmem:[%s118 + $0x98] sm:$0xff] %v619
      %652 = vst [vmem:[%s118 + $0xa0] sm:$0xff] %v620
      %653 = vst [vmem:[%s118 + $0xa8] sm:$0xff] %v621
      %654 = vst [vmem:[%s118 + $0xb0] sm:$0xff] %v622
      %655 = vst [vmem:[%s118 + $0xb8] sm:$0xff] %v623
      %656 = vst [vmem:[%s118 + $0xc0] sm:$0xff] %v624
      %657 = vst [vmem:[%s118 + $0xc8] sm:$0xff] %v625
      %658 = vst [vmem:[%s118 + $0xd0] sm:$0xff] %v626
      %659 = vst [vmem:[%s118 + $0xd8] sm:$0xff] %v627
      %660 = vst [vmem:[%s118 + $0xe0] sm:$0xff] %v628
      %661 = vst [vmem:[%s118 + $0xe8] sm:$0xff] %v629
      %662 = vst [vmem:[%s118 + $0xf0] sm:$0xff] %v630
      %663 = vst [vmem:[%s118 + $0xf8] sm:$0xff] %v631
      %s664 = smul.u32 32, %s12
      %p665 = scmp.lt.s32.totalorder %s664, 63
      %s666 = scalar_select %p665, %s664, 63
      %s667 = smul.addr %s666, 8
      %s668 = scalar_lea.vmem %s1, %s667
      // Predicated region
      $region25: #{gaex_forward.14} parent=23 // pred_check
        %p669 = pneg %p56
      $region26: #{gaex_forward.14} parent=23 // pred_check_branch
        %671 = sbr.rel (%p669) target = $region28
      $region27: #{gaex_forward.14} parent=23 // pred_region
        %s672 = smul.u32 32, %s12
      $region28: #{gaex_forward.14} parent=23 // pred_fallthru
        _
    $region24: #{gaex_forward.14} parent=5 // pred_fallthru
      _
    %p673 = scmp.le.s32.totalorder 2, %s7
    // Predicated region
    $region29: #{gaex_forward.14} parent=5 // pred_check
      %p674 = pneg %p673
    $region30: #{gaex_forward.14} parent=5 // pred_check_branch
      %676 = sbr.rel (%p674) target = $region32
    $region31: #{gaex_forward.14} parent=5 // pred_region
      %s677 = ssub.s32 %s7, 2
      // Predicated region
      $region33: #{gaex_forward.14} parent=31 // pred_check
        %p678 = pneg %p62
      $region34: #{gaex_forward.14} parent=31 // pred_check_branch
        %680 = sbr.rel (%p678) target = $region36
      $region35: #{gaex_forward.14} parent=31 // pred_region
        %s681 = smul.u32 32, %s13
        %p682 = scmp.lt.s32.totalorder %s681, 63
        %s683 = scalar_select %p682, %s681, 63
        %s684 = smul.addr %s683, 8
        %s685 = scalar_lea.vmem %s1, %s684
      $region36: #{gaex_forward.14} parent=31 // pred_fallthru
        _
    $region32: #{gaex_forward.14} parent=5 // pred_fallthru
      _
  $region6: #{gaex_forward.14} parent=0 // loop_footer
    %s11 = sadd.s32 1, %s7
  $region7: #{gaex_forward.14} parent=0 // loop_footer_branch
    %6 = sbr.rel target = $region3
  $region8: #{gaex_forward.14} parent=0 // loop_exit
    _

// kernel: gaex_forward.9
$region0: #{gaex_forward.9}
  #allocation0 [shape = 'u32[]', space=smem, size = 0x4, offset = 0x4, fixed_abs, tag = 'smem constant byte address 0x4 - core index']
  #allocation1 [shape = 'u32[72,128]{1,0:T(1,128)}', space=vmem, size = 0x9000, scoped, tag = 'internal scratch']
  %s0 = inlined_call_operand.vmem [shape: bf16[512,512], index: 0, kind: input, shape index: {}]
  %s1 = inlined_call_operand.vmem [shape: f32[512,128], index: 1, kind: input, shape index: {}]
  %s2 = inlined_call_operand.vmem [shape: f32[1,512], index: 2, kind: input, shape index: {}]
  %s3 = inlined_call_operand.vmem [shape: bf16[512,128], index: 3, kind: input, shape index: {}]
  %s4 = inlined_call_operand.vmem [shape: f32[512,128], index: 4, kind: output, shape index: {}]
  %s5 = sld [smem:[#allocation0]]
  $region49: #{gaex_forward.9} parent=0
    _
  %s7 = ssub.s32 1, %s5
  %s8 = scalar_select 0, %s7, %s5
  loop: start=0, step=1, limit=4
  $region2: #{gaex_forward.9} parent=0 // loop_pre_header
    _
  $region3: #{gaex_forward.9} parent=0 // loop_header
    %s10 = sphi 0, %s14
    %p11 = scmp.ge.s32.totalorder %s10, 4
    %s20 = sphi 0, %s22
    %s23 = sphi 0, %s20
    %s24 = sphi 0, %s23
    %s40 = sphi 0, %s24
    %s46 = sphi 0, %s48
    %s49 = sphi 0, %s46
    %s50 = sphi 0, %s49
    %s66 = sphi 0, %s50
    %s70 = sphi 0, %s70
    %s72 = sphi 0, %s70
    %s73 = sphi 0, %s72
    %s87 = sphi 0, %s73
    %s91 = sphi 0, %s91
    %s93 = sphi 0, %s91
    %s94 = sphi 0, %s93
    %s108 = sphi 0, %s94
    %s114 = sphi 0, %s116
    %s117 = sphi 0, %s114
    %s118 = sphi 0, %s117
    %s134 = sphi 0, %s118
  $region4: #{gaex_forward.9} parent=0 // loop_header_branch
    %13 = sbr.rel (%p11) target = $region8
  $region5: #{gaex_forward.9} parent=0 // loop_body
    %s15 = ssub.s32 %s10, 1
    %s16 = ssub.s32 %s10, 2
    %s17 = sadd.s32 %s10, 1
    %s18 = ssub.s32 %s10, %s17
    %p19 = scmp.eq.s32.totalorder %s18, 0
    %s21 = sadd.s32 %s20, 1
    %s22 = scalar_select %p19, %s20, %s21
    %p25 = pneg %p19
    %p26 = scmp.eq.s32.totalorder %s10, 1
    %p27 = por %p25, %p26
    %p28 = scmp.ne.s32.totalorder %s20, %s23
    %p29 = scmp.eq.s32.totalorder %s10, 0
    %p30 = por %p28, %p29
    %p31 = scmp.ne.s32.totalorder %s20, %s23
    %p32 = scmp.eq.s32.totalorder %s15, 1
    %p33 = por %p31, %p32
    %p34 = scmp.ne.s32.totalorder %s23, %s24
    %p35 = scmp.eq.s32.totalorder %s15, 0
    %p36 = por %p34, %p35
    %p37 = scmp.ne.s32.totalorder %s23, %s24
    %p38 = scmp.eq.s32.totalorder %s16, 1
    %p39 = por %p37, %p38
    %p41 = scmp.ne.s32.totalorder %s24, %s40
    %p42 = scmp.eq.s32.totalorder %s16, 0
    %p43 = por %p41, %p42
    %s44 = ssub.s32 %s10, %s17
    %p45 = scmp.eq.s32.totalorder %s44, 0
    %s47 = sadd.s32 %s46, 1
    %s48 = scalar_select %p45, %s46, %s47
    %p51 = pneg %p45
    %p52 = scmp.eq.s32.totalorder %s10, 1
    %p53 = por %p51, %p52
    %p54 = scmp.ne.s32.totalorder %s46, %s49
    %p55 = scmp.eq.s32.totalorder %s10, 0
    %p56 = por %p54, %p55
    %p57 = scmp.ne.s32.totalorder %s46, %s49
    %p58 = scmp.eq.s32.totalorder %s15, 1
    %p59 = por %p57, %p58
    %p60 = scmp.ne.s32.totalorder %s49, %s50
    %p61 = scmp.eq.s32.totalorder %s15, 0
    %p62 = por %p60, %p61
    %p63 = scmp.ne.s32.totalorder %s49, %s50
    %p64 = scmp.eq.s32.totalorder %s16, 1
    %p65 = por %p63, %p64
    %p67 = scmp.ne.s32.totalorder %s50, %s66
    %p68 = scmp.eq.s32.totalorder %s16, 0
    %p69 = por %p67, %p68
    %s71 = sadd.s32 %s70, 1
    %p74 = scmp.eq.s32.totalorder %s10, 1
    %p75 = scmp.ne.s32.totalorder %s70, %s72
    %p76 = scmp.eq.s32.totalorder %s10, 0
    %p77 = por %p75, %p76
    %p78 = scmp.ne.s32.totalorder %s70, %s72
    %p79 = scmp.eq.s32.totalorder %s15, 1
    %p80 = por %p78, %p79
    %p81 = scmp.ne.s32.totalorder %s72, %s73
    %p82 = scmp.eq.s32.totalorder %s15, 0
    %p83 = por %p81, %p82
    %p84 = scmp.ne.s32.totalorder %s72, %s73
    %p85 = scmp.eq.s32.totalorder %s16, 1
    %p86 = por %p84, %p85
    %p88 = scmp.ne.s32.totalorder %s73, %s87
    %p89 = scmp.eq.s32.totalorder %s16, 0
    %p90 = por %p88, %p89
    %s92 = sadd.s32 %s91, 1
    %p95 = scmp.eq.s32.totalorder %s10, 1
    %p96 = scmp.ne.s32.totalorder %s91, %s93
    %p97 = scmp.eq.s32.totalorder %s10, 0
    %p98 = por %p96, %p97
    %p99 = scmp.ne.s32.totalorder %s91, %s93
    %p100 = scmp.eq.s32.totalorder %s15, 1
    %p101 = por %p99, %p100
    %p102 = scmp.ne.s32.totalorder %s93, %s94
    %p103 = scmp.eq.s32.totalorder %s15, 0
    %p104 = por %p102, %p103
    %p105 = scmp.ne.s32.totalorder %s93, %s94
    %p106 = scmp.eq.s32.totalorder %s16, 1
    %p107 = por %p105, %p106
    %p109 = scmp.ne.s32.totalorder %s94, %s108
    %p110 = scmp.eq.s32.totalorder %s16, 0
    %p111 = por %p109, %p110
    %s112 = ssub.s32 %s10, %s17
    %p113 = scmp.eq.s32.totalorder %s112, 0
    %s115 = sadd.s32 %s114, 1
    %s116 = scalar_select %p113, %s114, %s115
    %p119 = pneg %p113
    %p120 = scmp.eq.s32.totalorder %s10, 1
    %p121 = por %p119, %p120
    %p122 = scmp.ne.s32.totalorder %s114, %s117
    %p123 = scmp.eq.s32.totalorder %s10, 0
    %p124 = por %p122, %p123
    %p125 = scmp.ne.s32.totalorder %s114, %s117
    %p126 = scmp.eq.s32.totalorder %s15, 1
    %p127 = por %p125, %p126
    %p128 = scmp.ne.s32.totalorder %s117, %s118
    %p129 = scmp.eq.s32.totalorder %s15, 0
    %p130 = por %p128, %p129
    %p131 = scmp.ne.s32.totalorder %s117, %s118
    %p132 = scmp.eq.s32.totalorder %s16, 1
    %p133 = por %p131, %p132
    %p135 = scmp.ne.s32.totalorder %s118, %s134
    %p136 = scmp.eq.s32.totalorder %s16, 0
    %p137 = por %p135, %p136
    %p138 = scmp.le.s32.totalorder 1, %s10
    %p139 = scmp.lt.s32.totalorder %s10, 3
    %p140 = pnand %p138, %p139
    %p141 = pneg %p140
    // Predicated region
    $region9: #{gaex_forward.9} parent=5 // pred_check
      _
    $region10: #{gaex_forward.9} parent=5 // pred_check_branch
      %143 = sbr.rel (%p140) target = $region12
    $region11: #{gaex_forward.9} parent=5 // pred_region
      %s144 = ssub.s32 %s10, 1
      // Predicated region
      $region13: #{gaex_forward.9} parent=11 // pred_check
        %p145 = pneg %p83
      $region14: #{gaex_forward.9} parent=11 // pred_check_branch
        %147 = sbr.rel (%p145) target = $region16
      $region15: #{gaex_forward.9} parent=11 // pred_region
        _
      $region16: #{gaex_forward.9} parent=11 // pred_fallthru
        _
      // Predicated region
      $region17: #{gaex_forward.9} parent=11 // pred_check
        %p148 = pneg %p104
      $region18: #{gaex_forward.9} parent=11 // pred_check_branch
        %150 = sbr.rel (%p148) target = $region20
      $region19: #{gaex_forward.9} parent=11 // pred_region
        _
      $region20: #{gaex_forward.9} parent=11 // pred_fallthru
        _
    $region12: #{gaex_forward.9} parent=5 // pred_fallthru
      _
    %p151 = scmp.lt.s32.totalorder %s10, 2
    // Predicated region
    $region21: #{gaex_forward.9} parent=5 // pred_check
      %p152 = pneg %p151
    $region22: #{gaex_forward.9} parent=5 // pred_check_branch
      %154 = sbr.rel (%p152) target = $region24
    $region23: #{gaex_forward.9} parent=5 // pred_region
      // Predicated region
      $region25: #{gaex_forward.9} parent=23 // pred_check
        %p155 = pneg %p30
      $region26: #{gaex_forward.9} parent=23 // pred_check_branch
        %157 = sbr.rel (%p155) target = $region28
      $region27: #{gaex_forward.9} parent=23 // pred_region
        %s158 = smul.u32 32, %s10
        %p159 = scmp.lt.s32.totalorder %s158, 63
        %s160 = scalar_select %p159, %s158, 63
        %s161 = smul.addr %s160, 4
        %s162 = smul.addr %s161, 4
        %s163 = scalar_lea.vmem %s0, %s162
        %s164 = smul.u32 32, %s10
      $region28: #{gaex_forward.9} parent=23 // pred_fallthru
        _
      // Predicated region
      $region29: #{gaex_forward.9} parent=23 // pred_check
        %p165 = pneg %p56
      $region30: #{gaex_forward.9} parent=23 // pred_check_branch
        %167 = sbr.rel (%p165) target = $region32
      $region31: #{gaex_forward.9} parent=23 // pred_region
        %s168 = smul.u32 32, %s10
        %p169 = scmp.lt.s32.totalorder %s168, 63
        %s170 = scalar_select %p169, %s168, 63
        %s171 = smul.addr %s170, 8
        %s172 = scalar_lea.vmem %s1, %s171
        %s173 = smul.u32 32, %s10
      $region32: #{gaex_forward.9} parent=23 // pred_fallthru
        _
    $region24: #{gaex_forward.9} parent=5 // pred_fallthru
      _
    %p174 = scmp.le.s32.totalorder 1, %s10
    %p175 = scmp.lt.s32.totalorder %s10, 3
    %p176 = pnand %p174, %p175
    %p177 = pneg %p176
    // Predicated region
    $region33: #{gaex_forward.9} parent=5 // pred_check
      _
    $region34: #{gaex_forward.9} parent=5 // pred_check_branch
      %179 = sbr.rel (%p176) target = $region36
    $region35: #{gaex_forward.9} parent=5 // pred_region
      %s180 = ssub.s32 %s10, 1
      %s181 = smul.u32 32, %s15
      %p182 = scmp.lt.s32.totalorder %s181, 63
      %s183 = scalar_select %p182, %s181, 63
      %s184 = smul.addr %s183, 4
      %s185 = smul.addr %s184, 4
      %s186 = scalar_lea.vmem %s0, %s185
      %p187 = pneg %p36
      %p188 = pneg %p33
      %s189 = smul.u32 32, %s15
      %p190 = scmp.lt.s32.totalorder %s189, 63
      %s191 = scalar_select %p190, %s189, 63
      %s192 = smul.addr %s191, 8
      %s193 = scalar_lea.vmem %s1, %s192
      %p194 = pneg %p62
      %p195 = pneg %p59
      %p196 = pneg %p83
      %p197 = pneg %p80
      %p198 = pneg %p104
      %p199 = pneg %p101
      %p200 = pneg %p130
      %p201 = pneg %p127
      %s202 = smul.u32 32, %s15
      %p203 = scmp.lt.s32.totalorder %s202, 63
      %s204 = scalar_select %p203, %s202, 63
      %s205 = smul.addr %s204, 8
      %s206 = scalar_lea.vmem %s4, %s205
      %s207 = smul.u32 32, %s15
      %p208 = scmp.lt.s32.totalorder %s207, 63
      %s209 = scalar_select %p208, %s207, 63
      %s210 = smul.addr %s209, 4
      %s211 = smul.addr %s210, 4
      %s212 = scalar_lea.vmem %s0, %s211
      %s213 = smul.u32 32, %s15
      %s214 = smul.u32 32, %s15
      %p215 = scmp.lt.s32.totalorder %s214, 63
      %s216 = scalar_select %p215, %s214, 63
      %s217 = smul.addr %s216, 8
      %s218 = scalar_lea.vmem %s1, %s217
      %s219 = smul.u32 32, %s15
      %s220 = smul.u32 32, %s15
      %p221 = scmp.lt.s32.totalorder %s220, 63
      %s222 = scalar_select %p221, %s220, 63
      %s223 = smul.addr %s222, 8
      %s224 = scalar_lea.vmem %s4, %s223
      %s225 = smul.u32 32, %s15
      %v226 = vld [vmem:[%s212] sm:$0xff]
      %v227 = vld [vmem:[%s212 + $0x8] sm:$0xff]
      %v228 = vld [vmem:[%s212 + $0x10] sm:$0xff]
      %v229 = vld [vmem:[%s212 + $0x18] sm:$0xff]
      %v230 = vld [vmem:[%s212 + $0x20] sm:$0xff]
      %v231 = vld [vmem:[%s212 + $0x28] sm:$0xff]
      %v232 = vld [vmem:[%s212 + $0x30] sm:$0xff]
      %v233 = vld [vmem:[%s212 + $0x38] sm:$0xff]
      %v234 = vld [vmem:[%s212 + $0x40] sm:$0xff]
      %v235 = vld [vmem:[%s212 + $0x48] sm:$0xff]
      %v236 = vld [vmem:[%s212 + $0x50] sm:$0xff]
      %v237 = vld [vmem:[%s212 + $0x58] sm:$0xff]
      %v238 = vld [vmem:[%s212 + $0x60] sm:$0xff]
      %v239 = vld [vmem:[%s212 + $0x68] sm:$0xff]
      %v240 = vld [vmem:[%s212 + $0x70] sm:$0xff]
      %v241 = vld [vmem:[%s212 + $0x78] sm:$0xff]
      %v242 = vld [vmem:[%s212 + $0x80] sm:$0xff]
      %v243 = vld [vmem:[%s212 + $0x88] sm:$0xff]
      %v244 = vld [vmem:[%s212 + $0x90] sm:$0xff]
      %v245 = vld [vmem:[%s212 + $0x98] sm:$0xff]
      %v246 = vld [vmem:[%s212 + $0xa0] sm:$0xff]
      %v247 = vld [vmem:[%s212 + $0xa8] sm:$0xff]
      %v248 = vld [vmem:[%s212 + $0xb0] sm:$0xff]
      %v249 = vld [vmem:[%s212 + $0xb8] sm:$0xff]
      %v250 = vld [vmem:[%s212 + $0xc0] sm:$0xff]
      %v251 = vld [vmem:[%s212 + $0xc8] sm:$0xff]
      %v252 = vld [vmem:[%s212 + $0xd0] sm:$0xff]
      %v253 = vld [vmem:[%s212 + $0xd8] sm:$0xff]
      %v254 = vld [vmem:[%s212 + $0xe0] sm:$0xff]
      %v255 = vld [vmem:[%s212 + $0xe8] sm:$0xff]
      %v256 = vld [vmem:[%s212 + $0xf0] sm:$0xff]
      %v257 = vld [vmem:[%s212 + $0xf8] sm:$0xff]
      %v258 = vld [vmem:[%s212 + $0x100] sm:$0xff]
      %v259 = vld [vmem:[%s212 + $0x108] sm:$0xff]
      %v260 = vld [vmem:[%s212 + $0x110] sm:$0xff]
      %v261 = vld [vmem:[%s212 + $0x118] sm:$0xff]
      %v262 = vld [vmem:[%s212 + $0x120] sm:$0xff]
      %v263 = vld [vmem:[%s212 + $0x128] sm:$0xff]
      %v264 = vld [vmem:[%s212 + $0x130] sm:$0xff]
      %v265 = vld [vmem:[%s212 + $0x138] sm:$0xff]
      %v266 = vld [vmem:[%s212 + $0x140] sm:$0xff]
      %v267 = vld [vmem:[%s212 + $0x148] sm:$0xff]
      %v268 = vld [vmem:[%s212 + $0x150] sm:$0xff]
      %v269 = vld [vmem:[%s212 + $0x158] sm:$0xff]
      %v270 = vld [vmem:[%s212 + $0x160] sm:$0xff]
      %v271 = vld [vmem:[%s212 + $0x168] sm:$0xff]
      %v272 = vld [vmem:[%s212 + $0x170] sm:$0xff]
      %v273 = vld [vmem:[%s212 + $0x178] sm:$0xff]
      %v274 = vld [vmem:[%s212 + $0x180] sm:$0xff]
      %v275 = vld [vmem:[%s212 + $0x188] sm:$0xff]
      %v276 = vld [vmem:[%s212 + $0x190] sm:$0xff]
      %v277 = vld [vmem:[%s212 + $0x198] sm:$0xff]
      %v278 = vld [vmem:[%s212 + $0x1a0] sm:$0xff]
      %v279 = vld [vmem:[%s212 + $0x1a8] sm:$0xff]
      %v280 = vld [vmem:[%s212 + $0x1b0] sm:$0xff]
      %v281 = vld [vmem:[%s212 + $0x1b8] sm:$0xff]
      %v282 = vld [vmem:[%s212 + $0x1c0] sm:$0xff]
      %v283 = vld [vmem:[%s212 + $0x1c8] sm:$0xff]
      %v284 = vld [vmem:[%s212 + $0x1d0] sm:$0xff]
      %v285 = vld [vmem:[%s212 + $0x1d8] sm:$0xff]
      %v286 = vld [vmem:[%s212 + $0x1e0] sm:$0xff]
      %v287 = vld [vmem:[%s212 + $0x1e8] sm:$0xff]
      %v288 = vld [vmem:[%s212 + $0x1f0] sm:$0xff]
      %v289 = vld [vmem:[%s212 + $0x1f8] sm:$0xff]
      %v290 = vunpack.c.l.bf16 %v226
      %v291 = vunpack.c.h.bf16 %v226
      %v292 = vunpack.c.l.bf16 %v227
      %v293 = vunpack.c.h.bf16 %v227
      %v294 = vunpack.c.l.bf16 %v228
      %v295 = vunpack.c.h.bf16 %v228
      %v296 = vunpack.c.l.bf16 %v229
      %v297 = vunpack.c.h.bf16 %v229
      %v298 = vunpack.c.l.bf16 %v230
      %v299 = vunpack.c.h.bf16 %v230
      %v300 = vunpack.c.l.bf16 %v231
      %v301 = vunpack.c.h.bf16 %v231
      %v302 = vunpack.c.l.bf16 %v232
      %v303 = vunpack.c.h.bf16 %v232
      %v304 = vunpack.c.l.bf16 %v233
      %v305 = vunpack.c.h.bf16 %v233
      %v306 = vunpack.c.l.bf16 %v234
      %v307 = vunpack.c.h.bf16 %v234
      %v308 = vunpack.c.l.bf16 %v235
      %v309 = vunpack.c.h.bf16 %v235
      %v310 = vunpack.c.l.bf16 %v236
      %v311 = vunpack.c.h.bf16 %v236
      %v312 = vunpack.c.l.bf16 %v237
      %v313 = vunpack.c.h.bf16 %v237
      %v314 = vunpack.c.l.bf16 %v238
      %v315 = vunpack.c.h.bf16 %v238
      %v316 = vunpack.c.l.bf16 %v239
      %v317 = vunpack.c.h.bf16 %v239
      %v318 = vunpack.c.l.bf16 %v240
      %v319 = vunpack.c.h.bf16 %v240
      %v320 = vunpack.c.l.bf16 %v241
      %v321 = vunpack.c.h.bf16 %v241
      %v322 = vunpack.c.l.bf16 %v242
      %v323 = vunpack.c.h.bf16 %v242
      %v324 = vunpack.c.l.bf16 %v243
      %v325 = vunpack.c.h.bf16 %v243
      %v326 = vunpack.c.l.bf16 %v244
      %v327 = vunpack.c.h.bf16 %v244
      %v328 = vunpack.c.l.bf16 %v245
      %v329 = vunpack.c.h.bf16 %v245
      %v330 = vunpack.c.l.bf16 %v246
      %v331 = vunpack.c.h.bf16 %v246
      %v332 = vunpack.c.l.bf16 %v247
      %v333 = vunpack.c.h.bf16 %v247
      %v334 = vunpack.c.l.bf16 %v248
      %v335 = vunpack.c.h.bf16 %v248
      %v336 = vunpack.c.l.bf16 %v249
      %v337 = vunpack.c.h.bf16 %v249
      %v338 = vunpack.c.l.bf16 %v250
      %v339 = vunpack.c.h.bf16 %v250
      %v340 = vunpack.c.l.bf16 %v251
      %v341 = vunpack.c.h.bf16 %v251
      %v342 = vunpack.c.l.bf16 %v252
      %v343 = vunpack.c.h.bf16 %v252
      %v344 = vunpack.c.l.bf16 %v253
      %v345 = vunpack.c.h.bf16 %v253
      %v346 = vunpack.c.l.bf16 %v254
      %v347 = vunpack.c.h.bf16 %v254
      %v348 = vunpack.c.l.bf16 %v255
      %v349 = vunpack.c.h.bf16 %v255
      %v350 = vunpack.c.l.bf16 %v256
      %v351 = vunpack.c.h.bf16 %v256
      %v352 = vunpack.c.l.bf16 %v257
      %v353 = vunpack.c.h.bf16 %v257
      %v354 = vunpack.c.l.bf16 %v258
      %v355 = vunpack.c.h.bf16 %v258
      %v356 = vunpack.c.l.bf16 %v259
      %v357 = vunpack.c.h.bf16 %v259
      %v358 = vunpack.c.l.bf16 %v260
      %v359 = vunpack.c.h.bf16 %v260
      %v360 = vunpack.c.l.bf16 %v261
      %v361 = vunpack.c.h.bf16 %v261
      %v362 = vunpack.c.l.bf16 %v262
      %v363 = vunpack.c.h.bf16 %v262
      %v364 = vunpack.c.l.bf16 %v263
      %v365 = vunpack.c.h.bf16 %v263
      %v366 = vunpack.c.l.bf16 %v264
      %v367 = vunpack.c.h.bf16 %v264
      %v368 = vunpack.c.l.bf16 %v265
      %v369 = vunpack.c.h.bf16 %v265
      %v370 = vunpack.c.l.bf16 %v266
      %v371 = vunpack.c.h.bf16 %v266
      %v372 = vunpack.c.l.bf16 %v267
      %v373 = vunpack.c.h.bf16 %v267
      %v374 = vunpack.c.l.bf16 %v268
      %v375 = vunpack.c.h.bf16 %v268
      %v376 = vunpack.c.l.bf16 %v269
      %v377 = vunpack.c.h.bf16 %v269
      %v378 = vunpack.c.l.bf16 %v270
      %v379 = vunpack.c.h.bf16 %v270
      %v380 = vunpack.c.l.bf16 %v271
      %v381 = vunpack.c.h.bf16 %v271
      %v382 = vunpack.c.l.bf16 %v272
      %v383 = vunpack.c.h.bf16 %v272
      %v384 = vunpack.c.l.bf16 %v273
      %v385 = vunpack.c.h.bf16 %v273
      %v386 = vunpack.c.l.bf16 %v274
      %v387 = vunpack.c.h.bf16 %v274
      %v388 = vunpack.c.l.bf16 %v275
      %v389 = vunpack.c.h.bf16 %v275
      %v390 = vunpack.c.l.bf16 %v276
      %v391 = vunpack.c.h.bf16 %v276
      %v392 = vunpack.c.l.bf16 %v277
      %v393 = vunpack.c.h.bf16 %v277
      %v394 = vunpack.c.l.bf16 %v278
      %v395 = vunpack.c.h.bf16 %v278
      %v396 = vunpack.c.l.bf16 %v279
      %v397 = vunpack.c.h.bf16 %v279
      %v398 = vunpack.c.l.bf16 %v280
      %v399 = vunpack.c.h.bf16 %v280
      %v400 = vunpack.c.l.bf16 %v281
      %v401 = vunpack.c.h.bf16 %v281
      %v402 = vunpack.c.l.bf16 %v282
      %v403 = vunpack.c.h.bf16 %v282
      %v404 = vunpack.c.l.bf16 %v283
      %v405 = vunpack.c.h.bf16 %v283
      %v406 = vunpack.c.l.bf16 %v284
      %v407 = vunpack.c.h.bf16 %v284
      %v408 = vunpack.c.l.bf16 %v285
      %v409 = vunpack.c.h.bf16 %v285
      %v410 = vunpack.c.l.bf16 %v286
      %v411 = vunpack.c.h.bf16 %v286
      %v412 = vunpack.c.l.bf16 %v287
      %v413 = vunpack.c.h.bf16 %v287
      %v414 = vunpack.c.l.bf16 %v288
      %v415 = vunpack.c.h.bf16 %v288
      %v416 = vunpack.c.l.bf16 %v289
      %v417 = vunpack.c.h.bf16 %v289
      %vm418 = vcmp.ge.f32.partialorder %v290, 0.0
      %vm419 = vcmp.ge.f32.partialorder %v291, 0.0
      %vm420 = vcmp.ge.f32.partialorder %v292, 0.0
      %vm421 = vcmp.ge.f32.partialorder %v293, 0.0
      %vm422 = vcmp.ge.f32.partialorder %v294, 0.0
      %vm423 = vcmp.ge.f32.partialorder %v295, 0.0
      %vm424 = vcmp.ge.f32.partialorder %v296, 0.0
      %vm425 = vcmp.ge.f32.partialorder %v297, 0.0
      %vm426 = vcmp.ge.f32.partialorder %v298, 0.0
      %vm427 = vcmp.ge.f32.partialorder %v299, 0.0
      %vm428 = vcmp.ge.f32.partialorder %v300, 0.0
      %vm429 = vcmp.ge.f32.partialorder %v301, 0.0
      %vm430 = vcmp.ge.f32.partialorder %v302, 0.0
      %vm431 = vcmp.ge.f32.partialorder %v303, 0.0
      %vm432 = vcmp.ge.f32.partialorder %v304, 0.0
      %vm433 = vcmp.ge.f32.partialorder %v305, 0.0
      %vm434 = vcmp.ge.f32.partialorder %v306, 0.0
      %vm435 = vcmp.ge.f32.partialorder %v307, 0.0
      %vm436 = vcmp.ge.f32.partialorder %v308, 0.0
      %vm437 = vcmp.ge.f32.partialorder %v309, 0.0
      %vm438 = vcmp.ge.f32.partialorder %v310, 0.0
      %vm439 = vcmp.ge.f32.partialorder %v311, 0.0
      %vm440 = vcmp.ge.f32.partialorder %v312, 0.0
      %vm441 = vcmp.ge.f32.partialorder %v313, 0.0
      %vm442 = vcmp.ge.f32.partialorder %v314, 0.0
      %vm443 = vcmp.ge.f32.partialorder %v315, 0.0
      %vm444 = vcmp.ge.f32.partialorder %v316, 0.0
      %vm445 = vcmp.ge.f32.partialorder %v317, 0.0
      %vm446 = vcmp.ge.f32.partialorder %v318, 0.0
      %vm447 = vcmp.ge.f32.partialorder %v319, 0.0
      %vm448 = vcmp.ge.f32.partialorder %v320, 0.0
      %vm449 = vcmp.ge.f32.partialorder %v321, 0.0
      %vm450 = vcmp.ge.f32.partialorder %v322, 0.0
      %vm451 = vcmp.ge.f32.partialorder %v323, 0.0
      %vm452 = vcmp.ge.f32.partialorder %v324, 0.0
      %vm453 = vcmp.ge.f32.partialorder %v325, 0.0
      %vm454 = vcmp.ge.f32.partialorder %v326, 0.0
      %vm455 = vcmp.ge.f32.partialorder %v327, 0.0
      %vm456 = vcmp.ge.f32.partialorder %v328, 0.0
      %vm457 = vcmp.ge.f32.partialorder %v329, 0.0
      %vm458 = vcmp.ge.f32.partialorder %v330, 0.0
      %vm459 = vcmp.ge.f32.partialorder %v331, 0.0
      %vm460 = vcmp.ge.f32.partialorder %v332, 0.0
      %vm461 = vcmp.ge.f32.partialorder %v333, 0.0
      %vm462 = vcmp.ge.f32.partialorder %v334, 0.0
      %vm463 = vcmp.ge.f32.partialorder %v335, 0.0
      %vm464 = vcmp.ge.f32.partialorder %v336, 0.0
      %vm465 = vcmp.ge.f32.partialorder %v337, 0.0
      %vm466 = vcmp.ge.f32.partialorder %v338, 0.0
      %vm467 = vcmp.ge.f32.partialorder %v339, 0.0
      %vm468 = vcmp.ge.f32.partialorder %v340, 0.0
      %vm469 = vcmp.ge.f32.partialorder %v341, 0.0
      %vm470 = vcmp.ge.f32.partialorder %v342, 0.0
      %vm471 = vcmp.ge.f32.partialorder %v343, 0.0
      %vm472 = vcmp.ge.f32.partialorder %v344, 0.0
      %vm473 = vcmp.ge.f32.partialorder %v345, 0.0
      %vm474 = vcmp.ge.f32.partialorder %v346, 0.0
      %vm475 = vcmp.ge.f32.partialorder %v347, 0.0
      %vm476 = vcmp.ge.f32.partialorder %v348, 0.0
      %vm477 = vcmp.ge.f32.partialorder %v349, 0.0
      %vm478 = vcmp.ge.f32.partialorder %v350, 0.0
      %vm479 = vcmp.ge.f32.partialorder %v351, 0.0
      %vm480 = vcmp.ge.f32.partialorder %v352, 0.0
      %vm481 = vcmp.ge.f32.partialorder %v353, 0.0
      %vm482 = vcmp.ge.f32.partialorder %v354, 0.0
      %vm483 = vcmp.ge.f32.partialorder %v355, 0.0
      %vm484 = vcmp.ge.f32.partialorder %v356, 0.0
      %vm485 = vcmp.ge.f32.partialorder %v357, 0.0
      %vm486 = vcmp.ge.f32.partialorder %v358, 0.0
      %vm487 = vcmp.ge.f32.partialorder %v359, 0.0
      %vm488 = vcmp.ge.f32.partialorder %v360, 0.0
      %vm489 = vcmp.ge.f32.partialorder %v361, 0.0
      %vm490 = vcmp.ge.f32.partialorder %v362, 0.0
      %vm491 = vcmp.ge.f32.partialorder %v363, 0.0
      %vm492 = vcmp.ge.f32.partialorder %v364, 0.0
      %vm493 = vcmp.ge.f32.partialorder %v365, 0.0
      %vm494 = vcmp.ge.f32.partialorder %v366, 0.0
      %vm495 = vcmp.ge.f32.partialorder %v367, 0.0
      %vm496 = vcmp.ge.f32.partialorder %v368, 0.0
      %vm497 = vcmp.ge.f32.partialorder %v369, 0.0
      %vm498 = vcmp.ge.f32.partialorder %v370, 0.0
      %vm499 = vcmp.ge.f32.partialorder %v371, 0.0
      %vm500 = vcmp.ge.f32.partialorder %v372, 0.0
      %vm501 = vcmp.ge.f32.partialorder %v373, 0.0
      %vm502 = vcmp.ge.f32.partialorder %v374, 0.0
      %vm503 = vcmp.ge.f32.partialorder %v375, 0.0
      %vm504 = vcmp.ge.f32.partialorder %v376, 0.0
      %vm505 = vcmp.ge.f32.partialorder %v377, 0.0
      %vm506 = vcmp.ge.f32.partialorder %v378, 0.0
      %vm507 = vcmp.ge.f32.partialorder %v379, 0.0
      %vm508 = vcmp.ge.f32.partialorder %v380, 0.0
      %vm509 = vcmp.ge.f32.partialorder %v381, 0.0
      %vm510 = vcmp.ge.f32.partialorder %v382, 0.0
      %vm511 = vcmp.ge.f32.partialorder %v383, 0.0
      %vm512 = vcmp.ge.f32.partialorder %v384, 0.0
      %vm513 = vcmp.ge.f32.partialorder %v385, 0.0
      %vm514 = vcmp.ge.f32.partialorder %v386, 0.0
      %vm515 = vcmp.ge.f32.partialorder %v387, 0.0
      %vm516 = vcmp.ge.f32.partialorder %v388, 0.0
      %vm517 = vcmp.ge.f32.partialorder %v389, 0.0
      %vm518 = vcmp.ge.f32.partialorder %v390, 0.0
      %vm519 = vcmp.ge.f32.partialorder %v391, 0.0
      %vm520 = vcmp.ge.f32.partialorder %v392, 0.0
      %vm521 = vcmp.ge.f32.partialorder %v393, 0.0
      %vm522 = vcmp.ge.f32.partialorder %v394, 0.0
      %vm523 = vcmp.ge.f32.partialorder %v395, 0.0
      %vm524 = vcmp.ge.f32.partialorder %v396, 0.0
      %vm525 = vcmp.ge.f32.partialorder %v397, 0.0
      %vm526 = vcmp.ge.f32.partialorder %v398, 0.0
      %vm527 = vcmp.ge.f32.partialorder %v399, 0.0
      %vm528 = vcmp.ge.f32.partialorder %v400, 0.0
      %vm529 = vcmp.ge.f32.partialorder %v401, 0.0
      %vm530 = vcmp.ge.f32.partialorder %v402, 0.0
      %vm531 = vcmp.ge.f32.partialorder %v403, 0.0
      %vm532 = vcmp.ge.f32.partialorder %v404, 0.0
      %vm533 = vcmp.ge.f32.partialorder %v405, 0.0
      %vm534 = vcmp.ge.f32.partialorder %v406, 0.0
      %vm535 = vcmp.ge.f32.partialorder %v407, 0.0
      %vm536 = vcmp.ge.f32.partialorder %v408, 0.0
      %vm537 = vcmp.ge.f32.partialorder %v409, 0.0
      %vm538 = vcmp.ge.f32.partialorder %v410, 0.0
      %vm539 = vcmp.ge.f32.partialorder %v411, 0.0
      %vm540 = vcmp.ge.f32.partialorder %v412, 0.0
      %vm541 = vcmp.ge.f32.partialorder %v413, 0.0
      %vm542 = vcmp.ge.f32.partialorder %v414, 0.0
      %vm543 = vcmp.ge.f32.partialorder %v415, 0.0
      %vm544 = vcmp.ge.f32.partialorder %v416, 0.0
      %vm545 = vcmp.ge.f32.partialorder %v417, 0.0
      %v546 = vsel %vm418, 1, 0
      %v547 = vsel %vm419, 1, 0
      %v548 = vsel %vm420, 1, 0
      %v549 = vsel %vm421, 1, 0
      %v550 = vsel %vm422, 1, 0
      %v551 = vsel %vm423, 1, 0
      %v552 = vsel %vm424, 1, 0
      %v553 = vsel %vm425, 1, 0
      %v554 = vsel %vm426, 1, 0
      %v555 = vsel %vm427, 1, 0
      %v556 = vsel %vm428, 1, 0
      %v557 = vsel %vm429, 1, 0
      %v558 = vsel %vm430, 1, 0
      %v559 = vsel %vm431, 1, 0
      %v560 = vsel %vm432, 1, 0
      %v561 = vsel %vm433, 1, 0
      %v562 = vsel %vm434, 1, 0
      %v563 = vsel %vm435, 1, 0
      %v564 = vsel %vm436, 1, 0
      %v565 = vsel %vm437, 1, 0
      %v566 = vsel %vm438, 1, 0
      %v567 = vsel %vm439, 1, 0
      %v568 = vsel %vm440, 1, 0
      %v569 = vsel %vm441, 1, 0
      %v570 = vsel %vm442, 1, 0
      %v571 = vsel %vm443, 1, 0
      %v572 = vsel %vm444, 1, 0
      %v573 = vsel %vm445, 1, 0
      %v574 = vsel %vm446, 1, 0
      %v575 = vsel %vm447, 1, 0
      %v576 = vsel %vm448, 1, 0
      %v577 = vsel %vm449, 1, 0
      %v578 = vsel %vm450, 1, 0
      %v579 = vsel %vm451, 1, 0
      %v580 = vsel %vm452, 1, 0
      %v581 = vsel %vm453, 1, 0
      %v582 = vsel %vm454, 1, 0
      %v583 = vsel %vm455, 1, 0
      %v584 = vsel %vm456, 1, 0
      %v585 = vsel %vm457, 1, 0
      %v586 = vsel %vm458, 1, 0
      %v587 = vsel %vm459, 1, 0
      %v588 = vsel %vm460, 1, 0
      %v589 = vsel %vm461, 1, 0
      %v590 = vsel %vm462, 1, 0
      %v591 = vsel %vm463, 1, 0
      %v592 = vsel %vm464, 1, 0
      %v593 = vsel %vm465, 1, 0
      %v594 = vsel %vm466, 1, 0
      %v595 = vsel %vm467, 1, 0
      %v596 = vsel %vm468, 1, 0
      %v597 = vsel %vm469, 1, 0
      %v598 = vsel %vm470, 1, 0
      %v599 = vsel %vm471, 1, 0
      %v600 = vsel %vm472, 1, 0
      %v601 = vsel %vm473, 1, 0
      %v602 = vsel %vm474, 1, 0
      %v603 = vsel %vm475, 1, 0
      %v604 = vsel %vm476, 1, 0
      %v605 = vsel %vm477, 1, 0
      %v606 = vsel %vm478, 1, 0
      %v607 = vsel %vm479, 1, 0
      %v608 = vsel %vm480, 1, 0
      %v609 = vsel %vm481, 1, 0
      %v610 = vsel %vm482, 1, 0
      %v611 = vsel %vm483, 1, 0
      %v612 = vsel %vm484, 1, 0
      %v613 = vsel %vm485, 1, 0
      %v614 = vsel %vm486, 1, 0
      %v615 = vsel %vm487, 1, 0
      %v616 = vsel %vm488, 1, 0
      %v617 = vsel %vm489, 1, 0
      %v618 = vsel %vm490, 1, 0
      %v619 = vsel %vm491, 1, 0
      %v620 = vsel %vm492, 1, 0
      %v621 = vsel %vm493, 1, 0
      %v622 = vsel %vm494, 1, 0
      %v623 = vsel %vm495, 1, 0
      %v624 = vsel %vm496, 1, 0
      %v625 = vsel %vm497, 1, 0
      %v626 = vsel %vm498, 1, 0
      %v627 = vsel %vm499, 1, 0
      %v628 = vsel %vm500, 1, 0
      %v629 = vsel %vm501, 1, 0
      %v630 = vsel %vm502, 1, 0
      %v631 = vsel %vm503, 1, 0
      %v632 = vsel %vm504, 1, 0
      %v633 = vsel %vm505, 1, 0
      %v634 = vsel %vm506, 1, 0
      %v635 = vsel %vm507, 1, 0
      %v636 = vsel %vm508, 1, 0
      %v637 = vsel %vm509, 1, 0
      %v638 = vsel %vm510, 1, 0
      %v639 = vsel %vm511, 1, 0
      %v640 = vsel %vm512, 1, 0
      %v641 = vsel %vm513, 1, 0
      %v642 = vsel %vm514, 1, 0
      %v643 = vsel %vm515, 1, 0
      %v644 = vsel %vm516, 1, 0
      %v645 = vsel %vm517, 1, 0
      %v646 = vsel %vm518, 1, 0
      %v647 = vsel %vm519, 1, 0
      %v648 = vsel %vm520, 1, 0
      %v649 = vsel %vm521, 1, 0
      %v650 = vsel %vm522, 1, 0
      %v651 = vsel %vm523, 1, 0
      %v652 = vsel %vm524, 1, 0
      %v653 = vsel %vm525, 1, 0
      %v654 = vsel %vm526, 1, 0
      %v655 = vsel %vm527, 1, 0
      %v656 = vsel %vm528, 1, 0
      %v657 = vsel %vm529, 1, 0
      %v658 = vsel %vm530, 1, 0
      %v659 = vsel %vm531, 1, 0
      %v660 = vsel %vm532, 1, 0
      %v661 = vsel %vm533, 1, 0
      %v662 = vsel %vm534, 1, 0
      %v663 = vsel %vm535, 1, 0
      %v664 = vsel %vm536, 1, 0
      %v665 = vsel %vm537, 1, 0
      %v666 = vsel %vm538, 1, 0
      %v667 = vsel %vm539, 1, 0
      %v668 = vsel %vm540, 1, 0
      %v669 = vsel %vm541, 1, 0
      %v670 = vsel %vm542, 1, 0
      %v671 = vsel %vm543, 1, 0
      %v672 = vsel %vm544, 1, 0
      %v673 = vsel %vm545, 1, 0
      %v674 = vcvt.s32.f32 %v546
      %v675 = vcvt.s32.f32 %v547
      %v676 = vcvt.s32.f32 %v548
      %v677 = vcvt.s32.f32 %v549
      %v678 = vcvt.s32.f32 %v550
      %v679 = vcvt.s32.f32 %v551
      %v680 = vcvt.s32.f32 %v552
      %v681 = vcvt.s32.f32 %v553
      %v682 = vcvt.s32.f32 %v554
      %v683 = vcvt.s32.f32 %v555
      %v684 = vcvt.s32.f32 %v556
      %v685 = vcvt.s32.f32 %v557
      %v686 = vcvt.s32.f32 %v558
      %v687 = vcvt.s32.f32 %v559
      %v688 = vcvt.s32.f32 %v560
      %v689 = vcvt.s32.f32 %v561
      %v690 = vcvt.s32.f32 %v562
      %v691 = vcvt.s32.f32 %v563
      %v692 = vcvt.s32.f32 %v564
      %v693 = vcvt.s32.f32 %v565
      %v694 = vcvt.s32.f32 %v566
      %v695 = vcvt.s32.f32 %v567
      %v696 = vcvt.s32.f32 %v568
      %v697 = vcvt.s32.f32 %v569
      %v698 = vcvt.s32.f32 %v570
      %v699 = vcvt.s32.f32 %v571
      %v700 = vcvt.s32.f32 %v572
      %v701 = vcvt.s32.f32 %v573
      %v702 = vcvt.s32.f32 %v574
      %v703 = vcvt.s32.f32 %v575
      %v704 = vcvt.s32.f32 %v576
      %v705 = vcvt.s32.f32 %v577
      %v706 = vcvt.s32.f32 %v578
      %v707 = vcvt.s32.f32 %v579
      %v708 = vcvt.s32.f32 %v580
      %v709 = vcvt.s32.f32 %v581
      %v710 = vcvt.s32.f32 %v582
      %v711 = vcvt.s32.f32 %v583
      %v712 = vcvt.s32.f32 %v584
      %v713 = vcvt.s32.f32 %v585
      %v714 = vcvt.s32.f32 %v586
      %v715 = vcvt.s32.f32 %v587
      %v716 = vcvt.s32.f32 %v588
      %v717 = vcvt.s32.f32 %v589
      %v718 = vcvt.s32.f32 %v590
      %v719 = vcvt.s32.f32 %v591
      %v720 = vcvt.s32.f32 %v592
      %v721 = vcvt.s32.f32 %v593
      %v722 = vcvt.s32.f32 %v594
      %v723 = vcvt.s32.f32 %v595
      %v724 = vcvt.s32.f32 %v596
      %v725 = vcvt.s32.f32 %v597
      %v726 = vcvt.s32.f32 %v598
      %v727 = vcvt.s32.f32 %v599
      %v728 = vcvt.s32.f32 %v600
      %v729 = vcvt.s32.f32 %v601
      %v730 = vcvt.s32.f32 %v602
      %v731 = vcvt.s32.f32 %v603
      %v732 = vcvt.s32.f32 %v604
      %v733 = vcvt.s32.f32 %v605
      %v734 = vcvt.s32.f32 %v606
      %v735 = vcvt.s32.f32 %v607
      %v736 = vcvt.s32.f32 %v608
      %v737 = vcvt.s32.f32 %v609
      %v738 = vcvt.s32.f32 %v610
      %v739 = vcvt.s32.f32 %v611
      %v740 = vcvt.s32.f32 %v612
      %v741 = vcvt.s32.f32 %v613
      %v742 = vcvt.s32.f32 %v614
      %v743 = vcvt.s32.f32 %v615
      %v744 = vcvt.s32.f32 %v616
      %v745 = vcvt.s32.f32 %v617
      %v746 = vcvt.s32.f32 %v618
      %v747 = vcvt.s32.f32 %v619
      %v748 = vcvt.s32.f32 %v620
      %v749 = vcvt.s32.f32 %v621
      %v750 = vcvt.s32.f32 %v622
      %v751 = vcvt.s32.f32 %v623
      %v752 = vcvt.s32.f32 %v624
      %v753 = vcvt.s32.f32 %v625
      %v754 = vcvt.s32.f32 %v626
      %v755 = vcvt.s32.f32 %v627
      %v756 = vcvt.s32.f32 %v628
      %v757 = vcvt.s32.f32 %v629
      %v758 = vcvt.s32.f32 %v630
      %v759 = vcvt.s32.f32 %v631
      %v760 = vcvt.s32.f32 %v632
      %v761 = vcvt.s32.f32 %v633
      %v762 = vcvt.s32.f32 %v634
      %v763 = vcvt.s32.f32 %v635
      %v764 = vcvt.s32.f32 %v636
      %v765 = vcvt.s32.f32 %v637
      %v766 = vcvt.s32.f32 %v638
      %v767 = vcvt.s32.f32 %v639
      %v768 = vcvt.s32.f32 %v640
      %v769 = vcvt.s32.f32 %v641
      %v770 = vcvt.s32.f32 %v642
      %v771 = vcvt.s32.f32 %v643
      %v772 = vcvt.s32.f32 %v644
      %v773 = vcvt.s32.f32 %v645
      %v774 = vcvt.s32.f32 %v646
      %v775 = vcvt.s32.f32 %v647
      %v776 = vcvt.s32.f32 %v648
      %v777 = vcvt.s32.f32 %v649
      %v778 = vcvt.s32.f32 %v650
      %v779 = vcvt.s32.f32 %v651
      %v780 = vcvt.s32.f32 %v652
      %v781 = vcvt.s32.f32 %v653
      %v782 = vcvt.s32.f32 %v654
      %v783 = vcvt.s32.f32 %v655
      %v784 = vcvt.s32.f32 %v656
      %v785 = vcvt.s32.f32 %v657
      %v786 = vcvt.s32.f32 %v658
      %v787 = vcvt.s32.f32 %v659
      %v788 = vcvt.s32.f32 %v660
      %v789 = vcvt.s32.f32 %v661
      %v790 = vcvt.s32.f32 %v662
      %v791 = vcvt.s32.f32 %v663
      %v792 = vcvt.s32.f32 %v664
      %v793 = vcvt.s32.f32 %v665
      %v794 = vcvt.s32.f32 %v666
      %v795 = vcvt.s32.f32 %v667
      %v796 = vcvt.s32.f32 %v668
      %v797 = vcvt.s32.f32 %v669
      %v798 = vcvt.s32.f32 %v670
      %v799 = vcvt.s32.f32 %v671
      %v800 = vcvt.s32.f32 %v672
      %v801 = vcvt.s32.f32 %v673
      %v802 = vmax.f32 %v290, 0.0
      %v803 = vmax.f32 %v291, 0.0
      %v804 = vmax.f32 %v292, 0.0
      %v805 = vmax.f32 %v293, 0.0
      %v806 = vmax.f32 %v294, 0.0
      %v807 = vmax.f32 %v295, 0.0
      %v808 = vmax.f32 %v296, 0.0
      %v809 = vmax.f32 %v297, 0.0
      %v810 = vmax.f32 %v298, 0.0
      %v811 = vmax.f32 %v299, 0.0
      %v812 = vmax.f32 %v300, 0.0
      %v813 = vmax.f32 %v301, 0.0
      %v814 = vmax.f32 %v302, 0.0
      %v815 = vmax.f32 %v303, 0.0
      %v816 = vmax.f32 %v304, 0.0
      %v817 = vmax.f32 %v305, 0.0
      %v818 = vmax.f32 %v306, 0.0
      %v819 = vmax.f32 %v307, 0.0
      %v820 = vmax.f32 %v308, 0.0
      %v821 = vmax.f32 %v309, 0.0
      %v822 = vmax.f32 %v310, 0.0
      %v823 = vmax.f32 %v311, 0.0
      %v824 = vmax.f32 %v312, 0.0
      %v825 = vmax.f32 %v313, 0.0
      %v826 = vmax.f32 %v314, 0.0
      %v827 = vmax.f32 %v315, 0.0
      %v828 = vmax.f32 %v316, 0.0
      %v829 = vmax.f32 %v317, 0.0
      %v830 = vmax.f32 %v318, 0.0
      %v831 = vmax.f32 %v319, 0.0
      %v832 = vmax.f32 %v320, 0.0
      %v833 = vmax.f32 %v321, 0.0
      %v834 = vmax.f32 %v322, 0.0
      %v835 = vmax.f32 %v323, 0.0
      %v836 = vmax.f32 %v324, 0.0
      %v837 = vmax.f32 %v325, 0.0
      %v838 = vmax.f32 %v326, 0.0
      %v839 = vmax.f32 %v327, 0.0
      %v840 = vmax.f32 %v328, 0.0
      %v841 = vmax.f32 %v329, 0.0
      %v842 = vmax.f32 %v330, 0.0
      %v843 = vmax.f32 %v331, 0.0
      %v844 = vmax.f32 %v332, 0.0
      %v845 = vmax.f32 %v333, 0.0
      %v846 = vmax.f32 %v334, 0.0
      %v847 = vmax.f32 %v335, 0.0
      %v848 = vmax.f32 %v336, 0.0
      %v849 = vmax.f32 %v337, 0.0
      %v850 = vmax.f32 %v338, 0.0
      %v851 = vmax.f32 %v339, 0.0
      %v852 = vmax.f32 %v340, 0.0
      %v853 = vmax.f32 %v341, 0.0
      %v854 = vmax.f32 %v342, 0.0
      %v855 = vmax.f32 %v343, 0.0
      %v856 = vmax.f32 %v344, 0.0
      %v857 = vmax.f32 %v345, 0.0
      %v858 = vmax.f32 %v346, 0.0
      %v859 = vmax.f32 %v347, 0.0
      %v860 = vmax.f32 %v348, 0.0
      %v861 = vmax.f32 %v349, 0.0
      %v862 = vmax.f32 %v350, 0.0
      %v863 = vmax.f32 %v351, 0.0
      %v864 = vmax.f32 %v352, 0.0
      %v865 = vmax.f32 %v353, 0.0
      %v866 = vmax.f32 %v354, 0.0
      %v867 = vmax.f32 %v355, 0.0
      %v868 = vmax.f32 %v356, 0.0
      %v869 = vmax.f32 %v357, 0.0
      %v870 = vmax.f32 %v358, 0.0
      %v871 = vmax.f32 %v359, 0.0
      %v872 = vmax.f32 %v360, 0.0
      %v873 = vmax.f32 %v361, 0.0
      %v874 = vmax.f32 %v362, 0.0
      %v875 = vmax.f32 %v363, 0.0
      %v876 = vmax.f32 %v364, 0.0
      %v877 = vmax.f32 %v365, 0.0
      %v878 = vmax.f32 %v366, 0.0
      %v879 = vmax.f32 %v367, 0.0
      %v880 = vmax.f32 %v368, 0.0
      %v881 = vmax.f32 %v369, 0.0
      %v882 = vmax.f32 %v370, 0.0
      %v883 = vmax.f32 %v371, 0.0
      %v884 = vmax.f32 %v372, 0.0
      %v885 = vmax.f32 %v373, 0.0
      %v886 = vmax.f32 %v374, 0.0
      %v887 = vmax.f32 %v375, 0.0
      %v888 = vmax.f32 %v376, 0.0
      %v889 = vmax.f32 %v377, 0.0
      %v890 = vmax.f32 %v378, 0.0
      %v891 = vmax.f32 %v379, 0.0
      %v892 = vmax.f32 %v380, 0.0
      %v893 = vmax.f32 %v381, 0.0
      %v894 = vmax.f32 %v382, 0.0
      %v895 = vmax.f32 %v383, 0.0
      %v896 = vmax.f32 %v384, 0.0
      %v897 = vmax.f32 %v385, 0.0
      %v898 = vmax.f32 %v386, 0.0
      %v899 = vmax.f32 %v387, 0.0
      %v900 = vmax.f32 %v388, 0.0
      %v901 = vmax.f32 %v389, 0.0
      %v902 = vmax.f32 %v390, 0.0
      %v903 = vmax.f32 %v391, 0.0
      %v904 = vmax.f32 %v392, 0.0
      %v905 = vmax.f32 %v393, 0.0
      %v906 = vmax.f32 %v394, 0.0
      %v907 = vmax.f32 %v395, 0.0
      %v908 = vmax.f32 %v396, 0.0
      %v909 = vmax.f32 %v397, 0.0
      %v910 = vmax.f32 %v398, 0.0
      %v911 = vmax.f32 %v399, 0.0
      %v912 = vmax.f32 %v400, 0.0
      %v913 = vmax.f32 %v401, 0.0
      %v914 = vmax.f32 %v402, 0.0
      %v915 = vmax.f32 %v403, 0.0
      %v916 = vmax.f32 %v404, 0.0
      %v917 = vmax.f32 %v405, 0.0
      %v918 = vmax.f32 %v406, 0.0
      %v919 = vmax.f32 %v407, 0.0
      %v920 = vmax.f32 %v408, 0.0
      %v921 = vmax.f32 %v409, 0.0
      %v922 = vmax.f32 %v410, 0.0
      %v923 = vmax.f32 %v411, 0.0
      %v924 = vmax.f32 %v412, 0.0
      %v925 = vmax.f32 %v413, 0.0
      %v926 = vmax.f32 %v414, 0.0
      %v927 = vmax.f32 %v415, 0.0
      %v928 = vmax.f32 %v416, 0.0
      %v929 = vmax.f32 %v417, 0.0
      %v930 = vld [vmem:[%s218] sm:$0xff]
      %v931 = vld [vmem:[%s218 + $0x8] sm:$0xff]
      %v932 = vld [vmem:[%s218 + $0x10] sm:$0xff]
      %v933 = vld [vmem:[%s218 + $0x18] sm:$0xff]
      %v934 = vld [vmem:[%s218 + $0x20] sm:$0xff]
      %v935 = vld [vmem:[%s218 + $0x28] sm:$0xff]
      %v936 = vld [vmem:[%s218 + $0x30] sm:$0xff]
      %v937 = vld [vmem:[%s218 + $0x38] sm:$0xff]
      %v938 = vld [vmem:[%s218 + $0x40] sm:$0xff]
      %v939 = vld [vmem:[%s218 + $0x48] sm:$0xff]
      %v940 = vld [vmem:[%s218 + $0x50] sm:$0xff]
      %v941 = vld [vmem:[%s218 + $0x58] sm:$0xff]
      %v942 = vld [vmem:[%s218 + $0x60] sm:$0xff]
      %v943 = vld [vmem:[%s218 + $0x68] sm:$0xff]
      %v944 = vld [vmem:[%s218 + $0x70] sm:$0xff]
      %v945 = vld [vmem:[%s218 + $0x78] sm:$0xff]
      %v946 = vld [vmem:[%s218 + $0x80] sm:$0xff]
      %v947 = vld [vmem:[%s218 + $0x88] sm:$0xff]
      %v948 = vld [vmem:[%s218 + $0x90] sm:$0xff]
      %v949 = vld [vmem:[%s218 + $0x98] sm:$0xff]
      %v950 = vld [vmem:[%s218 + $0xa0] sm:$0xff]
      %v951 = vld [vmem:[%s218 + $0xa8] sm:$0xff]
      %v952 = vld [vmem:[%s218 + $0xb0] sm:$0xff]
      %v953 = vld [vmem:[%s218 + $0xb8] sm:$0xff]
      %v954 = vld [vmem:[%s218 + $0xc0] sm:$0xff]
      %v955 = vld [vmem:[%s218 + $0xc8] sm:$0xff]
      %v956 = vld [vmem:[%s218 + $0xd0] sm:$0xff]
      %v957 = vld [vmem:[%s218 + $0xd8] sm:$0xff]
      %v958 = vld [vmem:[%s218 + $0xe0] sm:$0xff]
      %v959 = vld [vmem:[%s218 + $0xe8] sm:$0xff]
      %v960 = vld [vmem:[%s218 + $0xf0] sm:$0xff]
      %v961 = vld [vmem:[%s218 + $0xf8] sm:$0xff]
      %v962 = vld [vmem:[%s2] sm:$0xf]
      %964 = vset.pattern.permute.xlu0 0
      %965 = vperm.xlu0 %964, %v930
      %v966 = vpop.permute.xlu0 %965
      %969 = vset.pattern.permute.xlu0 0
      %970 = vperm.xlu0 %969, %v931
      %v971 = vpop.permute.xlu0 %970
      %974 = vset.pattern.permute.xlu0 0
      %975 = vperm.xlu0 %974, %v932
      %v976 = vpop.permute.xlu0 %975
      %979 = vset.pattern.permute.xlu0 0
      %980 = vperm.xlu0 %979, %v933
      %v981 = vpop.permute.xlu0 %980
      %984 = vset.pattern.permute.xlu0 0
      %985 = vperm.xlu0 %984, %v934
      %v986 = vpop.permute.xlu0 %985
      %989 = vset.pattern.permute.xlu0 0
      %990 = vperm.xlu0 %989, %v935
      %v991 = vpop.permute.xlu0 %990
      %994 = vset.pattern.permute.xlu0 0
      %995 = vperm.xlu0 %994, %v936
      %v996 = vpop.permute.xlu0 %995
      %999 = vset.pattern.permute.xlu0 0
      %1000 = vperm.xlu0 %999, %v937
      %v1001 = vpop.permute.xlu0 %1000
      %1004 = vset.pattern.permute.xlu0 0
      %1005 = vperm.xlu0 %1004, %v938
      %v1006 = vpop.permute.xlu0 %1005
      %1009 = vset.pattern.permute.xlu0 0
      %1010 = vperm.xlu0 %1009, %v939
      %v1011 = vpop.permute.xlu0 %1010
      %1014 = vset.pattern.permute.xlu0 0
      %1015 = vperm.xlu0 %1014, %v940
      %v1016 = vpop.permute.xlu0 %1015
      %1019 = vset.pattern.permute.xlu0 0
      %1020 = vperm.xlu0 %1019, %v941
      %v1021 = vpop.permute.xlu0 %1020
      %1024 = vset.pattern.permute.xlu0 0
      %1025 = vperm.xlu0 %1024, %v942
      %v1026 = vpop.permute.xlu0 %1025
      %1029 = vset.pattern.permute.xlu0 0
      %1030 = vperm.xlu0 %1029, %v943
      %v1031 = vpop.permute.xlu0 %1030
      %1034 = vset.pattern.permute.xlu0 0
      %1035 = vperm.xlu0 %1034, %v944
      %v1036 = vpop.permute.xlu0 %1035
      %1039 = vset.pattern.permute.xlu0 0
      %1040 = vperm.xlu0 %1039, %v945
      %v1041 = vpop.permute.xlu0 %1040
      %1044 = vset.pattern.permute.xlu0 0
      %1045 = vperm.xlu0 %1044, %v946
      %v1046 = vpop.permute.xlu0 %1045
      %1049 = vset.pattern.permute.xlu0 0
      %1050 = vperm.xlu0 %1049, %v947
      %v1051 = vpop.permute.xlu0 %1050
      %1054 = vset.pattern.permute.xlu0 0
      %1055 = vperm.xlu0 %1054, %v948
      %v1056 = vpop.permute.xlu0 %1055
      %1059 = vset.pattern.permute.xlu0 0
      %1060 = vperm.xlu0 %1059, %v949
      %v1061 = vpop.permute.xlu0 %1060
      %1064 = vset.pattern.permute.xlu0 0
      %1065 = vperm.xlu0 %1064, %v950
      %v1066 = vpop.permute.xlu0 %1065
      %1069 = vset.pattern.permute.xlu0 0
      %1070 = vperm.xlu0 %1069, %v951
      %v1071 = vpop.permute.xlu0 %1070
      %1074 = vset.pattern.permute.xlu0 0
      %1075 = vperm.xlu0 %1074, %v952
      %v1076 = vpop.permute.xlu0 %1075
      %1079 = vset.pattern.permute.xlu0 0
      %1080 = vperm.xlu0 %1079, %v953
      %v1081 = vpop.permute.xlu0 %1080
      %1084 = vset.pattern.permute.xlu0 0
      %1085 = vperm.xlu0 %1084, %v954
      %v1086 = vpop.permute.xlu0 %1085
      %1089 = vset.pattern.permute.xlu0 0
      %1090 = vperm.xlu0 %1089, %v955
      %v1091 = vpop.permute.xlu0 %1090
      %1094 = vset.pattern.permute.xlu0 0
      %1095 = vperm.xlu0 %1094, %v956
      %v1096 = vpop.permute.xlu0 %1095
      %1099 = vset.pattern.permute.xlu0 0
      %1100 = vperm.xlu0 %1099, %v957
      %v1101 = vpop.permute.xlu0 %1100
      %1104 = vset.pattern.permute.xlu0 0
      %1105 = vperm.xlu0 %1104, %v958
      %v1106 = vpop.permute.xlu0 %1105
      %1109 = vset.pattern.permute.xlu0 0
      %1110 = vperm.xlu0 %1109, %v959
      %v1111 = vpop.permute.xlu0 %1110
      %1114 = vset.pattern.permute.xlu0 0
      %1115 = vperm.xlu0 %1114, %v960
      %v1116 = vpop.permute.xlu0 %1115
      %1119 = vset.pattern.permute.xlu0 0
      %1120 = vperm.xlu0 %1119, %v961
      %v1121 = vpop.permute.xlu0 %1120
      %v1124 = vperm.slane %v962, 0
      %v1125 = vperm.slane %v962, 1
      %v1126 = vperm.slane %v962, 2
      %v1127 = vperm.slane %v962, 3
      %v1132 = vadd.f32 %v966, %v1124
      %v1133 = vadd.f32 %v966, %v1125
      %v1134 = vadd.f32 %v966, %v1126
      %v1135 = vadd.f32 %v966, %v1127
      %v1136 = vadd.f32 %v971, %v1124
      %v1137 = vadd.f32 %v971, %v1125
      %v1138 = vadd.f32 %v971, %v1126
      %v1139 = vadd.f32 %v971, %v1127
      %v1140 = vadd.f32 %v976, %v1124
      %v1141 = vadd.f32 %v976, %v1125
      %v1142 = vadd.f32 %v976, %v1126
      %v1143 = vadd.f32 %v976, %v1127
      %v1144 = vadd.f32 %v981, %v1124
      %v1145 = vadd.f32 %v981, %v1125
      %v1146 = vadd.f32 %v981, %v1126
      %v1147 = vadd.f32 %v981, %v1127
      %v1148 = vadd.f32 %v986, %v1124
      %v1149 = vadd.f32 %v986, %v1125
      %v1150 = vadd.f32 %v986, %v1126
      %v1151 = vadd.f32 %v986, %v1127
      %v1152 = vadd.f32 %v991, %v1124
      %v1153 = vadd.f32 %v991, %v1125
      %v1154 = vadd.f32 %v991, %v1126
      %v1155 = vadd.f32 %v991, %v1127
      %v1156 = vadd.f32 %v996, %v1124
      %v1157 = vadd.f32 %v996, %v1125
      %v1158 = vadd.f32 %v996, %v1126
      %v1159 = vadd.f32 %v996, %v1127
      %v1160 = vadd.f32 %v1001, %v1124
      %v1161 = vadd.f32 %v1001, %v1125
      %v1162 = vadd.f32 %v1001, %v1126
      %v1163 = vadd.f32 %v1001, %v1127
      %v1164 = vadd.f32 %v1006, %v1124
      %v1165 = vadd.f32 %v1006, %v1125
      %v1166 = vadd.f32 %v1006, %v1126
      %v1167 = vadd.f32 %v1006, %v1127
      %v1168 = vadd.f32 %v1011, %v1124
      %v1169 = vadd.f32 %v1011, %v1125
      %v1170 = vadd.f32 %v1011, %v1126
      %v1171 = vadd.f32 %v1011, %v1127
      %v1172 = vadd.f32 %v1016, %v1124
      %v1173 = vadd.f32 %v1016, %v1125
      %v1174 = vadd.f32 %v1016, %v1126
      %v1175 = vadd.f32 %v1016, %v1127
      %v1176 = vadd.f32 %v1021, %v1124
      %v1177 = vadd.f32 %v1021, %v1125
      %v1178 = vadd.f32 %v1021, %v1126
      %v1179 = vadd.f32 %v1021, %v1127
      %v1180 = vadd.f32 %v1026, %v1124
      %v1181 = vadd.f32 %v1026, %v1125
      %v1182 = vadd.f32 %v1026, %v1126
      %v1183 = vadd.f32 %v1026, %v1127
      %v1184 = vadd.f32 %v1031, %v1124
      %v1185 = vadd.f32 %v1031, %v1125
      %v1186 = vadd.f32 %v1031, %v1126
      %v1187 = vadd.f32 %v1031, %v1127
      %v1188 = vadd.f32 %v1036, %v1124
      %v1189 = vadd.f32 %v1036, %v1125
      %v1190 = vadd.f32 %v1036, %v1126
      %v1191 = vadd.f32 %v1036, %v1127
      %v1192 = vadd.f32 %v1041, %v1124
      %v1193 = vadd.f32 %v1041, %v1125
      %v1194 = vadd.f32 %v1041, %v1126
      %v1195 = vadd.f32 %v1041, %v1127
      %v1196 = vadd.f32 %v1046, %v1124
      %v1197 = vadd.f32 %v1046, %v1125
      %v1198 = vadd.f32 %v1046, %v1126
      %v1199 = vadd.f32 %v1046, %v1127
      %v1200 = vadd.f32 %v1051, %v1124
      %v1201 = vadd.f32 %v1051, %v1125
      %v1202 = vadd.f32 %v1051, %v1126
      %v1203 = vadd.f32 %v1051, %v1127
      %v1204 = vadd.f32 %v1056, %v1124
      %v1205 = vadd.f32 %v1056, %v1125
      %v1206 = vadd.f32 %v1056, %v1126
      %v1207 = vadd.f32 %v1056, %v1127
      %v1208 = vadd.f32 %v1061, %v1124
      %v1209 = vadd.f32 %v1061, %v1125
      %v1210 = vadd.f32 %v1061, %v1126
      %v1211 = vadd.f32 %v1061, %v1127
      %v1212 = vadd.f32 %v1066, %v1124
      %v1213 = vadd.f32 %v1066, %v1125
      %v1214 = vadd.f32 %v1066, %v1126
      %v1215 = vadd.f32 %v1066, %v1127
      %v1216 = vadd.f32 %v1071, %v1124
      %v1217 = vadd.f32 %v1071, %v1125
      %v1218 = vadd.f32 %v1071, %v1126
      %v1219 = vadd.f32 %v1071, %v1127
      %v1220 = vadd.f32 %v1076, %v1124
      %v1221 = vadd.f32 %v1076, %v1125
      %v1222 = vadd.f32 %v1076, %v1126
      %v1223 = vadd.f32 %v1076, %v1127
      %v1224 = vadd.f32 %v1081, %v1124
      %v1225 = vadd.f32 %v1081, %v1125
      %v1226 = vadd.f32 %v1081, %v1126
      %v1227 = vadd.f32 %v1081, %v1127
      %v1228 = vadd.f32 %v1086, %v1124
      %v1229 = vadd.f32 %v1086, %v1125
      %v1230 = vadd.f32 %v1086, %v1126
      %v1231 = vadd.f32 %v1086, %v1127
      %v1232 = vadd.f32 %v1091, %v1124
      %v1233 = vadd.f32 %v1091, %v1125
      %v1234 = vadd.f32 %v1091, %v1126
      %v1235 = vadd.f32 %v1091, %v1127
      %v1236 = vadd.f32 %v1096, %v1124
      %v1237 = vadd.f32 %v1096, %v1125
      %v1238 = vadd.f32 %v1096, %v1126
      %v1239 = vadd.f32 %v1096, %v1127
      %v1240 = vadd.f32 %v1101, %v1124
      %v1241 = vadd.f32 %v1101, %v1125
      %v1242 = vadd.f32 %v1101, %v1126
      %v1243 = vadd.f32 %v1101, %v1127
      %v1244 = vadd.f32 %v1106, %v1124
      %v1245 = vadd.f32 %v1106, %v1125
      %v1246 = vadd.f32 %v1106, %v1126
      %v1247 = vadd.f32 %v1106, %v1127
      %v1248 = vadd.f32 %v1111, %v1124
      %v1249 = vadd.f32 %v1111, %v1125
      %v1250 = vadd.f32 %v1111, %v1126
      %v1251 = vadd.f32 %v1111, %v1127
      %v1252 = vadd.f32 %v1116, %v1124
      %v1253 = vadd.f32 %v1116, %v1125
      %v1254 = vadd.f32 %v1116, %v1126
      %v1255 = vadd.f32 %v1116, %v1127
      %v1256 = vadd.f32 %v1121, %v1124
      %v1257 = vadd.f32 %v1121, %v1125
      %v1258 = vadd.f32 %v1121, %v1126
      %v1259 = vadd.f32 %v1121, %v1127
      %v1260 = vmul.f32 %v1132, %v802
      %v1261 = vmul.f32 %v1133, %v803
      %v1262 = vmul.f32 %v1134, %v804
      %v1263 = vmul.f32 %v1135, %v805
      %v1264 = vmul.f32 %v1136, %v806
      %v1265 = vmul.f32 %v1137, %v807
      %v1266 = vmul.f32 %v1138, %v808
      %v1267 = vmul.f32 %v1139, %v809
      %v1268 = vmul.f32 %v1140, %v810
      %v1269 = vmul.f32 %v1141, %v811
      %v1270 = vmul.f32 %v1142, %v812
      %v1271 = vmul.f32 %v1143, %v813
      %v1272 = vmul.f32 %v1144, %v814
      %v1273 = vmul.f32 %v1145, %v815
      %v1274 = vmul.f32 %v1146, %v816
      %v1275 = vmul.f32 %v1147, %v817
      %v1276 = vmul.f32 %v1148, %v818
      %v1277 = vmul.f32 %v1149, %v819
      %v1278 = vmul.f32 %v1150, %v820
      %v1279 = vmul.f32 %v1151, %v821
      %v1280 = vmul.f32 %v1152, %v822
      %v1281 = vmul.f32 %v1153, %v823
      %v1282 = vmul.f32 %v1154, %v824
      %v1283 = vmul.f32 %v1155, %v825
      %v1284 = vmul.f32 %v1156, %v826
      %v1285 = vmul.f32 %v1157, %v827
      %v1286 = vmul.f32 %v1158, %v828
      %v1287 = vmul.f32 %v1159, %v829
      %v1288 = vmul.f32 %v1160, %v830
      %v1289 = vmul.f32 %v1161, %v831
      %v1290 = vmul.f32 %v1162, %v832
      %v1291 = vmul.f32 %v1163, %v833
      %v1292 = vmul.f32 %v1164, %v834
      %v1293 = vmul.f32 %v1165, %v835
      %v1294 = vmul.f32 %v1166, %v836
      %v1295 = vmul.f32 %v1167, %v837
      %v1296 = vmul.f32 %v1168, %v838
      %v1297 = vmul.f32 %v1169, %v839
      %v1298 = vmul.f32 %v1170, %v840
      %v1299 = vmul.f32 %v1171, %v841
      %v1300 = vmul.f32 %v1172, %v842
      %v1301 = vmul.f32 %v1173, %v843
      %v1302 = vmul.f32 %v1174, %v844
      %v1303 = vmul.f32 %v1175, %v845
      %v1304 = vmul.f32 %v1176, %v846
      %v1305 = vmul.f32 %v1177, %v847
      %v1306 = vmul.f32 %v1178, %v848
      %v1307 = vmul.f32 %v1179, %v849
      %v1308 = vmul.f32 %v1180, %v850
      %v1309 = vmul.f32 %v1181, %v851
      %v1310 = vmul.f32 %v1182, %v852
      %v1311 = vmul.f32 %v1183, %v853
      %v1312 = vmul.f32 %v1184, %v854
      %v1313 = vmul.f32 %v1185, %v855
      %v1314 = vmul.f32 %v1186, %v856
      %v1315 = vmul.f32 %v1187, %v857
      %v1316 = vmul.f32 %v1188, %v858
      %v1317 = vmul.f32 %v1189, %v859
      %v1318 = vmul.f32 %v1190, %v860
      %v1319 = vmul.f32 %v1191, %v861
      %v1320 = vmul.f32 %v1192, %v862
      %v1321 = vmul.f32 %v1193, %v863
      %v1322 = vmul.f32 %v1194, %v864
      %v1323 = vmul.f32 %v1195, %v865
      %v1324 = vmul.f32 %v1196, %v866
      %v1325 = vmul.f32 %v1197, %v867
      %v1326 = vmul.f32 %v1198, %v868
      %v1327 = vmul.f32 %v1199, %v869
      %v1328 = vmul.f32 %v1200, %v870
      %v1329 = vmul.f32 %v1201, %v871
      %v1330 = vmul.f32 %v1202, %v872
      %v1331 = vmul.f32 %v1203, %v873
      %v1332 = vmul.f32 %v1204, %v874
      %v1333 = vmul.f32 %v1205, %v875
      %v1334 = vmul.f32 %v1206, %v876
      %v1335 = vmul.f32 %v1207, %v877
      %v1336 = vmul.f32 %v1208, %v878
      %v1337 = vmul.f32 %v1209, %v879
      %v1338 = vmul.f32 %v1210, %v880
      %v1339 = vmul.f32 %v1211, %v881
      %v1340 = vmul.f32 %v1212, %v882
      %v1341 = vmul.f32 %v1213, %v883
      %v1342 = vmul.f32 %v1214, %v884
      %v1343 = vmul.f32 %v1215, %v885
      %v1344 = vmul.f32 %v1216, %v886
      %v1345 = vmul.f32 %v1217, %v887
      %v1346 = vmul.f32 %v1218, %v888
      %v1347 = vmul.f32 %v1219, %v889
      %v1348 = vmul.f32 %v1220, %v890
      %v1349 = vmul.f32 %v1221, %v891
      %v1350 = vmul.f32 %v1222, %v892
      %v1351 = vmul.f32 %v1223, %v893
      %v1352 = vmul.f32 %v1224, %v894
      %v1353 = vmul.f32 %v1225, %v895
      %v1354 = vmul.f32 %v1226, %v896
      %v1355 = vmul.f32 %v1227, %v897
      %v1356 = vmul.f32 %v1228, %v898
      %v1357 = vmul.f32 %v1229, %v899
      %v1358 = vmul.f32 %v1230, %v900
      %v1359 = vmul.f32 %v1231, %v901
      %v1360 = vmul.f32 %v1232, %v902
      %v1361 = vmul.f32 %v1233, %v903
      %v1362 = vmul.f32 %v1234, %v904
      %v1363 = vmul.f32 %v1235, %v905
      %v1364 = vmul.f32 %v1236, %v906
      %v1365 = vmul.f32 %v1237, %v907
      %v1366 = vmul.f32 %v1238, %v908
      %v1367 = vmul.f32 %v1239, %v909
      %v1368 = vmul.f32 %v1240, %v910
      %v1369 = vmul.f32 %v1241, %v911
      %v1370 = vmul.f32 %v1242, %v912
      %v1371 = vmul.f32 %v1243, %v913
      %v1372 = vmul.f32 %v1244, %v914
      %v1373 = vmul.f32 %v1245, %v915
      %v1374 = vmul.f32 %v1246, %v916
      %v1375 = vmul.f32 %v1247, %v917
      %v1376 = vmul.f32 %v1248, %v918
      %v1377 = vmul.f32 %v1249, %v919
      %v1378 = vmul.f32 %v1250, %v920
      %v1379 = vmul.f32 %v1251, %v921
      %v1380 = vmul.f32 %v1252, %v922
      %v1381 = vmul.f32 %v1253, %v923
      %v1382 = vmul.f32 %v1254, %v924
      %v1383 = vmul.f32 %v1255, %v925
      %v1384 = vmul.f32 %v1256, %v926
      %v1385 = vmul.f32 %v1257, %v927
      %v1386 = vmul.f32 %v1258, %v928
      %v1387 = vmul.f32 %v1259, %v929
      %v1388 = vmul.f32 %v1260, 0.2
      %v1389 = vmul.f32 %v1261, 0.2
      %v1390 = vmul.f32 %v1262, 0.2
      %v1391 = vmul.f32 %v1263, 0.2
      %v1392 = vmul.f32 %v1264, 0.2
      %v1393 = vmul.f32 %v1265, 0.2
      %v1394 = vmul.f32 %v1266, 0.2
      %v1395 = vmul.f32 %v1267, 0.2
      %v1396 = vmul.f32 %v1268, 0.2
      %v1397 = vmul.f32 %v1269, 0.2
      %v1398 = vmul.f32 %v1270, 0.2
      %v1399 = vmul.f32 %v1271, 0.2
      %v1400 = vmul.f32 %v1272, 0.2
      %v1401 = vmul.f32 %v1273, 0.2
      %v1402 = vmul.f32 %v1274, 0.2
      %v1403 = vmul.f32 %v1275, 0.2
      %v1404 = vmul.f32 %v1276, 0.2
      %v1405 = vmul.f32 %v1277, 0.2
      %v1406 = vmul.f32 %v1278, 0.2
      %v1407 = vmul.f32 %v1279, 0.2
      %v1408 = vmul.f32 %v1280, 0.2
      %v1409 = vmul.f32 %v1281, 0.2
      %v1410 = vmul.f32 %v1282, 0.2
      %v1411 = vmul.f32 %v1283, 0.2
      %v1412 = vmul.f32 %v1284, 0.2
      %v1413 = vmul.f32 %v1285, 0.2
      %v1414 = vmul.f32 %v1286, 0.2
      %v1415 = vmul.f32 %v1287, 0.2
      %v1416 = vmul.f32 %v1288, 0.2
      %v1417 = vmul.f32 %v1289, 0.2
      %v1418 = vmul.f32 %v1290, 0.2
      %v1419 = vmul.f32 %v1291, 0.2
      %v1420 = vmul.f32 %v1292, 0.2
      %v1421 = vmul.f32 %v1293, 0.2
      %v1422 = vmul.f32 %v1294, 0.2
      %v1423 = vmul.f32 %v1295, 0.2
      %v1424 = vmul.f32 %v1296, 0.2
      %v1425 = vmul.f32 %v1297, 0.2
      %v1426 = vmul.f32 %v1298, 0.2
      %v1427 = vmul.f32 %v1299, 0.2
      %v1428 = vmul.f32 %v1300, 0.2
      %v1429 = vmul.f32 %v1301, 0.2
      %v1430 = vmul.f32 %v1302, 0.2
      %v1431 = vmul.f32 %v1303, 0.2
      %v1432 = vmul.f32 %v1304, 0.2
      %v1433 = vmul.f32 %v1305, 0.2
      %v1434 = vmul.f32 %v1306, 0.2
      %v1435 = vmul.f32 %v1307, 0.2
      %v1436 = vmul.f32 %v1308, 0.2
      %v1437 = vmul.f32 %v1309, 0.2
      %v1438 = vmul.f32 %v1310, 0.2
      %v1439 = vmul.f32 %v1311, 0.2
      %v1440 = vmul.f32 %v1312, 0.2
      %v1441 = vmul.f32 %v1313, 0.2
      %v1442 = vmul.f32 %v1314, 0.2
      %v1443 = vmul.f32 %v1315, 0.2
      %v1444 = vmul.f32 %v1316, 0.2
      %v1445 = vmul.f32 %v1317, 0.2
      %v1446 = vmul.f32 %v1318, 0.2
      %v1447 = vmul.f32 %v1319, 0.2
      %v1448 = vmul.f32 %v1320, 0.2
      %v1449 = vmul.f32 %v1321, 0.2
      %v1450 = vmul.f32 %v1322, 0.2
      %v1451 = vmul.f32 %v1323, 0.2
      %v1452 = vmul.f32 %v1324, 0.2
      %v1453 = vmul.f32 %v1325, 0.2
      %v1454 = vmul.f32 %v1326, 0.2
      %v1455 = vmul.f32 %v1327, 0.2
      %v1456 = vmul.f32 %v1328, 0.2
      %v1457 = vmul.f32 %v1329, 0.2
      %v1458 = vmul.f32 %v1330, 0.2
      %v1459 = vmul.f32 %v1331, 0.2
      %v1460 = vmul.f32 %v1332, 0.2
      %v1461 = vmul.f32 %v1333, 0.2
      %v1462 = vmul.f32 %v1334, 0.2
      %v1463 = vmul.f32 %v1335, 0.2
      %v1464 = vmul.f32 %v1336, 0.2
      %v1465 = vmul.f32 %v1337, 0.2
      %v1466 = vmul.f32 %v1338, 0.2
      %v1467 = vmul.f32 %v1339, 0.2
      %v1468 = vmul.f32 %v1340, 0.2
      %v1469 = vmul.f32 %v1341, 0.2
      %v1470 = vmul.f32 %v1342, 0.2
      %v1471 = vmul.f32 %v1343, 0.2
      %v1472 = vmul.f32 %v1344, 0.2
      %v1473 = vmul.f32 %v1345, 0.2
      %v1474 = vmul.f32 %v1346, 0.2
      %v1475 = vmul.f32 %v1347, 0.2
      %v1476 = vmul.f32 %v1348, 0.2
      %v1477 = vmul.f32 %v1349, 0.2
      %v1478 = vmul.f32 %v1350, 0.2
      %v1479 = vmul.f32 %v1351, 0.2
      %v1480 = vmul.f32 %v1352, 0.2
      %v1481 = vmul.f32 %v1353, 0.2
      %v1482 = vmul.f32 %v1354, 0.2
      %v1483 = vmul.f32 %v1355, 0.2
      %v1484 = vmul.f32 %v1356, 0.2
      %v1485 = vmul.f32 %v1357, 0.2
      %v1486 = vmul.f32 %v1358, 0.2
      %v1487 = vmul.f32 %v1359, 0.2
      %v1488 = vmul.f32 %v1360, 0.2
      %v1489 = vmul.f32 %v1361, 0.2
      %v1490 = vmul.f32 %v1362, 0.2
      %v1491 = vmul.f32 %v1363, 0.2
      %v1492 = vmul.f32 %v1364, 0.2
      %v1493 = vmul.f32 %v1365, 0.2
      %v1494 = vmul.f32 %v1366, 0.2
      %v1495 = vmul.f32 %v1367, 0.2
      %v1496 = vmul.f32 %v1368, 0.2
      %v1497 = vmul.f32 %v1369, 0.2
      %v1498 = vmul.f32 %v1370, 0.2
      %v1499 = vmul.f32 %v1371, 0.2
      %v1500 = vmul.f32 %v1372, 0.2
      %v1501 = vmul.f32 %v1373, 0.2
      %v1502 = vmul.f32 %v1374, 0.2
      %v1503 = vmul.f32 %v1375, 0.2
      %v1504 = vmul.f32 %v1376, 0.2
      %v1505 = vmul.f32 %v1377, 0.2
      %v1506 = vmul.f32 %v1378, 0.2
      %v1507 = vmul.f32 %v1379, 0.2
      %v1508 = vmul.f32 %v1380, 0.2
      %v1509 = vmul.f32 %v1381, 0.2
      %v1510 = vmul.f32 %v1382, 0.2
      %v1511 = vmul.f32 %v1383, 0.2
      %v1512 = vmul.f32 %v1384, 0.2
      %v1513 = vmul.f32 %v1385, 0.2
      %v1514 = vmul.f32 %v1386, 0.2
      %v1515 = vmul.f32 %v1387, 0.2
      %v1516 = vmax.f32 %v1260, %v1388
      %v1517 = vmax.f32 %v1261, %v1389
      %v1518 = vmax.f32 %v1262, %v1390
      %v1519 = vmax.f32 %v1263, %v1391
      %v1520 = vmax.f32 %v1264, %v1392
      %v1521 = vmax.f32 %v1265, %v1393
      %v1522 = vmax.f32 %v1266, %v1394
      %v1523 = vmax.f32 %v1267, %v1395
      %v1524 = vmax.f32 %v1268, %v1396
      %v1525 = vmax.f32 %v1269, %v1397
      %v1526 = vmax.f32 %v1270, %v1398
      %v1527 = vmax.f32 %v1271, %v1399
      %v1528 = vmax.f32 %v1272, %v1400
      %v1529 = vmax.f32 %v1273, %v1401
      %v1530 = vmax.f32 %v1274, %v1402
      %v1531 = vmax.f32 %v1275, %v1403
      %v1532 = vmax.f32 %v1276, %v1404
      %v1533 = vmax.f32 %v1277, %v1405
      %v1534 = vmax.f32 %v1278, %v1406
      %v1535 = vmax.f32 %v1279, %v1407
      %v1536 = vmax.f32 %v1280, %v1408
      %v1537 = vmax.f32 %v1281, %v1409
      %v1538 = vmax.f32 %v1282, %v1410
      %v1539 = vmax.f32 %v1283, %v1411
      %v1540 = vmax.f32 %v1284, %v1412
      %v1541 = vmax.f32 %v1285, %v1413
      %v1542 = vmax.f32 %v1286, %v1414
      %v1543 = vmax.f32 %v1287, %v1415
      %v1544 = vmax.f32 %v1288, %v1416
      %v1545 = vmax.f32 %v1289, %v1417
      %v1546 = vmax.f32 %v1290, %v1418
      %v1547 = vmax.f32 %v1291, %v1419
      %v1548 = vmax.f32 %v1292, %v1420
      %v1549 = vmax.f32 %v1293, %v1421
      %v1550 = vmax.f32 %v1294, %v1422
      %v1551 = vmax.f32 %v1295, %v1423
      %v1552 = vmax.f32 %v1296, %v1424
      %v1553 = vmax.f32 %v1297, %v1425
      %v1554 = vmax.f32 %v1298, %v1426
      %v1555 = vmax.f32 %v1299, %v1427
      %v1556 = vmax.f32 %v1300, %v1428
      %v1557 = vmax.f32 %v1301, %v1429
      %v1558 = vmax.f32 %v1302, %v1430
      %v1559 = vmax.f32 %v1303, %v1431
      %v1560 = vmax.f32 %v1304, %v1432
      %v1561 = vmax.f32 %v1305, %v1433
      %v1562 = vmax.f32 %v1306, %v1434
      %v1563 = vmax.f32 %v1307, %v1435
      %v1564 = vmax.f32 %v1308, %v1436
      %v1565 = vmax.f32 %v1309, %v1437
      %v1566 = vmax.f32 %v1310, %v1438
      %v1567 = vmax.f32 %v1311, %v1439
      %v1568 = vmax.f32 %v1312, %v1440
      %v1569 = vmax.f32 %v1313, %v1441
      %v1570 = vmax.f32 %v1314, %v1442
      %v1571 = vmax.f32 %v1315, %v1443
      %v1572 = vmax.f32 %v1316, %v1444
      %v1573 = vmax.f32 %v1317, %v1445
      %v1574 = vmax.f32 %v1318, %v1446
      %v1575 = vmax.f32 %v1319, %v1447
      %v1576 = vmax.f32 %v1320, %v1448
      %v1577 = vmax.f32 %v1321, %v1449
      %v1578 = vmax.f32 %v1322, %v1450
      %v1579 = vmax.f32 %v1323, %v1451
      %v1580 = vmax.f32 %v1324, %v1452
      %v1581 = vmax.f32 %v1325, %v1453
      %v1582 = vmax.f32 %v1326, %v1454
      %v1583 = vmax.f32 %v1327, %v1455
      %v1584 = vmax.f32 %v1328, %v1456
      %v1585 = vmax.f32 %v1329, %v1457
      %v1586 = vmax.f32 %v1330, %v1458
      %v1587 = vmax.f32 %v1331, %v1459
      %v1588 = vmax.f32 %v1332, %v1460
      %v1589 = vmax.f32 %v1333, %v1461
      %v1590 = vmax.f32 %v1334, %v1462
      %v1591 = vmax.f32 %v1335, %v1463
      %v1592 = vmax.f32 %v1336, %v1464
      %v1593 = vmax.f32 %v1337, %v1465
      %v1594 = vmax.f32 %v1338, %v1466
      %v1595 = vmax.f32 %v1339, %v1467
      %v1596 = vmax.f32 %v1340, %v1468
      %v1597 = vmax.f32 %v1341, %v1469
      %v1598 = vmax.f32 %v1342, %v1470
      %v1599 = vmax.f32 %v1343, %v1471
      %v1600 = vmax.f32 %v1344, %v1472
      %v1601 = vmax.f32 %v1345, %v1473
      %v1602 = vmax.f32 %v1346, %v1474
      %v1603 = vmax.f32 %v1347, %v1475
      %v1604 = vmax.f32 %v1348, %v1476
      %v1605 = vmax.f32 %v1349, %v1477
      %v1606 = vmax.f32 %v1350, %v1478
      %v1607 = vmax.f32 %v1351, %v1479
      %v1608 = vmax.f32 %v1352, %v1480
      %v1609 = vmax.f32 %v1353, %v1481
      %v1610 = vmax.f32 %v1354, %v1482
      %v1611 = vmax.f32 %v1355, %v1483
      %v1612 = vmax.f32 %v1356, %v1484
      %v1613 = vmax.f32 %v1357, %v1485
      %v1614 = vmax.f32 %v1358, %v1486
      %v1615 = vmax.f32 %v1359, %v1487
      %v1616 = vmax.f32 %v1360, %v1488
      %v1617 = vmax.f32 %v1361, %v1489
      %v1618 = vmax.f32 %v1362, %v1490
      %v1619 = vmax.f32 %v1363, %v1491
      %v1620 = vmax.f32 %v1364, %v1492
      %v1621 = vmax.f32 %v1365, %v1493
      %v1622 = vmax.f32 %v1366, %v1494
      %v1623 = vmax.f32 %v1367, %v1495
      %v1624 = vmax.f32 %v1368, %v1496
      %v1625 = vmax.f32 %v1369, %v1497
      %v1626 = vmax.f32 %v1370, %v1498
      %v1627 = vmax.f32 %v1371, %v1499
      %v1628 = vmax.f32 %v1372, %v1500
      %v1629 = vmax.f32 %v1373, %v1501
      %v1630 = vmax.f32 %v1374, %v1502
      %v1631 = vmax.f32 %v1375, %v1503
      %v1632 = vmax.f32 %v1376, %v1504
      %v1633 = vmax.f32 %v1377, %v1505
      %v1634 = vmax.f32 %v1378, %v1506
      %v1635 = vmax.f32 %v1379, %v1507
      %v1636 = vmax.f32 %v1380, %v1508
      %v1637 = vmax.f32 %v1381, %v1509
      %v1638 = vmax.f32 %v1382, %v1510
      %v1639 = vmax.f32 %v1383, %v1511
      %v1640 = vmax.f32 %v1384, %v1512
      %v1641 = vmax.f32 %v1385, %v1513
      %v1642 = vmax.f32 %v1386, %v1514
      %v1643 = vmax.f32 %v1387, %v1515
      %v1644 = vmax.f32 %v1516, %v1517
      %v1645 = vmax.f32 %v1644, %v1518
      %v1646 = vmax.f32 %v1645, %v1519
      %1647 = vmax.xlane.f32.xlu0 %v1646
      %v1648 = vpop.xlane.xlu0 %1647
      %v1649 = vmax.f32 %v1520, %v1521
      %v1650 = vmax.f32 %v1649, %v1522
      %v1651 = vmax.f32 %v1650, %v1523
      %1652 = vmax.xlane.f32.xlu0 %v1651
      %v1653 = vpop.xlane.xlu0 %1652
      %v1654 = vmax.f32 %v1524, %v1525
      %v1655 = vmax.f32 %v1654, %v1526
      %v1656 = vmax.f32 %v1655, %v1527
      %1657 = vmax.xlane.f32.xlu0 %v1656
      %v1658 = vpop.xlane.xlu0 %1657
      %v1659 = vmax.f32 %v1528, %v1529
      %v1660 = vmax.f32 %v1659, %v1530
      %v1661 = vmax.f32 %v1660, %v1531
      %1662 = vmax.xlane.f32.xlu0 %v1661
      %v1663 = vpop.xlane.xlu0 %1662
      %v1664 = vmax.f32 %v1532, %v1533
      %v1665 = vmax.f32 %v1664, %v1534
      %v1666 = vmax.f32 %v1665, %v1535
      %1667 = vmax.xlane.f32.xlu0 %v1666
      %v1668 = vpop.xlane.xlu0 %1667
      %v1669 = vmax.f32 %v1536, %v1537
      %v1670 = vmax.f32 %v1669, %v1538
      %v1671 = vmax.f32 %v1670, %v1539
      %1672 = vmax.xlane.f32.xlu0 %v1671
      %v1673 = vpop.xlane.xlu0 %1672
      %v1674 = vmax.f32 %v1540, %v1541
      %v1675 = vmax.f32 %v1674, %v1542
      %v1676 = vmax.f32 %v1675, %v1543
      %1677 = vmax.xlane.f32.xlu0 %v1676
      %v1678 = vpop.xlane.xlu0 %1677
      %v1679 = vmax.f32 %v1544, %v1545
      %v1680 = vmax.f32 %v1679, %v1546
      %v1681 = vmax.f32 %v1680, %v1547
      %1682 = vmax.xlane.f32.xlu0 %v1681
      %v1683 = vpop.xlane.xlu0 %1682
      %v1684 = vmax.f32 %v1548, %v1549
      %v1685 = vmax.f32 %v1684, %v1550
      %v1686 = vmax.f32 %v1685, %v1551
      %1687 = vmax.xlane.f32.xlu0 %v1686
      %v1688 = vpop.xlane.xlu0 %1687
      %v1689 = vmax.f32 %v1552, %v1553
      %v1690 = vmax.f32 %v1689, %v1554
      %v1691 = vmax.f32 %v1690, %v1555
      %1692 = vmax.xlane.f32.xlu0 %v1691
      %v1693 = vpop.xlane.xlu0 %1692
      %v1694 = vmax.f32 %v1556, %v1557
      %v1695 = vmax.f32 %v1694, %v1558
      %v1696 = vmax.f32 %v1695, %v1559
      %1697 = vmax.xlane.f32.xlu0 %v1696
      %v1698 = vpop.xlane.xlu0 %1697
      %v1699 = vmax.f32 %v1560, %v1561
      %v1700 = vmax.f32 %v1699, %v1562
      %v1701 = vmax.f32 %v1700, %v1563
      %1702 = vmax.xlane.f32.xlu0 %v1701
      %v1703 = vpop.xlane.xlu0 %1702
      %v1704 = vmax.f32 %v1564, %v1565
      %v1705 = vmax.f32 %v1704, %v1566
      %v1706 = vmax.f32 %v1705, %v1567
      %1707 = vmax.xlane.f32.xlu0 %v1706
      %v1708 = vpop.xlane.xlu0 %1707
      %v1709 = vmax.f32 %v1568, %v1569
      %v1710 = vmax.f32 %v1709, %v1570
      %v1711 = vmax.f32 %v1710, %v1571
      %1712 = vmax.xlane.f32.xlu0 %v1711
      %v1713 = vpop.xlane.xlu0 %1712
      %v1714 = vmax.f32 %v1572, %v1573
      %v1715 = vmax.f32 %v1714, %v1574
      %v1716 = vmax.f32 %v1715, %v1575
      %1717 = vmax.xlane.f32.xlu0 %v1716
      %v1718 = vpop.xlane.xlu0 %1717
      %v1719 = vmax.f32 %v1576, %v1577
      %v1720 = vmax.f32 %v1719, %v1578
      %v1721 = vmax.f32 %v1720, %v1579
      %1722 = vmax.xlane.f32.xlu0 %v1721
      %v1723 = vpop.xlane.xlu0 %1722
      %v1724 = vmax.f32 %v1580, %v1581
      %v1725 = vmax.f32 %v1724, %v1582
      %v1726 = vmax.f32 %v1725, %v1583
      %1727 = vmax.xlane.f32.xlu0 %v1726
      %v1728 = vpop.xlane.xlu0 %1727
      %v1729 = vmax.f32 %v1584, %v1585
      %v1730 = vmax.f32 %v1729, %v1586
      %v1731 = vmax.f32 %v1730, %v1587
      %1732 = vmax.xlane.f32.xlu0 %v1731
      %v1733 = vpop.xlane.xlu0 %1732
      %v1734 = vmax.f32 %v1588, %v1589
      %v1735 = vmax.f32 %v1734, %v1590
      %v1736 = vmax.f32 %v1735, %v1591
      %1737 = vmax.xlane.f32.xlu0 %v1736
      %v1738 = vpop.xlane.xlu0 %1737
      %v1739 = vmax.f32 %v1592, %v1593
      %v1740 = vmax.f32 %v1739, %v1594
      %v1741 = vmax.f32 %v1740, %v1595
      %1742 = vmax.xlane.f32.xlu0 %v1741
      %v1743 = vpop.xlane.xlu0 %1742
      %v1744 = vmax.f32 %v1596, %v1597
      %v1745 = vmax.f32 %v1744, %v1598
      %v1746 = vmax.f32 %v1745, %v1599
      %1747 = vmax.xlane.f32.xlu0 %v1746
      %v1748 = vpop.xlane.xlu0 %1747
      %v1749 = vmax.f32 %v1600, %v1601
      %v1750 = vmax.f32 %v1749, %v1602
      %v1751 = vmax.f32 %v1750, %v1603
      %1752 = vmax.xlane.f32.xlu0 %v1751
      %v1753 = vpop.xlane.xlu0 %1752
      %v1754 = vmax.f32 %v1604, %v1605
      %v1755 = vmax.f32 %v1754, %v1606
      %v1756 = vmax.f32 %v1755, %v1607
      %1757 = vmax.xlane.f32.xlu0 %v1756
      %v1758 = vpop.xlane.xlu0 %1757
      %v1759 = vmax.f32 %v1608, %v1609
      %v1760 = vmax.f32 %v1759, %v1610
      %v1761 = vmax.f32 %v1760, %v1611
      %1762 = vmax.xlane.f32.xlu0 %v1761
      %v1763 = vpop.xlane.xlu0 %1762
      %v1764 = vmax.f32 %v1612, %v1613
      %v1765 = vmax.f32 %v1764, %v1614
      %v1766 = vmax.f32 %v1765, %v1615
      %1767 = vmax.xlane.f32.xlu0 %v1766
      %v1768 = vpop.xlane.xlu0 %1767
      %v1769 = vmax.f32 %v1616, %v1617
      %v1770 = vmax.f32 %v1769, %v1618
      %v1771 = vmax.f32 %v1770, %v1619
      %1772 = vmax.xlane.f32.xlu0 %v1771
      %v1773 = vpop.xlane.xlu0 %1772
      %v1774 = vmax.f32 %v1620, %v1621
      %v1775 = vmax.f32 %v1774, %v1622
      %v1776 = vmax.f32 %v1775, %v1623
      %1777 = vmax.xlane.f32.xlu0 %v1776
      %v1778 = vpop.xlane.xlu0 %1777
      %v1779 = vmax.f32 %v1624, %v1625
      %v1780 = vmax.f32 %v1779, %v1626
      %v1781 = vmax.f32 %v1780, %v1627
      %1782 = vmax.xlane.f32.xlu0 %v1781
      %v1783 = vpop.xlane.xlu0 %1782
      %v1784 = vmax.f32 %v1628, %v1629
      %v1785 = vmax.f32 %v1784, %v1630
      %v1786 = vmax.f32 %v1785, %v1631
      %1787 = vmax.xlane.f32.xlu0 %v1786
      %v1788 = vpop.xlane.xlu0 %1787
      %v1789 = vmax.f32 %v1632, %v1633
      %v1790 = vmax.f32 %v1789, %v1634
      %v1791 = vmax.f32 %v1790, %v1635
      %1792 = vmax.xlane.f32.xlu0 %v1791
      %v1793 = vpop.xlane.xlu0 %1792
      %v1794 = vmax.f32 %v1636, %v1637
      %v1795 = vmax.f32 %v1794, %v1638
      %v1796 = vmax.f32 %v1795, %v1639
      %1797 = vmax.xlane.f32.xlu0 %v1796
      %v1798 = vpop.xlane.xlu0 %1797
      %v1799 = vmax.f32 %v1640, %v1641
      %v1800 = vmax.f32 %v1799, %v1642
      %v1801 = vmax.f32 %v1800, %v1643
      %1802 = vmax.xlane.f32.xlu0 %v1801
      %v1803 = vpop.xlane.xlu0 %1802
      %v1804 = vsub.f32 %v1516, %v1648
      %v1805 = vsub.f32 %v1517, %v1648
      %v1806 = vsub.f32 %v1518, %v1648
      %v1807 = vsub.f32 %v1519, %v1648
      %v1808 = vsub.f32 %v1520, %v1653
      %v1809 = vsub.f32 %v1521, %v1653
      %v1810 = vsub.f32 %v1522, %v1653
      %v1811 = vsub.f32 %v1523, %v1653
      %v1812 = vsub.f32 %v1524, %v1658
      %v1813 = vsub.f32 %v1525, %v1658
      %v1814 = vsub.f32 %v1526, %v1658
      %v1815 = vsub.f32 %v1527, %v1658
      %v1816 = vsub.f32 %v1528, %v1663
      %v1817 = vsub.f32 %v1529, %v1663
      %v1818 = vsub.f32 %v1530, %v1663
      %v1819 = vsub.f32 %v1531, %v1663
      %v1820 = vsub.f32 %v1532, %v1668
      %v1821 = vsub.f32 %v1533, %v1668
      %v1822 = vsub.f32 %v1534, %v1668
      %v1823 = vsub.f32 %v1535, %v1668
      %v1824 = vsub.f32 %v1536, %v1673
      %v1825 = vsub.f32 %v1537, %v1673
      %v1826 = vsub.f32 %v1538, %v1673
      %v1827 = vsub.f32 %v1539, %v1673
      %v1828 = vsub.f32 %v1540, %v1678
      %v1829 = vsub.f32 %v1541, %v1678
      %v1830 = vsub.f32 %v1542, %v1678
      %v1831 = vsub.f32 %v1543, %v1678
      %v1832 = vsub.f32 %v1544, %v1683
      %v1833 = vsub.f32 %v1545, %v1683
      %v1834 = vsub.f32 %v1546, %v1683
      %v1835 = vsub.f32 %v1547, %v1683
      %v1836 = vsub.f32 %v1548, %v1688
      %v1837 = vsub.f32 %v1549, %v1688
      %v1838 = vsub.f32 %v1550, %v1688
      %v1839 = vsub.f32 %v1551, %v1688
      %v1840 = vsub.f32 %v1552, %v1693
      %v1841 = vsub.f32 %v1553, %v1693
      %v1842 = vsub.f32 %v1554, %v1693
      %v1843 = vsub.f32 %v1555, %v1693
      %v1844 = vsub.f32 %v1556, %v1698
      %v1845 = vsub.f32 %v1557, %v1698
      %v1846 = vsub.f32 %v1558, %v1698
      %v1847 = vsub.f32 %v1559, %v1698
      %v1848 = vsub.f32 %v1560, %v1703
      %v1849 = vsub.f32 %v1561, %v1703
      %v1850 = vsub.f32 %v1562, %v1703
      %v1851 = vsub.f32 %v1563, %v1703
      %v1852 = vsub.f32 %v1564, %v1708
      %v1853 = vsub.f32 %v1565, %v1708
      %v1854 = vsub.f32 %v1566, %v1708
      %v1855 = vsub.f32 %v1567, %v1708
      %v1856 = vsub.f32 %v1568, %v1713
      %v1857 = vsub.f32 %v1569, %v1713
      %v1858 = vsub.f32 %v1570, %v1713
      %v1859 = vsub.f32 %v1571, %v1713
      %v1860 = vsub.f32 %v1572, %v1718
      %v1861 = vsub.f32 %v1573, %v1718
      %v1862 = vsub.f32 %v1574, %v1718
      %v1863 = vsub.f32 %v1575, %v1718
      %v1864 = vsub.f32 %v1576, %v1723
      %v1865 = vsub.f32 %v1577, %v1723
      %v1866 = vsub.f32 %v1578, %v1723
      %v1867 = vsub.f32 %v1579, %v1723
      %v1868 = vsub.f32 %v1580, %v1728
      %v1869 = vsub.f32 %v1581, %v1728
      %v1870 = vsub.f32 %v1582, %v1728
      %v1871 = vsub.f32 %v1583, %v1728
      %v1872 = vsub.f32 %v1584, %v1733
      %v1873 = vsub.f32 %v1585, %v1733
      %v1874 = vsub.f32 %v1586, %v1733
      %v1875 = vsub.f32 %v1587, %v1733
      %v1876 = vsub.f32 %v1588, %v1738
      %v1877 = vsub.f32 %v1589, %v1738
      %v1878 = vsub.f32 %v1590, %v1738
      %v1879 = vsub.f32 %v1591, %v1738
      %v1880 = vsub.f32 %v1592, %v1743
      %v1881 = vsub.f32 %v1593, %v1743
      %v1882 = vsub.f32 %v1594, %v1743
      %v1883 = vsub.f32 %v1595, %v1743
      %v1884 = vsub.f32 %v1596, %v1748
      %v1885 = vsub.f32 %v1597, %v1748
      %v1886 = vsub.f32 %v1598, %v1748
      %v1887 = vsub.f32 %v1599, %v1748
      %v1888 = vsub.f32 %v1600, %v1753
      %v1889 = vsub.f32 %v1601, %v1753
      %v1890 = vsub.f32 %v1602, %v1753
      %v1891 = vsub.f32 %v1603, %v1753
      %v1892 = vsub.f32 %v1604, %v1758
      %v1893 = vsub.f32 %v1605, %v1758
      %v1894 = vsub.f32 %v1606, %v1758
      %v1895 = vsub.f32 %v1607, %v1758
      %v1896 = vsub.f32 %v1608, %v1763
      %v1897 = vsub.f32 %v1609, %v1763
      %v1898 = vsub.f32 %v1610, %v1763
      %v1899 = vsub.f32 %v1611, %v1763
      %v1900 = vsub.f32 %v1612, %v1768
      %v1901 = vsub.f32 %v1613, %v1768
      %v1902 = vsub.f32 %v1614, %v1768
      %v1903 = vsub.f32 %v1615, %v1768
      %v1904 = vsub.f32 %v1616, %v1773
      %v1905 = vsub.f32 %v1617, %v1773
      %v1906 = vsub.f32 %v1618, %v1773
      %v1907 = vsub.f32 %v1619, %v1773
      %v1908 = vsub.f32 %v1620, %v1778
      %v1909 = vsub.f32 %v1621, %v1778
      %v1910 = vsub.f32 %v1622, %v1778
      %v1911 = vsub.f32 %v1623, %v1778
      %v1912 = vsub.f32 %v1624, %v1783
      %v1913 = vsub.f32 %v1625, %v1783
      %v1914 = vsub.f32 %v1626, %v1783
      %v1915 = vsub.f32 %v1627, %v1783
      %v1916 = vsub.f32 %v1628, %v1788
      %v1917 = vsub.f32 %v1629, %v1788
      %v1918 = vsub.f32 %v1630, %v1788
      %v1919 = vsub.f32 %v1631, %v1788
      %v1920 = vsub.f32 %v1632, %v1793
      %v1921 = vsub.f32 %v1633, %v1793
      %v1922 = vsub.f32 %v1634, %v1793
      %v1923 = vsub.f32 %v1635, %v1793
      %v1924 = vsub.f32 %v1636, %v1798
      %v1925 = vsub.f32 %v1637, %v1798
      %v1926 = vsub.f32 %v1638, %v1798
      %v1927 = vsub.f32 %v1639, %v1798
      %v1928 = vsub.f32 %v1640, %v1803
      %v1929 = vsub.f32 %v1641, %v1803
      %v1930 = vsub.f32 %v1642, %v1803
      %v1931 = vsub.f32 %v1643, %v1803
      %v1932 = vmul.f32 %v1804, 1.442695
      %v1933 = vpow.pop %v1932
      %v1934 = vmul.f32 %v1805, 1.442695
      %v1935 = vpow.pop %v1934
      %v1936 = vmul.f32 %v1806, 1.442695
      %v1937 = vpow.pop %v1936
      %v1938 = vmul.f32 %v1807, 1.442695
      %v1939 = vpow.pop %v1938
      %v1940 = vmul.f32 %v1808, 1.442695
      %v1941 = vpow.pop %v1940
      %v1942 = vmul.f32 %v1809, 1.442695
      %v1943 = vpow.pop %v1942
      %v1944 = vmul.f32 %v1810, 1.442695
      %v1945 = vpow.pop %v1944
      %v1946 = vmul.f32 %v1811, 1.442695
      %v1947 = vpow.pop %v1946
      %v1948 = vmul.f32 %v1812, 1.442695
      %v1949 = vpow.pop %v1948
      %v1950 = vmul.f32 %v1813, 1.442695
      %v1951 = vpow.pop %v1950
      %v1952 = vmul.f32 %v1814, 1.442695
      %v1953 = vpow.pop %v1952
      %v1954 = vmul.f32 %v1815, 1.442695
      %v1955 = vpow.pop %v1954
      %v1956 = vmul.f32 %v1816, 1.442695
      %v1957 = vpow.pop %v1956
      %v1958 = vmul.f32 %v1817, 1.442695
      %v1959 = vpow.pop %v1958
      %v1960 = vmul.f32 %v1818, 1.442695
      %v1961 = vpow.pop %v1960
      %v1962 = vmul.f32 %v1819, 1.442695
      %v1963 = vpow.pop %v1962
      %v1964 = vmul.f32 %v1820, 1.442695
      %v1965 = vpow.pop %v1964
      %v1966 = vmul.f32 %v1821, 1.442695
      %v1967 = vpow.pop %v1966
      %v1968 = vmul.f32 %v1822, 1.442695
      %v1969 = vpow.pop %v1968
      %v1970 = vmul.f32 %v1823, 1.442695
      %v1971 = vpow.pop %v1970
      %v1972 = vmul.f32 %v1824, 1.442695
      %v1973 = vpow.pop %v1972
      %v1974 = vmul.f32 %v1825, 1.442695
      %v1975 = vpow.pop %v1974
      %v1976 = vmul.f32 %v1826, 1.442695
      %v1977 = vpow.pop %v1976
      %v1978 = vmul.f32 %v1827, 1.442695
      %v1979 = vpow.pop %v1978
      %v1980 = vmul.f32 %v1828, 1.442695
      %v1981 = vpow.pop %v1980
      %v1982 = vmul.f32 %v1829, 1.442695
      %v1983 = vpow.pop %v1982
      %v1984 = vmul.f32 %v1830, 1.442695
      %v1985 = vpow.pop %v1984
      %v1986 = vmul.f32 %v1831, 1.442695
      %v1987 = vpow.pop %v1986
      %v1988 = vmul.f32 %v1832, 1.442695
      %v1989 = vpow.pop %v1988
      %v1990 = vmul.f32 %v1833, 1.442695
      %v1991 = vpow.pop %v1990
      %v1992 = vmul.f32 %v1834, 1.442695
      %v1993 = vpow.pop %v1992
      %v1994 = vmul.f32 %v1835, 1.442695
      %v1995 = vpow.pop %v1994
      %v1996 = vmul.f32 %v1836, 1.442695
      %v1997 = vpow.pop %v1996
      %v1998 = vmul.f32 %v1837, 1.442695
      %v1999 = vpow.pop %v1998
      %v2000 = vmul.f32 %v1838, 1.442695
      %v2001 = vpow.pop %v2000
      %v2002 = vmul.f32 %v1839, 1.442695
      %v2003 = vpow.pop %v2002
      %v2004 = vmul.f32 %v1840, 1.442695
      %v2005 = vpow.pop %v2004
      %v2006 = vmul.f32 %v1841, 1.442695
      %v2007 = vpow.pop %v2006
      %v2008 = vmul.f32 %v1842, 1.442695
      %v2009 = vpow.pop %v2008
      %v2010 = vmul.f32 %v1843, 1.442695
      %v2011 = vpow.pop %v2010
      %v2012 = vmul.f32 %v1844, 1.442695
      %v2013 = vpow.pop %v2012
      %v2014 = vmul.f32 %v1845, 1.442695
      %v2015 = vpow.pop %v2014
      %v2016 = vmul.f32 %v1846, 1.442695
      %v2017 = vpow.pop %v2016
      %v2018 = vmul.f32 %v1847, 1.442695
      %v2019 = vpow.pop %v2018
      %v2020 = vmul.f32 %v1848, 1.442695
      %v2021 = vpow.pop %v2020
      %v2022 = vmul.f32 %v1849, 1.442695
      %v2023 = vpow.pop %v2022
      %v2024 = vmul.f32 %v1850, 1.442695
      %v2025 = vpow.pop %v2024
      %v2026 = vmul.f32 %v1851, 1.442695
      %v2027 = vpow.pop %v2026
      %v2028 = vmul.f32 %v1852, 1.442695
      %v2029 = vpow.pop %v2028
      %v2030 = vmul.f32 %v1853, 1.442695
      %v2031 = vpow.pop %v2030
      %v2032 = vmul.f32 %v1854, 1.442695
      %v2033 = vpow.pop %v2032
      %v2034 = vmul.f32 %v1855, 1.442695
      %v2035 = vpow.pop %v2034
      %v2036 = vmul.f32 %v1856, 1.442695
      %v2037 = vpow.pop %v2036
      %v2038 = vmul.f32 %v1857, 1.442695
      %v2039 = vpow.pop %v2038
      %v2040 = vmul.f32 %v1858, 1.442695
      %v2041 = vpow.pop %v2040
      %v2042 = vmul.f32 %v1859, 1.442695
      %v2043 = vpow.pop %v2042
      %v2044 = vmul.f32 %v1860, 1.442695
      %v2045 = vpow.pop %v2044
      %v2046 = vmul.f32 %v1861, 1.442695
      %v2047 = vpow.pop %v2046
      %v2048 = vmul.f32 %v1862, 1.442695
      %v2049 = vpow.pop %v2048
      %v2050 = vmul.f32 %v1863, 1.442695
      %v2051 = vpow.pop %v2050
      %v2052 = vmul.f32 %v1864, 1.442695
      %v2053 = vpow.pop %v2052
      %v2054 = vmul.f32 %v1865, 1.442695
      %v2055 = vpow.pop %v2054
      %v2056 = vmul.f32 %v1866, 1.442695
      %v2057 = vpow.pop %v2056
      %v2058 = vmul.f32 %v1867, 1.442695
      %v2059 = vpow.pop %v2058
      %v2060 = vmul.f32 %v1868, 1.442695
      %v2061 = vpow.pop %v2060
      %v2062 = vmul.f32 %v1869, 1.442695
      %v2063 = vpow.pop %v2062
      %v2064 = vmul.f32 %v1870, 1.442695
      %v2065 = vpow.pop %v2064
      %v2066 = vmul.f32 %v1871, 1.442695
      %v2067 = vpow.pop %v2066
      %v2068 = vmul.f32 %v1872, 1.442695
      %v2069 = vpow.pop %v2068
      %v2070 = vmul.f32 %v1873, 1.442695
      %v2071 = vpow.pop %v2070
      %v2072 = vmul.f32 %v1874, 1.442695
      %v2073 = vpow.pop %v2072
      %v2074 = vmul.f32 %v1875, 1.442695
      %v2075 = vpow.pop %v2074
      %v2076 = vmul.f32 %v1876, 1.442695
      %v2077 = vpow.pop %v2076
      %v2078 = vmul.f32 %v1877, 1.442695
      %v2079 = vpow.pop %v2078
      %v2080 = vmul.f32 %v1878, 1.442695
      %v2081 = vpow.pop %v2080
      %v2082 = vmul.f32 %v1879, 1.442695
      %v2083 = vpow.pop %v2082
      %v2084 = vmul.f32 %v1880, 1.442695
      %v2085 = vpow.pop %v2084
      %v2086 = vmul.f32 %v1881, 1.442695
      %v2087 = vpow.pop %v2086
      %v2088 = vmul.f32 %v1882, 1.442695
      %v2089 = vpow.pop %v2088
      %v2090 = vmul.f32 %v1883, 1.442695
      %v2091 = vpow.pop %v2090
      %v2092 = vmul.f32 %v1884, 1.442695
      %v2093 = vpow.pop %v2092
      %v2094 = vmul.f32 %v1885, 1.442695
      %v2095 = vpow.pop %v2094
      %v2096 = vmul.f32 %v1886, 1.442695
      %v2097 = vpow.pop %v2096
      %v2098 = vmul.f32 %v1887, 1.442695
      %v2099 = vpow.pop %v2098
      %v2100 = vmul.f32 %v1888, 1.442695
      %v2101 = vpow.pop %v2100
      %v2102 = vmul.f32 %v1889, 1.442695
      %v2103 = vpow.pop %v2102
      %v2104 = vmul.f32 %v1890, 1.442695
      %v2105 = vpow.pop %v2104
      %v2106 = vmul.f32 %v1891, 1.442695
      %v2107 = vpow.pop %v2106
      %v2108 = vmul.f32 %v1892, 1.442695
      %v2109 = vpow.pop %v2108
      %v2110 = vmul.f32 %v1893, 1.442695
      %v2111 = vpow.pop %v2110
      %v2112 = vmul.f32 %v1894, 1.442695
      %v2113 = vpow.pop %v2112
      %v2114 = vmul.f32 %v1895, 1.442695
      %v2115 = vpow.pop %v2114
      %v2116 = vmul.f32 %v1896, 1.442695
      %v2117 = vpow.pop %v2116
      %v2118 = vmul.f32 %v1897, 1.442695
      %v2119 = vpow.pop %v2118
      %v2120 = vmul.f32 %v1898, 1.442695
      %v2121 = vpow.pop %v2120
      %v2122 = vmul.f32 %v1899, 1.442695
      %v2123 = vpow.pop %v2122
      %v2124 = vmul.f32 %v1900, 1.442695
      %v2125 = vpow.pop %v2124
      %v2126 = vmul.f32 %v1901, 1.442695
      %v2127 = vpow.pop %v2126
      %v2128 = vmul.f32 %v1902, 1.442695
      %v2129 = vpow.pop %v2128
      %v2130 = vmul.f32 %v1903, 1.442695
      %v2131 = vpow.pop %v2130
      %v2132 = vmul.f32 %v1904, 1.442695
      %v2133 = vpow.pop %v2132
      %v2134 = vmul.f32 %v1905, 1.442695
      %v2135 = vpow.pop %v2134
      %v2136 = vmul.f32 %v1906, 1.442695
      %v2137 = vpow.pop %v2136
      %v2138 = vmul.f32 %v1907, 1.442695
      %v2139 = vpow.pop %v2138
      %v2140 = vmul.f32 %v1908, 1.442695
      %v2141 = vpow.pop %v2140
      %v2142 = vmul.f32 %v1909, 1.442695
      %v2143 = vpow.pop %v2142
      %v2144 = vmul.f32 %v1910, 1.442695
      %v2145 = vpow.pop %v2144
      %v2146 = vmul.f32 %v1911, 1.442695
      %v2147 = vpow.pop %v2146
      %v2148 = vmul.f32 %v1912, 1.442695
      %v2149 = vpow.pop %v2148
      %v2150 = vmul.f32 %v1913, 1.442695
      %v2151 = vpow.pop %v2150
      %v2152 = vmul.f32 %v1914, 1.442695
      %v2153 = vpow.pop %v2152
      %v2154 = vmul.f32 %v1915, 1.442695
      %v2155 = vpow.pop %v2154
      %v2156 = vmul.f32 %v1916, 1.442695
      %v2157 = vpow.pop %v2156
      %v2158 = vmul.f32 %v1917, 1.442695
      %v2159 = vpow.pop %v2158
      %v2160 = vmul.f32 %v1918, 1.442695
      %v2161 = vpow.pop %v2160
      %v2162 = vmul.f32 %v1919, 1.442695
      %v2163 = vpow.pop %v2162
      %v2164 = vmul.f32 %v1920, 1.442695
      %v2165 = vpow.pop %v2164
      %v2166 = vmul.f32 %v1921, 1.442695
      %v2167 = vpow.pop %v2166
      %v2168 = vmul.f32 %v1922, 1.442695
      %v2169 = vpow.pop %v2168
      %v2170 = vmul.f32 %v1923, 1.442695
      %v2171 = vpow.pop %v2170
      %v2172 = vmul.f32 %v1924, 1.442695
      %v2173 = vpow.pop %v2172
      %v2174 = vmul.f32 %v1925, 1.442695
      %v2175 = vpow.pop %v2174
      %v2176 = vmul.f32 %v1926, 1.442695
      %v2177 = vpow.pop %v2176
      %v2178 = vmul.f32 %v1927, 1.442695
      %v2179 = vpow.pop %v2178
      %v2180 = vmul.f32 %v1928, 1.442695
      %v2181 = vpow.pop %v2180
      %v2182 = vmul.f32 %v1929, 1.442695
      %v2183 = vpow.pop %v2182
      %v2184 = vmul.f32 %v1930, 1.442695
      %v2185 = vpow.pop %v2184
      %v2186 = vmul.f32 %v1931, 1.442695
      %v2187 = vpow.pop %v2186
      %v2188 = vmul.f32 %v1933, %v674
      %v2189 = vmul.f32 %v1935, %v675
      %v2190 = vmul.f32 %v1937, %v676
      %v2191 = vmul.f32 %v1939, %v677
      %v2192 = vmul.f32 %v1941, %v678
      %v2193 = vmul.f32 %v1943, %v679
      %v2194 = vmul.f32 %v1945, %v680
      %v2195 = vmul.f32 %v1947, %v681
      %v2196 = vmul.f32 %v1949, %v682
      %v2197 = vmul.f32 %v1951, %v683
      %v2198 = vmul.f32 %v1953, %v684
      %v2199 = vmul.f32 %v1955, %v685
      %v2200 = vmul.f32 %v1957, %v686
      %v2201 = vmul.f32 %v1959, %v687
      %v2202 = vmul.f32 %v1961, %v688
      %v2203 = vmul.f32 %v1963, %v689
      %v2204 = vmul.f32 %v1965, %v690
      %v2205 = vmul.f32 %v1967, %v691
      %v2206 = vmul.f32 %v1969, %v692
      %v2207 = vmul.f32 %v1971, %v693
      %v2208 = vmul.f32 %v1973, %v694
      %v2209 = vmul.f32 %v1975, %v695
      %v2210 = vmul.f32 %v1977, %v696
      %v2211 = vmul.f32 %v1979, %v697
      %v2212 = vmul.f32 %v1981, %v698
      %v2213 = vmul.f32 %v1983, %v699
      %v2214 = vmul.f32 %v1985, %v700
      %v2215 = vmul.f32 %v1987, %v701
      %v2216 = vmul.f32 %v1989, %v702
      %v2217 = vmul.f32 %v1991, %v703
      %v2218 = vmul.f32 %v1993, %v704
      %v2219 = vmul.f32 %v1995, %v705
      %v2220 = vmul.f32 %v1997, %v706
      %v2221 = vmul.f32 %v1999, %v707
      %v2222 = vmul.f32 %v2001, %v708
      %v2223 = vmul.f32 %v2003, %v709
      %v2224 = vmul.f32 %v2005, %v710
      %v2225 = vmul.f32 %v2007, %v711
      %v2226 = vmul.f32 %v2009, %v712
      %v2227 = vmul.f32 %v2011, %v713
      %v2228 = vmul.f32 %v2013, %v714
      %v2229 = vmul.f32 %v2015, %v715
      %v2230 = vmul.f32 %v2017, %v716
      %v2231 = vmul.f32 %v2019, %v717
      %v2232 = vmul.f32 %v2021, %v718
      %v2233 = vmul.f32 %v2023, %v719
      %v2234 = vmul.f32 %v2025, %v720
      %v2235 = vmul.f32 %v2027, %v721
      %v2236 = vmul.f32 %v2029, %v722
      %v2237 = vmul.f32 %v2031, %v723
      %v2238 = vmul.f32 %v2033, %v724
      %v2239 = vmul.f32 %v2035, %v725
      %v2240 = vmul.f32 %v2037, %v726
      %v2241 = vmul.f32 %v2039, %v727
      %v2242 = vmul.f32 %v2041, %v728
      %v2243 = vmul.f32 %v2043, %v729
      %v2244 = vmul.f32 %v2045, %v730
      %v2245 = vmul.f32 %v2047, %v731
      %v2246 = vmul.f32 %v2049, %v732
      %v2247 = vmul.f32 %v2051, %v733
      %v2248 = vmul.f32 %v2053, %v734
      %v2249 = vmul.f32 %v2055, %v735
      %v2250 = vmul.f32 %v2057, %v736
      %v2251 = vmul.f32 %v2059, %v737
      %v2252 = vmul.f32 %v2061, %v738
      %v2253 = vmul.f32 %v2063, %v739
      %v2254 = vmul.f32 %v2065, %v740
      %v2255 = vmul.f32 %v2067, %v741
      %v2256 = vmul.f32 %v2069, %v742
      %v2257 = vmul.f32 %v2071, %v743
      %v2258 = vmul.f32 %v2073, %v744
      %v2259 = vmul.f32 %v2075, %v745
      %v2260 = vmul.f32 %v2077, %v746
      %v2261 = vmul.f32 %v2079, %v747
      %v2262 = vmul.f32 %v2081, %v748
      %v2263 = vmul.f32 %v2083, %v749
      %v2264 = vmul.f32 %v2085, %v750
      %v2265 = vmul.f32 %v2087, %v751
      %v2266 = vmul.f32 %v2089, %v752
      %v2267 = vmul.f32 %v2091, %v753
      %v2268 = vmul.f32 %v2093, %v754
      %v2269 = vmul.f32 %v2095, %v755
      %v2270 = vmul.f32 %v2097, %v756
      %v2271 = vmul.f32 %v2099, %v757
      %v2272 = vmul.f32 %v2101, %v758
      %v2273 = vmul.f32 %v2103, %v759
      %v2274 = vmul.f32 %v2105, %v760
      %v2275 = vmul.f32 %v2107, %v761
      %v2276 = vmul.f32 %v2109, %v762
      %v2277 = vmul.f32 %v2111, %v763
      %v2278 = vmul.f32 %v2113, %v764
      %v2279 = vmul.f32 %v2115, %v765
      %v2280 = vmul.f32 %v2117, %v766
      %v2281 = vmul.f32 %v2119, %v767
      %v2282 = vmul.f32 %v2121, %v768
      %v2283 = vmul.f32 %v2123, %v769
      %v2284 = vmul.f32 %v2125, %v770
      %v2285 = vmul.f32 %v2127, %v771
      %v2286 = vmul.f32 %v2129, %v772
      %v2287 = vmul.f32 %v2131, %v773
      %v2288 = vmul.f32 %v2133, %v774
      %v2289 = vmul.f32 %v2135, %v775
      %v2290 = vmul.f32 %v2137, %v776
      %v2291 = vmul.f32 %v2139, %v777
      %v2292 = vmul.f32 %v2141, %v778
      %v2293 = vmul.f32 %v2143, %v779
      %v2294 = vmul.f32 %v2145, %v780
      %v2295 = vmul.f32 %v2147, %v781
      %v2296 = vmul.f32 %v2149, %v782
      %v2297 = vmul.f32 %v2151, %v783
      %v2298 = vmul.f32 %v2153, %v784
      %v2299 = vmul.f32 %v2155, %v785
      %v2300 = vmul.f32 %v2157, %v786
      %v2301 = vmul.f32 %v2159, %v787
      %v2302 = vmul.f32 %v2161, %v788
      %v2303 = vmul.f32 %v2163, %v789
      %v2304 = vmul.f32 %v2165, %v790
      %v2305 = vmul.f32 %v2167, %v791
      %v2306 = vmul.f32 %v2169, %v792
      %v2307 = vmul.f32 %v2171, %v793
      %v2308 = vmul.f32 %v2173, %v794
      %v2309 = vmul.f32 %v2175, %v795
      %v2310 = vmul.f32 %v2177, %v796
      %v2311 = vmul.f32 %v2179, %v797
      %v2312 = vmul.f32 %v2181, %v798
      %v2313 = vmul.f32 %v2183, %v799
      %v2314 = vmul.f32 %v2185, %v800
      %v2315 = vmul.f32 %v2187, %v801
      %v2316 = vadd.f32 %v2188, %v2189
      %v2317 = vadd.f32 %v2316, %v2190
      %v2318 = vadd.f32 %v2317, %v2191
      %2319 = vadd.xlane.f32.xlu0 %v2318
      %v2320 = vpop.xlane.xlu0 %2319
      %v2321 = vadd.f32 %v2192, %v2193
      %v2322 = vadd.f32 %v2321, %v2194
      %v2323 = vadd.f32 %v2322, %v2195
      %2324 = vadd.xlane.f32.xlu0 %v2323
      %v2325 = vpop.xlane.xlu0 %2324
      %v2326 = vadd.f32 %v2196, %v2197
      %v2327 = vadd.f32 %v2326, %v2198
      %v2328 = vadd.f32 %v2327, %v2199
      %2329 = vadd.xlane.f32.xlu0 %v2328
      %v2330 = vpop.xlane.xlu0 %2329
      %v2331 = vadd.f32 %v2200, %v2201
      %v2332 = vadd.f32 %v2331, %v2202
      %v2333 = vadd.f32 %v2332, %v2203
      %2334 = vadd.xlane.f32.xlu0 %v2333
      %v2335 = vpop.xlane.xlu0 %2334
      %v2336 = vadd.f32 %v2204, %v2205
      %v2337 = vadd.f32 %v2336, %v2206
      %v2338 = vadd.f32 %v2337, %v2207
      %2339 = vadd.xlane.f32.xlu0 %v2338
      %v2340 = vpop.xlane.xlu0 %2339
      %v2341 = vadd.f32 %v2208, %v2209
      %v2342 = vadd.f32 %v2341, %v2210
      %v2343 = vadd.f32 %v2342, %v2211
      %2344 = vadd.xlane.f32.xlu0 %v2343
      %v2345 = vpop.xlane.xlu0 %2344
      %v2346 = vadd.f32 %v2212, %v2213
      %v2347 = vadd.f32 %v2346, %v2214
      %v2348 = vadd.f32 %v2347, %v2215
      %2349 = vadd.xlane.f32.xlu0 %v2348
      %v2350 = vpop.xlane.xlu0 %2349
      %v2351 = vadd.f32 %v2216, %v2217
      %v2352 = vadd.f32 %v2351, %v2218
      %v2353 = vadd.f32 %v2352, %v2219
      %2354 = vadd.xlane.f32.xlu0 %v2353
      %v2355 = vpop.xlane.xlu0 %2354
      %v2356 = vadd.f32 %v2220, %v2221
      %v2357 = vadd.f32 %v2356, %v2222
      %v2358 = vadd.f32 %v2357, %v2223
      %2359 = vadd.xlane.f32.xlu0 %v2358
      %v2360 = vpop.xlane.xlu0 %2359
      %v2361 = vadd.f32 %v2224, %v2225
      %v2362 = vadd.f32 %v2361, %v2226
      %v2363 = vadd.f32 %v2362, %v2227
      %2364 = vadd.xlane.f32.xlu0 %v2363
      %v2365 = vpop.xlane.xlu0 %2364
      %v2366 = vadd.f32 %v2228, %v2229
      %v2367 = vadd.f32 %v2366, %v2230
      %v2368 = vadd.f32 %v2367, %v2231
      %2369 = vadd.xlane.f32.xlu0 %v2368
      %v2370 = vpop.xlane.xlu0 %2369
      %v2371 = vadd.f32 %v2232, %v2233
      %v2372 = vadd.f32 %v2371, %v2234
      %v2373 = vadd.f32 %v2372, %v2235
      %2374 = vadd.xlane.f32.xlu0 %v2373
      %v2375 = vpop.xlane.xlu0 %2374
      %v2376 = vadd.f32 %v2236, %v2237
      %v2377 = vadd.f32 %v2376, %v2238
      %v2378 = vadd.f32 %v2377, %v2239
      %2379 = vadd.xlane.f32.xlu0 %v2378
      %v2380 = vpop.xlane.xlu0 %2379
      %v2381 = vadd.f32 %v2240, %v2241
      %v2382 = vadd.f32 %v2381, %v2242
      %v2383 = vadd.f32 %v2382, %v2243
      %2384 = vadd.xlane.f32.xlu0 %v2383
      %v2385 = vpop.xlane.xlu0 %2384
      %v2386 = vadd.f32 %v2244, %v2245
      %v2387 = vadd.f32 %v2386, %v2246
      %v2388 = vadd.f32 %v2387, %v2247
      %2389 = vadd.xlane.f32.xlu0 %v2388
      %v2390 = vpop.xlane.xlu0 %2389
      %v2391 = vadd.f32 %v2248, %v2249
      %v2392 = vadd.f32 %v2391, %v2250
      %v2393 = vadd.f32 %v2392, %v2251
      %2394 = vadd.xlane.f32.xlu0 %v2393
      %v2395 = vpop.xlane.xlu0 %2394
      %v2396 = vadd.f32 %v2252, %v2253
      %v2397 = vadd.f32 %v2396, %v2254
      %v2398 = vadd.f32 %v2397, %v2255
      %2399 = vadd.xlane.f32.xlu0 %v2398
      %v2400 = vpop.xlane.xlu0 %2399
      %v2401 = vadd.f32 %v2256, %v2257
      %v2402 = vadd.f32 %v2401, %v2258
      %v2403 = vadd.f32 %v2402, %v2259
      %2404 = vadd.xlane.f32.xlu0 %v2403
      %v2405 = vpop.xlane.xlu0 %2404
      %v2406 = vadd.f32 %v2260, %v2261
      %v2407 = vadd.f32 %v2406, %v2262
      %v2408 = vadd.f32 %v2407, %v2263
      %2409 = vadd.xlane.f32.xlu0 %v2408
      %v2410 = vpop.xlane.xlu0 %2409
      %v2411 = vadd.f32 %v2264, %v2265
      %v2412 = vadd.f32 %v2411, %v2266
      %v2413 = vadd.f32 %v2412, %v2267
      %2414 = vadd.xlane.f32.xlu0 %v2413
      %v2415 = vpop.xlane.xlu0 %2414
      %v2416 = vadd.f32 %v2268, %v2269
      %v2417 = vadd.f32 %v2416, %v2270
      %v2418 = vadd.f32 %v2417, %v2271
      %2419 = vadd.xlane.f32.xlu0 %v2418
      %v2420 = vpop.xlane.xlu0 %2419
      %v2421 = vadd.f32 %v2272, %v2273
      %v2422 = vadd.f32 %v2421, %v2274
      %v2423 = vadd.f32 %v2422, %v2275
      %2424 = vadd.xlane.f32.xlu0 %v2423
      %v2425 = vpop.xlane.xlu0 %2424
      %v2426 = vadd.f32 %v2276, %v2277
      %v2427 = vadd.f32 %v2426, %v2278
      %v2428 = vadd.f32 %v2427, %v2279
      %2429 = vadd.xlane.f32.xlu0 %v2428
      %v2430 = vpop.xlane.xlu0 %2429
      %v2431 = vadd.f32 %v2280, %v2281
      %v2432 = vadd.f32 %v2431, %v2282
      %v2433 = vadd.f32 %v2432, %v2283
      %2434 = vadd.xlane.f32.xlu0 %v2433
      %v2435 = vpop.xlane.xlu0 %2434
      %v2436 = vadd.f32 %v2284, %v2285
      %v2437 = vadd.f32 %v2436, %v2286
      %v2438 = vadd.f32 %v2437, %v2287
      %2439 = vadd.xlane.f32.xlu0 %v2438
      %v2440 = vpop.xlane.xlu0 %2439
      %v2441 = vadd.f32 %v2288, %v2289
      %v2442 = vadd.f32 %v2441, %v2290
      %v2443 = vadd.f32 %v2442, %v2291
      %2444 = vadd.xlane.f32.xlu0 %v2443
      %v2445 = vpop.xlane.xlu0 %2444
      %v2446 = vadd.f32 %v2292, %v2293
      %v2447 = vadd.f32 %v2446, %v2294
      %v2448 = vadd.f32 %v2447, %v2295
      %2449 = vadd.xlane.f32.xlu0 %v2448
      %v2450 = vpop.xlane.xlu0 %2449
      %v2451 = vadd.f32 %v2296, %v2297
      %v2452 = vadd.f32 %v2451, %v2298
      %v2453 = vadd.f32 %v2452, %v2299
      %2454 = vadd.xlane.f32.xlu0 %v2453
      %v2455 = vpop.xlane.xlu0 %2454
      %v2456 = vadd.f32 %v2300, %v2301
      %v2457 = vadd.f32 %v2456, %v2302
      %v2458 = vadd.f32 %v2457, %v2303
      %2459 = vadd.xlane.f32.xlu0 %v2458
      %v2460 = vpop.xlane.xlu0 %2459
      %v2461 = vadd.f32 %v2304, %v2305
      %v2462 = vadd.f32 %v2461, %v2306
      %v2463 = vadd.f32 %v2462, %v2307
      %2464 = vadd.xlane.f32.xlu0 %v2463
      %v2465 = vpop.xlane.xlu0 %2464
      %v2466 = vadd.f32 %v2308, %v2309
      %v2467 = vadd.f32 %v2466, %v2310
      %v2468 = vadd.f32 %v2467, %v2311
      %2469 = vadd.xlane.f32.xlu0 %v2468
      %v2470 = vpop.xlane.xlu0 %2469
      %v2471 = vadd.f32 %v2312, %v2313
      %v2472 = vadd.f32 %v2471, %v2314
      %v2473 = vadd.f32 %v2472, %v2315
      %2474 = vadd.xlane.f32.xlu0 %v2473
      %v2475 = vpop.xlane.xlu0 %2474
      %v2476 = vmax.f32 %v2320, 1e-12
      %v2477 = vmax.f32 %v2325, 1e-12
      %v2478 = vmax.f32 %v2330, 1e-12
      %v2479 = vmax.f32 %v2335, 1e-12
      %v2480 = vmax.f32 %v2340, 1e-12
      %v2481 = vmax.f32 %v2345, 1e-12
      %v2482 = vmax.f32 %v2350, 1e-12
      %v2483 = vmax.f32 %v2355, 1e-12
      %v2484 = vmax.f32 %v2360, 1e-12
      %v2485 = vmax.f32 %v2365, 1e-12
      %v2486 = vmax.f32 %v2370, 1e-12
      %v2487 = vmax.f32 %v2375, 1e-12
      %v2488 = vmax.f32 %v2380, 1e-12
      %v2489 = vmax.f32 %v2385, 1e-12
      %v2490 = vmax.f32 %v2390, 1e-12
      %v2491 = vmax.f32 %v2395, 1e-12
      %v2492 = vmax.f32 %v2400, 1e-12
      %v2493 = vmax.f32 %v2405, 1e-12
      %v2494 = vmax.f32 %v2410, 1e-12
      %v2495 = vmax.f32 %v2415, 1e-12
      %v2496 = vmax.f32 %v2420, 1e-12
      %v2497 = vmax.f32 %v2425, 1e-12
      %v2498 = vmax.f32 %v2430, 1e-12
      %v2499 = vmax.f32 %v2435, 1e-12
      %v2500 = vmax.f32 %v2440, 1e-12
      %v2501 = vmax.f32 %v2445, 1e-12
      %v2502 = vmax.f32 %v2450, 1e-12
      %v2503 = vmax.f32 %v2455, 1e-12
      %v2504 = vmax.f32 %v2460, 1e-12
      %v2505 = vmax.f32 %v2465, 1e-12
      %v2506 = vmax.f32 %v2470, 1e-12
      %v2507 = vmax.f32 %v2475, 1e-12
      %v2508 = vrcp.pop %v2476
      %v2509 = vrcp.pop %v2477
      %v2510 = vrcp.pop %v2478
      %v2511 = vrcp.pop %v2479
      %v2512 = vrcp.pop %v2480
      %v2513 = vrcp.pop %v2481
      %v2514 = vrcp.pop %v2482
      %v2515 = vrcp.pop %v2483
      %v2516 = vrcp.pop %v2484
      %v2517 = vrcp.pop %v2485
      %v2518 = vrcp.pop %v2486
      %v2519 = vrcp.pop %v2487
      %v2520 = vrcp.pop %v2488
      %v2521 = vrcp.pop %v2489
      %v2522 = vrcp.pop %v2490
      %v2523 = vrcp.pop %v2491
      %v2524 = vrcp.pop %v2492
      %v2525 = vrcp.pop %v2493
      %v2526 = vrcp.pop %v2494
      %v2527 = vrcp.pop %v2495
      %v2528 = vrcp.pop %v2496
      %v2529 = vrcp.pop %v2497
      %v2530 = vrcp.pop %v2498
      %v2531 = vrcp.pop %v2499
      %v2532 = vrcp.pop %v2500
      %v2533 = vrcp.pop %v2501
      %v2534 = vrcp.pop %v2502
      %v2535 = vrcp.pop %v2503
      %v2536 = vrcp.pop %v2504
      %v2537 = vrcp.pop %v2505
      %v2538 = vrcp.pop %v2506
      %v2539 = vrcp.pop %v2507
      %v2540 = vmul.f32 %v2188, %v2508
      %v2541 = vmul.f32 %v2189, %v2508
      %v2542 = vmul.f32 %v2190, %v2508
      %v2543 = vmul.f32 %v2191, %v2508
      %v2544 = vmul.f32 %v2192, %v2509
      %v2545 = vmul.f32 %v2193, %v2509
      %v2546 = vmul.f32 %v2194, %v2509
      %v2547 = vmul.f32 %v2195, %v2509
      %v2548 = vmul.f32 %v2196, %v2510
      %v2549 = vmul.f32 %v2197, %v2510
      %v2550 = vmul.f32 %v2198, %v2510
      %v2551 = vmul.f32 %v2199, %v2510
      %v2552 = vmul.f32 %v2200, %v2511
      %v2553 = vmul.f32 %v2201, %v2511
      %v2554 = vmul.f32 %v2202, %v2511
      %v2555 = vmul.f32 %v2203, %v2511
      %v2556 = vmul.f32 %v2204, %v2512
      %v2557 = vmul.f32 %v2205, %v2512
      %v2558 = vmul.f32 %v2206, %v2512
      %v2559 = vmul.f32 %v2207, %v2512
      %v2560 = vmul.f32 %v2208, %v2513
      %v2561 = vmul.f32 %v2209, %v2513
      %v2562 = vmul.f32 %v2210, %v2513
      %v2563 = vmul.f32 %v2211, %v2513
      %v2564 = vmul.f32 %v2212, %v2514
      %v2565 = vmul.f32 %v2213, %v2514
      %v2566 = vmul.f32 %v2214, %v2514
      %v2567 = vmul.f32 %v2215, %v2514
      %v2568 = vmul.f32 %v2216, %v2515
      %v2569 = vmul.f32 %v2217, %v2515
      %v2570 = vmul.f32 %v2218, %v2515
      %v2571 = vmul.f32 %v2219, %v2515
      %v2572 = vmul.f32 %v2220, %v2516
      %v2573 = vmul.f32 %v2221, %v2516
      %v2574 = vmul.f32 %v2222, %v2516
      %v2575 = vmul.f32 %v2223, %v2516
      %v2576 = vmul.f32 %v2224, %v2517
      %v2577 = vmul.f32 %v2225, %v2517
      %v2578 = vmul.f32 %v2226, %v2517
      %v2579 = vmul.f32 %v2227, %v2517
      %v2580 = vmul.f32 %v2228, %v2518
      %v2581 = vmul.f32 %v2229, %v2518
      %v2582 = vmul.f32 %v2230, %v2518
      %v2583 = vmul.f32 %v2231, %v2518
      %v2584 = vmul.f32 %v2232, %v2519
      %v2585 = vmul.f32 %v2233, %v2519
      %v2586 = vmul.f32 %v2234, %v2519
      %v2587 = vmul.f32 %v2235, %v2519
      %v2588 = vmul.f32 %v2236, %v2520
      %v2589 = vmul.f32 %v2237, %v2520
      %v2590 = vmul.f32 %v2238, %v2520
      %v2591 = vmul.f32 %v2239, %v2520
      %v2592 = vmul.f32 %v2240, %v2521
      %v2593 = vmul.f32 %v2241, %v2521
      %v2594 = vmul.f32 %v2242, %v2521
      %v2595 = vmul.f32 %v2243, %v2521
      %v2596 = vmul.f32 %v2244, %v2522
      %v2597 = vmul.f32 %v2245, %v2522
      %v2598 = vmul.f32 %v2246, %v2522
      %v2599 = vmul.f32 %v2247, %v2522
      %v2600 = vmul.f32 %v2248, %v2523
      %v2601 = vmul.f32 %v2249, %v2523
      %v2602 = vmul.f32 %v2250, %v2523
      %v2603 = vmul.f32 %v2251, %v2523
      %v2604 = vmul.f32 %v2252, %v2524
      %v2605 = vmul.f32 %v2253, %v2524
      %v2606 = vmul.f32 %v2254, %v2524
      %v2607 = vmul.f32 %v2255, %v2524
      %v2608 = vmul.f32 %v2256, %v2525
      %v2609 = vmul.f32 %v2257, %v2525
      %v2610 = vmul.f32 %v2258, %v2525
      %v2611 = vmul.f32 %v2259, %v2525
      %v2612 = vmul.f32 %v2260, %v2526
      %v2613 = vmul.f32 %v2261, %v2526
      %v2614 = vmul.f32 %v2262, %v2526
      %v2615 = vmul.f32 %v2263, %v2526
      %v2616 = vmul.f32 %v2264, %v2527
      %v2617 = vmul.f32 %v2265, %v2527
      %v2618 = vmul.f32 %v2266, %v2527
      %v2619 = vmul.f32 %v2267, %v2527
      %v2620 = vmul.f32 %v2268, %v2528
      %v2621 = vmul.f32 %v2269, %v2528
      %v2622 = vmul.f32 %v2270, %v2528
      %v2623 = vmul.f32 %v2271, %v2528
      %v2624 = vmul.f32 %v2272, %v2529
      %v2625 = vmul.f32 %v2273, %v2529
      %v2626 = vmul.f32 %v2274, %v2529
      %v2627 = vmul.f32 %v2275, %v2529
      %v2628 = vmul.f32 %v2276, %v2530
      %v2629 = vmul.f32 %v2277, %v2530
      %v2630 = vmul.f32 %v2278, %v2530
      %v2631 = vmul.f32 %v2279, %v2530
      %v2632 = vmul.f32 %v2280, %v2531
      %v2633 = vmul.f32 %v2281, %v2531
      %v2634 = vmul.f32 %v2282, %v2531
      %v2635 = vmul.f32 %v2283, %v2531
      %v2636 = vmul.f32 %v2284, %v2532
      %v2637 = vmul.f32 %v2285, %v2532
      %v2638 = vmul.f32 %v2286, %v2532
      %v2639 = vmul.f32 %v2287, %v2532
      %v2640 = vmul.f32 %v2288, %v2533
      %v2641 = vmul.f32 %v2289, %v2533
      %v2642 = vmul.f32 %v2290, %v2533
      %v2643 = vmul.f32 %v2291, %v2533
      %v2644 = vmul.f32 %v2292, %v2534
      %v2645 = vmul.f32 %v2293, %v2534
      %v2646 = vmul.f32 %v2294, %v2534
      %v2647 = vmul.f32 %v2295, %v2534
      %v2648 = vmul.f32 %v2296, %v2535
      %v2649 = vmul.f32 %v2297, %v2535
      %v2650 = vmul.f32 %v2298, %v2535
      %v2651 = vmul.f32 %v2299, %v2535
      %v2652 = vmul.f32 %v2300, %v2536
      %v2653 = vmul.f32 %v2301, %v2536
      %v2654 = vmul.f32 %v2302, %v2536
      %v2655 = vmul.f32 %v2303, %v2536
      %v2656 = vmul.f32 %v2304, %v2537
      %v2657 = vmul.f32 %v2305, %v2537
      %v2658 = vmul.f32 %v2306, %v2537
      %v2659 = vmul.f32 %v2307, %v2537
      %v2660 = vmul.f32 %v2308, %v2538
      %v2661 = vmul.f32 %v2309, %v2538
      %v2662 = vmul.f32 %v2310, %v2538
      %v2663 = vmul.f32 %v2311, %v2538
      %v2664 = vmul.f32 %v2312, %v2539
      %v2665 = vmul.f32 %v2313, %v2539
      %v2666 = vmul.f32 %v2314, %v2539
      %v2667 = vmul.f32 %v2315, %v2539
      %v2668 = vld [vmem:[%s3] sm:$0xf]
      %v2669 = vld [vmem:[%s3 + $0x4] sm:$0xf]
      %v2670 = vld [vmem:[%s3 + $0x8] sm:$0xf]
      %v2671 = vld [vmem:[%s3 + $0xc] sm:$0xf]
      %v2672 = vld [vmem:[%s3 + $0x10] sm:$0xf]
      %v2673 = vld [vmem:[%s3 + $0x14] sm:$0xf]
      %v2674 = vld [vmem:[%s3 + $0x18] sm:$0xf]
      %v2675 = vld [vmem:[%s3 + $0x1c] sm:$0xf]
      %v2676 = vld [vmem:[%s3 + $0x20] sm:$0xf]
      %v2677 = vld [vmem:[%s3 + $0x24] sm:$0xf]
      %v2678 = vld [vmem:[%s3 + $0x28] sm:$0xf]
      %v2679 = vld [vmem:[%s3 + $0x2c] sm:$0xf]
      %v2680 = vld [vmem:[%s3 + $0x30] sm:$0xf]
      %v2681 = vld [vmem:[%s3 + $0x34] sm:$0xf]
      %v2682 = vld [vmem:[%s3 + $0x38] sm:$0xf]
      %v2683 = vld [vmem:[%s3 + $0x3c] sm:$0xf]
      %v2684 = vld [vmem:[%s3 + $0x40] sm:$0xf]
      %v2685 = vld [vmem:[%s3 + $0x44] sm:$0xf]
      %v2686 = vld [vmem:[%s3 + $0x48] sm:$0xf]
      %v2687 = vld [vmem:[%s3 + $0x4c] sm:$0xf]
      %v2688 = vld [vmem:[%s3 + $0x50] sm:$0xf]
      %v2689 = vld [vmem:[%s3 + $0x54] sm:$0xf]
      %v2690 = vld [vmem:[%s3 + $0x58] sm:$0xf]
      %v2691 = vld [vmem:[%s3 + $0x5c] sm:$0xf]
      %v2692 = vld [vmem:[%s3 + $0x60] sm:$0xf]
      %v2693 = vld [vmem:[%s3 + $0x64] sm:$0xf]
      %v2694 = vld [vmem:[%s3 + $0x68] sm:$0xf]
      %v2695 = vld [vmem:[%s3 + $0x6c] sm:$0xf]
      %v2696 = vld [vmem:[%s3 + $0x70] sm:$0xf]
      %v2697 = vld [vmem:[%s3 + $0x74] sm:$0xf]
      %v2698 = vld [vmem:[%s3 + $0x78] sm:$0xf]
      %v2699 = vld [vmem:[%s3 + $0x7c] sm:$0xf]
      %v2700 = vld [vmem:[%s3 + $0x80] sm:$0xf]
      %v2701 = vld [vmem:[%s3 + $0x84] sm:$0xf]
      %v2702 = vld [vmem:[%s3 + $0x88] sm:$0xf]
      %v2703 = vld [vmem:[%s3 + $0x8c] sm:$0xf]
      %v2704 = vld [vmem:[%s3 + $0x90] sm:$0xf]
      %v2705 = vld [vmem:[%s3 + $0x94] sm:$0xf]
      %v2706 = vld [vmem:[%s3 + $0x98] sm:$0xf]
      %v2707 = vld [vmem:[%s3 + $0x9c] sm:$0xf]
      %v2708 = vld [vmem:[%s3 + $0xa0] sm:$0xf]
      %v2709 = vld [vmem:[%s3 + $0xa4] sm:$0xf]
      %v2710 = vld [vmem:[%s3 + $0xa8] sm:$0xf]
      %v2711 = vld [vmem:[%s3 + $0xac] sm:$0xf]
      %v2712 = vld [vmem:[%s3 + $0xb0] sm:$0xf]
      %v2713 = vld [vmem:[%s3 + $0xb4] sm:$0xf]
      %v2714 = vld [vmem:[%s3 + $0xb8] sm:$0xf]
      %v2715 = vld [vmem:[%s3 + $0xbc] sm:$0xf]
      %v2716 = vld [vmem:[%s3 + $0xc0] sm:$0xf]
      %v2717 = vld [vmem:[%s3 + $0xc4] sm:$0xf]
      %v2718 = vld [vmem:[%s3 + $0xc8] sm:$0xf]
      %v2719 = vld [vmem:[%s3 + $0xcc] sm:$0xf]
      %v2720 = vld [vmem:[%s3 + $0xd0] sm:$0xf]
      %v2721 = vld [vmem:[%s3 + $0xd4] sm:$0xf]
      %v2722 = vld [vmem:[%s3 + $0xd8] sm:$0xf]
      %v2723 = vld [vmem:[%s3 + $0xdc] sm:$0xf]
      %v2724 = vld [vmem:[%s3 + $0xe0] sm:$0xf]
      %v2725 = vld [vmem:[%s3 + $0xe4] sm:$0xf]
      %v2726 = vld [vmem:[%s3 + $0xe8] sm:$0xf]
      %v2727 = vld [vmem:[%s3 + $0xec] sm:$0xf]
      %v2728 = vld [vmem:[%s3 + $0xf0] sm:$0xf]
      %v2729 = vld [vmem:[%s3 + $0xf4] sm:$0xf]
      %v2730 = vld [vmem:[%s3 + $0xf8] sm:$0xf]
      %v2731 = vld [vmem:[%s3 + $0xfc] sm:$0xf]
      %v2732 = vpack.c.bf16 %v2544, %v2540
      %v2733 = vpack.c.bf16 %v2545, %v2541
      %v2734 = vpack.c.bf16 %v2546, %v2542
      %v2735 = vpack.c.bf16 %v2547, %v2543
      %v2736 = vpack.c.bf16 %v2552, %v2548
      %v2737 = vpack.c.bf16 %v2553, %v2549
      %v2738 = vpack.c.bf16 %v2554, %v2550
      %v2739 = vpack.c.bf16 %v2555, %v2551
      %v2740 = vpack.c.bf16 %v2560, %v2556
      %v2741 = vpack.c.bf16 %v2561, %v2557
      %v2742 = vpack.c.bf16 %v2562, %v2558
      %v2743 = vpack.c.bf16 %v2563, %v2559
      %v2744 = vpack.c.bf16 %v2568, %v2564
      %v2745 = vpack.c.bf16 %v2569, %v2565
      %v2746 = vpack.c.bf16 %v2570, %v2566
      %v2747 = vpack.c.bf16 %v2571, %v2567
      %v2748 = vpack.c.bf16 %v2576, %v2572
      %v2749 = vpack.c.bf16 %v2577, %v2573
      %v2750 = vpack.c.bf16 %v2578, %v2574
      %v2751 = vpack.c.bf16 %v2579, %v2575
      %v2752 = vpack.c.bf16 %v2584, %v2580
      %v2753 = vpack.c.bf16 %v2585, %v2581
      %v2754 = vpack.c.bf16 %v2586, %v2582
      %v2755 = vpack.c.bf16 %v2587, %v2583
      %v2756 = vpack.c.bf16 %v2592, %v2588
      %v2757 = vpack.c.bf16 %v2593, %v2589
      %v2758 = vpack.c.bf16 %v2594, %v2590
      %v2759 = vpack.c.bf16 %v2595, %v2591
      %v2760 = vpack.c.bf16 %v2600, %v2596
      %v2761 = vpack.c.bf16 %v2601, %v2597
      %v2762 = vpack.c.bf16 %v2602, %v2598
      %v2763 = vpack.c.bf16 %v2603, %v2599
      %v2764 = vpack.c.bf16 %v2608, %v2604
      %v2765 = vpack.c.bf16 %v2609, %v2605
      %v2766 = vpack.c.bf16 %v2610, %v2606
      %v2767 = vpack.c.bf16 %v2611, %v2607
      %v2768 = vpack.c.bf16 %v2616, %v2612
      %v2769 = vpack.c.bf16 %v2617, %v2613
      %v2770 = vpack.c.bf16 %v2618, %v2614
      %v2771 = vpack.c.bf16 %v2619, %v2615
      %v2772 = vpack.c.bf16 %v2624, %v2620
      %v2773 = vpack.c.bf16 %v2625, %v2621
      %v2774 = vpack.c.bf16 %v2626, %v2622
      %v2775 = vpack.c.bf16 %v2627, %v2623
      %v2776 = vpack.c.bf16 %v2632, %v2628
      %v2777 = vpack.c.bf16 %v2633, %v2629
      %v2778 = vpack.c.bf16 %v2634, %v2630
      %v2779 = vpack.c.bf16 %v2635, %v2631
      %v2780 = vpack.c.bf16 %v2640, %v2636
      %v2781 = vpack.c.bf16 %v2641, %v2637
      %v2782 = vpack.c.bf16 %v2642, %v2638
      %v2783 = vpack.c.bf16 %v2643, %v2639
      %v2784 = vpack.c.bf16 %v2648, %v2644
      %v2785 = vpack.c.bf16 %v2649, %v2645
      %v2786 = vpack.c.bf16 %v2650, %v2646
      %v2787 = vpack.c.bf16 %v2651, %v2647
      %v2788 = vpack.c.bf16 %v2656, %v2652
      %v2789 = vpack.c.bf16 %v2657, %v2653
      %v2790 = vpack.c.bf16 %v2658, %v2654
      %v2791 = vpack.c.bf16 %v2659, %v2655
      %v2792 = vpack.c.bf16 %v2664, %v2660
      %v2793 = vpack.c.bf16 %v2665, %v2661
      %v2794 = vpack.c.bf16 %v2666, %v2662
      %v2795 = vpack.c.bf16 %v2667, %v2663
      %v2860 = vunpack.c.l.b16 %v2668
      %v2861 = vunpack.c.l.b16 %v2669
      %v2862 = vunpack.c.l.b16 %v2670
      %v2863 = vunpack.c.l.b16 %v2671
      %v2864 = vunpack.c.l.b16 %v2672
      %v2865 = vunpack.c.l.b16 %v2673
      %v2866 = vunpack.c.l.b16 %v2674
      %v2867 = vunpack.c.l.b16 %v2675
      %v2868 = vunpack.c.l.b16 %v2676
      %v2869 = vunpack.c.l.b16 %v2677
      %v2870 = vunpack.c.l.b16 %v2678
      %v2871 = vunpack.c.l.b16 %v2679
      %v2872 = vunpack.c.l.b16 %v2680
      %v2873 = vunpack.c.l.b16 %v2681
      %v2874 = vunpack.c.l.b16 %v2682
      %v2875 = vunpack.c.l.b16 %v2683
      %v2876 = vunpack.c.l.b16 %v2684
      %v2877 = vunpack.c.l.b16 %v2685
      %v2878 = vunpack.c.l.b16 %v2686
      %v2879 = vunpack.c.l.b16 %v2687
      %v2880 = vunpack.c.l.b16 %v2688
      %v2881 = vunpack.c.l.b16 %v2689
      %v2882 = vunpack.c.l.b16 %v2690
      %v2883 = vunpack.c.l.b16 %v2691
      %v2884 = vunpack.c.l.b16 %v2692
      %v2885 = vunpack.c.l.b16 %v2693
      %v2886 = vunpack.c.l.b16 %v2694
      %v2887 = vunpack.c.l.b16 %v2695
      %v2888 = vunpack.c.l.b16 %v2696
      %v2889 = vunpack.c.l.b16 %v2697
      %v2890 = vunpack.c.l.b16 %v2698
      %v2891 = vunpack.c.l.b16 %v2699
      %v2892 = vunpack.c.l.b16 %v2700
      %v2893 = vunpack.c.l.b16 %v2701
      %v2894 = vunpack.c.l.b16 %v2702
      %v2895 = vunpack.c.l.b16 %v2703
      %v2896 = vunpack.c.l.b16 %v2704
      %v2897 = vunpack.c.l.b16 %v2705
      %v2898 = vunpack.c.l.b16 %v2706
      %v2899 = vunpack.c.l.b16 %v2707
      %v2900 = vunpack.c.l.b16 %v2708
      %v2901 = vunpack.c.l.b16 %v2709
      %v2902 = vunpack.c.l.b16 %v2710
      %v2903 = vunpack.c.l.b16 %v2711
      %v2904 = vunpack.c.l.b16 %v2712
      %v2905 = vunpack.c.l.b16 %v2713
      %v2906 = vunpack.c.l.b16 %v2714
      %v2907 = vunpack.c.l.b16 %v2715
      %v2908 = vunpack.c.l.b16 %v2716
      %v2909 = vunpack.c.l.b16 %v2717
      %v2910 = vunpack.c.l.b16 %v2718
      %v2911 = vunpack.c.l.b16 %v2719
      %v2912 = vunpack.c.l.b16 %v2720
      %v2913 = vunpack.c.l.b16 %v2721
      %v2914 = vunpack.c.l.b16 %v2722
      %v2915 = vunpack.c.l.b16 %v2723
      %v2916 = vunpack.c.l.b16 %v2724
      %v2917 = vunpack.c.l.b16 %v2725
      %v2918 = vunpack.c.l.b16 %v2726
      %v2919 = vunpack.c.l.b16 %v2727
      %v2920 = vunpack.c.l.b16 %v2728
      %v2921 = vunpack.c.l.b16 %v2729
      %v2922 = vunpack.c.l.b16 %v2730
      %v2923 = vunpack.c.l.b16 %v2731
      %v2924 = vpack.c.b16 %v2861, %v2860
      %v2925 = vpack.c.b16 %v2863, %v2862
      %v2926 = vpack.c.b16 %v2865, %v2864
      %v2927 = vpack.c.b16 %v2867, %v2866
      %v2928 = vpack.c.b16 %v2869, %v2868
      %v2929 = vpack.c.b16 %v2871, %v2870
      %v2930 = vpack.c.b16 %v2873, %v2872
      %v2931 = vpack.c.b16 %v2875, %v2874
      %v2932 = vpack.c.b16 %v2877, %v2876
      %v2933 = vpack.c.b16 %v2879, %v2878
      %v2934 = vpack.c.b16 %v2881, %v2880
      %v2935 = vpack.c.b16 %v2883, %v2882
      %v2936 = vpack.c.b16 %v2885, %v2884
      %v2937 = vpack.c.b16 %v2887, %v2886
      %v2938 = vpack.c.b16 %v2889, %v2888
      %v2939 = vpack.c.b16 %v2891, %v2890
      %v2940 = vpack.c.b16 %v2893, %v2892
      %v2941 = vpack.c.b16 %v2895, %v2894
      %v2942 = vpack.c.b16 %v2897, %v2896
      %v2943 = vpack.c.b16 %v2899, %v2898
      %v2944 = vpack.c.b16 %v2901, %v2900
      %v2945 = vpack.c.b16 %v2903, %v2902
      %v2946 = vpack.c.b16 %v2905, %v2904
      %v2947 = vpack.c.b16 %v2907, %v2906
      %v2948 = vpack.c.b16 %v2909, %v2908
      %v2949 = vpack.c.b16 %v2911, %v2910
      %v2950 = vpack.c.b16 %v2913, %v2912
      %v2951 = vpack.c.b16 %v2915, %v2914
      %v2952 = vpack.c.b16 %v2917, %v2916
      %v2953 = vpack.c.b16 %v2919, %v2918
      %v2954 = vpack.c.b16 %v2921, %v2920
      %v2955 = vpack.c.b16 %v2923, %v2922
      %2988 = vmatpush.bf16.msra.mxu0 %v2931
      %2989 = vmatpush.bf16.msra.mxu0 %v2930
      %2990 = vmatpush.bf16.msra.mxu0 %v2929
      %2991 = vmatpush.bf16.msra.mxu0 %v2928
      %2992 = vmatpush.bf16.msra.mxu0 %v2927
      %2993 = vmatpush.bf16.msra.mxu0 %v2926
      %2994 = vmatpush.bf16.msra.mxu0 %v2925
      %2995 = vmatpush.bf16.msra.mxu0 %v2924
      %2996 = vmatmul.bf16.gmra.mxu0 %v2732
      %v2997 = vpop.f32.mrf.mxu0
      %v2998 = vadd.f32 0.0, %v2997
      %v2999 = vpop.f32.mrf.mxu0
      %v3000 = vadd.f32 0.0, %v2999
      %3001 = vmatmul.bf16.gmra.mxu0 %v2736
      %v3002 = vpop.f32.mrf.mxu0
      %v3003 = vadd.f32 0.0, %v3002
      %v3004 = vpop.f32.mrf.mxu0
      %v3005 = vadd.f32 0.0, %v3004
      %3006 = vmatmul.bf16.gmra.mxu0 %v2740
      %v3007 = vpop.f32.mrf.mxu0
      %v3008 = vadd.f32 0.0, %v3007
      %v3009 = vpop.f32.mrf.mxu0
      %v3010 = vadd.f32 0.0, %v3009
      %3011 = vmatmul.bf16.gmra.mxu0 %v2744
      %v3012 = vpop.f32.mrf.mxu0
      %v3013 = vadd.f32 0.0, %v3012
      %v3014 = vpop.f32.mrf.mxu0
      %v3015 = vadd.f32 0.0, %v3014
      %3016 = vmatmul.bf16.gmra.mxu0 %v2748
      %v3017 = vpop.f32.mrf.mxu0
      %v3018 = vadd.f32 0.0, %v3017
      %v3019 = vpop.f32.mrf.mxu0
      %v3020 = vadd.f32 0.0, %v3019
      %3021 = vmatmul.bf16.gmra.mxu0 %v2752
      %v3022 = vpop.f32.mrf.mxu0
      %v3023 = vadd.f32 0.0, %v3022
      %v3024 = vpop.f32.mrf.mxu0
      %v3025 = vadd.f32 0.0, %v3024
      %3026 = vmatmul.bf16.gmra.mxu0 %v2756
      %v3027 = vpop.f32.mrf.mxu0
      %v3028 = vadd.f32 0.0, %v3027
      %v3029 = vpop.f32.mrf.mxu0
      %v3030 = vadd.f32 0.0, %v3029
      %3031 = vmatmul.bf16.gmra.mxu0 %v2760
      %v3032 = vpop.f32.mrf.mxu0
      %v3033 = vadd.f32 0.0, %v3032
      %v3034 = vpop.f32.mrf.mxu0
      %v3035 = vadd.f32 0.0, %v3034
      %3036 = vmatmul.bf16.gmra.mxu0 %v2764
      %v3037 = vpop.f32.mrf.mxu0
      %v3038 = vadd.f32 0.0, %v3037
      %v3039 = vpop.f32.mrf.mxu0
      %v3040 = vadd.f32 0.0, %v3039
      %3041 = vmatmul.bf16.gmra.mxu0 %v2768
      %v3042 = vpop.f32.mrf.mxu0
      %v3043 = vadd.f32 0.0, %v3042
      %v3044 = vpop.f32.mrf.mxu0
      %v3045 = vadd.f32 0.0, %v3044
      %3046 = vmatmul.bf16.gmra.mxu0 %v2772
      %v3047 = vpop.f32.mrf.mxu0
      %v3048 = vadd.f32 0.0, %v3047
      %v3049 = vpop.f32.mrf.mxu0
      %v3050 = vadd.f32 0.0, %v3049
      %3051 = vmatmul.bf16.gmra.mxu0 %v2776
      %v3052 = vpop.f32.mrf.mxu0
      %v3053 = vadd.f32 0.0, %v3052
      %v3054 = vpop.f32.mrf.mxu0
      %v3055 = vadd.f32 0.0, %v3054
      %3056 = vmatmul.bf16.gmra.mxu0 %v2780
      %v3057 = vpop.f32.mrf.mxu0
      %v3058 = vadd.f32 0.0, %v3057
      %v3059 = vpop.f32.mrf.mxu0
      %v3060 = vadd.f32 0.0, %v3059
      %3061 = vmatmul.bf16.gmra.mxu0 %v2784
      %v3062 = vpop.f32.mrf.mxu0
      %v3063 = vadd.f32 0.0, %v3062
      %v3064 = vpop.f32.mrf.mxu0
      %v3065 = vadd.f32 0.0, %v3064
      %3066 = vmatmul.bf16.gmra.mxu0 %v2788
      %v3067 = vpop.f32.mrf.mxu0
      %v3068 = vadd.f32 0.0, %v3067
      %v3069 = vpop.f32.mrf.mxu0
      %v3070 = vadd.f32 0.0, %v3069
      %3071 = vmatmul.bf16.gmra.mxu0 %v2792
      %v3072 = vpop.f32.mrf.mxu0
      %v3073 = vadd.f32 0.0, %v3072
      %v3074 = vpop.f32.mrf.mxu0
      %v3075 = vadd.f32 0.0, %v3074
      %3076 = vdwg.mxu0
      %3077 = vmatpush.bf16.msra.mxu0 %v2939
      %3078 = vmatpush.bf16.msra.mxu0 %v2938
      %3079 = vmatpush.bf16.msra.mxu0 %v2937
      %3080 = vmatpush.bf16.msra.mxu0 %v2936
      %3081 = vmatpush.bf16.msra.mxu0 %v2935
      %3082 = vmatpush.bf16.msra.mxu0 %v2934
      %3083 = vmatpush.bf16.msra.mxu0 %v2933
      %3084 = vmatpush.bf16.msra.mxu0 %v2932
      %3085 = vmatmul.bf16.gmra.mxu0 %v2733
      %v3086 = vpop.f32.mrf.mxu0
      %v3087 = vadd.f32 %v2998, %v3086
      %v3088 = vpop.f32.mrf.mxu0
      %v3089 = vadd.f32 %v3000, %v3088
      %3090 = vmatmul.bf16.gmra.mxu0 %v2737
      %v3091 = vpop.f32.mrf.mxu0
      %v3092 = vadd.f32 %v3003, %v3091
      %v3093 = vpop.f32.mrf.mxu0
      %v3094 = vadd.f32 %v3005, %v3093
      %3095 = vmatmul.bf16.gmra.mxu0 %v2741
      %v3096 = vpop.f32.mrf.mxu0
      %v3097 = vadd.f32 %v3008, %v3096
      %v3098 = vpop.f32.mrf.mxu0
      %v3099 = vadd.f32 %v3010, %v3098
      %3100 = vmatmul.bf16.gmra.mxu0 %v2745
      %v3101 = vpop.f32.mrf.mxu0
      %v3102 = vadd.f32 %v3013, %v3101
      %v3103 = vpop.f32.mrf.mxu0
      %v3104 = vadd.f32 %v3015, %v3103
      %3105 = vmatmul.bf16.gmra.mxu0 %v2749
      %v3106 = vpop.f32.mrf.mxu0
      %v3107 = vadd.f32 %v3018, %v3106
      %v3108 = vpop.f32.mrf.mxu0
      %v3109 = vadd.f32 %v3020, %v3108
      %3110 = vmatmul.bf16.gmra.mxu0 %v2753
      %v3111 = vpop.f32.mrf.mxu0
      %v3112 = vadd.f32 %v3023, %v3111
      %v3113 = vpop.f32.mrf.mxu0
      %v3114 = vadd.f32 %v3025, %v3113
      %3115 = vmatmul.bf16.gmra.mxu0 %v2757
      %v3116 = vpop.f32.mrf.mxu0
      %v3117 = vadd.f32 %v3028, %v3116
      %v3118 = vpop.f32.mrf.mxu0
      %v3119 = vadd.f32 %v3030, %v3118
      %3120 = vmatmul.bf16.gmra.mxu0 %v2761
      %v3121 = vpop.f32.mrf.mxu0
      %v3122 = vadd.f32 %v3033, %v3121
      %v3123 = vpop.f32.mrf.mxu0
      %v3124 = vadd.f32 %v3035, %v3123
      %3125 = vmatmul.bf16.gmra.mxu0 %v2765
      %v3126 = vpop.f32.mrf.mxu0
      %v3127 = vadd.f32 %v3038, %v3126
      %v3128 = vpop.f32.mrf.mxu0
      %v3129 = vadd.f32 %v3040, %v3128
      %3130 = vmatmul.bf16.gmra.mxu0 %v2769
      %v3131 = vpop.f32.mrf.mxu0
      %v3132 = vadd.f32 %v3043, %v3131
      %v3133 = vpop.f32.mrf.mxu0
      %v3134 = vadd.f32 %v3045, %v3133
      %3135 = vmatmul.bf16.gmra.mxu0 %v2773
      %v3136 = vpop.f32.mrf.mxu0
      %v3137 = vadd.f32 %v3048, %v3136
      %v3138 = vpop.f32.mrf.mxu0
      %v3139 = vadd.f32 %v3050, %v3138
      %3140 = vmatmul.bf16.gmra.mxu0 %v2777
      %v3141 = vpop.f32.mrf.mxu0
      %v3142 = vadd.f32 %v3053, %v3141
      %v3143 = vpop.f32.mrf.mxu0
      %v3144 = vadd.f32 %v3055, %v3143
      %3145 = vmatmul.bf16.gmra.mxu0 %v2781
      %v3146 = vpop.f32.mrf.mxu0
      %v3147 = vadd.f32 %v3058, %v3146
      %v3148 = vpop.f32.mrf.mxu0
      %v3149 = vadd.f32 %v3060, %v3148
      %3150 = vmatmul.bf16.gmra.mxu0 %v2785
      %v3151 = vpop.f32.mrf.mxu0
      %v3152 = vadd.f32 %v3063, %v3151
      %v3153 = vpop.f32.mrf.mxu0
      %v3154 = vadd.f32 %v3065, %v3153
      %3155 = vmatmul.bf16.gmra.mxu0 %v2789
      %v3156 = vpop.f32.mrf.mxu0
      %v3157 = vadd.f32 %v3068, %v3156
      %v3158 = vpop.f32.mrf.mxu0
      %v3159 = vadd.f32 %v3070, %v3158
      %3160 = vmatmul.bf16.gmra.mxu0 %v2793
      %v3161 = vpop.f32.mrf.mxu0
      %v3162 = vadd.f32 %v3073, %v3161
      %v3163 = vpop.f32.mrf.mxu0
      %v3164 = vadd.f32 %v3075, %v3163
      %3165 = vdwg.mxu0
      %3166 = vmatpush.bf16.msra.mxu0 %v2947
      %3167 = vmatpush.bf16.msra.mxu0 %v2946
      %3168 = vmatpush.bf16.msra.mxu0 %v2945
      %3169 = vmatpush.bf16.msra.mxu0 %v2944
      %3170 = vmatpush.bf16.msra.mxu0 %v2943
      %3171 = vmatpush.bf16.msra.mxu0 %v2942
      %3172 = vmatpush.bf16.msra.mxu0 %v2941
      %3173 = vmatpush.bf16.msra.mxu0 %v2940
      %3174 = vmatmul.bf16.gmra.mxu0 %v2734
      %v3175 = vpop.f32.mrf.mxu0
      %v3176 = vadd.f32 %v3087, %v3175
      %v3177 = vpop.f32.mrf.mxu0
      %v3178 = vadd.f32 %v3089, %v3177
      %3179 = vmatmul.bf16.gmra.mxu0 %v2738
      %v3180 = vpop.f32.mrf.mxu0
      %v3181 = vadd.f32 %v3092, %v3180
      %v3182 = vpop.f32.mrf.mxu0
      %v3183 = vadd.f32 %v3094, %v3182
      %3184 = vmatmul.bf16.gmra.mxu0 %v2742
      %v3185 = vpop.f32.mrf.mxu0
      %v3186 = vadd.f32 %v3097, %v3185
      %v3187 = vpop.f32.mrf.mxu0
      %v3188 = vadd.f32 %v3099, %v3187
      %3189 = vmatmul.bf16.gmra.mxu0 %v2746
      %v3190 = vpop.f32.mrf.mxu0
      %v3191 = vadd.f32 %v3102, %v3190
      %v3192 = vpop.f32.mrf.mxu0
      %v3193 = vadd.f32 %v3104, %v3192
      %3194 = vmatmul.bf16.gmra.mxu0 %v2750
      %v3195 = vpop.f32.mrf.mxu0
      %v3196 = vadd.f32 %v3107, %v3195
      %v3197 = vpop.f32.mrf.mxu0
      %v3198 = vadd.f32 %v3109, %v3197
      %3199 = vmatmul.bf16.gmra.mxu0 %v2754
      %v3200 = vpop.f32.mrf.mxu0
      %v3201 = vadd.f32 %v3112, %v3200
      %v3202 = vpop.f32.mrf.mxu0
      %v3203 = vadd.f32 %v3114, %v3202
      %3204 = vmatmul.bf16.gmra.mxu0 %v2758
      %v3205 = vpop.f32.mrf.mxu0
      %v3206 = vadd.f32 %v3117, %v3205
      %v3207 = vpop.f32.mrf.mxu0
      %v3208 = vadd.f32 %v3119, %v3207
      %3209 = vmatmul.bf16.gmra.mxu0 %v2762
      %v3210 = vpop.f32.mrf.mxu0
      %v3211 = vadd.f32 %v3122, %v3210
      %v3212 = vpop.f32.mrf.mxu0
      %v3213 = vadd.f32 %v3124, %v3212
      %3214 = vmatmul.bf16.gmra.mxu0 %v2766
      %v3215 = vpop.f32.mrf.mxu0
      %v3216 = vadd.f32 %v3127, %v3215
      %v3217 = vpop.f32.mrf.mxu0
      %v3218 = vadd.f32 %v3129, %v3217
      %3219 = vmatmul.bf16.gmra.mxu0 %v2770
      %v3220 = vpop.f32.mrf.mxu0
      %v3221 = vadd.f32 %v3132, %v3220
      %v3222 = vpop.f32.mrf.mxu0
      %v3223 = vadd.f32 %v3134, %v3222
      %3224 = vmatmul.bf16.gmra.mxu0 %v2774
      %v3225 = vpop.f32.mrf.mxu0
      %v3226 = vadd.f32 %v3137, %v3225
      %v3227 = vpop.f32.mrf.mxu0
      %v3228 = vadd.f32 %v3139, %v3227
      %3229 = vmatmul.bf16.gmra.mxu0 %v2778
      %v3230 = vpop.f32.mrf.mxu0
      %v3231 = vadd.f32 %v3142, %v3230
      %v3232 = vpop.f32.mrf.mxu0
      %v3233 = vadd.f32 %v3144, %v3232
      %3234 = vmatmul.bf16.gmra.mxu0 %v2782
      %v3235 = vpop.f32.mrf.mxu0
      %v3236 = vadd.f32 %v3147, %v3235
      %v3237 = vpop.f32.mrf.mxu0
      %v3238 = vadd.f32 %v3149, %v3237
      %3239 = vmatmul.bf16.gmra.mxu0 %v2786
      %v3240 = vpop.f32.mrf.mxu0
      %v3241 = vadd.f32 %v3152, %v3240
      %v3242 = vpop.f32.mrf.mxu0
      %v3243 = vadd.f32 %v3154, %v3242
      %3244 = vmatmul.bf16.gmra.mxu0 %v2790
      %v3245 = vpop.f32.mrf.mxu0
      %v3246 = vadd.f32 %v3157, %v3245
      %v3247 = vpop.f32.mrf.mxu0
      %v3248 = vadd.f32 %v3159, %v3247
      %3249 = vmatmul.bf16.gmra.mxu0 %v2794
      %v3250 = vpop.f32.mrf.mxu0
      %v3251 = vadd.f32 %v3162, %v3250
      %v3252 = vpop.f32.mrf.mxu0
      %v3253 = vadd.f32 %v3164, %v3252
      %3254 = vdwg.mxu0
      %3255 = vmatpush.bf16.msra.mxu0 %v2955
      %3256 = vmatpush.bf16.msra.mxu0 %v2954
      %3257 = vmatpush.bf16.msra.mxu0 %v2953
      %3258 = vmatpush.bf16.msra.mxu0 %v2952
      %3259 = vmatpush.bf16.msra.mxu0 %v2951
      %3260 = vmatpush.bf16.msra.mxu0 %v2950
      %3261 = vmatpush.bf16.msra.mxu0 %v2949
      %3262 = vmatpush.bf16.msra.mxu0 %v2948
      %3263 = vmatmul.bf16.gmra.mxu0 %v2735
      %v3264 = vpop.f32.mrf.mxu0
      %v3265 = vadd.f32 %v3176, %v3264
      %v3266 = vpop.f32.mrf.mxu0
      %v3267 = vadd.f32 %v3178, %v3266
      %3268 = vmatmul.bf16.gmra.mxu0 %v2739
      %v3269 = vpop.f32.mrf.mxu0
      %v3270 = vadd.f32 %v3181, %v3269
      %v3271 = vpop.f32.mrf.mxu0
      %v3272 = vadd.f32 %v3183, %v3271
      %3273 = vmatmul.bf16.gmra.mxu0 %v2743
      %v3274 = vpop.f32.mrf.mxu0
      %v3275 = vadd.f32 %v3186, %v3274
      %v3276 = vpop.f32.mrf.mxu0
      %v3277 = vadd.f32 %v3188, %v3276
      %3278 = vmatmul.bf16.gmra.mxu0 %v2747
      %v3279 = vpop.f32.mrf.mxu0
      %v3280 = vadd.f32 %v3191, %v3279
      %v3281 = vpop.f32.mrf.mxu0
      %v3282 = vadd.f32 %v3193, %v3281
      %3283 = vmatmul.bf16.gmra.mxu0 %v2751
      %v3284 = vpop.f32.mrf.mxu0
      %v3285 = vadd.f32 %v3196, %v3284
      %v3286 = vpop.f32.mrf.mxu0
      %v3287 = vadd.f32 %v3198, %v3286
      %3288 = vmatmul.bf16.gmra.mxu0 %v2755
      %v3289 = vpop.f32.mrf.mxu0
      %v3290 = vadd.f32 %v3201, %v3289
      %v3291 = vpop.f32.mrf.mxu0
      %v3292 = vadd.f32 %v3203, %v3291
      %3293 = vmatmul.bf16.gmra.mxu0 %v2759
      %v3294 = vpop.f32.mrf.mxu0
      %v3295 = vadd.f32 %v3206, %v3294
      %v3296 = vpop.f32.mrf.mxu0
      %v3297 = vadd.f32 %v3208, %v3296
      %3298 = vmatmul.bf16.gmra.mxu0 %v2763
      %v3299 = vpop.f32.mrf.mxu0
      %v3300 = vadd.f32 %v3211, %v3299
      %v3301 = vpop.f32.mrf.mxu0
      %v3302 = vadd.f32 %v3213, %v3301
      %3303 = vmatmul.bf16.gmra.mxu0 %v2767
      %v3304 = vpop.f32.mrf.mxu0
      %v3305 = vadd.f32 %v3216, %v3304
      %v3306 = vpop.f32.mrf.mxu0
      %v3307 = vadd.f32 %v3218, %v3306
      %3308 = vmatmul.bf16.gmra.mxu0 %v2771
      %v3309 = vpop.f32.mrf.mxu0
      %v3310 = vadd.f32 %v3221, %v3309
      %v3311 = vpop.f32.mrf.mxu0
      %v3312 = vadd.f32 %v3223, %v3311
      %3313 = vmatmul.bf16.gmra.mxu0 %v2775
      %v3314 = vpop.f32.mrf.mxu0
      %v3315 = vadd.f32 %v3226, %v3314
      %v3316 = vpop.f32.mrf.mxu0
      %v3317 = vadd.f32 %v3228, %v3316
      %3318 = vmatmul.bf16.gmra.mxu0 %v2779
      %v3319 = vpop.f32.mrf.mxu0
      %v3320 = vadd.f32 %v3231, %v3319
      %v3321 = vpop.f32.mrf.mxu0
      %v3322 = vadd.f32 %v3233, %v3321
      %3323 = vmatmul.bf16.gmra.mxu0 %v2783
      %v3324 = vpop.f32.mrf.mxu0
      %v3325 = vadd.f32 %v3236, %v3324
      %v3326 = vpop.f32.mrf.mxu0
      %v3327 = vadd.f32 %v3238, %v3326
      %3328 = vmatmul.bf16.gmra.mxu0 %v2787
      %v3329 = vpop.f32.mrf.mxu0
      %v3330 = vadd.f32 %v3241, %v3329
      %v3331 = vpop.f32.mrf.mxu0
      %v3332 = vadd.f32 %v3243, %v3331
      %3333 = vmatmul.bf16.gmra.mxu0 %v2791
      %v3334 = vpop.f32.mrf.mxu0
      %v3335 = vadd.f32 %v3246, %v3334
      %v3336 = vpop.f32.mrf.mxu0
      %v3337 = vadd.f32 %v3248, %v3336
      %3338 = vmatmul.bf16.gmra.mxu0 %v2795
      %v3339 = vpop.f32.mrf.mxu0
      %v3340 = vadd.f32 %v3251, %v3339
      %v3341 = vpop.f32.mrf.mxu0
      %v3342 = vadd.f32 %v3253, %v3341
      %3343 = vdwg.mxu0
      %vm3344 = vcmp.gt.f32.partialorder %v3265, 0.0
      %vm3345 = vcmp.gt.f32.partialorder %v3267, 0.0
      %vm3346 = vcmp.gt.f32.partialorder %v3270, 0.0
      %vm3347 = vcmp.gt.f32.partialorder %v3272, 0.0
      %vm3348 = vcmp.gt.f32.partialorder %v3275, 0.0
      %vm3349 = vcmp.gt.f32.partialorder %v3277, 0.0
      %vm3350 = vcmp.gt.f32.partialorder %v3280, 0.0
      %vm3351 = vcmp.gt.f32.partialorder %v3282, 0.0
      %vm3352 = vcmp.gt.f32.partialorder %v3285, 0.0
      %vm3353 = vcmp.gt.f32.partialorder %v3287, 0.0
      %vm3354 = vcmp.gt.f32.partialorder %v3290, 0.0
      %vm3355 = vcmp.gt.f32.partialorder %v3292, 0.0
      %vm3356 = vcmp.gt.f32.partialorder %v3295, 0.0
      %vm3357 = vcmp.gt.f32.partialorder %v3297, 0.0
      %vm3358 = vcmp.gt.f32.partialorder %v3300, 0.0
      %vm3359 = vcmp.gt.f32.partialorder %v3302, 0.0
      %vm3360 = vcmp.gt.f32.partialorder %v3305, 0.0
      %vm3361 = vcmp.gt.f32.partialorder %v3307, 0.0
      %vm3362 = vcmp.gt.f32.partialorder %v3310, 0.0
      %vm3363 = vcmp.gt.f32.partialorder %v3312, 0.0
      %vm3364 = vcmp.gt.f32.partialorder %v3315, 0.0
      %vm3365 = vcmp.gt.f32.partialorder %v3317, 0.0
      %vm3366 = vcmp.gt.f32.partialorder %v3320, 0.0
      %vm3367 = vcmp.gt.f32.partialorder %v3322, 0.0
      %vm3368 = vcmp.gt.f32.partialorder %v3325, 0.0
      %vm3369 = vcmp.gt.f32.partialorder %v3327, 0.0
      %vm3370 = vcmp.gt.f32.partialorder %v3330, 0.0
      %vm3371 = vcmp.gt.f32.partialorder %v3332, 0.0
      %vm3372 = vcmp.gt.f32.partialorder %v3335, 0.0
      %vm3373 = vcmp.gt.f32.partialorder %v3337, 0.0
      %vm3374 = vcmp.gt.f32.partialorder %v3340, 0.0
      %vm3375 = vcmp.gt.f32.partialorder %v3342, 0.0
      %v3376 = vmin.f32 %v3265, 0.0
      %v3377 = vmin.f32 %v3267, 0.0
      %v3378 = vmin.f32 %v3270, 0.0
      %v3379 = vmin.f32 %v3272, 0.0
      %v3380 = vmin.f32 %v3275, 0.0
      %v3381 = vmin.f32 %v3277, 0.0
      %v3382 = vmin.f32 %v3280, 0.0
      %v3383 = vmin.f32 %v3282, 0.0
      %v3384 = vmin.f32 %v3285, 0.0
      %v3385 = vmin.f32 %v3287, 0.0
      %v3386 = vmin.f32 %v3290, 0.0
      %v3387 = vmin.f32 %v3292, 0.0
      %v3388 = vmin.f32 %v3295, 0.0
      %v3389 = vmin.f32 %v3297, 0.0
      %v3390 = vmin.f32 %v3300, 0.0
      %v3391 = vmin.f32 %v3302, 0.0
      %v3392 = vmin.f32 %v3305, 0.0
      %v3393 = vmin.f32 %v3307, 0.0
      %v3394 = vmin.f32 %v3310, 0.0
      %v3395 = vmin.f32 %v3312, 0.0
      %v3396 = vmin.f32 %v3315, 0.0
      %v3397 = vmin.f32 %v3317, 0.0
      %v3398 = vmin.f32 %v3320, 0.0
      %v3399 = vmin.f32 %v3322, 0.0
      %v3400 = vmin.f32 %v3325, 0.0
      %v3401 = vmin.f32 %v3327, 0.0
      %v3402 = vmin.f32 %v3330, 0.0
      %v3403 = vmin.f32 %v3332, 0.0
      %v3404 = vmin.f32 %v3335, 0.0
      %v3405 = vmin.f32 %v3337, 0.0
      %v3406 = vmin.f32 %v3340, 0.0
      %v3407 = vmin.f32 %v3342, 0.0
      %v3408 = vmul.f32 %v3376, 1.442695
      %v3409 = vpow.pop %v3408
      %v3410 = vmul.f32 %v3377, 1.442695
      %v3411 = vpow.pop %v3410
      %v3412 = vmul.f32 %v3378, 1.442695
      %v3413 = vpow.pop %v3412
      %v3414 = vmul.f32 %v3379, 1.442695
      %v3415 = vpow.pop %v3414
      %v3416 = vmul.f32 %v3380, 1.442695
      %v3417 = vpow.pop %v3416
      %v3418 = vmul.f32 %v3381, 1.442695
      %v3419 = vpow.pop %v3418
      %v3420 = vmul.f32 %v3382, 1.442695
      %v3421 = vpow.pop %v3420
      %v3422 = vmul.f32 %v3383, 1.442695
      %v3423 = vpow.pop %v3422
      %v3424 = vmul.f32 %v3384, 1.442695
      %v3425 = vpow.pop %v3424
      %v3426 = vmul.f32 %v3385, 1.442695
      %v3427 = vpow.pop %v3426
      %v3428 = vmul.f32 %v3386, 1.442695
      %v3429 = vpow.pop %v3428
      %v3430 = vmul.f32 %v3387, 1.442695
      %v3431 = vpow.pop %v3430
      %v3432 = vmul.f32 %v3388, 1.442695
      %v3433 = vpow.pop %v3432
      %v3434 = vmul.f32 %v3389, 1.442695
      %v3435 = vpow.pop %v3434
      %v3436 = vmul.f32 %v3390, 1.442695
      %v3437 = vpow.pop %v3436
      %v3438 = vmul.f32 %v3391, 1.442695
      %v3439 = vpow.pop %v3438
      %v3440 = vmul.f32 %v3392, 1.442695
      %v3441 = vpow.pop %v3440
      %v3442 = vmul.f32 %v3393, 1.442695
      %v3443 = vpow.pop %v3442
      %v3444 = vmul.f32 %v3394, 1.442695
      %v3445 = vpow.pop %v3444
      %v3446 = vmul.f32 %v3395, 1.442695
      %v3447 = vpow.pop %v3446
      %v3448 = vmul.f32 %v3396, 1.442695
      %v3449 = vpow.pop %v3448
      %v3450 = vmul.f32 %v3397, 1.442695
      %v3451 = vpow.pop %v3450
      %v3452 = vmul.f32 %v3398, 1.442695
      %v3453 = vpow.pop %v3452
      %v3454 = vmul.f32 %v3399, 1.442695
      %v3455 = vpow.pop %v3454
      %v3456 = vmul.f32 %v3400, 1.442695
      %v3457 = vpow.pop %v3456
      %v3458 = vmul.f32 %v3401, 1.442695
      %v3459 = vpow.pop %v3458
      %v3460 = vmul.f32 %v3402, 1.442695
      %v3461 = vpow.pop %v3460
      %v3462 = vmul.f32 %v3403, 1.442695
      %v3463 = vpow.pop %v3462
      %v3464 = vmul.f32 %v3404, 1.442695
      %v3465 = vpow.pop %v3464
      %v3466 = vmul.f32 %v3405, 1.442695
      %v3467 = vpow.pop %v3466
      %v3468 = vmul.f32 %v3406, 1.442695
      %v3469 = vpow.pop %v3468
      %v3470 = vmul.f32 %v3407, 1.442695
      %v3471 = vpow.pop %v3470
      %v3472 = vsub.f32 %v3409, 1.0
      %v3473 = vsub.f32 %v3411, 1.0
      %v3474 = vsub.f32 %v3413, 1.0
      %v3475 = vsub.f32 %v3415, 1.0
      %v3476 = vsub.f32 %v3417, 1.0
      %v3477 = vsub.f32 %v3419, 1.0
      %v3478 = vsub.f32 %v3421, 1.0
      %v3479 = vsub.f32 %v3423, 1.0
      %v3480 = vsub.f32 %v3425, 1.0
      %v3481 = vsub.f32 %v3427, 1.0
      %v3482 = vsub.f32 %v3429, 1.0
      %v3483 = vsub.f32 %v3431, 1.0
      %v3484 = vsub.f32 %v3433, 1.0
      %v3485 = vsub.f32 %v3435, 1.0
      %v3486 = vsub.f32 %v3437, 1.0
      %v3487 = vsub.f32 %v3439, 1.0
      %v3488 = vsub.f32 %v3441, 1.0
      %v3489 = vsub.f32 %v3443, 1.0
      %v3490 = vsub.f32 %v3445, 1.0
      %v3491 = vsub.f32 %v3447, 1.0
      %v3492 = vsub.f32 %v3449, 1.0
      %v3493 = vsub.f32 %v3451, 1.0
      %v3494 = vsub.f32 %v3453, 1.0
      %v3495 = vsub.f32 %v3455, 1.0
      %v3496 = vsub.f32 %v3457, 1.0
      %v3497 = vsub.f32 %v3459, 1.0
      %v3498 = vsub.f32 %v3461, 1.0
      %v3499 = vsub.f32 %v3463, 1.0
      %v3500 = vsub.f32 %v3465, 1.0
      %v3501 = vsub.f32 %v3467, 1.0
      %v3502 = vsub.f32 %v3469, 1.0
      %v3503 = vsub.f32 %v3471, 1.0
      %v3504 = vsel %vm3344, %v3265, %v3472
      %v3505 = vsel %vm3345, %v3267, %v3473
      %v3506 = vsel %vm3346, %v3270, %v3474
      %v3507 = vsel %vm3347, %v3272, %v3475
      %v3508 = vsel %vm3348, %v3275, %v3476
      %v3509 = vsel %vm3349, %v3277, %v3477
      %v3510 = vsel %vm3350, %v3280, %v3478
      %v3511 = vsel %vm3351, %v3282, %v3479
      %v3512 = vsel %vm3352, %v3285, %v3480
      %v3513 = vsel %vm3353, %v3287, %v3481
      %v3514 = vsel %vm3354, %v3290, %v3482
      %v3515 = vsel %vm3355, %v3292, %v3483
      %v3516 = vsel %vm3356, %v3295, %v3484
      %v3517 = vsel %vm3357, %v3297, %v3485
      %v3518 = vsel %vm3358, %v3300, %v3486
      %v3519 = vsel %vm3359, %v3302, %v3487
      %v3520 = vsel %vm3360, %v3305, %v3488
      %v3521 = vsel %vm3361, %v3307, %v3489
      %v3522 = vsel %vm3362, %v3310, %v3490
      %v3523 = vsel %vm3363, %v3312, %v3491
      %v3524 = vsel %vm3364, %v3315, %v3492
      %v3525 = vsel %vm3365, %v3317, %v3493
      %v3526 = vsel %vm3366, %v3320, %v3494
      %v3527 = vsel %vm3367, %v3322, %v3495
      %v3528 = vsel %vm3368, %v3325, %v3496
      %v3529 = vsel %vm3369, %v3327, %v3497
      %v3530 = vsel %vm3370, %v3330, %v3498
      %v3531 = vsel %vm3371, %v3332, %v3499
      %v3532 = vsel %vm3372, %v3335, %v3500
      %v3533 = vsel %vm3373, %v3337, %v3501
      %v3534 = vsel %vm3374, %v3340, %v3502
      %v3535 = vsel %vm3375, %v3342, %v3503
      %3536 = vst [vmem:[%s224] sm:$0xff] %v3504
      %3537 = vst [vmem:[%s224 + $0x8] sm:$0xff] %v3505
      %3538 = vst [vmem:[%s224 + $0x10] sm:$0xff] %v3506
      %3539 = vst [vmem:[%s224 + $0x18] sm:$0xff] %v3507
      %3540 = vst [vmem:[%s224 + $0x20] sm:$0xff] %v3508
      %3541 = vst [vmem:[%s224 + $0x28] sm:$0xff] %v3509
      %3542 = vst [vmem:[%s224 + $0x30] sm:$0xff] %v3510
      %3543 = vst [vmem:[%s224 + $0x38] sm:$0xff] %v3511
      %3544 = vst [vmem:[%s224 + $0x40] sm:$0xff] %v3512
      %3545 = vst [vmem:[%s224 + $0x48] sm:$0xff] %v3513
      %3546 = vst [vmem:[%s224 + $0x50] sm:$0xff] %v3514
      %3547 = vst [vmem:[%s224 + $0x58] sm:$0xff] %v3515
      %3548 = vst [vmem:[%s224 + $0x60] sm:$0xff] %v3516
      %3549 = vst [vmem:[%s224 + $0x68] sm:$0xff] %v3517
      %3550 = vst [vmem:[%s224 + $0x70] sm:$0xff] %v3518
      %3551 = vst [vmem:[%s224 + $0x78] sm:$0xff] %v3519
      %3552 = vst [vmem:[%s224 + $0x80] sm:$0xff] %v3520
      %3553 = vst [vmem:[%s224 + $0x88] sm:$0xff] %v3521
      %3554 = vst [vmem:[%s224 + $0x90] sm:$0xff] %v3522
      %3555 = vst [vmem:[%s224 + $0x98] sm:$0xff] %v3523
      %3556 = vst [vmem:[%s224 + $0xa0] sm:$0xff] %v3524
      %3557 = vst [vmem:[%s224 + $0xa8] sm:$0xff] %v3525
      %3558 = vst [vmem:[%s224 + $0xb0] sm:$0xff] %v3526
      %3559 = vst [vmem:[%s224 + $0xb8] sm:$0xff] %v3527
      %3560 = vst [vmem:[%s224 + $0xc0] sm:$0xff] %v3528
      %3561 = vst [vmem:[%s224 + $0xc8] sm:$0xff] %v3529
      %3562 = vst [vmem:[%s224 + $0xd0] sm:$0xff] %v3530
      %3563 = vst [vmem:[%s224 + $0xd8] sm:$0xff] %v3531
      %3564 = vst [vmem:[%s224 + $0xe0] sm:$0xff] %v3532
      %3565 = vst [vmem:[%s224 + $0xe8] sm:$0xff] %v3533
      %3566 = vst [vmem:[%s224 + $0xf0] sm:$0xff] %v3534
      %3567 = vst [vmem:[%s224 + $0xf8] sm:$0xff] %v3535
      %s3568 = smul.u32 32, %s15
      %p3569 = scmp.lt.s32.totalorder %s3568, 63
      %s3570 = scalar_select %p3569, %s3568, 63
      %s3571 = smul.addr %s3570, 8
      %s3572 = scalar_lea.vmem %s4, %s3571
      // Predicated region
      $region37: #{gaex_forward.9} parent=35 // pred_check
        %p3573 = pneg %p127
      $region38: #{gaex_forward.9} parent=35 // pred_check_branch
        %3575 = sbr.rel (%p3573) target = $region40
      $region39: #{gaex_forward.9} parent=35 // pred_region
        %s3576 = smul.u32 32, %s15
      $region40: #{gaex_forward.9} parent=35 // pred_fallthru
        _
    $region36: #{gaex_forward.9} parent=5 // pred_fallthru
      _
    %p3577 = scmp.le.s32.totalorder 2, %s10
    // Predicated region
    $region41: #{gaex_forward.9} parent=5 // pred_check
      %p3578 = pneg %p3577
    $region42: #{gaex_forward.9} parent=5 // pred_check_branch
      %3580 = sbr.rel (%p3578) target = $region44
    $region43: #{gaex_forward.9} parent=5 // pred_region
      %s3581 = ssub.s32 %s10, 2
      // Predicated region
      $region45: #{gaex_forward.9} parent=43 // pred_check
        %p3582 = pneg %p133
      $region46: #{gaex_forward.9} parent=43 // pred_check_branch
        %3584 = sbr.rel (%p3582) target = $region48
      $region47: #{gaex_forward.9} parent=43 // pred_region
        %s3585 = smul.u32 32, %s16
        %p3586 = scmp.lt.s32.totalorder %s3585, 63
        %s3587 = scalar_select %p3586, %s3585, 63
        %s3588 = smul.addr %s3587, 8
        %s3589 = scalar_lea.vmem %s4, %s3588
      $region48: #{gaex_forward.9} parent=43 // pred_fallthru
        _
    $region44: #{gaex_forward.9} parent=5 // pred_fallthru
      _
  $region6: #{gaex_forward.9} parent=0 // loop_footer
    %s14 = sadd.s32 1, %s10
  $region7: #{gaex_forward.9} parent=0 // loop_footer_branch
    %9 = sbr.rel target = $region3
  $region8: #{gaex_forward.9} parent=0 // loop_exit
    _

// kernel: gaex_forward.15
$region0: #{gaex_forward.15}
  #allocation0 [shape = 'u32[]', space=smem, size = 0x4, offset = 0x4, fixed_abs, tag = 'smem constant byte address 0x4 - core index']
  #allocation1 [shape = 'u32[72,128]{1,0:T(1,128)}', space=vmem, size = 0x9000, scoped, tag = 'internal scratch']
  %s0 = inlined_call_operand.vmem [shape: f32[512,128], index: 0, kind: input, shape index: {}]
  %s1 = inlined_call_operand.vmem [shape: f32[128,512], index: 1, kind: input, shape index: {}]
  %s2 = inlined_call_operand.vmem [shape: f32[128,128], index: 2, kind: input, shape index: {}]
  %s3 = inlined_call_operand.vmem [shape: f32[1,128], index: 3, kind: input, shape index: {}]
  %s4 = inlined_call_operand.vmem [shape: f32[512,512], index: 4, kind: output, shape index: {0}]
  %s5 = inlined_call_operand.vmem [shape: f32[512,128], index: 5, kind: output, shape index: {1}]
  %6 = xla_tuple %s4, %s5
  %s7 = sld [smem:[#allocation0]]
  $region57: #{gaex_forward.15} parent=0
    _
  %s9 = ssub.s32 1, %s7
  %s10 = scalar_select 0, %s9, %s7
  loop: start=0, step=1, limit=4
  $region2: #{gaex_forward.15} parent=0 // loop_pre_header
    _
  $region3: #{gaex_forward.15} parent=0 // loop_header
    %s12 = sphi 0, %s16
    %p13 = scmp.ge.s32.totalorder %s12, 4
    %s22 = sphi 0, %s24
    %s25 = sphi 0, %s22
    %s26 = sphi 0, %s25
    %s42 = sphi 0, %s26
    %s46 = sphi 0, %s46
    %s48 = sphi 0, %s46
    %s49 = sphi 0, %s48
    %s63 = sphi 0, %s49
    %s67 = sphi 0, %s67
    %s69 = sphi 0, %s67
    %s70 = sphi 0, %s69
    %s84 = sphi 0, %s70
    %s88 = sphi 0, %s88
    %s90 = sphi 0, %s88
    %s91 = sphi 0, %s90
    %s105 = sphi 0, %s91
    %s111 = sphi 0, %s113
    %s114 = sphi 0, %s111
    %s115 = sphi 0, %s114
    %s131 = sphi 0, %s115
    %s137 = sphi 0, %s139
    %s140 = sphi 0, %s137
    %s141 = sphi 0, %s140
    %s157 = sphi 0, %s141
  $region4: #{gaex_forward.15} parent=0 // loop_header_branch
    %15 = sbr.rel (%p13) target = $region8
  $region5: #{gaex_forward.15} parent=0 // loop_body
    %s17 = ssub.s32 %s12, 1
    %s18 = ssub.s32 %s12, 2
    %s19 = sadd.s32 %s12, 1
    %s20 = ssub.s32 %s12, %s19
    %p21 = scmp.eq.s32.totalorder %s20, 0
    %s23 = sadd.s32 %s22, 1
    %s24 = scalar_select %p21, %s22, %s23
    %p27 = pneg %p21
    %p28 = scmp.eq.s32.totalorder %s12, 1
    %p29 = por %p27, %p28
    %p30 = scmp.ne.s32.totalorder %s22, %s25
    %p31 = scmp.eq.s32.totalorder %s12, 0
    %p32 = por %p30, %p31
    %p33 = scmp.ne.s32.totalorder %s22, %s25
    %p34 = scmp.eq.s32.totalorder %s17, 1
    %p35 = por %p33, %p34
    %p36 = scmp.ne.s32.totalorder %s25, %s26
    %p37 = scmp.eq.s32.totalorder %s17, 0
    %p38 = por %p36, %p37
    %p39 = scmp.ne.s32.totalorder %s25, %s26
    %p40 = scmp.eq.s32.totalorder %s18, 1
    %p41 = por %p39, %p40
    %p43 = scmp.ne.s32.totalorder %s26, %s42
    %p44 = scmp.eq.s32.totalorder %s18, 0
    %p45 = por %p43, %p44
    %s47 = sadd.s32 %s46, 1
    %p50 = scmp.eq.s32.totalorder %s12, 1
    %p51 = scmp.ne.s32.totalorder %s46, %s48
    %p52 = scmp.eq.s32.totalorder %s12, 0
    %p53 = por %p51, %p52
    %p54 = scmp.ne.s32.totalorder %s46, %s48
    %p55 = scmp.eq.s32.totalorder %s17, 1
    %p56 = por %p54, %p55
    %p57 = scmp.ne.s32.totalorder %s48, %s49
    %p58 = scmp.eq.s32.totalorder %s17, 0
    %p59 = por %p57, %p58
    %p60 = scmp.ne.s32.totalorder %s48, %s49
    %p61 = scmp.eq.s32.totalorder %s18, 1
    %p62 = por %p60, %p61
    %p64 = scmp.ne.s32.totalorder %s49, %s63
    %p65 = scmp.eq.s32.totalorder %s18, 0
    %p66 = por %p64, %p65
    %s68 = sadd.s32 %s67, 1
    %p71 = scmp.eq.s32.totalorder %s12, 1
    %p72 = scmp.ne.s32.totalorder %s67, %s69
    %p73 = scmp.eq.s32.totalorder %s12, 0
    %p74 = por %p72, %p73
    %p75 = scmp.ne.s32.totalorder %s67, %s69
    %p76 = scmp.eq.s32.totalorder %s17, 1
    %p77 = por %p75, %p76
    %p78 = scmp.ne.s32.totalorder %s69, %s70
    %p79 = scmp.eq.s32.totalorder %s17, 0
    %p80 = por %p78, %p79
    %p81 = scmp.ne.s32.totalorder %s69, %s70
    %p82 = scmp.eq.s32.totalorder %s18, 1
    %p83 = por %p81, %p82
    %p85 = scmp.ne.s32.totalorder %s70, %s84
    %p86 = scmp.eq.s32.totalorder %s18, 0
    %p87 = por %p85, %p86
    %s89 = sadd.s32 %s88, 1
    %p92 = scmp.eq.s32.totalorder %s12, 1
    %p93 = scmp.ne.s32.totalorder %s88, %s90
    %p94 = scmp.eq.s32.totalorder %s12, 0
    %p95 = por %p93, %p94
    %p96 = scmp.ne.s32.totalorder %s88, %s90
    %p97 = scmp.eq.s32.totalorder %s17, 1
    %p98 = por %p96, %p97
    %p99 = scmp.ne.s32.totalorder %s90, %s91
    %p100 = scmp.eq.s32.totalorder %s17, 0
    %p101 = por %p99, %p100
    %p102 = scmp.ne.s32.totalorder %s90, %s91
    %p103 = scmp.eq.s32.totalorder %s18, 1
    %p104 = por %p102, %p103
    %p106 = scmp.ne.s32.totalorder %s91, %s105
    %p107 = scmp.eq.s32.totalorder %s18, 0
    %p108 = por %p106, %p107
    %s109 = ssub.s32 %s12, %s19
    %p110 = scmp.eq.s32.totalorder %s109, 0
    %s112 = sadd.s32 %s111, 1
    %s113 = scalar_select %p110, %s111, %s112
    %p116 = pneg %p110
    %p117 = scmp.eq.s32.totalorder %s12, 1
    %p118 = por %p116, %p117
    %p119 = scmp.ne.s32.totalorder %s111, %s114
    %p120 = scmp.eq.s32.totalorder %s12, 0
    %p121 = por %p119, %p120
    %p122 = scmp.ne.s32.totalorder %s111, %s114
    %p123 = scmp.eq.s32.totalorder %s17, 1
    %p124 = por %p122, %p123
    %p125 = scmp.ne.s32.totalorder %s114, %s115
    %p126 = scmp.eq.s32.totalorder %s17, 0
    %p127 = por %p125, %p126
    %p128 = scmp.ne.s32.totalorder %s114, %s115
    %p129 = scmp.eq.s32.totalorder %s18, 1
    %p130 = por %p128, %p129
    %p132 = scmp.ne.s32.totalorder %s115, %s131
    %p133 = scmp.eq.s32.totalorder %s18, 0
    %p134 = por %p132, %p133
    %s135 = ssub.s32 %s12, %s19
    %p136 = scmp.eq.s32.totalorder %s135, 0
    %s138 = sadd.s32 %s137, 1
    %s139 = scalar_select %p136, %s137, %s138
    %p142 = pneg %p136
    %p143 = scmp.eq.s32.totalorder %s12, 1
    %p144 = por %p142, %p143
    %p145 = scmp.ne.s32.totalorder %s137, %s140
    %p146 = scmp.eq.s32.totalorder %s12, 0
    %p147 = por %p145, %p146
    %p148 = scmp.ne.s32.totalorder %s137, %s140
    %p149 = scmp.eq.s32.totalorder %s17, 1
    %p150 = por %p148, %p149
    %p151 = scmp.ne.s32.totalorder %s140, %s141
    %p152 = scmp.eq.s32.totalorder %s17, 0
    %p153 = por %p151, %p152
    %p154 = scmp.ne.s32.totalorder %s140, %s141
    %p155 = scmp.eq.s32.totalorder %s18, 1
    %p156 = por %p154, %p155
    %p158 = scmp.ne.s32.totalorder %s141, %s157
    %p159 = scmp.eq.s32.totalorder %s18, 0
    %p160 = por %p158, %p159
    %p161 = scmp.le.s32.totalorder 1, %s12
    %p162 = scmp.lt.s32.totalorder %s12, 3
    %p163 = pnand %p161, %p162
    %p164 = pneg %p163
    // Predicated region
    $region9: #{gaex_forward.15} parent=5 // pred_check
      _
    $region10: #{gaex_forward.15} parent=5 // pred_check_branch
      %166 = sbr.rel (%p163) target = $region12
    $region11: #{gaex_forward.15} parent=5 // pred_region
      %s167 = ssub.s32 %s12, 1
      // Predicated region
      $region13: #{gaex_forward.15} parent=11 // pred_check
        %p168 = pneg %p59
      $region14: #{gaex_forward.15} parent=11 // pred_check_branch
        %170 = sbr.rel (%p168) target = $region16
      $region15: #{gaex_forward.15} parent=11 // pred_region
        _
      $region16: #{gaex_forward.15} parent=11 // pred_fallthru
        _
      // Predicated region
      $region17: #{gaex_forward.15} parent=11 // pred_check
        %p171 = pneg %p80
      $region18: #{gaex_forward.15} parent=11 // pred_check_branch
        %173 = sbr.rel (%p171) target = $region20
      $region19: #{gaex_forward.15} parent=11 // pred_region
        _
      $region20: #{gaex_forward.15} parent=11 // pred_fallthru
        _
      // Predicated region
      $region21: #{gaex_forward.15} parent=11 // pred_check
        %p174 = pneg %p101
      $region22: #{gaex_forward.15} parent=11 // pred_check_branch
        %176 = sbr.rel (%p174) target = $region24
      $region23: #{gaex_forward.15} parent=11 // pred_region
        _
      $region24: #{gaex_forward.15} parent=11 // pred_fallthru
        _
    $region12: #{gaex_forward.15} parent=5 // pred_fallthru
      _
    %p177 = scmp.lt.s32.totalorder %s12, 2
    // Predicated region
    $region25: #{gaex_forward.15} parent=5 // pred_check
      %p178 = pneg %p177
    $region26: #{gaex_forward.15} parent=5 // pred_check_branch
      %180 = sbr.rel (%p178) target = $region28
    $region27: #{gaex_forward.15} parent=5 // pred_region
      // Predicated region
      $region29: #{gaex_forward.15} parent=27 // pred_check
        %p181 = pneg %p32
      $region30: #{gaex_forward.15} parent=27 // pred_check_branch
        %183 = sbr.rel (%p181) target = $region32
      $region31: #{gaex_forward.15} parent=27 // pred_region
        %s184 = smul.u32 32, %s12
        %p185 = scmp.lt.s32.totalorder %s184, 63
        %s186 = scalar_select %p185, %s184, 63
        %s187 = smul.addr %s186, 8
        %s188 = scalar_lea.vmem %s0, %s187
        %s189 = smul.u32 32, %s12
      $region32: #{gaex_forward.15} parent=27 // pred_fallthru
        _
    $region28: #{gaex_forward.15} parent=5 // pred_fallthru
      _
    %p190 = scmp.le.s32.totalorder 1, %s12
    %p191 = scmp.lt.s32.totalorder %s12, 3
    %p192 = pnand %p190, %p191
    %p193 = pneg %p192
    // Predicated region
    $region33: #{gaex_forward.15} parent=5 // pred_check
      _
    $region34: #{gaex_forward.15} parent=5 // pred_check_branch
      %195 = sbr.rel (%p192) target = $region36
    $region35: #{gaex_forward.15} parent=5 // pred_region
      %s196 = ssub.s32 %s12, 1
      %s197 = smul.u32 32, %s17
      %p198 = scmp.lt.s32.totalorder %s197, 63
      %s199 = scalar_select %p198, %s197, 63
      %s200 = smul.addr %s199, 8
      %s201 = scalar_lea.vmem %s0, %s200
      %p202 = pneg %p38
      %p203 = pneg %p35
      %p204 = pneg %p59
      %p205 = pneg %p56
      %p206 = pneg %p80
      %p207 = pneg %p77
      %p208 = pneg %p101
      %p209 = pneg %p98
      %p210 = pneg %p127
      %p211 = pneg %p124
      %s212 = smul.u32 32, %s17
      %p213 = scmp.lt.s32.totalorder %s212, 63
      %s214 = scalar_select %p213, %s212, 63
      %s215 = smul.addr %s214, 4
      %s216 = smul.addr %s215, 8
      %s217 = scalar_lea.vmem %s4, %s216
      %p218 = pneg %p153
      %p219 = pneg %p150
      %s220 = smul.u32 32, %s17
      %p221 = scmp.lt.s32.totalorder %s220, 63
      %s222 = scalar_select %p221, %s220, 63
      %s223 = smul.addr %s222, 8
      %s224 = scalar_lea.vmem %s5, %s223
      %s225 = smul.u32 32, %s17
      %p226 = scmp.lt.s32.totalorder %s225, 63
      %s227 = scalar_select %p226, %s225, 63
      %s228 = smul.addr %s227, 8
      %s229 = scalar_lea.vmem %s0, %s228
      %s230 = smul.u32 32, %s17
      %s231 = smul.u32 32, %s17
      %p232 = scmp.lt.s32.totalorder %s231, 63
      %s233 = scalar_select %p232, %s231, 63
      %s234 = smul.addr %s233, 4
      %s235 = smul.addr %s234, 8
      %s236 = scalar_lea.vmem %s4, %s235
      %s237 = smul.u32 32, %s17
      %s238 = smul.u32 32, %s17
      %p239 = scmp.lt.s32.totalorder %s238, 63
      %s240 = scalar_select %p239, %s238, 63
      %s241 = smul.addr %s240, 8
      %s242 = scalar_lea.vmem %s5, %s241
      %s243 = smul.u32 32, %s17
      %v244 = vld [vmem:[%s229] sm:$0xff]
      %v245 = vld [vmem:[%s229 + $0x8] sm:$0xff]
      %v246 = vld [vmem:[%s229 + $0x10] sm:$0xff]
      %v247 = vld [vmem:[%s229 + $0x18] sm:$0xff]
      %v248 = vld [vmem:[%s229 + $0x20] sm:$0xff]
      %v249 = vld [vmem:[%s229 + $0x28] sm:$0xff]
      %v250 = vld [vmem:[%s229 + $0x30] sm:$0xff]
      %v251 = vld [vmem:[%s229 + $0x38] sm:$0xff]
      %v252 = vld [vmem:[%s229 + $0x40] sm:$0xff]
      %v253 = vld [vmem:[%s229 + $0x48] sm:$0xff]
      %v254 = vld [vmem:[%s229 + $0x50] sm:$0xff]
      %v255 = vld [vmem:[%s229 + $0x58] sm:$0xff]
      %v256 = vld [vmem:[%s229 + $0x60] sm:$0xff]
      %v257 = vld [vmem:[%s229 + $0x68] sm:$0xff]
      %v258 = vld [vmem:[%s229 + $0x70] sm:$0xff]
      %v259 = vld [vmem:[%s229 + $0x78] sm:$0xff]
      %v260 = vld [vmem:[%s229 + $0x80] sm:$0xff]
      %v261 = vld [vmem:[%s229 + $0x88] sm:$0xff]
      %v262 = vld [vmem:[%s229 + $0x90] sm:$0xff]
      %v263 = vld [vmem:[%s229 + $0x98] sm:$0xff]
      %v264 = vld [vmem:[%s229 + $0xa0] sm:$0xff]
      %v265 = vld [vmem:[%s229 + $0xa8] sm:$0xff]
      %v266 = vld [vmem:[%s229 + $0xb0] sm:$0xff]
      %v267 = vld [vmem:[%s229 + $0xb8] sm:$0xff]
      %v268 = vld [vmem:[%s229 + $0xc0] sm:$0xff]
      %v269 = vld [vmem:[%s229 + $0xc8] sm:$0xff]
      %v270 = vld [vmem:[%s229 + $0xd0] sm:$0xff]
      %v271 = vld [vmem:[%s229 + $0xd8] sm:$0xff]
      %v272 = vld [vmem:[%s229 + $0xe0] sm:$0xff]
      %v273 = vld [vmem:[%s229 + $0xe8] sm:$0xff]
      %v274 = vld [vmem:[%s229 + $0xf0] sm:$0xff]
      %v275 = vld [vmem:[%s229 + $0xf8] sm:$0xff]
      %v276 = vld [vmem:[%s1] sm:$0xff]
      %v277 = vld [vmem:[%s1 + $0x8] sm:$0xff]
      %v278 = vld [vmem:[%s1 + $0x10] sm:$0xff]
      %v279 = vld [vmem:[%s1 + $0x18] sm:$0xff]
      %v280 = vld [vmem:[%s1 + $0x20] sm:$0xff]
      %v281 = vld [vmem:[%s1 + $0x28] sm:$0xff]
      %v282 = vld [vmem:[%s1 + $0x30] sm:$0xff]
      %v283 = vld [vmem:[%s1 + $0x38] sm:$0xff]
      %v284 = vld [vmem:[%s1 + $0x40] sm:$0xff]
      %v285 = vld [vmem:[%s1 + $0x48] sm:$0xff]
      %v286 = vld [vmem:[%s1 + $0x50] sm:$0xff]
      %v287 = vld [vmem:[%s1 + $0x58] sm:$0xff]
      %v288 = vld [vmem:[%s1 + $0x60] sm:$0xff]
      %v289 = vld [vmem:[%s1 + $0x68] sm:$0xff]
      %v290 = vld [vmem:[%s1 + $0x70] sm:$0xff]
      %v291 = vld [vmem:[%s1 + $0x78] sm:$0xff]
      %v292 = vld [vmem:[%s1 + $0x80] sm:$0xff]
      %v293 = vld [vmem:[%s1 + $0x88] sm:$0xff]
      %v294 = vld [vmem:[%s1 + $0x90] sm:$0xff]
      %v295 = vld [vmem:[%s1 + $0x98] sm:$0xff]
      %v296 = vld [vmem:[%s1 + $0xa0] sm:$0xff]
      %v297 = vld [vmem:[%s1 + $0xa8] sm:$0xff]
      %v298 = vld [vmem:[%s1 + $0xb0] sm:$0xff]
      %v299 = vld [vmem:[%s1 + $0xb8] sm:$0xff]
      %v300 = vld [vmem:[%s1 + $0xc0] sm:$0xff]
      %v301 = vld [vmem:[%s1 + $0xc8] sm:$0xff]
      %v302 = vld [vmem:[%s1 + $0xd0] sm:$0xff]
      %v303 = vld [vmem:[%s1 + $0xd8] sm:$0xff]
      %v304 = vld [vmem:[%s1 + $0xe0] sm:$0xff]
      %v305 = vld [vmem:[%s1 + $0xe8] sm:$0xff]
      %v306 = vld [vmem:[%s1 + $0xf0] sm:$0xff]
      %v307 = vld [vmem:[%s1 + $0xf8] sm:$0xff]
      %v308 = vld [vmem:[%s1 + $0x100] sm:$0xff]
      %v309 = vld [vmem:[%s1 + $0x108] sm:$0xff]
      %v310 = vld [vmem:[%s1 + $0x110] sm:$0xff]
      %v311 = vld [vmem:[%s1 + $0x118] sm:$0xff]
      %v312 = vld [vmem:[%s1 + $0x120] sm:$0xff]
      %v313 = vld [vmem:[%s1 + $0x128] sm:$0xff]
      %v314 = vld [vmem:[%s1 + $0x130] sm:$0xff]
      %v315 = vld [vmem:[%s1 + $0x138] sm:$0xff]
      %v316 = vld [vmem:[%s1 + $0x140] sm:$0xff]
      %v317 = vld [vmem:[%s1 + $0x148] sm:$0xff]
      %v318 = vld [vmem:[%s1 + $0x150] sm:$0xff]
      %v319 = vld [vmem:[%s1 + $0x158] sm:$0xff]
      %v320 = vld [vmem:[%s1 + $0x160] sm:$0xff]
      %v321 = vld [vmem:[%s1 + $0x168] sm:$0xff]
      %v322 = vld [vmem:[%s1 + $0x170] sm:$0xff]
      %v323 = vld [vmem:[%s1 + $0x178] sm:$0xff]
      %v324 = vld [vmem:[%s1 + $0x180] sm:$0xff]
      %v325 = vld [vmem:[%s1 + $0x188] sm:$0xff]
      %v326 = vld [vmem:[%s1 + $0x190] sm:$0xff]
      %v327 = vld [vmem:[%s1 + $0x198] sm:$0xff]
      %v328 = vld [vmem:[%s1 + $0x1a0] sm:$0xff]
      %v329 = vld [vmem:[%s1 + $0x1a8] sm:$0xff]
      %v330 = vld [vmem:[%s1 + $0x1b0] sm:$0xff]
      %v331 = vld [vmem:[%s1 + $0x1b8] sm:$0xff]
      %v332 = vld [vmem:[%s1 + $0x1c0] sm:$0xff]
      %v333 = vld [vmem:[%s1 + $0x1c8] sm:$0xff]
      %v334 = vld [vmem:[%s1 + $0x1d0] sm:$0xff]
      %v335 = vld [vmem:[%s1 + $0x1d8] sm:$0xff]
      %v336 = vld [vmem:[%s1 + $0x1e0] sm:$0xff]
      %v337 = vld [vmem:[%s1 + $0x1e8] sm:$0xff]
      %v338 = vld [vmem:[%s1 + $0x1f0] sm:$0xff]
      %v339 = vld [vmem:[%s1 + $0x1f8] sm:$0xff]
      %340 = vmatpush.msra.mxu0 %v336
      %341 = vmatpush.msra.mxu0 %v332
      %342 = vmatpush.msra.mxu0 %v328
      %343 = vmatpush.msra.mxu0 %v324
      %344 = vmatpush.msra.mxu0 %v320
      %345 = vmatpush.msra.mxu0 %v316
      %346 = vmatpush.msra.mxu0 %v312
      %347 = vmatpush.msra.mxu0 %v308
      %348 = vmatpush.msra.mxu0 %v304
      %349 = vmatpush.msra.mxu0 %v300
      %350 = vmatpush.msra.mxu0 %v296
      %351 = vmatpush.msra.mxu0 %v292
      %352 = vmatpush.msra.mxu0 %v288
      %353 = vmatpush.msra.mxu0 %v284
      %354 = vmatpush.msra.mxu0 %v280
      %355 = vmatpush.msra.mxu0 %v276
      %356 = vmatmul.f32.gmra.mxu0 %v244
      %v357 = vpop.f32.mrf.mxu0
      %v358 = vadd.f32 0.0, %v357
      %359 = vmatmul.f32.gmra.mxu0 %v245
      %v360 = vpop.f32.mrf.mxu0
      %v361 = vadd.f32 0.0, %v360
      %362 = vmatmul.f32.gmra.mxu0 %v246
      %v363 = vpop.f32.mrf.mxu0
      %v364 = vadd.f32 0.0, %v363
      %365 = vmatmul.f32.gmra.mxu0 %v247
      %v366 = vpop.f32.mrf.mxu0
      %v367 = vadd.f32 0.0, %v366
      %368 = vmatmul.f32.gmra.mxu0 %v248
      %v369 = vpop.f32.mrf.mxu0
      %v370 = vadd.f32 0.0, %v369
      %371 = vmatmul.f32.gmra.mxu0 %v249
      %v372 = vpop.f32.mrf.mxu0
      %v373 = vadd.f32 0.0, %v372
      %374 = vmatmul.f32.gmra.mxu0 %v250
      %v375 = vpop.f32.mrf.mxu0
      %v376 = vadd.f32 0.0, %v375
      %377 = vmatmul.f32.gmra.mxu0 %v251
      %v378 = vpop.f32.mrf.mxu0
      %v379 = vadd.f32 0.0, %v378
      %380 = vmatmul.f32.gmra.mxu0 %v252
      %v381 = vpop.f32.mrf.mxu0
      %v382 = vadd.f32 0.0, %v381
      %383 = vmatmul.f32.gmra.mxu0 %v253
      %v384 = vpop.f32.mrf.mxu0
      %v385 = vadd.f32 0.0, %v384
      %386 = vmatmul.f32.gmra.mxu0 %v254
      %v387 = vpop.f32.mrf.mxu0
      %v388 = vadd.f32 0.0, %v387
      %389 = vmatmul.f32.gmra.mxu0 %v255
      %v390 = vpop.f32.mrf.mxu0
      %v391 = vadd.f32 0.0, %v390
      %392 = vmatmul.f32.gmra.mxu0 %v256
      %v393 = vpop.f32.mrf.mxu0
      %v394 = vadd.f32 0.0, %v393
      %395 = vmatmul.f32.gmra.mxu0 %v257
      %v396 = vpop.f32.mrf.mxu0
      %v397 = vadd.f32 0.0, %v396
      %398 = vmatmul.f32.gmra.mxu0 %v258
      %v399 = vpop.f32.mrf.mxu0
      %v400 = vadd.f32 0.0, %v399
      %401 = vmatmul.f32.gmra.mxu0 %v259
      %v402 = vpop.f32.mrf.mxu0
      %v403 = vadd.f32 0.0, %v402
      %404 = vmatmul.f32.gmra.mxu0 %v260
      %v405 = vpop.f32.mrf.mxu0
      %v406 = vadd.f32 0.0, %v405
      %407 = vmatmul.f32.gmra.mxu0 %v261
      %v408 = vpop.f32.mrf.mxu0
      %v409 = vadd.f32 0.0, %v408
      %410 = vmatmul.f32.gmra.mxu0 %v262
      %v411 = vpop.f32.mrf.mxu0
      %v412 = vadd.f32 0.0, %v411
      %413 = vmatmul.f32.gmra.mxu0 %v263
      %v414 = vpop.f32.mrf.mxu0
      %v415 = vadd.f32 0.0, %v414
      %416 = vmatmul.f32.gmra.mxu0 %v264
      %v417 = vpop.f32.mrf.mxu0
      %v418 = vadd.f32 0.0, %v417
      %419 = vmatmul.f32.gmra.mxu0 %v265
      %v420 = vpop.f32.mrf.mxu0
      %v421 = vadd.f32 0.0, %v420
      %422 = vmatmul.f32.gmra.mxu0 %v266
      %v423 = vpop.f32.mrf.mxu0
      %v424 = vadd.f32 0.0, %v423
      %425 = vmatmul.f32.gmra.mxu0 %v267
      %v426 = vpop.f32.mrf.mxu0
      %v427 = vadd.f32 0.0, %v426
      %428 = vmatmul.f32.gmra.mxu0 %v268
      %v429 = vpop.f32.mrf.mxu0
      %v430 = vadd.f32 0.0, %v429
      %431 = vmatmul.f32.gmra.mxu0 %v269
      %v432 = vpop.f32.mrf.mxu0
      %v433 = vadd.f32 0.0, %v432
      %434 = vmatmul.f32.gmra.mxu0 %v270
      %v435 = vpop.f32.mrf.mxu0
      %v436 = vadd.f32 0.0, %v435
      %437 = vmatmul.f32.gmra.mxu0 %v271
      %v438 = vpop.f32.mrf.mxu0
      %v439 = vadd.f32 0.0, %v438
      %440 = vmatmul.f32.gmra.mxu0 %v272
      %v441 = vpop.f32.mrf.mxu0
      %v442 = vadd.f32 0.0, %v441
      %443 = vmatmul.f32.gmra.mxu0 %v273
      %v444 = vpop.f32.mrf.mxu0
      %v445 = vadd.f32 0.0, %v444
      %446 = vmatmul.f32.gmra.mxu0 %v274
      %v447 = vpop.f32.mrf.mxu0
      %v448 = vadd.f32 0.0, %v447
      %449 = vmatmul.f32.gmra.mxu0 %v275
      %v450 = vpop.f32.mrf.mxu0
      %v451 = vadd.f32 0.0, %v450
      %452 = vdwg.mxu0
      %453 = vmatpush.msra.mxu0 %v337
      %454 = vmatpush.msra.mxu0 %v333
      %455 = vmatpush.msra.mxu0 %v329
      %456 = vmatpush.msra.mxu0 %v325
      %457 = vmatpush.msra.mxu0 %v321
      %458 = vmatpush.msra.mxu0 %v317
      %459 = vmatpush.msra.mxu0 %v313
      %460 = vmatpush.msra.mxu0 %v309
      %461 = vmatpush.msra.mxu0 %v305
      %462 = vmatpush.msra.mxu0 %v301
      %463 = vmatpush.msra.mxu0 %v297
      %464 = vmatpush.msra.mxu0 %v293
      %465 = vmatpush.msra.mxu0 %v289
      %466 = vmatpush.msra.mxu0 %v285
      %467 = vmatpush.msra.mxu0 %v281
      %468 = vmatpush.msra.mxu0 %v277
      %469 = vmatmul.f32.gmra.mxu0 %v244
      %v470 = vpop.f32.mrf.mxu0
      %v471 = vadd.f32 0.0, %v470
      %472 = vmatmul.f32.gmra.mxu0 %v245
      %v473 = vpop.f32.mrf.mxu0
      %v474 = vadd.f32 0.0, %v473
      %475 = vmatmul.f32.gmra.mxu0 %v246
      %v476 = vpop.f32.mrf.mxu0
      %v477 = vadd.f32 0.0, %v476
      %478 = vmatmul.f32.gmra.mxu0 %v247
      %v479 = vpop.f32.mrf.mxu0
      %v480 = vadd.f32 0.0, %v479
      %481 = vmatmul.f32.gmra.mxu0 %v248
      %v482 = vpop.f32.mrf.mxu0
      %v483 = vadd.f32 0.0, %v482
      %484 = vmatmul.f32.gmra.mxu0 %v249
      %v485 = vpop.f32.mrf.mxu0
      %v486 = vadd.f32 0.0, %v485
      %487 = vmatmul.f32.gmra.mxu0 %v250
      %v488 = vpop.f32.mrf.mxu0
      %v489 = vadd.f32 0.0, %v488
      %490 = vmatmul.f32.gmra.mxu0 %v251
      %v491 = vpop.f32.mrf.mxu0
      %v492 = vadd.f32 0.0, %v491
      %493 = vmatmul.f32.gmra.mxu0 %v252
      %v494 = vpop.f32.mrf.mxu0
      %v495 = vadd.f32 0.0, %v494
      %496 = vmatmul.f32.gmra.mxu0 %v253
      %v497 = vpop.f32.mrf.mxu0
      %v498 = vadd.f32 0.0, %v497
      %499 = vmatmul.f32.gmra.mxu0 %v254
      %v500 = vpop.f32.mrf.mxu0
      %v501 = vadd.f32 0.0, %v500
      %502 = vmatmul.f32.gmra.mxu0 %v255
      %v503 = vpop.f32.mrf.mxu0
      %v504 = vadd.f32 0.0, %v503
      %505 = vmatmul.f32.gmra.mxu0 %v256
      %v506 = vpop.f32.mrf.mxu0
      %v507 = vadd.f32 0.0, %v506
      %508 = vmatmul.f32.gmra.mxu0 %v257
      %v509 = vpop.f32.mrf.mxu0
      %v510 = vadd.f32 0.0, %v509
      %511 = vmatmul.f32.gmra.mxu0 %v258
      %v512 = vpop.f32.mrf.mxu0
      %v513 = vadd.f32 0.0, %v512
      %514 = vmatmul.f32.gmra.mxu0 %v259
      %v515 = vpop.f32.mrf.mxu0
      %v516 = vadd.f32 0.0, %v515
      %517 = vmatmul.f32.gmra.mxu0 %v260
      %v518 = vpop.f32.mrf.mxu0
      %v519 = vadd.f32 0.0, %v518
      %520 = vmatmul.f32.gmra.mxu0 %v261
      %v521 = vpop.f32.mrf.mxu0
      %v522 = vadd.f32 0.0, %v521
      %523 = vmatmul.f32.gmra.mxu0 %v262
      %v524 = vpop.f32.mrf.mxu0
      %v525 = vadd.f32 0.0, %v524
      %526 = vmatmul.f32.gmra.mxu0 %v263
      %v527 = vpop.f32.mrf.mxu0
      %v528 = vadd.f32 0.0, %v527
      %529 = vmatmul.f32.gmra.mxu0 %v264
      %v530 = vpop.f32.mrf.mxu0
      %v531 = vadd.f32 0.0, %v530
      %532 = vmatmul.f32.gmra.mxu0 %v265
      %v533 = vpop.f32.mrf.mxu0
      %v534 = vadd.f32 0.0, %v533
      %535 = vmatmul.f32.gmra.mxu0 %v266
      %v536 = vpop.f32.mrf.mxu0
      %v537 = vadd.f32 0.0, %v536
      %538 = vmatmul.f32.gmra.mxu0 %v267
      %v539 = vpop.f32.mrf.mxu0
      %v540 = vadd.f32 0.0, %v539
      %541 = vmatmul.f32.gmra.mxu0 %v268
      %v542 = vpop.f32.mrf.mxu0
      %v543 = vadd.f32 0.0, %v542
      %544 = vmatmul.f32.gmra.mxu0 %v269
      %v545 = vpop.f32.mrf.mxu0
      %v546 = vadd.f32 0.0, %v545
      %547 = vmatmul.f32.gmra.mxu0 %v270
      %v548 = vpop.f32.mrf.mxu0
      %v549 = vadd.f32 0.0, %v548
      %550 = vmatmul.f32.gmra.mxu0 %v271
      %v551 = vpop.f32.mrf.mxu0
      %v552 = vadd.f32 0.0, %v551
      %553 = vmatmul.f32.gmra.mxu0 %v272
      %v554 = vpop.f32.mrf.mxu0
      %v555 = vadd.f32 0.0, %v554
      %556 = vmatmul.f32.gmra.mxu0 %v273
      %v557 = vpop.f32.mrf.mxu0
      %v558 = vadd.f32 0.0, %v557
      %559 = vmatmul.f32.gmra.mxu0 %v274
      %v560 = vpop.f32.mrf.mxu0
      %v561 = vadd.f32 0.0, %v560
      %562 = vmatmul.f32.gmra.mxu0 %v275
      %v563 = vpop.f32.mrf.mxu0
      %v564 = vadd.f32 0.0, %v563
      %565 = vdwg.mxu0
      %566 = vmatpush.msra.mxu0 %v338
      %567 = vmatpush.msra.mxu0 %v334
      %568 = vmatpush.msra.mxu0 %v330
      %569 = vmatpush.msra.mxu0 %v326
      %570 = vmatpush.msra.mxu0 %v322
      %571 = vmatpush.msra.mxu0 %v318
      %572 = vmatpush.msra.mxu0 %v314
      %573 = vmatpush.msra.mxu0 %v310
      %574 = vmatpush.msra.mxu0 %v306
      %575 = vmatpush.msra.mxu0 %v302
      %576 = vmatpush.msra.mxu0 %v298
      %577 = vmatpush.msra.mxu0 %v294
      %578 = vmatpush.msra.mxu0 %v290
      %579 = vmatpush.msra.mxu0 %v286
      %580 = vmatpush.msra.mxu0 %v282
      %581 = vmatpush.msra.mxu0 %v278
      %582 = vmatmul.f32.gmra.mxu0 %v244
      %v583 = vpop.f32.mrf.mxu0
      %v584 = vadd.f32 0.0, %v583
      %585 = vmatmul.f32.gmra.mxu0 %v245
      %v586 = vpop.f32.mrf.mxu0
      %v587 = vadd.f32 0.0, %v586
      %588 = vmatmul.f32.gmra.mxu0 %v246
      %v589 = vpop.f32.mrf.mxu0
      %v590 = vadd.f32 0.0, %v589
      %591 = vmatmul.f32.gmra.mxu0 %v247
      %v592 = vpop.f32.mrf.mxu0
      %v593 = vadd.f32 0.0, %v592
      %594 = vmatmul.f32.gmra.mxu0 %v248
      %v595 = vpop.f32.mrf.mxu0
      %v596 = vadd.f32 0.0, %v595
      %597 = vmatmul.f32.gmra.mxu0 %v249
      %v598 = vpop.f32.mrf.mxu0
      %v599 = vadd.f32 0.0, %v598
      %600 = vmatmul.f32.gmra.mxu0 %v250
      %v601 = vpop.f32.mrf.mxu0
      %v602 = vadd.f32 0.0, %v601
      %603 = vmatmul.f32.gmra.mxu0 %v251
      %v604 = vpop.f32.mrf.mxu0
      %v605 = vadd.f32 0.0, %v604
      %606 = vmatmul.f32.gmra.mxu0 %v252
      %v607 = vpop.f32.mrf.mxu0
      %v608 = vadd.f32 0.0, %v607
      %609 = vmatmul.f32.gmra.mxu0 %v253
      %v610 = vpop.f32.mrf.mxu0
      %v611 = vadd.f32 0.0, %v610
      %612 = vmatmul.f32.gmra.mxu0 %v254
      %v613 = vpop.f32.mrf.mxu0
      %v614 = vadd.f32 0.0, %v613
      %615 = vmatmul.f32.gmra.mxu0 %v255
      %v616 = vpop.f32.mrf.mxu0
      %v617 = vadd.f32 0.0, %v616
      %618 = vmatmul.f32.gmra.mxu0 %v256
      %v619 = vpop.f32.mrf.mxu0
      %v620 = vadd.f32 0.0, %v619
      %621 = vmatmul.f32.gmra.mxu0 %v257
      %v622 = vpop.f32.mrf.mxu0
      %v623 = vadd.f32 0.0, %v622
      %624 = vmatmul.f32.gmra.mxu0 %v258
      %v625 = vpop.f32.mrf.mxu0
      %v626 = vadd.f32 0.0, %v625
      %627 = vmatmul.f32.gmra.mxu0 %v259
      %v628 = vpop.f32.mrf.mxu0
      %v629 = vadd.f32 0.0, %v628
      %630 = vmatmul.f32.gmra.mxu0 %v260
      %v631 = vpop.f32.mrf.mxu0
      %v632 = vadd.f32 0.0, %v631
      %633 = vmatmul.f32.gmra.mxu0 %v261
      %v634 = vpop.f32.mrf.mxu0
      %v635 = vadd.f32 0.0, %v634
      %636 = vmatmul.f32.gmra.mxu0 %v262
      %v637 = vpop.f32.mrf.mxu0
      %v638 = vadd.f32 0.0, %v637
      %639 = vmatmul.f32.gmra.mxu0 %v263
      %v640 = vpop.f32.mrf.mxu0
      %v641 = vadd.f32 0.0, %v640
      %642 = vmatmul.f32.gmra.mxu0 %v264
      %v643 = vpop.f32.mrf.mxu0
      %v644 = vadd.f32 0.0, %v643
      %645 = vmatmul.f32.gmra.mxu0 %v265
      %v646 = vpop.f32.mrf.mxu0
      %v647 = vadd.f32 0.0, %v646
      %648 = vmatmul.f32.gmra.mxu0 %v266
      %v649 = vpop.f32.mrf.mxu0
      %v650 = vadd.f32 0.0, %v649
      %651 = vmatmul.f32.gmra.mxu0 %v267
      %v652 = vpop.f32.mrf.mxu0
      %v653 = vadd.f32 0.0, %v652
      %654 = vmatmul.f32.gmra.mxu0 %v268
      %v655 = vpop.f32.mrf.mxu0
      %v656 = vadd.f32 0.0, %v655
      %657 = vmatmul.f32.gmra.mxu0 %v269
      %v658 = vpop.f32.mrf.mxu0
      %v659 = vadd.f32 0.0, %v658
      %660 = vmatmul.f32.gmra.mxu0 %v270
      %v661 = vpop.f32.mrf.mxu0
      %v662 = vadd.f32 0.0, %v661
      %663 = vmatmul.f32.gmra.mxu0 %v271
      %v664 = vpop.f32.mrf.mxu0
      %v665 = vadd.f32 0.0, %v664
      %666 = vmatmul.f32.gmra.mxu0 %v272
      %v667 = vpop.f32.mrf.mxu0
      %v668 = vadd.f32 0.0, %v667
      %669 = vmatmul.f32.gmra.mxu0 %v273
      %v670 = vpop.f32.mrf.mxu0
      %v671 = vadd.f32 0.0, %v670
      %672 = vmatmul.f32.gmra.mxu0 %v274
      %v673 = vpop.f32.mrf.mxu0
      %v674 = vadd.f32 0.0, %v673
      %675 = vmatmul.f32.gmra.mxu0 %v275
      %v676 = vpop.f32.mrf.mxu0
      %v677 = vadd.f32 0.0, %v676
      %678 = vdwg.mxu0
      %679 = vmatpush.msra.mxu0 %v339
      %680 = vmatpush.msra.mxu0 %v335
      %681 = vmatpush.msra.mxu0 %v331
      %682 = vmatpush.msra.mxu0 %v327
      %683 = vmatpush.msra.mxu0 %v323
      %684 = vmatpush.msra.mxu0 %v319
      %685 = vmatpush.msra.mxu0 %v315
      %686 = vmatpush.msra.mxu0 %v311
      %687 = vmatpush.msra.mxu0 %v307
      %688 = vmatpush.msra.mxu0 %v303
      %689 = vmatpush.msra.mxu0 %v299
      %690 = vmatpush.msra.mxu0 %v295
      %691 = vmatpush.msra.mxu0 %v291
      %692 = vmatpush.msra.mxu0 %v287
      %693 = vmatpush.msra.mxu0 %v283
      %694 = vmatpush.msra.mxu0 %v279
      %695 = vmatmul.f32.gmra.mxu0 %v244
      %v696 = vpop.f32.mrf.mxu0
      %v697 = vadd.f32 0.0, %v696
      %698 = vmatmul.f32.gmra.mxu0 %v245
      %v699 = vpop.f32.mrf.mxu0
      %v700 = vadd.f32 0.0, %v699
      %701 = vmatmul.f32.gmra.mxu0 %v246
      %v702 = vpop.f32.mrf.mxu0
      %v703 = vadd.f32 0.0, %v702
      %704 = vmatmul.f32.gmra.mxu0 %v247
      %v705 = vpop.f32.mrf.mxu0
      %v706 = vadd.f32 0.0, %v705
      %707 = vmatmul.f32.gmra.mxu0 %v248
      %v708 = vpop.f32.mrf.mxu0
      %v709 = vadd.f32 0.0, %v708
      %710 = vmatmul.f32.gmra.mxu0 %v249
      %v711 = vpop.f32.mrf.mxu0
      %v712 = vadd.f32 0.0, %v711
      %713 = vmatmul.f32.gmra.mxu0 %v250
      %v714 = vpop.f32.mrf.mxu0
      %v715 = vadd.f32 0.0, %v714
      %716 = vmatmul.f32.gmra.mxu0 %v251
      %v717 = vpop.f32.mrf.mxu0
      %v718 = vadd.f32 0.0, %v717
      %719 = vmatmul.f32.gmra.mxu0 %v252
      %v720 = vpop.f32.mrf.mxu0
      %v721 = vadd.f32 0.0, %v720
      %722 = vmatmul.f32.gmra.mxu0 %v253
      %v723 = vpop.f32.mrf.mxu0
      %v724 = vadd.f32 0.0, %v723
      %725 = vmatmul.f32.gmra.mxu0 %v254
      %v726 = vpop.f32.mrf.mxu0
      %v727 = vadd.f32 0.0, %v726
      %728 = vmatmul.f32.gmra.mxu0 %v255
      %v729 = vpop.f32.mrf.mxu0
      %v730 = vadd.f32 0.0, %v729
      %731 = vmatmul.f32.gmra.mxu0 %v256
      %v732 = vpop.f32.mrf.mxu0
      %v733 = vadd.f32 0.0, %v732
      %734 = vmatmul.f32.gmra.mxu0 %v257
      %v735 = vpop.f32.mrf.mxu0
      %v736 = vadd.f32 0.0, %v735
      %737 = vmatmul.f32.gmra.mxu0 %v258
      %v738 = vpop.f32.mrf.mxu0
      %v739 = vadd.f32 0.0, %v738
      %740 = vmatmul.f32.gmra.mxu0 %v259
      %v741 = vpop.f32.mrf.mxu0
      %v742 = vadd.f32 0.0, %v741
      %743 = vmatmul.f32.gmra.mxu0 %v260
      %v744 = vpop.f32.mrf.mxu0
      %v745 = vadd.f32 0.0, %v744
      %746 = vmatmul.f32.gmra.mxu0 %v261
      %v747 = vpop.f32.mrf.mxu0
      %v748 = vadd.f32 0.0, %v747
      %749 = vmatmul.f32.gmra.mxu0 %v262
      %v750 = vpop.f32.mrf.mxu0
      %v751 = vadd.f32 0.0, %v750
      %752 = vmatmul.f32.gmra.mxu0 %v263
      %v753 = vpop.f32.mrf.mxu0
      %v754 = vadd.f32 0.0, %v753
      %755 = vmatmul.f32.gmra.mxu0 %v264
      %v756 = vpop.f32.mrf.mxu0
      %v757 = vadd.f32 0.0, %v756
      %758 = vmatmul.f32.gmra.mxu0 %v265
      %v759 = vpop.f32.mrf.mxu0
      %v760 = vadd.f32 0.0, %v759
      %761 = vmatmul.f32.gmra.mxu0 %v266
      %v762 = vpop.f32.mrf.mxu0
      %v763 = vadd.f32 0.0, %v762
      %764 = vmatmul.f32.gmra.mxu0 %v267
      %v765 = vpop.f32.mrf.mxu0
      %v766 = vadd.f32 0.0, %v765
      %767 = vmatmul.f32.gmra.mxu0 %v268
      %v768 = vpop.f32.mrf.mxu0
      %v769 = vadd.f32 0.0, %v768
      %770 = vmatmul.f32.gmra.mxu0 %v269
      %v771 = vpop.f32.mrf.mxu0
      %v772 = vadd.f32 0.0, %v771
      %773 = vmatmul.f32.gmra.mxu0 %v270
      %v774 = vpop.f32.mrf.mxu0
      %v775 = vadd.f32 0.0, %v774
      %776 = vmatmul.f32.gmra.mxu0 %v271
      %v777 = vpop.f32.mrf.mxu0
      %v778 = vadd.f32 0.0, %v777
      %779 = vmatmul.f32.gmra.mxu0 %v272
      %v780 = vpop.f32.mrf.mxu0
      %v781 = vadd.f32 0.0, %v780
      %782 = vmatmul.f32.gmra.mxu0 %v273
      %v783 = vpop.f32.mrf.mxu0
      %v784 = vadd.f32 0.0, %v783
      %785 = vmatmul.f32.gmra.mxu0 %v274
      %v786 = vpop.f32.mrf.mxu0
      %v787 = vadd.f32 0.0, %v786
      %788 = vmatmul.f32.gmra.mxu0 %v275
      %v789 = vpop.f32.mrf.mxu0
      %v790 = vadd.f32 0.0, %v789
      %791 = vdwg.mxu0
      %v792 = vsub.f32 0.0, %v358
      %v793 = vsub.f32 0.0, %v471
      %v794 = vsub.f32 0.0, %v584
      %v795 = vsub.f32 0.0, %v697
      %v796 = vsub.f32 0.0, %v361
      %v797 = vsub.f32 0.0, %v474
      %v798 = vsub.f32 0.0, %v587
      %v799 = vsub.f32 0.0, %v700
      %v800 = vsub.f32 0.0, %v364
      %v801 = vsub.f32 0.0, %v477
      %v802 = vsub.f32 0.0, %v590
      %v803 = vsub.f32 0.0, %v703
      %v804 = vsub.f32 0.0, %v367
      %v805 = vsub.f32 0.0, %v480
      %v806 = vsub.f32 0.0, %v593
      %v807 = vsub.f32 0.0, %v706
      %v808 = vsub.f32 0.0, %v370
      %v809 = vsub.f32 0.0, %v483
      %v810 = vsub.f32 0.0, %v596
      %v811 = vsub.f32 0.0, %v709
      %v812 = vsub.f32 0.0, %v373
      %v813 = vsub.f32 0.0, %v486
      %v814 = vsub.f32 0.0, %v599
      %v815 = vsub.f32 0.0, %v712
      %v816 = vsub.f32 0.0, %v376
      %v817 = vsub.f32 0.0, %v489
      %v818 = vsub.f32 0.0, %v602
      %v819 = vsub.f32 0.0, %v715
      %v820 = vsub.f32 0.0, %v379
      %v821 = vsub.f32 0.0, %v492
      %v822 = vsub.f32 0.0, %v605
      %v823 = vsub.f32 0.0, %v718
      %v824 = vsub.f32 0.0, %v382
      %v825 = vsub.f32 0.0, %v495
      %v826 = vsub.f32 0.0, %v608
      %v827 = vsub.f32 0.0, %v721
      %v828 = vsub.f32 0.0, %v385
      %v829 = vsub.f32 0.0, %v498
      %v830 = vsub.f32 0.0, %v611
      %v831 = vsub.f32 0.0, %v724
      %v832 = vsub.f32 0.0, %v388
      %v833 = vsub.f32 0.0, %v501
      %v834 = vsub.f32 0.0, %v614
      %v835 = vsub.f32 0.0, %v727
      %v836 = vsub.f32 0.0, %v391
      %v837 = vsub.f32 0.0, %v504
      %v838 = vsub.f32 0.0, %v617
      %v839 = vsub.f32 0.0, %v730
      %v840 = vsub.f32 0.0, %v394
      %v841 = vsub.f32 0.0, %v507
      %v842 = vsub.f32 0.0, %v620
      %v843 = vsub.f32 0.0, %v733
      %v844 = vsub.f32 0.0, %v397
      %v845 = vsub.f32 0.0, %v510
      %v846 = vsub.f32 0.0, %v623
      %v847 = vsub.f32 0.0, %v736
      %v848 = vsub.f32 0.0, %v400
      %v849 = vsub.f32 0.0, %v513
      %v850 = vsub.f32 0.0, %v626
      %v851 = vsub.f32 0.0, %v739
      %v852 = vsub.f32 0.0, %v403
      %v853 = vsub.f32 0.0, %v516
      %v854 = vsub.f32 0.0, %v629
      %v855 = vsub.f32 0.0, %v742
      %v856 = vsub.f32 0.0, %v406
      %v857 = vsub.f32 0.0, %v519
      %v858 = vsub.f32 0.0, %v632
      %v859 = vsub.f32 0.0, %v745
      %v860 = vsub.f32 0.0, %v409
      %v861 = vsub.f32 0.0, %v522
      %v862 = vsub.f32 0.0, %v635
      %v863 = vsub.f32 0.0, %v748
      %v864 = vsub.f32 0.0, %v412
      %v865 = vsub.f32 0.0, %v525
      %v866 = vsub.f32 0.0, %v638
      %v867 = vsub.f32 0.0, %v751
      %v868 = vsub.f32 0.0, %v415
      %v869 = vsub.f32 0.0, %v528
      %v870 = vsub.f32 0.0, %v641
      %v871 = vsub.f32 0.0, %v754
      %v872 = vsub.f32 0.0, %v418
      %v873 = vsub.f32 0.0, %v531
      %v874 = vsub.f32 0.0, %v644
      %v875 = vsub.f32 0.0, %v757
      %v876 = vsub.f32 0.0, %v421
      %v877 = vsub.f32 0.0, %v534
      %v878 = vsub.f32 0.0, %v647
      %v879 = vsub.f32 0.0, %v760
      %v880 = vsub.f32 0.0, %v424
      %v881 = vsub.f32 0.0, %v537
      %v882 = vsub.f32 0.0, %v650
      %v883 = vsub.f32 0.0, %v763
      %v884 = vsub.f32 0.0, %v427
      %v885 = vsub.f32 0.0, %v540
      %v886 = vsub.f32 0.0, %v653
      %v887 = vsub.f32 0.0, %v766
      %v888 = vsub.f32 0.0, %v430
      %v889 = vsub.f32 0.0, %v543
      %v890 = vsub.f32 0.0, %v656
      %v891 = vsub.f32 0.0, %v769
      %v892 = vsub.f32 0.0, %v433
      %v893 = vsub.f32 0.0, %v546
      %v894 = vsub.f32 0.0, %v659
      %v895 = vsub.f32 0.0, %v772
      %v896 = vsub.f32 0.0, %v436
      %v897 = vsub.f32 0.0, %v549
      %v898 = vsub.f32 0.0, %v662
      %v899 = vsub.f32 0.0, %v775
      %v900 = vsub.f32 0.0, %v439
      %v901 = vsub.f32 0.0, %v552
      %v902 = vsub.f32 0.0, %v665
      %v903 = vsub.f32 0.0, %v778
      %v904 = vsub.f32 0.0, %v442
      %v905 = vsub.f32 0.0, %v555
      %v906 = vsub.f32 0.0, %v668
      %v907 = vsub.f32 0.0, %v781
      %v908 = vsub.f32 0.0, %v445
      %v909 = vsub.f32 0.0, %v558
      %v910 = vsub.f32 0.0, %v671
      %v911 = vsub.f32 0.0, %v784
      %v912 = vsub.f32 0.0, %v448
      %v913 = vsub.f32 0.0, %v561
      %v914 = vsub.f32 0.0, %v674
      %v915 = vsub.f32 0.0, %v787
      %v916 = vsub.f32 0.0, %v451
      %v917 = vsub.f32 0.0, %v564
      %v918 = vsub.f32 0.0, %v677
      %v919 = vsub.f32 0.0, %v790
      %v920 = vmul.f32 %v792, 1.442695
      %v921 = vpow.pop %v920
      %v922 = vmul.f32 %v793, 1.442695
      %v923 = vpow.pop %v922
      %v924 = vmul.f32 %v794, 1.442695
      %v925 = vpow.pop %v924
      %v926 = vmul.f32 %v795, 1.442695
      %v927 = vpow.pop %v926
      %v928 = vmul.f32 %v796, 1.442695
      %v929 = vpow.pop %v928
      %v930 = vmul.f32 %v797, 1.442695
      %v931 = vpow.pop %v930
      %v932 = vmul.f32 %v798, 1.442695
      %v933 = vpow.pop %v932
      %v934 = vmul.f32 %v799, 1.442695
      %v935 = vpow.pop %v934
      %v936 = vmul.f32 %v800, 1.442695
      %v937 = vpow.pop %v936
      %v938 = vmul.f32 %v801, 1.442695
      %v939 = vpow.pop %v938
      %v940 = vmul.f32 %v802, 1.442695
      %v941 = vpow.pop %v940
      %v942 = vmul.f32 %v803, 1.442695
      %v943 = vpow.pop %v942
      %v944 = vmul.f32 %v804, 1.442695
      %v945 = vpow.pop %v944
      %v946 = vmul.f32 %v805, 1.442695
      %v947 = vpow.pop %v946
      %v948 = vmul.f32 %v806, 1.442695
      %v949 = vpow.pop %v948
      %v950 = vmul.f32 %v807, 1.442695
      %v951 = vpow.pop %v950
      %v952 = vmul.f32 %v808, 1.442695
      %v953 = vpow.pop %v952
      %v954 = vmul.f32 %v809, 1.442695
      %v955 = vpow.pop %v954
      %v956 = vmul.f32 %v810, 1.442695
      %v957 = vpow.pop %v956
      %v958 = vmul.f32 %v811, 1.442695
      %v959 = vpow.pop %v958
      %v960 = vmul.f32 %v812, 1.442695
      %v961 = vpow.pop %v960
      %v962 = vmul.f32 %v813, 1.442695
      %v963 = vpow.pop %v962
      %v964 = vmul.f32 %v814, 1.442695
      %v965 = vpow.pop %v964
      %v966 = vmul.f32 %v815, 1.442695
      %v967 = vpow.pop %v966
      %v968 = vmul.f32 %v816, 1.442695
      %v969 = vpow.pop %v968
      %v970 = vmul.f32 %v817, 1.442695
      %v971 = vpow.pop %v970
      %v972 = vmul.f32 %v818, 1.442695
      %v973 = vpow.pop %v972
      %v974 = vmul.f32 %v819, 1.442695
      %v975 = vpow.pop %v974
      %v976 = vmul.f32 %v820, 1.442695
      %v977 = vpow.pop %v976
      %v978 = vmul.f32 %v821, 1.442695
      %v979 = vpow.pop %v978
      %v980 = vmul.f32 %v822, 1.442695
      %v981 = vpow.pop %v980
      %v982 = vmul.f32 %v823, 1.442695
      %v983 = vpow.pop %v982
      %v984 = vmul.f32 %v824, 1.442695
      %v985 = vpow.pop %v984
      %v986 = vmul.f32 %v825, 1.442695
      %v987 = vpow.pop %v986
      %v988 = vmul.f32 %v826, 1.442695
      %v989 = vpow.pop %v988
      %v990 = vmul.f32 %v827, 1.442695
      %v991 = vpow.pop %v990
      %v992 = vmul.f32 %v828, 1.442695
      %v993 = vpow.pop %v992
      %v994 = vmul.f32 %v829, 1.442695
      %v995 = vpow.pop %v994
      %v996 = vmul.f32 %v830, 1.442695
      %v997 = vpow.pop %v996
      %v998 = vmul.f32 %v831, 1.442695
      %v999 = vpow.pop %v998
      %v1000 = vmul.f32 %v832, 1.442695
      %v1001 = vpow.pop %v1000
      %v1002 = vmul.f32 %v833, 1.442695
      %v1003 = vpow.pop %v1002
      %v1004 = vmul.f32 %v834, 1.442695
      %v1005 = vpow.pop %v1004
      %v1006 = vmul.f32 %v835, 1.442695
      %v1007 = vpow.pop %v1006
      %v1008 = vmul.f32 %v836, 1.442695
      %v1009 = vpow.pop %v1008
      %v1010 = vmul.f32 %v837, 1.442695
      %v1011 = vpow.pop %v1010
      %v1012 = vmul.f32 %v838, 1.442695
      %v1013 = vpow.pop %v1012
      %v1014 = vmul.f32 %v839, 1.442695
      %v1015 = vpow.pop %v1014
      %v1016 = vmul.f32 %v840, 1.442695
      %v1017 = vpow.pop %v1016
      %v1018 = vmul.f32 %v841, 1.442695
      %v1019 = vpow.pop %v1018
      %v1020 = vmul.f32 %v842, 1.442695
      %v1021 = vpow.pop %v1020
      %v1022 = vmul.f32 %v843, 1.442695
      %v1023 = vpow.pop %v1022
      %v1024 = vmul.f32 %v844, 1.442695
      %v1025 = vpow.pop %v1024
      %v1026 = vmul.f32 %v845, 1.442695
      %v1027 = vpow.pop %v1026
      %v1028 = vmul.f32 %v846, 1.442695
      %v1029 = vpow.pop %v1028
      %v1030 = vmul.f32 %v847, 1.442695
      %v1031 = vpow.pop %v1030
      %v1032 = vmul.f32 %v848, 1.442695
      %v1033 = vpow.pop %v1032
      %v1034 = vmul.f32 %v849, 1.442695
      %v1035 = vpow.pop %v1034
      %v1036 = vmul.f32 %v850, 1.442695
      %v1037 = vpow.pop %v1036
      %v1038 = vmul.f32 %v851, 1.442695
      %v1039 = vpow.pop %v1038
      %v1040 = vmul.f32 %v852, 1.442695
      %v1041 = vpow.pop %v1040
      %v1042 = vmul.f32 %v853, 1.442695
      %v1043 = vpow.pop %v1042
      %v1044 = vmul.f32 %v854, 1.442695
      %v1045 = vpow.pop %v1044
      %v1046 = vmul.f32 %v855, 1.442695
      %v1047 = vpow.pop %v1046
      %v1048 = vmul.f32 %v856, 1.442695
      %v1049 = vpow.pop %v1048
      %v1050 = vmul.f32 %v857, 1.442695
      %v1051 = vpow.pop %v1050
      %v1052 = vmul.f32 %v858, 1.442695
      %v1053 = vpow.pop %v1052
      %v1054 = vmul.f32 %v859, 1.442695
      %v1055 = vpow.pop %v1054
      %v1056 = vmul.f32 %v860, 1.442695
      %v1057 = vpow.pop %v1056
      %v1058 = vmul.f32 %v861, 1.442695
      %v1059 = vpow.pop %v1058
      %v1060 = vmul.f32 %v862, 1.442695
      %v1061 = vpow.pop %v1060
      %v1062 = vmul.f32 %v863, 1.442695
      %v1063 = vpow.pop %v1062
      %v1064 = vmul.f32 %v864, 1.442695
      %v1065 = vpow.pop %v1064
      %v1066 = vmul.f32 %v865, 1.442695
      %v1067 = vpow.pop %v1066
      %v1068 = vmul.f32 %v866, 1.442695
      %v1069 = vpow.pop %v1068
      %v1070 = vmul.f32 %v867, 1.442695
      %v1071 = vpow.pop %v1070
      %v1072 = vmul.f32 %v868, 1.442695
      %v1073 = vpow.pop %v1072
      %v1074 = vmul.f32 %v869, 1.442695
      %v1075 = vpow.pop %v1074
      %v1076 = vmul.f32 %v870, 1.442695
      %v1077 = vpow.pop %v1076
      %v1078 = vmul.f32 %v871, 1.442695
      %v1079 = vpow.pop %v1078
      %v1080 = vmul.f32 %v872, 1.442695
      %v1081 = vpow.pop %v1080
      %v1082 = vmul.f32 %v873, 1.442695
      %v1083 = vpow.pop %v1082
      %v1084 = vmul.f32 %v874, 1.442695
      %v1085 = vpow.pop %v1084
      %v1086 = vmul.f32 %v875, 1.442695
      %v1087 = vpow.pop %v1086
      %v1088 = vmul.f32 %v876, 1.442695
      %v1089 = vpow.pop %v1088
      %v1090 = vmul.f32 %v877, 1.442695
      %v1091 = vpow.pop %v1090
      %v1092 = vmul.f32 %v878, 1.442695
      %v1093 = vpow.pop %v1092
      %v1094 = vmul.f32 %v879, 1.442695
      %v1095 = vpow.pop %v1094
      %v1096 = vmul.f32 %v880, 1.442695
      %v1097 = vpow.pop %v1096
      %v1098 = vmul.f32 %v881, 1.442695
      %v1099 = vpow.pop %v1098
      %v1100 = vmul.f32 %v882, 1.442695
      %v1101 = vpow.pop %v1100
      %v1102 = vmul.f32 %v883, 1.442695
      %v1103 = vpow.pop %v1102
      %v1104 = vmul.f32 %v884, 1.442695
      %v1105 = vpow.pop %v1104
      %v1106 = vmul.f32 %v885, 1.442695
      %v1107 = vpow.pop %v1106
      %v1108 = vmul.f32 %v886, 1.442695
      %v1109 = vpow.pop %v1108
      %v1110 = vmul.f32 %v887, 1.442695
      %v1111 = vpow.pop %v1110
      %v1112 = vmul.f32 %v888, 1.442695
      %v1113 = vpow.pop %v1112
      %v1114 = vmul.f32 %v889, 1.442695
      %v1115 = vpow.pop %v1114
      %v1116 = vmul.f32 %v890, 1.442695
      %v1117 = vpow.pop %v1116
      %v1118 = vmul.f32 %v891, 1.442695
      %v1119 = vpow.pop %v1118
      %v1120 = vmul.f32 %v892, 1.442695
      %v1121 = vpow.pop %v1120
      %v1122 = vmul.f32 %v893, 1.442695
      %v1123 = vpow.pop %v1122
      %v1124 = vmul.f32 %v894, 1.442695
      %v1125 = vpow.pop %v1124
      %v1126 = vmul.f32 %v895, 1.442695
      %v1127 = vpow.pop %v1126
      %v1128 = vmul.f32 %v896, 1.442695
      %v1129 = vpow.pop %v1128
      %v1130 = vmul.f32 %v897, 1.442695
      %v1131 = vpow.pop %v1130
      %v1132 = vmul.f32 %v898, 1.442695
      %v1133 = vpow.pop %v1132
      %v1134 = vmul.f32 %v899, 1.442695
      %v1135 = vpow.pop %v1134
      %v1136 = vmul.f32 %v900, 1.442695
      %v1137 = vpow.pop %v1136
      %v1138 = vmul.f32 %v901, 1.442695
      %v1139 = vpow.pop %v1138
      %v1140 = vmul.f32 %v902, 1.442695
      %v1141 = vpow.pop %v1140
      %v1142 = vmul.f32 %v903, 1.442695
      %v1143 = vpow.pop %v1142
      %v1144 = vmul.f32 %v904, 1.442695
      %v1145 = vpow.pop %v1144
      %v1146 = vmul.f32 %v905, 1.442695
      %v1147 = vpow.pop %v1146
      %v1148 = vmul.f32 %v906, 1.442695
      %v1149 = vpow.pop %v1148
      %v1150 = vmul.f32 %v907, 1.442695
      %v1151 = vpow.pop %v1150
      %v1152 = vmul.f32 %v908, 1.442695
      %v1153 = vpow.pop %v1152
      %v1154 = vmul.f32 %v909, 1.442695
      %v1155 = vpow.pop %v1154
      %v1156 = vmul.f32 %v910, 1.442695
      %v1157 = vpow.pop %v1156
      %v1158 = vmul.f32 %v911, 1.442695
      %v1159 = vpow.pop %v1158
      %v1160 = vmul.f32 %v912, 1.442695
      %v1161 = vpow.pop %v1160
      %v1162 = vmul.f32 %v913, 1.442695
      %v1163 = vpow.pop %v1162
      %v1164 = vmul.f32 %v914, 1.442695
      %v1165 = vpow.pop %v1164
      %v1166 = vmul.f32 %v915, 1.442695
      %v1167 = vpow.pop %v1166
      %v1168 = vmul.f32 %v916, 1.442695
      %v1169 = vpow.pop %v1168
      %v1170 = vmul.f32 %v917, 1.442695
      %v1171 = vpow.pop %v1170
      %v1172 = vmul.f32 %v918, 1.442695
      %v1173 = vpow.pop %v1172
      %v1174 = vmul.f32 %v919, 1.442695
      %v1175 = vpow.pop %v1174
      %v1176 = vadd.f32 %v921, 1.0
      %v1177 = vadd.f32 %v923, 1.0
      %v1178 = vadd.f32 %v925, 1.0
      %v1179 = vadd.f32 %v927, 1.0
      %v1180 = vadd.f32 %v929, 1.0
      %v1181 = vadd.f32 %v931, 1.0
      %v1182 = vadd.f32 %v933, 1.0
      %v1183 = vadd.f32 %v935, 1.0
      %v1184 = vadd.f32 %v937, 1.0
      %v1185 = vadd.f32 %v939, 1.0
      %v1186 = vadd.f32 %v941, 1.0
      %v1187 = vadd.f32 %v943, 1.0
      %v1188 = vadd.f32 %v945, 1.0
      %v1189 = vadd.f32 %v947, 1.0
      %v1190 = vadd.f32 %v949, 1.0
      %v1191 = vadd.f32 %v951, 1.0
      %v1192 = vadd.f32 %v953, 1.0
      %v1193 = vadd.f32 %v955, 1.0
      %v1194 = vadd.f32 %v957, 1.0
      %v1195 = vadd.f32 %v959, 1.0
      %v1196 = vadd.f32 %v961, 1.0
      %v1197 = vadd.f32 %v963, 1.0
      %v1198 = vadd.f32 %v965, 1.0
      %v1199 = vadd.f32 %v967, 1.0
      %v1200 = vadd.f32 %v969, 1.0
      %v1201 = vadd.f32 %v971, 1.0
      %v1202 = vadd.f32 %v973, 1.0
      %v1203 = vadd.f32 %v975, 1.0
      %v1204 = vadd.f32 %v977, 1.0
      %v1205 = vadd.f32 %v979, 1.0
      %v1206 = vadd.f32 %v981, 1.0
      %v1207 = vadd.f32 %v983, 1.0
      %v1208 = vadd.f32 %v985, 1.0
      %v1209 = vadd.f32 %v987, 1.0
      %v1210 = vadd.f32 %v989, 1.0
      %v1211 = vadd.f32 %v991, 1.0
      %v1212 = vadd.f32 %v993, 1.0
      %v1213 = vadd.f32 %v995, 1.0
      %v1214 = vadd.f32 %v997, 1.0
      %v1215 = vadd.f32 %v999, 1.0
      %v1216 = vadd.f32 %v1001, 1.0
      %v1217 = vadd.f32 %v1003, 1.0
      %v1218 = vadd.f32 %v1005, 1.0
      %v1219 = vadd.f32 %v1007, 1.0
      %v1220 = vadd.f32 %v1009, 1.0
      %v1221 = vadd.f32 %v1011, 1.0
      %v1222 = vadd.f32 %v1013, 1.0
      %v1223 = vadd.f32 %v1015, 1.0
      %v1224 = vadd.f32 %v1017, 1.0
      %v1225 = vadd.f32 %v1019, 1.0
      %v1226 = vadd.f32 %v1021, 1.0
      %v1227 = vadd.f32 %v1023, 1.0
      %v1228 = vadd.f32 %v1025, 1.0
      %v1229 = vadd.f32 %v1027, 1.0
      %v1230 = vadd.f32 %v1029, 1.0
      %v1231 = vadd.f32 %v1031, 1.0
      %v1232 = vadd.f32 %v1033, 1.0
      %v1233 = vadd.f32 %v1035, 1.0
      %v1234 = vadd.f32 %v1037, 1.0
      %v1235 = vadd.f32 %v1039, 1.0
      %v1236 = vadd.f32 %v1041, 1.0
      %v1237 = vadd.f32 %v1043, 1.0
      %v1238 = vadd.f32 %v1045, 1.0
      %v1239 = vadd.f32 %v1047, 1.0
      %v1240 = vadd.f32 %v1049, 1.0
      %v1241 = vadd.f32 %v1051, 1.0
      %v1242 = vadd.f32 %v1053, 1.0
      %v1243 = vadd.f32 %v1055, 1.0
      %v1244 = vadd.f32 %v1057, 1.0
      %v1245 = vadd.f32 %v1059, 1.0
      %v1246 = vadd.f32 %v1061, 1.0
      %v1247 = vadd.f32 %v1063, 1.0
      %v1248 = vadd.f32 %v1065, 1.0
      %v1249 = vadd.f32 %v1067, 1.0
      %v1250 = vadd.f32 %v1069, 1.0
      %v1251 = vadd.f32 %v1071, 1.0
      %v1252 = vadd.f32 %v1073, 1.0
      %v1253 = vadd.f32 %v1075, 1.0
      %v1254 = vadd.f32 %v1077, 1.0
      %v1255 = vadd.f32 %v1079, 1.0
      %v1256 = vadd.f32 %v1081, 1.0
      %v1257 = vadd.f32 %v1083, 1.0
      %v1258 = vadd.f32 %v1085, 1.0
      %v1259 = vadd.f32 %v1087, 1.0
      %v1260 = vadd.f32 %v1089, 1.0
      %v1261 = vadd.f32 %v1091, 1.0
      %v1262 = vadd.f32 %v1093, 1.0
      %v1263 = vadd.f32 %v1095, 1.0
      %v1264 = vadd.f32 %v1097, 1.0
      %v1265 = vadd.f32 %v1099, 1.0
      %v1266 = vadd.f32 %v1101, 1.0
      %v1267 = vadd.f32 %v1103, 1.0
      %v1268 = vadd.f32 %v1105, 1.0
      %v1269 = vadd.f32 %v1107, 1.0
      %v1270 = vadd.f32 %v1109, 1.0
      %v1271 = vadd.f32 %v1111, 1.0
      %v1272 = vadd.f32 %v1113, 1.0
      %v1273 = vadd.f32 %v1115, 1.0
      %v1274 = vadd.f32 %v1117, 1.0
      %v1275 = vadd.f32 %v1119, 1.0
      %v1276 = vadd.f32 %v1121, 1.0
      %v1277 = vadd.f32 %v1123, 1.0
      %v1278 = vadd.f32 %v1125, 1.0
      %v1279 = vadd.f32 %v1127, 1.0
      %v1280 = vadd.f32 %v1129, 1.0
      %v1281 = vadd.f32 %v1131, 1.0
      %v1282 = vadd.f32 %v1133, 1.0
      %v1283 = vadd.f32 %v1135, 1.0
      %v1284 = vadd.f32 %v1137, 1.0
      %v1285 = vadd.f32 %v1139, 1.0
      %v1286 = vadd.f32 %v1141, 1.0
      %v1287 = vadd.f32 %v1143, 1.0
      %v1288 = vadd.f32 %v1145, 1.0
      %v1289 = vadd.f32 %v1147, 1.0
      %v1290 = vadd.f32 %v1149, 1.0
      %v1291 = vadd.f32 %v1151, 1.0
      %v1292 = vadd.f32 %v1153, 1.0
      %v1293 = vadd.f32 %v1155, 1.0
      %v1294 = vadd.f32 %v1157, 1.0
      %v1295 = vadd.f32 %v1159, 1.0
      %v1296 = vadd.f32 %v1161, 1.0
      %v1297 = vadd.f32 %v1163, 1.0
      %v1298 = vadd.f32 %v1165, 1.0
      %v1299 = vadd.f32 %v1167, 1.0
      %v1300 = vadd.f32 %v1169, 1.0
      %v1301 = vadd.f32 %v1171, 1.0
      %v1302 = vadd.f32 %v1173, 1.0
      %v1303 = vadd.f32 %v1175, 1.0
      %v1304 = vrcp.pop %v1176
      %v1305 = vrcp.pop %v1177
      %v1306 = vrcp.pop %v1178
      %v1307 = vrcp.pop %v1179
      %v1308 = vrcp.pop %v1180
      %v1309 = vrcp.pop %v1181
      %v1310 = vrcp.pop %v1182
      %v1311 = vrcp.pop %v1183
      %v1312 = vrcp.pop %v1184
      %v1313 = vrcp.pop %v1185
      %v1314 = vrcp.pop %v1186
      %v1315 = vrcp.pop %v1187
      %v1316 = vrcp.pop %v1188
      %v1317 = vrcp.pop %v1189
      %v1318 = vrcp.pop %v1190
      %v1319 = vrcp.pop %v1191
      %v1320 = vrcp.pop %v1192
      %v1321 = vrcp.pop %v1193
      %v1322 = vrcp.pop %v1194
      %v1323 = vrcp.pop %v1195
      %v1324 = vrcp.pop %v1196
      %v1325 = vrcp.pop %v1197
      %v1326 = vrcp.pop %v1198
      %v1327 = vrcp.pop %v1199
      %v1328 = vrcp.pop %v1200
      %v1329 = vrcp.pop %v1201
      %v1330 = vrcp.pop %v1202
      %v1331 = vrcp.pop %v1203
      %v1332 = vrcp.pop %v1204
      %v1333 = vrcp.pop %v1205
      %v1334 = vrcp.pop %v1206
      %v1335 = vrcp.pop %v1207
      %v1336 = vrcp.pop %v1208
      %v1337 = vrcp.pop %v1209
      %v1338 = vrcp.pop %v1210
      %v1339 = vrcp.pop %v1211
      %v1340 = vrcp.pop %v1212
      %v1341 = vrcp.pop %v1213
      %v1342 = vrcp.pop %v1214
      %v1343 = vrcp.pop %v1215
      %v1344 = vrcp.pop %v1216
      %v1345 = vrcp.pop %v1217
      %v1346 = vrcp.pop %v1218
      %v1347 = vrcp.pop %v1219
      %v1348 = vrcp.pop %v1220
      %v1349 = vrcp.pop %v1221
      %v1350 = vrcp.pop %v1222
      %v1351 = vrcp.pop %v1223
      %v1352 = vrcp.pop %v1224
      %v1353 = vrcp.pop %v1225
      %v1354 = vrcp.pop %v1226
      %v1355 = vrcp.pop %v1227
      %v1356 = vrcp.pop %v1228
      %v1357 = vrcp.pop %v1229
      %v1358 = vrcp.pop %v1230
      %v1359 = vrcp.pop %v1231
      %v1360 = vrcp.pop %v1232
      %v1361 = vrcp.pop %v1233
      %v1362 = vrcp.pop %v1234
      %v1363 = vrcp.pop %v1235
      %v1364 = vrcp.pop %v1236
      %v1365 = vrcp.pop %v1237
      %v1366 = vrcp.pop %v1238
      %v1367 = vrcp.pop %v1239
      %v1368 = vrcp.pop %v1240
      %v1369 = vrcp.pop %v1241
      %v1370 = vrcp.pop %v1242
      %v1371 = vrcp.pop %v1243
      %v1372 = vrcp.pop %v1244
      %v1373 = vrcp.pop %v1245
      %v1374 = vrcp.pop %v1246
      %v1375 = vrcp.pop %v1247
      %v1376 = vrcp.pop %v1248
      %v1377 = vrcp.pop %v1249
      %v1378 = vrcp.pop %v1250
      %v1379 = vrcp.pop %v1251
      %v1380 = vrcp.pop %v1252
      %v1381 = vrcp.pop %v1253
      %v1382 = vrcp.pop %v1254
      %v1383 = vrcp.pop %v1255
      %v1384 = vrcp.pop %v1256
      %v1385 = vrcp.pop %v1257
      %v1386 = vrcp.pop %v1258
      %v1387 = vrcp.pop %v1259
      %v1388 = vrcp.pop %v1260
      %v1389 = vrcp.pop %v1261
      %v1390 = vrcp.pop %v1262
      %v1391 = vrcp.pop %v1263
      %v1392 = vrcp.pop %v1264
      %v1393 = vrcp.pop %v1265
      %v1394 = vrcp.pop %v1266
      %v1395 = vrcp.pop %v1267
      %v1396 = vrcp.pop %v1268
      %v1397 = vrcp.pop %v1269
      %v1398 = vrcp.pop %v1270
      %v1399 = vrcp.pop %v1271
      %v1400 = vrcp.pop %v1272
      %v1401 = vrcp.pop %v1273
      %v1402 = vrcp.pop %v1274
      %v1403 = vrcp.pop %v1275
      %v1404 = vrcp.pop %v1276
      %v1405 = vrcp.pop %v1277
      %v1406 = vrcp.pop %v1278
      %v1407 = vrcp.pop %v1279
      %v1408 = vrcp.pop %v1280
      %v1409 = vrcp.pop %v1281
      %v1410 = vrcp.pop %v1282
      %v1411 = vrcp.pop %v1283
      %v1412 = vrcp.pop %v1284
      %v1413 = vrcp.pop %v1285
      %v1414 = vrcp.pop %v1286
      %v1415 = vrcp.pop %v1287
      %v1416 = vrcp.pop %v1288
      %v1417 = vrcp.pop %v1289
      %v1418 = vrcp.pop %v1290
      %v1419 = vrcp.pop %v1291
      %v1420 = vrcp.pop %v1292
      %v1421 = vrcp.pop %v1293
      %v1422 = vrcp.pop %v1294
      %v1423 = vrcp.pop %v1295
      %v1424 = vrcp.pop %v1296
      %v1425 = vrcp.pop %v1297
      %v1426 = vrcp.pop %v1298
      %v1427 = vrcp.pop %v1299
      %v1428 = vrcp.pop %v1300
      %v1429 = vrcp.pop %v1301
      %v1430 = vrcp.pop %v1302
      %v1431 = vrcp.pop %v1303
      %v1432 = vmin.f32 %v1304, 1.0
      %v1433 = vmin.f32 %v1305, 1.0
      %v1434 = vmin.f32 %v1306, 1.0
      %v1435 = vmin.f32 %v1307, 1.0
      %v1436 = vmin.f32 %v1308, 1.0
      %v1437 = vmin.f32 %v1309, 1.0
      %v1438 = vmin.f32 %v1310, 1.0
      %v1439 = vmin.f32 %v1311, 1.0
      %v1440 = vmin.f32 %v1312, 1.0
      %v1441 = vmin.f32 %v1313, 1.0
      %v1442 = vmin.f32 %v1314, 1.0
      %v1443 = vmin.f32 %v1315, 1.0
      %v1444 = vmin.f32 %v1316, 1.0
      %v1445 = vmin.f32 %v1317, 1.0
      %v1446 = vmin.f32 %v1318, 1.0
      %v1447 = vmin.f32 %v1319, 1.0
      %v1448 = vmin.f32 %v1320, 1.0
      %v1449 = vmin.f32 %v1321, 1.0
      %v1450 = vmin.f32 %v1322, 1.0
      %v1451 = vmin.f32 %v1323, 1.0
      %v1452 = vmin.f32 %v1324, 1.0
      %v1453 = vmin.f32 %v1325, 1.0
      %v1454 = vmin.f32 %v1326, 1.0
      %v1455 = vmin.f32 %v1327, 1.0
      %v1456 = vmin.f32 %v1328, 1.0
      %v1457 = vmin.f32 %v1329, 1.0
      %v1458 = vmin.f32 %v1330, 1.0
      %v1459 = vmin.f32 %v1331, 1.0
      %v1460 = vmin.f32 %v1332, 1.0
      %v1461 = vmin.f32 %v1333, 1.0
      %v1462 = vmin.f32 %v1334, 1.0
      %v1463 = vmin.f32 %v1335, 1.0
      %v1464 = vmin.f32 %v1336, 1.0
      %v1465 = vmin.f32 %v1337, 1.0
      %v1466 = vmin.f32 %v1338, 1.0
      %v1467 = vmin.f32 %v1339, 1.0
      %v1468 = vmin.f32 %v1340, 1.0
      %v1469 = vmin.f32 %v1341, 1.0
      %v1470 = vmin.f32 %v1342, 1.0
      %v1471 = vmin.f32 %v1343, 1.0
      %v1472 = vmin.f32 %v1344, 1.0
      %v1473 = vmin.f32 %v1345, 1.0
      %v1474 = vmin.f32 %v1346, 1.0
      %v1475 = vmin.f32 %v1347, 1.0
      %v1476 = vmin.f32 %v1348, 1.0
      %v1477 = vmin.f32 %v1349, 1.0
      %v1478 = vmin.f32 %v1350, 1.0
      %v1479 = vmin.f32 %v1351, 1.0
      %v1480 = vmin.f32 %v1352, 1.0
      %v1481 = vmin.f32 %v1353, 1.0
      %v1482 = vmin.f32 %v1354, 1.0
      %v1483 = vmin.f32 %v1355, 1.0
      %v1484 = vmin.f32 %v1356, 1.0
      %v1485 = vmin.f32 %v1357, 1.0
      %v1486 = vmin.f32 %v1358, 1.0
      %v1487 = vmin.f32 %v1359, 1.0
      %v1488 = vmin.f32 %v1360, 1.0
      %v1489 = vmin.f32 %v1361, 1.0
      %v1490 = vmin.f32 %v1362, 1.0
      %v1491 = vmin.f32 %v1363, 1.0
      %v1492 = vmin.f32 %v1364, 1.0
      %v1493 = vmin.f32 %v1365, 1.0
      %v1494 = vmin.f32 %v1366, 1.0
      %v1495 = vmin.f32 %v1367, 1.0
      %v1496 = vmin.f32 %v1368, 1.0
      %v1497 = vmin.f32 %v1369, 1.0
      %v1498 = vmin.f32 %v1370, 1.0
      %v1499 = vmin.f32 %v1371, 1.0
      %v1500 = vmin.f32 %v1372, 1.0
      %v1501 = vmin.f32 %v1373, 1.0
      %v1502 = vmin.f32 %v1374, 1.0
      %v1503 = vmin.f32 %v1375, 1.0
      %v1504 = vmin.f32 %v1376, 1.0
      %v1505 = vmin.f32 %v1377, 1.0
      %v1506 = vmin.f32 %v1378, 1.0
      %v1507 = vmin.f32 %v1379, 1.0
      %v1508 = vmin.f32 %v1380, 1.0
      %v1509 = vmin.f32 %v1381, 1.0
      %v1510 = vmin.f32 %v1382, 1.0
      %v1511 = vmin.f32 %v1383, 1.0
      %v1512 = vmin.f32 %v1384, 1.0
      %v1513 = vmin.f32 %v1385, 1.0
      %v1514 = vmin.f32 %v1386, 1.0
      %v1515 = vmin.f32 %v1387, 1.0
      %v1516 = vmin.f32 %v1388, 1.0
      %v1517 = vmin.f32 %v1389, 1.0
      %v1518 = vmin.f32 %v1390, 1.0
      %v1519 = vmin.f32 %v1391, 1.0
      %v1520 = vmin.f32 %v1392, 1.0
      %v1521 = vmin.f32 %v1393, 1.0
      %v1522 = vmin.f32 %v1394, 1.0
      %v1523 = vmin.f32 %v1395, 1.0
      %v1524 = vmin.f32 %v1396, 1.0
      %v1525 = vmin.f32 %v1397, 1.0
      %v1526 = vmin.f32 %v1398, 1.0
      %v1527 = vmin.f32 %v1399, 1.0
      %v1528 = vmin.f32 %v1400, 1.0
      %v1529 = vmin.f32 %v1401, 1.0
      %v1530 = vmin.f32 %v1402, 1.0
      %v1531 = vmin.f32 %v1403, 1.0
      %v1532 = vmin.f32 %v1404, 1.0
      %v1533 = vmin.f32 %v1405, 1.0
      %v1534 = vmin.f32 %v1406, 1.0
      %v1535 = vmin.f32 %v1407, 1.0
      %v1536 = vmin.f32 %v1408, 1.0
      %v1537 = vmin.f32 %v1409, 1.0
      %v1538 = vmin.f32 %v1410, 1.0
      %v1539 = vmin.f32 %v1411, 1.0
      %v1540 = vmin.f32 %v1412, 1.0
      %v1541 = vmin.f32 %v1413, 1.0
      %v1542 = vmin.f32 %v1414, 1.0
      %v1543 = vmin.f32 %v1415, 1.0
      %v1544 = vmin.f32 %v1416, 1.0
      %v1545 = vmin.f32 %v1417, 1.0
      %v1546 = vmin.f32 %v1418, 1.0
      %v1547 = vmin.f32 %v1419, 1.0
      %v1548 = vmin.f32 %v1420, 1.0
      %v1549 = vmin.f32 %v1421, 1.0
      %v1550 = vmin.f32 %v1422, 1.0
      %v1551 = vmin.f32 %v1423, 1.0
      %v1552 = vmin.f32 %v1424, 1.0
      %v1553 = vmin.f32 %v1425, 1.0
      %v1554 = vmin.f32 %v1426, 1.0
      %v1555 = vmin.f32 %v1427, 1.0
      %v1556 = vmin.f32 %v1428, 1.0
      %v1557 = vmin.f32 %v1429, 1.0
      %v1558 = vmin.f32 %v1430, 1.0
      %v1559 = vmin.f32 %v1431, 1.0
      %1560 = vst [vmem:[%s236] sm:$0xff] %v1432
      %1561 = vst [vmem:[%s236 + $0x8] sm:$0xff] %v1433
      %1562 = vst [vmem:[%s236 + $0x10] sm:$0xff] %v1434
      %1563 = vst [vmem:[%s236 + $0x18] sm:$0xff] %v1435
      %1564 = vst [vmem:[%s236 + $0x20] sm:$0xff] %v1436
      %1565 = vst [vmem:[%s236 + $0x28] sm:$0xff] %v1437
      %1566 = vst [vmem:[%s236 + $0x30] sm:$0xff] %v1438
      %1567 = vst [vmem:[%s236 + $0x38] sm:$0xff] %v1439
      %1568 = vst [vmem:[%s236 + $0x40] sm:$0xff] %v1440
      %1569 = vst [vmem:[%s236 + $0x48] sm:$0xff] %v1441
      %1570 = vst [vmem:[%s236 + $0x50] sm:$0xff] %v1442
      %1571 = vst [vmem:[%s236 + $0x58] sm:$0xff] %v1443
      %1572 = vst [vmem:[%s236 + $0x60] sm:$0xff] %v1444
      %1573 = vst [vmem:[%s236 + $0x68] sm:$0xff] %v1445
      %1574 = vst [vmem:[%s236 + $0x70] sm:$0xff] %v1446
      %1575 = vst [vmem:[%s236 + $0x78] sm:$0xff] %v1447
      %1576 = vst [vmem:[%s236 + $0x80] sm:$0xff] %v1448
      %1577 = vst [vmem:[%s236 + $0x88] sm:$0xff] %v1449
      %1578 = vst [vmem:[%s236 + $0x90] sm:$0xff] %v1450
      %1579 = vst [vmem:[%s236 + $0x98] sm:$0xff] %v1451
      %1580 = vst [vmem:[%s236 + $0xa0] sm:$0xff] %v1452
      %1581 = vst [vmem:[%s236 + $0xa8] sm:$0xff] %v1453
      %1582 = vst [vmem:[%s236 + $0xb0] sm:$0xff] %v1454
      %1583 = vst [vmem:[%s236 + $0xb8] sm:$0xff] %v1455
      %1584 = vst [vmem:[%s236 + $0xc0] sm:$0xff] %v1456
      %1585 = vst [vmem:[%s236 + $0xc8] sm:$0xff] %v1457
      %1586 = vst [vmem:[%s236 + $0xd0] sm:$0xff] %v1458
      %1587 = vst [vmem:[%s236 + $0xd8] sm:$0xff] %v1459
      %1588 = vst [vmem:[%s236 + $0xe0] sm:$0xff] %v1460
      %1589 = vst [vmem:[%s236 + $0xe8] sm:$0xff] %v1461
      %1590 = vst [vmem:[%s236 + $0xf0] sm:$0xff] %v1462
      %1591 = vst [vmem:[%s236 + $0xf8] sm:$0xff] %v1463
      %1592 = vst [vmem:[%s236 + $0x100] sm:$0xff] %v1464
      %1593 = vst [vmem:[%s236 + $0x108] sm:$0xff] %v1465
      %1594 = vst [vmem:[%s236 + $0x110] sm:$0xff] %v1466
      %1595 = vst [vmem:[%s236 + $0x118] sm:$0xff] %v1467
      %1596 = vst [vmem:[%s236 + $0x120] sm:$0xff] %v1468
      %1597 = vst [vmem:[%s236 + $0x128] sm:$0xff] %v1469
      %1598 = vst [vmem:[%s236 + $0x130] sm:$0xff] %v1470
      %1599 = vst [vmem:[%s236 + $0x138] sm:$0xff] %v1471
      %1600 = vst [vmem:[%s236 + $0x140] sm:$0xff] %v1472
      %1601 = vst [vmem:[%s236 + $0x148] sm:$0xff] %v1473
      %1602 = vst [vmem:[%s236 + $0x150] sm:$0xff] %v1474
      %1603 = vst [vmem:[%s236 + $0x158] sm:$0xff] %v1475
      %1604 = vst [vmem:[%s236 + $0x160] sm:$0xff] %v1476
      %1605 = vst [vmem:[%s236 + $0x168] sm:$0xff] %v1477
      %1606 = vst [vmem:[%s236 + $0x170] sm:$0xff] %v1478
      %1607 = vst [vmem:[%s236 + $0x178] sm:$0xff] %v1479
      %1608 = vst [vmem:[%s236 + $0x180] sm:$0xff] %v1480
      %1609 = vst [vmem:[%s236 + $0x188] sm:$0xff] %v1481
      %1610 = vst [vmem:[%s236 + $0x190] sm:$0xff] %v1482
      %1611 = vst [vmem:[%s236 + $0x198] sm:$0xff] %v1483
      %1612 = vst [vmem:[%s236 + $0x1a0] sm:$0xff] %v1484
      %1613 = vst [vmem:[%s236 + $0x1a8] sm:$0xff] %v1485
      %1614 = vst [vmem:[%s236 + $0x1b0] sm:$0xff] %v1486
      %1615 = vst [vmem:[%s236 + $0x1b8] sm:$0xff] %v1487
      %1616 = vst [vmem:[%s236 + $0x1c0] sm:$0xff] %v1488
      %1617 = vst [vmem:[%s236 + $0x1c8] sm:$0xff] %v1489
      %1618 = vst [vmem:[%s236 + $0x1d0] sm:$0xff] %v1490
      %1619 = vst [vmem:[%s236 + $0x1d8] sm:$0xff] %v1491
      %1620 = vst [vmem:[%s236 + $0x1e0] sm:$0xff] %v1492
      %1621 = vst [vmem:[%s236 + $0x1e8] sm:$0xff] %v1493
      %1622 = vst [vmem:[%s236 + $0x1f0] sm:$0xff] %v1494
      %1623 = vst [vmem:[%s236 + $0x1f8] sm:$0xff] %v1495
      %1624 = vst [vmem:[%s236 + $0x200] sm:$0xff] %v1496
      %1625 = vst [vmem:[%s236 + $0x208] sm:$0xff] %v1497
      %1626 = vst [vmem:[%s236 + $0x210] sm:$0xff] %v1498
      %1627 = vst [vmem:[%s236 + $0x218] sm:$0xff] %v1499
      %1628 = vst [vmem:[%s236 + $0x220] sm:$0xff] %v1500
      %1629 = vst [vmem:[%s236 + $0x228] sm:$0xff] %v1501
      %1630 = vst [vmem:[%s236 + $0x230] sm:$0xff] %v1502
      %1631 = vst [vmem:[%s236 + $0x238] sm:$0xff] %v1503
      %1632 = vst [vmem:[%s236 + $0x240] sm:$0xff] %v1504
      %1633 = vst [vmem:[%s236 + $0x248] sm:$0xff] %v1505
      %1634 = vst [vmem:[%s236 + $0x250] sm:$0xff] %v1506
      %1635 = vst [vmem:[%s236 + $0x258] sm:$0xff] %v1507
      %1636 = vst [vmem:[%s236 + $0x260] sm:$0xff] %v1508
      %1637 = vst [vmem:[%s236 + $0x268] sm:$0xff] %v1509
      %1638 = vst [vmem:[%s236 + $0x270] sm:$0xff] %v1510
      %1639 = vst [vmem:[%s236 + $0x278] sm:$0xff] %v1511
      %1640 = vst [vmem:[%s236 + $0x280] sm:$0xff] %v1512
      %1641 = vst [vmem:[%s236 + $0x288] sm:$0xff] %v1513
      %1642 = vst [vmem:[%s236 + $0x290] sm:$0xff] %v1514
      %1643 = vst [vmem:[%s236 + $0x298] sm:$0xff] %v1515
      %1644 = vst [vmem:[%s236 + $0x2a0] sm:$0xff] %v1516
      %1645 = vst [vmem:[%s236 + $0x2a8] sm:$0xff] %v1517
      %1646 = vst [vmem:[%s236 + $0x2b0] sm:$0xff] %v1518
      %1647 = vst [vmem:[%s236 + $0x2b8] sm:$0xff] %v1519
      %1648 = vst [vmem:[%s236 + $0x2c0] sm:$0xff] %v1520
      %1649 = vst [vmem:[%s236 + $0x2c8] sm:$0xff] %v1521
      %1650 = vst [vmem:[%s236 + $0x2d0] sm:$0xff] %v1522
      %1651 = vst [vmem:[%s236 + $0x2d8] sm:$0xff] %v1523
      %1652 = vst [vmem:[%s236 + $0x2e0] sm:$0xff] %v1524
      %1653 = vst [vmem:[%s236 + $0x2e8] sm:$0xff] %v1525
      %1654 = vst [vmem:[%s236 + $0x2f0] sm:$0xff] %v1526
      %1655 = vst [vmem:[%s236 + $0x2f8] sm:$0xff] %v1527
      %1656 = vst [vmem:[%s236 + $0x300] sm:$0xff] %v1528
      %1657 = vst [vmem:[%s236 + $0x308] sm:$0xff] %v1529
      %1658 = vst [vmem:[%s236 + $0x310] sm:$0xff] %v1530
      %1659 = vst [vmem:[%s236 + $0x318] sm:$0xff] %v1531
      %1660 = vst [vmem:[%s236 + $0x320] sm:$0xff] %v1532
      %1661 = vst [vmem:[%s236 + $0x328] sm:$0xff] %v1533
      %1662 = vst [vmem:[%s236 + $0x330] sm:$0xff] %v1534
      %1663 = vst [vmem:[%s236 + $0x338] sm:$0xff] %v1535
      %1664 = vst [vmem:[%s236 + $0x340] sm:$0xff] %v1536
      %1665 = vst [vmem:[%s236 + $0x348] sm:$0xff] %v1537
      %1666 = vst [vmem:[%s236 + $0x350] sm:$0xff] %v1538
      %1667 = vst [vmem:[%s236 + $0x358] sm:$0xff] %v1539
      %1668 = vst [vmem:[%s236 + $0x360] sm:$0xff] %v1540
      %1669 = vst [vmem:[%s236 + $0x368] sm:$0xff] %v1541
      %1670 = vst [vmem:[%s236 + $0x370] sm:$0xff] %v1542
      %1671 = vst [vmem:[%s236 + $0x378] sm:$0xff] %v1543
      %1672 = vst [vmem:[%s236 + $0x380] sm:$0xff] %v1544
      %1673 = vst [vmem:[%s236 + $0x388] sm:$0xff] %v1545
      %1674 = vst [vmem:[%s236 + $0x390] sm:$0xff] %v1546
      %1675 = vst [vmem:[%s236 + $0x398] sm:$0xff] %v1547
      %1676 = vst [vmem:[%s236 + $0x3a0] sm:$0xff] %v1548
      %1677 = vst [vmem:[%s236 + $0x3a8] sm:$0xff] %v1549
      %1678 = vst [vmem:[%s236 + $0x3b0] sm:$0xff] %v1550
      %1679 = vst [vmem:[%s236 + $0x3b8] sm:$0xff] %v1551
      %1680 = vst [vmem:[%s236 + $0x3c0] sm:$0xff] %v1552
      %1681 = vst [vmem:[%s236 + $0x3c8] sm:$0xff] %v1553
      %1682 = vst [vmem:[%s236 + $0x3d0] sm:$0xff] %v1554
      %1683 = vst [vmem:[%s236 + $0x3d8] sm:$0xff] %v1555
      %1684 = vst [vmem:[%s236 + $0x3e0] sm:$0xff] %v1556
      %1685 = vst [vmem:[%s236 + $0x3e8] sm:$0xff] %v1557
      %1686 = vst [vmem:[%s236 + $0x3f0] sm:$0xff] %v1558
      %1687 = vst [vmem:[%s236 + $0x3f8] sm:$0xff] %v1559
      %v1688 = vmul.f32 %v244, %v244
      %v1689 = vmul.f32 %v245, %v245
      %v1690 = vmul.f32 %v246, %v246
      %v1691 = vmul.f32 %v247, %v247
      %v1692 = vmul.f32 %v248, %v248
      %v1693 = vmul.f32 %v249, %v249
      %v1694 = vmul.f32 %v250, %v250
      %v1695 = vmul.f32 %v251, %v251
      %v1696 = vmul.f32 %v252, %v252
      %v1697 = vmul.f32 %v253, %v253
      %v1698 = vmul.f32 %v254, %v254
      %v1699 = vmul.f32 %v255, %v255
      %v1700 = vmul.f32 %v256, %v256
      %v1701 = vmul.f32 %v257, %v257
      %v1702 = vmul.f32 %v258, %v258
      %v1703 = vmul.f32 %v259, %v259
      %v1704 = vmul.f32 %v260, %v260
      %v1705 = vmul.f32 %v261, %v261
      %v1706 = vmul.f32 %v262, %v262
      %v1707 = vmul.f32 %v263, %v263
      %v1708 = vmul.f32 %v264, %v264
      %v1709 = vmul.f32 %v265, %v265
      %v1710 = vmul.f32 %v266, %v266
      %v1711 = vmul.f32 %v267, %v267
      %v1712 = vmul.f32 %v268, %v268
      %v1713 = vmul.f32 %v269, %v269
      %v1714 = vmul.f32 %v270, %v270
      %v1715 = vmul.f32 %v271, %v271
      %v1716 = vmul.f32 %v272, %v272
      %v1717 = vmul.f32 %v273, %v273
      %v1718 = vmul.f32 %v274, %v274
      %v1719 = vmul.f32 %v275, %v275
      %1720 = vadd.xlane.f32.xlu0 %v1688
      %v1721 = vpop.xlane.xlu0 %1720
      %1722 = vadd.xlane.f32.xlu0 %v1689
      %v1723 = vpop.xlane.xlu0 %1722
      %1724 = vadd.xlane.f32.xlu0 %v1690
      %v1725 = vpop.xlane.xlu0 %1724
      %1726 = vadd.xlane.f32.xlu0 %v1691
      %v1727 = vpop.xlane.xlu0 %1726
      %1728 = vadd.xlane.f32.xlu0 %v1692
      %v1729 = vpop.xlane.xlu0 %1728
      %1730 = vadd.xlane.f32.xlu0 %v1693
      %v1731 = vpop.xlane.xlu0 %1730
      %1732 = vadd.xlane.f32.xlu0 %v1694
      %v1733 = vpop.xlane.xlu0 %1732
      %1734 = vadd.xlane.f32.xlu0 %v1695
      %v1735 = vpop.xlane.xlu0 %1734
      %1736 = vadd.xlane.f32.xlu0 %v1696
      %v1737 = vpop.xlane.xlu0 %1736
      %1738 = vadd.xlane.f32.xlu0 %v1697
      %v1739 = vpop.xlane.xlu0 %1738
      %1740 = vadd.xlane.f32.xlu0 %v1698
      %v1741 = vpop.xlane.xlu0 %1740
      %1742 = vadd.xlane.f32.xlu0 %v1699
      %v1743 = vpop.xlane.xlu0 %1742
      %1744 = vadd.xlane.f32.xlu0 %v1700
      %v1745 = vpop.xlane.xlu0 %1744
      %1746 = vadd.xlane.f32.xlu0 %v1701
      %v1747 = vpop.xlane.xlu0 %1746
      %1748 = vadd.xlane.f32.xlu0 %v1702
      %v1749 = vpop.xlane.xlu0 %1748
      %1750 = vadd.xlane.f32.xlu0 %v1703
      %v1751 = vpop.xlane.xlu0 %1750
      %1752 = vadd.xlane.f32.xlu0 %v1704
      %v1753 = vpop.xlane.xlu0 %1752
      %1754 = vadd.xlane.f32.xlu0 %v1705
      %v1755 = vpop.xlane.xlu0 %1754
      %1756 = vadd.xlane.f32.xlu0 %v1706
      %v1757 = vpop.xlane.xlu0 %1756
      %1758 = vadd.xlane.f32.xlu0 %v1707
      %v1759 = vpop.xlane.xlu0 %1758
      %1760 = vadd.xlane.f32.xlu0 %v1708
      %v1761 = vpop.xlane.xlu0 %1760
      %1762 = vadd.xlane.f32.xlu0 %v1709
      %v1763 = vpop.xlane.xlu0 %1762
      %1764 = vadd.xlane.f32.xlu0 %v1710
      %v1765 = vpop.xlane.xlu0 %1764
      %1766 = vadd.xlane.f32.xlu0 %v1711
      %v1767 = vpop.xlane.xlu0 %1766
      %1768 = vadd.xlane.f32.xlu0 %v1712
      %v1769 = vpop.xlane.xlu0 %1768
      %1770 = vadd.xlane.f32.xlu0 %v1713
      %v1771 = vpop.xlane.xlu0 %1770
      %1772 = vadd.xlane.f32.xlu0 %v1714
      %v1773 = vpop.xlane.xlu0 %1772
      %1774 = vadd.xlane.f32.xlu0 %v1715
      %v1775 = vpop.xlane.xlu0 %1774
      %1776 = vadd.xlane.f32.xlu0 %v1716
      %v1777 = vpop.xlane.xlu0 %1776
      %1778 = vadd.xlane.f32.xlu0 %v1717
      %v1779 = vpop.xlane.xlu0 %1778
      %1780 = vadd.xlane.f32.xlu0 %v1718
      %v1781 = vpop.xlane.xlu0 %1780
      %1782 = vadd.xlane.f32.xlu0 %v1719
      %v1783 = vpop.xlane.xlu0 %1782
      %v1784 = vld [vmem:[%s2] sm:$0xff]
      %v1785 = vld [vmem:[%s2 + $0x8] sm:$0xff]
      %v1786 = vld [vmem:[%s2 + $0x10] sm:$0xff]
      %v1787 = vld [vmem:[%s2 + $0x18] sm:$0xff]
      %v1788 = vld [vmem:[%s2 + $0x20] sm:$0xff]
      %v1789 = vld [vmem:[%s2 + $0x28] sm:$0xff]
      %v1790 = vld [vmem:[%s2 + $0x30] sm:$0xff]
      %v1791 = vld [vmem:[%s2 + $0x38] sm:$0xff]
      %v1792 = vld [vmem:[%s2 + $0x40] sm:$0xff]
      %v1793 = vld [vmem:[%s2 + $0x48] sm:$0xff]
      %v1794 = vld [vmem:[%s2 + $0x50] sm:$0xff]
      %v1795 = vld [vmem:[%s2 + $0x58] sm:$0xff]
      %v1796 = vld [vmem:[%s2 + $0x60] sm:$0xff]
      %v1797 = vld [vmem:[%s2 + $0x68] sm:$0xff]
      %v1798 = vld [vmem:[%s2 + $0x70] sm:$0xff]
      %v1799 = vld [vmem:[%s2 + $0x78] sm:$0xff]
      %1800 = vmatpush.msra.mxu0 %v1799
      %1801 = vmatpush.msra.mxu0 %v1798
      %1802 = vmatpush.msra.mxu0 %v1797
      %1803 = vmatpush.msra.mxu0 %v1796
      %1804 = vmatpush.msra.mxu0 %v1795
      %1805 = vmatpush.msra.mxu0 %v1794
      %1806 = vmatpush.msra.mxu0 %v1793
      %1807 = vmatpush.msra.mxu0 %v1792
      %1808 = vmatpush.msra.mxu0 %v1791
      %1809 = vmatpush.msra.mxu0 %v1790
      %1810 = vmatpush.msra.mxu0 %v1789
      %1811 = vmatpush.msra.mxu0 %v1788
      %1812 = vmatpush.msra.mxu0 %v1787
      %1813 = vmatpush.msra.mxu0 %v1786
      %1814 = vmatpush.msra.mxu0 %v1785
      %1815 = vmatpush.msra.mxu0 %v1784
      %1816 = vmatmul.f32.gmra.mxu0 %v244
      %v1817 = vpop.f32.mrf.mxu0
      %v1818 = vadd.f32 0.0, %v1817
      %1819 = vmatmul.f32.gmra.mxu0 %v245
      %v1820 = vpop.f32.mrf.mxu0
      %v1821 = vadd.f32 0.0, %v1820
      %1822 = vmatmul.f32.gmra.mxu0 %v246
      %v1823 = vpop.f32.mrf.mxu0
      %v1824 = vadd.f32 0.0, %v1823
      %1825 = vmatmul.f32.gmra.mxu0 %v247
      %v1826 = vpop.f32.mrf.mxu0
      %v1827 = vadd.f32 0.0, %v1826
      %1828 = vmatmul.f32.gmra.mxu0 %v248
      %v1829 = vpop.f32.mrf.mxu0
      %v1830 = vadd.f32 0.0, %v1829
      %1831 = vmatmul.f32.gmra.mxu0 %v249
      %v1832 = vpop.f32.mrf.mxu0
      %v1833 = vadd.f32 0.0, %v1832
      %1834 = vmatmul.f32.gmra.mxu0 %v250
      %v1835 = vpop.f32.mrf.mxu0
      %v1836 = vadd.f32 0.0, %v1835
      %1837 = vmatmul.f32.gmra.mxu0 %v251
      %v1838 = vpop.f32.mrf.mxu0
      %v1839 = vadd.f32 0.0, %v1838
      %1840 = vmatmul.f32.gmra.mxu0 %v252
      %v1841 = vpop.f32.mrf.mxu0
      %v1842 = vadd.f32 0.0, %v1841
      %1843 = vmatmul.f32.gmra.mxu0 %v253
      %v1844 = vpop.f32.mrf.mxu0
      %v1845 = vadd.f32 0.0, %v1844
      %1846 = vmatmul.f32.gmra.mxu0 %v254
      %v1847 = vpop.f32.mrf.mxu0
      %v1848 = vadd.f32 0.0, %v1847
      %1849 = vmatmul.f32.gmra.mxu0 %v255
      %v1850 = vpop.f32.mrf.mxu0
      %v1851 = vadd.f32 0.0, %v1850
      %1852 = vmatmul.f32.gmra.mxu0 %v256
      %v1853 = vpop.f32.mrf.mxu0
      %v1854 = vadd.f32 0.0, %v1853
      %1855 = vmatmul.f32.gmra.mxu0 %v257
      %v1856 = vpop.f32.mrf.mxu0
      %v1857 = vadd.f32 0.0, %v1856
      %1858 = vmatmul.f32.gmra.mxu0 %v258
      %v1859 = vpop.f32.mrf.mxu0
      %v1860 = vadd.f32 0.0, %v1859
      %1861 = vmatmul.f32.gmra.mxu0 %v259
      %v1862 = vpop.f32.mrf.mxu0
      %v1863 = vadd.f32 0.0, %v1862
      %1864 = vmatmul.f32.gmra.mxu0 %v260
      %v1865 = vpop.f32.mrf.mxu0
      %v1866 = vadd.f32 0.0, %v1865
      %1867 = vmatmul.f32.gmra.mxu0 %v261
      %v1868 = vpop.f32.mrf.mxu0
      %v1869 = vadd.f32 0.0, %v1868
      %1870 = vmatmul.f32.gmra.mxu0 %v262
      %v1871 = vpop.f32.mrf.mxu0
      %v1872 = vadd.f32 0.0, %v1871
      %1873 = vmatmul.f32.gmra.mxu0 %v263
      %v1874 = vpop.f32.mrf.mxu0
      %v1875 = vadd.f32 0.0, %v1874
      %1876 = vmatmul.f32.gmra.mxu0 %v264
      %v1877 = vpop.f32.mrf.mxu0
      %v1878 = vadd.f32 0.0, %v1877
      %1879 = vmatmul.f32.gmra.mxu0 %v265
      %v1880 = vpop.f32.mrf.mxu0
      %v1881 = vadd.f32 0.0, %v1880
      %1882 = vmatmul.f32.gmra.mxu0 %v266
      %v1883 = vpop.f32.mrf.mxu0
      %v1884 = vadd.f32 0.0, %v1883
      %1885 = vmatmul.f32.gmra.mxu0 %v267
      %v1886 = vpop.f32.mrf.mxu0
      %v1887 = vadd.f32 0.0, %v1886
      %1888 = vmatmul.f32.gmra.mxu0 %v268
      %v1889 = vpop.f32.mrf.mxu0
      %v1890 = vadd.f32 0.0, %v1889
      %1891 = vmatmul.f32.gmra.mxu0 %v269
      %v1892 = vpop.f32.mrf.mxu0
      %v1893 = vadd.f32 0.0, %v1892
      %1894 = vmatmul.f32.gmra.mxu0 %v270
      %v1895 = vpop.f32.mrf.mxu0
      %v1896 = vadd.f32 0.0, %v1895
      %1897 = vmatmul.f32.gmra.mxu0 %v271
      %v1898 = vpop.f32.mrf.mxu0
      %v1899 = vadd.f32 0.0, %v1898
      %1900 = vmatmul.f32.gmra.mxu0 %v272
      %v1901 = vpop.f32.mrf.mxu0
      %v1902 = vadd.f32 0.0, %v1901
      %1903 = vmatmul.f32.gmra.mxu0 %v273
      %v1904 = vpop.f32.mrf.mxu0
      %v1905 = vadd.f32 0.0, %v1904
      %1906 = vmatmul.f32.gmra.mxu0 %v274
      %v1907 = vpop.f32.mrf.mxu0
      %v1908 = vadd.f32 0.0, %v1907
      %1909 = vmatmul.f32.gmra.mxu0 %v275
      %v1910 = vpop.f32.mrf.mxu0
      %v1911 = vadd.f32 0.0, %v1910
      %1912 = vdwg.mxu0
      %v1913 = vld [vmem:[%s3] sm:$0x1]
      %v1915 = vperm.slane %v1913, 0
      %v1917 = vadd.f32 %v1721, %v1915
      %v1918 = vadd.f32 %v1723, %v1915
      %v1919 = vadd.f32 %v1725, %v1915
      %v1920 = vadd.f32 %v1727, %v1915
      %v1921 = vadd.f32 %v1729, %v1915
      %v1922 = vadd.f32 %v1731, %v1915
      %v1923 = vadd.f32 %v1733, %v1915
      %v1924 = vadd.f32 %v1735, %v1915
      %v1925 = vadd.f32 %v1737, %v1915
      %v1926 = vadd.f32 %v1739, %v1915
      %v1927 = vadd.f32 %v1741, %v1915
      %v1928 = vadd.f32 %v1743, %v1915
      %v1929 = vadd.f32 %v1745, %v1915
      %v1930 = vadd.f32 %v1747, %v1915
      %v1931 = vadd.f32 %v1749, %v1915
      %v1932 = vadd.f32 %v1751, %v1915
      %v1933 = vadd.f32 %v1753, %v1915
      %v1934 = vadd.f32 %v1755, %v1915
      %v1935 = vadd.f32 %v1757, %v1915
      %v1936 = vadd.f32 %v1759, %v1915
      %v1937 = vadd.f32 %v1761, %v1915
      %v1938 = vadd.f32 %v1763, %v1915
      %v1939 = vadd.f32 %v1765, %v1915
      %v1940 = vadd.f32 %v1767, %v1915
      %v1941 = vadd.f32 %v1769, %v1915
      %v1942 = vadd.f32 %v1771, %v1915
      %v1943 = vadd.f32 %v1773, %v1915
      %v1944 = vadd.f32 %v1775, %v1915
      %v1945 = vadd.f32 %v1777, %v1915
      %v1946 = vadd.f32 %v1779, %v1915
      %v1947 = vadd.f32 %v1781, %v1915
      %v1948 = vadd.f32 %v1783, %v1915
      %v1949 = vmul.f32 %v1818, 2.0
      %v1950 = vmul.f32 %v1821, 2.0
      %v1951 = vmul.f32 %v1824, 2.0
      %v1952 = vmul.f32 %v1827, 2.0
      %v1953 = vmul.f32 %v1830, 2.0
      %v1954 = vmul.f32 %v1833, 2.0
      %v1955 = vmul.f32 %v1836, 2.0
      %v1956 = vmul.f32 %v1839, 2.0
      %v1957 = vmul.f32 %v1842, 2.0
      %v1958 = vmul.f32 %v1845, 2.0
      %v1959 = vmul.f32 %v1848, 2.0
      %v1960 = vmul.f32 %v1851, 2.0
      %v1961 = vmul.f32 %v1854, 2.0
      %v1962 = vmul.f32 %v1857, 2.0
      %v1963 = vmul.f32 %v1860, 2.0
      %v1964 = vmul.f32 %v1863, 2.0
      %v1965 = vmul.f32 %v1866, 2.0
      %v1966 = vmul.f32 %v1869, 2.0
      %v1967 = vmul.f32 %v1872, 2.0
      %v1968 = vmul.f32 %v1875, 2.0
      %v1969 = vmul.f32 %v1878, 2.0
      %v1970 = vmul.f32 %v1881, 2.0
      %v1971 = vmul.f32 %v1884, 2.0
      %v1972 = vmul.f32 %v1887, 2.0
      %v1973 = vmul.f32 %v1890, 2.0
      %v1974 = vmul.f32 %v1893, 2.0
      %v1975 = vmul.f32 %v1896, 2.0
      %v1976 = vmul.f32 %v1899, 2.0
      %v1977 = vmul.f32 %v1902, 2.0
      %v1978 = vmul.f32 %v1905, 2.0
      %v1979 = vmul.f32 %v1908, 2.0
      %v1980 = vmul.f32 %v1911, 2.0
      %v1981 = vsub.f32 %v1917, %v1949
      %v1982 = vsub.f32 %v1918, %v1950
      %v1983 = vsub.f32 %v1919, %v1951
      %v1984 = vsub.f32 %v1920, %v1952
      %v1985 = vsub.f32 %v1921, %v1953
      %v1986 = vsub.f32 %v1922, %v1954
      %v1987 = vsub.f32 %v1923, %v1955
      %v1988 = vsub.f32 %v1924, %v1956
      %v1989 = vsub.f32 %v1925, %v1957
      %v1990 = vsub.f32 %v1926, %v1958
      %v1991 = vsub.f32 %v1927, %v1959
      %v1992 = vsub.f32 %v1928, %v1960
      %v1993 = vsub.f32 %v1929, %v1961
      %v1994 = vsub.f32 %v1930, %v1962
      %v1995 = vsub.f32 %v1931, %v1963
      %v1996 = vsub.f32 %v1932, %v1964
      %v1997 = vsub.f32 %v1933, %v1965
      %v1998 = vsub.f32 %v1934, %v1966
      %v1999 = vsub.f32 %v1935, %v1967
      %v2000 = vsub.f32 %v1936, %v1968
      %v2001 = vsub.f32 %v1937, %v1969
      %v2002 = vsub.f32 %v1938, %v1970
      %v2003 = vsub.f32 %v1939, %v1971
      %v2004 = vsub.f32 %v1940, %v1972
      %v2005 = vsub.f32 %v1941, %v1973
      %v2006 = vsub.f32 %v1942, %v1974
      %v2007 = vsub.f32 %v1943, %v1975
      %v2008 = vsub.f32 %v1944, %v1976
      %v2009 = vsub.f32 %v1945, %v1977
      %v2010 = vsub.f32 %v1946, %v1978
      %v2011 = vsub.f32 %v1947, %v1979
      %v2012 = vsub.f32 %v1948, %v1980
      %v2013 = vmax.f32 %v1981, 0.0
      %v2014 = vmax.f32 %v1982, 0.0
      %v2015 = vmax.f32 %v1983, 0.0
      %v2016 = vmax.f32 %v1984, 0.0
      %v2017 = vmax.f32 %v1985, 0.0
      %v2018 = vmax.f32 %v1986, 0.0
      %v2019 = vmax.f32 %v1987, 0.0
      %v2020 = vmax.f32 %v1988, 0.0
      %v2021 = vmax.f32 %v1989, 0.0
      %v2022 = vmax.f32 %v1990, 0.0
      %v2023 = vmax.f32 %v1991, 0.0
      %v2024 = vmax.f32 %v1992, 0.0
      %v2025 = vmax.f32 %v1993, 0.0
      %v2026 = vmax.f32 %v1994, 0.0
      %v2027 = vmax.f32 %v1995, 0.0
      %v2028 = vmax.f32 %v1996, 0.0
      %v2029 = vmax.f32 %v1997, 0.0
      %v2030 = vmax.f32 %v1998, 0.0
      %v2031 = vmax.f32 %v1999, 0.0
      %v2032 = vmax.f32 %v2000, 0.0
      %v2033 = vmax.f32 %v2001, 0.0
      %v2034 = vmax.f32 %v2002, 0.0
      %v2035 = vmax.f32 %v2003, 0.0
      %v2036 = vmax.f32 %v2004, 0.0
      %v2037 = vmax.f32 %v2005, 0.0
      %v2038 = vmax.f32 %v2006, 0.0
      %v2039 = vmax.f32 %v2007, 0.0
      %v2040 = vmax.f32 %v2008, 0.0
      %v2041 = vmax.f32 %v2009, 0.0
      %v2042 = vmax.f32 %v2010, 0.0
      %v2043 = vmax.f32 %v2011, 0.0
      %v2044 = vmax.f32 %v2012, 0.0
      %v2045 = vadd.f32 %v2013, 1.0
      %v2046 = vadd.f32 %v2014, 1.0
      %v2047 = vadd.f32 %v2015, 1.0
      %v2048 = vadd.f32 %v2016, 1.0
      %v2049 = vadd.f32 %v2017, 1.0
      %v2050 = vadd.f32 %v2018, 1.0
      %v2051 = vadd.f32 %v2019, 1.0
      %v2052 = vadd.f32 %v2020, 1.0
      %v2053 = vadd.f32 %v2021, 1.0
      %v2054 = vadd.f32 %v2022, 1.0
      %v2055 = vadd.f32 %v2023, 1.0
      %v2056 = vadd.f32 %v2024, 1.0
      %v2057 = vadd.f32 %v2025, 1.0
      %v2058 = vadd.f32 %v2026, 1.0
      %v2059 = vadd.f32 %v2027, 1.0
      %v2060 = vadd.f32 %v2028, 1.0
      %v2061 = vadd.f32 %v2029, 1.0
      %v2062 = vadd.f32 %v2030, 1.0
      %v2063 = vadd.f32 %v2031, 1.0
      %v2064 = vadd.f32 %v2032, 1.0
      %v2065 = vadd.f32 %v2033, 1.0
      %v2066 = vadd.f32 %v2034, 1.0
      %v2067 = vadd.f32 %v2035, 1.0
      %v2068 = vadd.f32 %v2036, 1.0
      %v2069 = vadd.f32 %v2037, 1.0
      %v2070 = vadd.f32 %v2038, 1.0
      %v2071 = vadd.f32 %v2039, 1.0
      %v2072 = vadd.f32 %v2040, 1.0
      %v2073 = vadd.f32 %v2041, 1.0
      %v2074 = vadd.f32 %v2042, 1.0
      %v2075 = vadd.f32 %v2043, 1.0
      %v2076 = vadd.f32 %v2044, 1.0
      %v2077 = vrcp.pop %v2045
      %v2078 = vmul.f32 %v2045, %v2077
      %v2079 = vsub.f32 1.0, %v2078
      %v2080 = vmul.f32 %v2077, %v2079
      %v2081 = vadd.f32 %v2077, %v2080
      %vm2082 = vweird.f32 %v2045
      %vm2083 = vweird.f32 %v2077
      %vm2084 = vmor %vm2082, %vm2083
      %v2085 = vsel %vm2084, %v2077, %v2081
      %v2086 = vand.u32 2147483647, %v2045
      %vm2087 = vcmp.eq.f32.partialorder %v2086, 8.507059e+37
      %v2088 = vand.u32 %v2045, 2147483648
      %v2089 = vor.u32 1.1754944e-38, %v2088
      %v2090 = vsel %vm2087, %v2089, %v2085
      %v2091 = vmul.f32 1.0, %v2090
      %v2092 = vrcp.pop %v2046
      %v2093 = vmul.f32 %v2046, %v2092
      %v2094 = vsub.f32 1.0, %v2093
      %v2095 = vmul.f32 %v2092, %v2094
      %v2096 = vadd.f32 %v2092, %v2095
      %vm2097 = vweird.f32 %v2046
      %vm2098 = vweird.f32 %v2092
      %vm2099 = vmor %vm2097, %vm2098
      %v2100 = vsel %vm2099, %v2092, %v2096
      %v2101 = vand.u32 2147483647, %v2046
      %vm2102 = vcmp.eq.f32.partialorder %v2101, 8.507059e+37
      %v2103 = vand.u32 %v2046, 2147483648
      %v2104 = vor.u32 1.1754944e-38, %v2103
      %v2105 = vsel %vm2102, %v2104, %v2100
      %v2106 = vmul.f32 1.0, %v2105
      %v2107 = vrcp.pop %v2047
      %v2108 = vmul.f32 %v2047, %v2107
      %v2109 = vsub.f32 1.0, %v2108
      %v2110 = vmul.f32 %v2107, %v2109
      %v2111 = vadd.f32 %v2107, %v2110
      %vm2112 = vweird.f32 %v2047
      %vm2113 = vweird.f32 %v2107
      %vm2114 = vmor %vm2112, %vm2113
      %v2115 = vsel %vm2114, %v2107, %v2111
      %v2116 = vand.u32 2147483647, %v2047
      %vm2117 = vcmp.eq.f32.partialorder %v2116, 8.507059e+37
      %v2118 = vand.u32 %v2047, 2147483648
      %v2119 = vor.u32 1.1754944e-38, %v2118
      %v2120 = vsel %vm2117, %v2119, %v2115
      %v2121 = vmul.f32 1.0, %v2120
      %v2122 = vrcp.pop %v2048
      %v2123 = vmul.f32 %v2048, %v2122
      %v2124 = vsub.f32 1.0, %v2123
      %v2125 = vmul.f32 %v2122, %v2124
      %v2126 = vadd.f32 %v2122, %v2125
      %vm2127 = vweird.f32 %v2048
      %vm2128 = vweird.f32 %v2122
      %vm2129 = vmor %vm2127, %vm2128
      %v2130 = vsel %vm2129, %v2122, %v2126
      %v2131 = vand.u32 2147483647, %v2048
      %vm2132 = vcmp.eq.f32.partialorder %v2131, 8.507059e+37
      %v2133 = vand.u32 %v2048, 2147483648
      %v2134 = vor.u32 1.1754944e-38, %v2133
      %v2135 = vsel %vm2132, %v2134, %v2130
      %v2136 = vmul.f32 1.0, %v2135
      %v2137 = vrcp.pop %v2049
      %v2138 = vmul.f32 %v2049, %v2137
      %v2139 = vsub.f32 1.0, %v2138
      %v2140 = vmul.f32 %v2137, %v2139
      %v2141 = vadd.f32 %v2137, %v2140
      %vm2142 = vweird.f32 %v2049
      %vm2143 = vweird.f32 %v2137
      %vm2144 = vmor %vm2142, %vm2143
      %v2145 = vsel %vm2144, %v2137, %v2141
      %v2146 = vand.u32 2147483647, %v2049
      %vm2147 = vcmp.eq.f32.partialorder %v2146, 8.507059e+37
      %v2148 = vand.u32 %v2049, 2147483648
      %v2149 = vor.u32 1.1754944e-38, %v2148
      %v2150 = vsel %vm2147, %v2149, %v2145
      %v2151 = vmul.f32 1.0, %v2150
      %v2152 = vrcp.pop %v2050
      %v2153 = vmul.f32 %v2050, %v2152
      %v2154 = vsub.f32 1.0, %v2153
      %v2155 = vmul.f32 %v2152, %v2154
      %v2156 = vadd.f32 %v2152, %v2155
      %vm2157 = vweird.f32 %v2050
      %vm2158 = vweird.f32 %v2152
      %vm2159 = vmor %vm2157, %vm2158
      %v2160 = vsel %vm2159, %v2152, %v2156
      %v2161 = vand.u32 2147483647, %v2050
      %vm2162 = vcmp.eq.f32.partialorder %v2161, 8.507059e+37
      %v2163 = vand.u32 %v2050, 2147483648
      %v2164 = vor.u32 1.1754944e-38, %v2163
      %v2165 = vsel %vm2162, %v2164, %v2160
      %v2166 = vmul.f32 1.0, %v2165
      %v2167 = vrcp.pop %v2051
      %v2168 = vmul.f32 %v2051, %v2167
      %v2169 = vsub.f32 1.0, %v2168
      %v2170 = vmul.f32 %v2167, %v2169
      %v2171 = vadd.f32 %v2167, %v2170
      %vm2172 = vweird.f32 %v2051
      %vm2173 = vweird.f32 %v2167
      %vm2174 = vmor %vm2172, %vm2173
      %v2175 = vsel %vm2174, %v2167, %v2171
      %v2176 = vand.u32 2147483647, %v2051
      %vm2177 = vcmp.eq.f32.partialorder %v2176, 8.507059e+37
      %v2178 = vand.u32 %v2051, 2147483648
      %v2179 = vor.u32 1.1754944e-38, %v2178
      %v2180 = vsel %vm2177, %v2179, %v2175
      %v2181 = vmul.f32 1.0, %v2180
      %v2182 = vrcp.pop %v2052
      %v2183 = vmul.f32 %v2052, %v2182
      %v2184 = vsub.f32 1.0, %v2183
      %v2185 = vmul.f32 %v2182, %v2184
      %v2186 = vadd.f32 %v2182, %v2185
      %vm2187 = vweird.f32 %v2052
      %vm2188 = vweird.f32 %v2182
      %vm2189 = vmor %vm2187, %vm2188
      %v2190 = vsel %vm2189, %v2182, %v2186
      %v2191 = vand.u32 2147483647, %v2052
      %vm2192 = vcmp.eq.f32.partialorder %v2191, 8.507059e+37
      %v2193 = vand.u32 %v2052, 2147483648
      %v2194 = vor.u32 1.1754944e-38, %v2193
      %v2195 = vsel %vm2192, %v2194, %v2190
      %v2196 = vmul.f32 1.0, %v2195
      %v2197 = vrcp.pop %v2053
      %v2198 = vmul.f32 %v2053, %v2197
      %v2199 = vsub.f32 1.0, %v2198
      %v2200 = vmul.f32 %v2197, %v2199
      %v2201 = vadd.f32 %v2197, %v2200
      %vm2202 = vweird.f32 %v2053
      %vm2203 = vweird.f32 %v2197
      %vm2204 = vmor %vm2202, %vm2203
      %v2205 = vsel %vm2204, %v2197, %v2201
      %v2206 = vand.u32 2147483647, %v2053
      %vm2207 = vcmp.eq.f32.partialorder %v2206, 8.507059e+37
      %v2208 = vand.u32 %v2053, 2147483648
      %v2209 = vor.u32 1.1754944e-38, %v2208
      %v2210 = vsel %vm2207, %v2209, %v2205
      %v2211 = vmul.f32 1.0, %v2210
      %v2212 = vrcp.pop %v2054
      %v2213 = vmul.f32 %v2054, %v2212
      %v2214 = vsub.f32 1.0, %v2213
      %v2215 = vmul.f32 %v2212, %v2214
      %v2216 = vadd.f32 %v2212, %v2215
      %vm2217 = vweird.f32 %v2054
      %vm2218 = vweird.f32 %v2212
      %vm2219 = vmor %vm2217, %vm2218
      %v2220 = vsel %vm2219, %v2212, %v2216
      %v2221 = vand.u32 2147483647, %v2054
      %vm2222 = vcmp.eq.f32.partialorder %v2221, 8.507059e+37
      %v2223 = vand.u32 %v2054, 2147483648
      %v2224 = vor.u32 1.1754944e-38, %v2223
      %v2225 = vsel %vm2222, %v2224, %v2220
      %v2226 = vmul.f32 1.0, %v2225
      %v2227 = vrcp.pop %v2055
      %v2228 = vmul.f32 %v2055, %v2227
      %v2229 = vsub.f32 1.0, %v2228
      %v2230 = vmul.f32 %v2227, %v2229
      %v2231 = vadd.f32 %v2227, %v2230
      %vm2232 = vweird.f32 %v2055
      %vm2233 = vweird.f32 %v2227
      %vm2234 = vmor %vm2232, %vm2233
      %v2235 = vsel %vm2234, %v2227, %v2231
      %v2236 = vand.u32 2147483647, %v2055
      %vm2237 = vcmp.eq.f32.partialorder %v2236, 8.507059e+37
      %v2238 = vand.u32 %v2055, 2147483648
      %v2239 = vor.u32 1.1754944e-38, %v2238
      %v2240 = vsel %vm2237, %v2239, %v2235
      %v2241 = vmul.f32 1.0, %v2240
      %v2242 = vrcp.pop %v2056
      %v2243 = vmul.f32 %v2056, %v2242
      %v2244 = vsub.f32 1.0, %v2243
      %v2245 = vmul.f32 %v2242, %v2244
      %v2246 = vadd.f32 %v2242, %v2245
      %vm2247 = vweird.f32 %v2056
      %vm2248 = vweird.f32 %v2242
      %vm2249 = vmor %vm2247, %vm2248
      %v2250 = vsel %vm2249, %v2242, %v2246
      %v2251 = vand.u32 2147483647, %v2056
      %vm2252 = vcmp.eq.f32.partialorder %v2251, 8.507059e+37
      %v2253 = vand.u32 %v2056, 2147483648
      %v2254 = vor.u32 1.1754944e-38, %v2253
      %v2255 = vsel %vm2252, %v2254, %v2250
      %v2256 = vmul.f32 1.0, %v2255
      %v2257 = vrcp.pop %v2057
      %v2258 = vmul.f32 %v2057, %v2257
      %v2259 = vsub.f32 1.0, %v2258
      %v2260 = vmul.f32 %v2257, %v2259
      %v2261 = vadd.f32 %v2257, %v2260
      %vm2262 = vweird.f32 %v2057
      %vm2263 = vweird.f32 %v2257
      %vm2264 = vmor %vm2262, %vm2263
      %v2265 = vsel %vm2264, %v2257, %v2261
      %v2266 = vand.u32 2147483647, %v2057
      %vm2267 = vcmp.eq.f32.partialorder %v2266, 8.507059e+37
      %v2268 = vand.u32 %v2057, 2147483648
      %v2269 = vor.u32 1.1754944e-38, %v2268
      %v2270 = vsel %vm2267, %v2269, %v2265
      %v2271 = vmul.f32 1.0, %v2270
      %v2272 = vrcp.pop %v2058
      %v2273 = vmul.f32 %v2058, %v2272
      %v2274 = vsub.f32 1.0, %v2273
      %v2275 = vmul.f32 %v2272, %v2274
      %v2276 = vadd.f32 %v2272, %v2275
      %vm2277 = vweird.f32 %v2058
      %vm2278 = vweird.f32 %v2272
      %vm2279 = vmor %vm2277, %vm2278
      %v2280 = vsel %vm2279, %v2272, %v2276
      %v2281 = vand.u32 2147483647, %v2058
      %vm2282 = vcmp.eq.f32.partialorder %v2281, 8.507059e+37
      %v2283 = vand.u32 %v2058, 2147483648
      %v2284 = vor.u32 1.1754944e-38, %v2283
      %v2285 = vsel %vm2282, %v2284, %v2280
      %v2286 = vmul.f32 1.0, %v2285
      %v2287 = vrcp.pop %v2059
      %v2288 = vmul.f32 %v2059, %v2287
      %v2289 = vsub.f32 1.0, %v2288
      %v2290 = vmul.f32 %v2287, %v2289
      %v2291 = vadd.f32 %v2287, %v2290
      %vm2292 = vweird.f32 %v2059
      %vm2293 = vweird.f32 %v2287
      %vm2294 = vmor %vm2292, %vm2293
      %v2295 = vsel %vm2294, %v2287, %v2291
      %v2296 = vand.u32 2147483647, %v2059
      %vm2297 = vcmp.eq.f32.partialorder %v2296, 8.507059e+37
      %v2298 = vand.u32 %v2059, 2147483648
      %v2299 = vor.u32 1.1754944e-38, %v2298
      %v2300 = vsel %vm2297, %v2299, %v2295
      %v2301 = vmul.f32 1.0, %v2300
      %v2302 = vrcp.pop %v2060
      %v2303 = vmul.f32 %v2060, %v2302
      %v2304 = vsub.f32 1.0, %v2303
      %v2305 = vmul.f32 %v2302, %v2304
      %v2306 = vadd.f32 %v2302, %v2305
      %vm2307 = vweird.f32 %v2060
      %vm2308 = vweird.f32 %v2302
      %vm2309 = vmor %vm2307, %vm2308
      %v2310 = vsel %vm2309, %v2302, %v2306
      %v2311 = vand.u32 2147483647, %v2060
      %vm2312 = vcmp.eq.f32.partialorder %v2311, 8.507059e+37
      %v2313 = vand.u32 %v2060, 2147483648
      %v2314 = vor.u32 1.1754944e-38, %v2313
      %v2315 = vsel %vm2312, %v2314, %v2310
      %v2316 = vmul.f32 1.0, %v2315
      %v2317 = vrcp.pop %v2061
      %v2318 = vmul.f32 %v2061, %v2317
      %v2319 = vsub.f32 1.0, %v2318
      %v2320 = vmul.f32 %v2317, %v2319
      %v2321 = vadd.f32 %v2317, %v2320
      %vm2322 = vweird.f32 %v2061
      %vm2323 = vweird.f32 %v2317
      %vm2324 = vmor %vm2322, %vm2323
      %v2325 = vsel %vm2324, %v2317, %v2321
      %v2326 = vand.u32 2147483647, %v2061
      %vm2327 = vcmp.eq.f32.partialorder %v2326, 8.507059e+37
      %v2328 = vand.u32 %v2061, 2147483648
      %v2329 = vor.u32 1.1754944e-38, %v2328
      %v2330 = vsel %vm2327, %v2329, %v2325
      %v2331 = vmul.f32 1.0, %v2330
      %v2332 = vrcp.pop %v2062
      %v2333 = vmul.f32 %v2062, %v2332
      %v2334 = vsub.f32 1.0, %v2333
      %v2335 = vmul.f32 %v2332, %v2334
      %v2336 = vadd.f32 %v2332, %v2335
      %vm2337 = vweird.f32 %v2062
      %vm2338 = vweird.f32 %v2332
      %vm2339 = vmor %vm2337, %vm2338
      %v2340 = vsel %vm2339, %v2332, %v2336
      %v2341 = vand.u32 2147483647, %v2062
      %vm2342 = vcmp.eq.f32.partialorder %v2341, 8.507059e+37
      %v2343 = vand.u32 %v2062, 2147483648
      %v2344 = vor.u32 1.1754944e-38, %v2343
      %v2345 = vsel %vm2342, %v2344, %v2340
      %v2346 = vmul.f32 1.0, %v2345
      %v2347 = vrcp.pop %v2063
      %v2348 = vmul.f32 %v2063, %v2347
      %v2349 = vsub.f32 1.0, %v2348
      %v2350 = vmul.f32 %v2347, %v2349
      %v2351 = vadd.f32 %v2347, %v2350
      %vm2352 = vweird.f32 %v2063
      %vm2353 = vweird.f32 %v2347
      %vm2354 = vmor %vm2352, %vm2353
      %v2355 = vsel %vm2354, %v2347, %v2351
      %v2356 = vand.u32 2147483647, %v2063
      %vm2357 = vcmp.eq.f32.partialorder %v2356, 8.507059e+37
      %v2358 = vand.u32 %v2063, 2147483648
      %v2359 = vor.u32 1.1754944e-38, %v2358
      %v2360 = vsel %vm2357, %v2359, %v2355
      %v2361 = vmul.f32 1.0, %v2360
      %v2362 = vrcp.pop %v2064
      %v2363 = vmul.f32 %v2064, %v2362
      %v2364 = vsub.f32 1.0, %v2363
      %v2365 = vmul.f32 %v2362, %v2364
      %v2366 = vadd.f32 %v2362, %v2365
      %vm2367 = vweird.f32 %v2064
      %vm2368 = vweird.f32 %v2362
      %vm2369 = vmor %vm2367, %vm2368
      %v2370 = vsel %vm2369, %v2362, %v2366
      %v2371 = vand.u32 2147483647, %v2064
      %vm2372 = vcmp.eq.f32.partialorder %v2371, 8.507059e+37
      %v2373 = vand.u32 %v2064, 2147483648
      %v2374 = vor.u32 1.1754944e-38, %v2373
      %v2375 = vsel %vm2372, %v2374, %v2370
      %v2376 = vmul.f32 1.0, %v2375
      %v2377 = vrcp.pop %v2065
      %v2378 = vmul.f32 %v2065, %v2377
      %v2379 = vsub.f32 1.0, %v2378
      %v2380 = vmul.f32 %v2377, %v2379
      %v2381 = vadd.f32 %v2377, %v2380
      %vm2382 = vweird.f32 %v2065
      %vm2383 = vweird.f32 %v2377
      %vm2384 = vmor %vm2382, %vm2383
      %v2385 = vsel %vm2384, %v2377, %v2381
      %v2386 = vand.u32 2147483647, %v2065
      %vm2387 = vcmp.eq.f32.partialorder %v2386, 8.507059e+37
      %v2388 = vand.u32 %v2065, 2147483648
      %v2389 = vor.u32 1.1754944e-38, %v2388
      %v2390 = vsel %vm2387, %v2389, %v2385
      %v2391 = vmul.f32 1.0, %v2390
      %v2392 = vrcp.pop %v2066
      %v2393 = vmul.f32 %v2066, %v2392
      %v2394 = vsub.f32 1.0, %v2393
      %v2395 = vmul.f32 %v2392, %v2394
      %v2396 = vadd.f32 %v2392, %v2395
      %vm2397 = vweird.f32 %v2066
      %vm2398 = vweird.f32 %v2392
      %vm2399 = vmor %vm2397, %vm2398
      %v2400 = vsel %vm2399, %v2392, %v2396
      %v2401 = vand.u32 2147483647, %v2066
      %vm2402 = vcmp.eq.f32.partialorder %v2401, 8.507059e+37
      %v2403 = vand.u32 %v2066, 2147483648
      %v2404 = vor.u32 1.1754944e-38, %v2403
      %v2405 = vsel %vm2402, %v2404, %v2400
      %v2406 = vmul.f32 1.0, %v2405
      %v2407 = vrcp.pop %v2067
      %v2408 = vmul.f32 %v2067, %v2407
      %v2409 = vsub.f32 1.0, %v2408
      %v2410 = vmul.f32 %v2407, %v2409
      %v2411 = vadd.f32 %v2407, %v2410
      %vm2412 = vweird.f32 %v2067
      %vm2413 = vweird.f32 %v2407
      %vm2414 = vmor %vm2412, %vm2413
      %v2415 = vsel %vm2414, %v2407, %v2411
      %v2416 = vand.u32 2147483647, %v2067
      %vm2417 = vcmp.eq.f32.partialorder %v2416, 8.507059e+37
      %v2418 = vand.u32 %v2067, 2147483648
      %v2419 = vor.u32 1.1754944e-38, %v2418
      %v2420 = vsel %vm2417, %v2419, %v2415
      %v2421 = vmul.f32 1.0, %v2420
      %v2422 = vrcp.pop %v2068
      %v2423 = vmul.f32 %v2068, %v2422
      %v2424 = vsub.f32 1.0, %v2423
      %v2425 = vmul.f32 %v2422, %v2424
      %v2426 = vadd.f32 %v2422, %v2425
      %vm2427 = vweird.f32 %v2068
      %vm2428 = vweird.f32 %v2422
      %vm2429 = vmor %vm2427, %vm2428
      %v2430 = vsel %vm2429, %v2422, %v2426
      %v2431 = vand.u32 2147483647, %v2068
      %vm2432 = vcmp.eq.f32.partialorder %v2431, 8.507059e+37
      %v2433 = vand.u32 %v2068, 2147483648
      %v2434 = vor.u32 1.1754944e-38, %v2433
      %v2435 = vsel %vm2432, %v2434, %v2430
      %v2436 = vmul.f32 1.0, %v2435
      %v2437 = vrcp.pop %v2069
      %v2438 = vmul.f32 %v2069, %v2437
      %v2439 = vsub.f32 1.0, %v2438
      %v2440 = vmul.f32 %v2437, %v2439
      %v2441 = vadd.f32 %v2437, %v2440
      %vm2442 = vweird.f32 %v2069
      %vm2443 = vweird.f32 %v2437
      %vm2444 = vmor %vm2442, %vm2443
      %v2445 = vsel %vm2444, %v2437, %v2441
      %v2446 = vand.u32 2147483647, %v2069
      %vm2447 = vcmp.eq.f32.partialorder %v2446, 8.507059e+37
      %v2448 = vand.u32 %v2069, 2147483648
      %v2449 = vor.u32 1.1754944e-38, %v2448
      %v2450 = vsel %vm2447, %v2449, %v2445
      %v2451 = vmul.f32 1.0, %v2450
      %v2452 = vrcp.pop %v2070
      %v2453 = vmul.f32 %v2070, %v2452
      %v2454 = vsub.f32 1.0, %v2453
      %v2455 = vmul.f32 %v2452, %v2454
      %v2456 = vadd.f32 %v2452, %v2455
      %vm2457 = vweird.f32 %v2070
      %vm2458 = vweird.f32 %v2452
      %vm2459 = vmor %vm2457, %vm2458
      %v2460 = vsel %vm2459, %v2452, %v2456
      %v2461 = vand.u32 2147483647, %v2070
      %vm2462 = vcmp.eq.f32.partialorder %v2461, 8.507059e+37
      %v2463 = vand.u32 %v2070, 2147483648
      %v2464 = vor.u32 1.1754944e-38, %v2463
      %v2465 = vsel %vm2462, %v2464, %v2460
      %v2466 = vmul.f32 1.0, %v2465
      %v2467 = vrcp.pop %v2071
      %v2468 = vmul.f32 %v2071, %v2467
      %v2469 = vsub.f32 1.0, %v2468
      %v2470 = vmul.f32 %v2467, %v2469
      %v2471 = vadd.f32 %v2467, %v2470
      %vm2472 = vweird.f32 %v2071
      %vm2473 = vweird.f32 %v2467
      %vm2474 = vmor %vm2472, %vm2473
      %v2475 = vsel %vm2474, %v2467, %v2471
      %v2476 = vand.u32 2147483647, %v2071
      %vm2477 = vcmp.eq.f32.partialorder %v2476, 8.507059e+37
      %v2478 = vand.u32 %v2071, 2147483648
      %v2479 = vor.u32 1.1754944e-38, %v2478
      %v2480 = vsel %vm2477, %v2479, %v2475
      %v2481 = vmul.f32 1.0, %v2480
      %v2482 = vrcp.pop %v2072
      %v2483 = vmul.f32 %v2072, %v2482
      %v2484 = vsub.f32 1.0, %v2483
      %v2485 = vmul.f32 %v2482, %v2484
      %v2486 = vadd.f32 %v2482, %v2485
      %vm2487 = vweird.f32 %v2072
      %vm2488 = vweird.f32 %v2482
      %vm2489 = vmor %vm2487, %vm2488
      %v2490 = vsel %vm2489, %v2482, %v2486
      %v2491 = vand.u32 2147483647, %v2072
      %vm2492 = vcmp.eq.f32.partialorder %v2491, 8.507059e+37
      %v2493 = vand.u32 %v2072, 2147483648
      %v2494 = vor.u32 1.1754944e-38, %v2493
      %v2495 = vsel %vm2492, %v2494, %v2490
      %v2496 = vmul.f32 1.0, %v2495
      %v2497 = vrcp.pop %v2073
      %v2498 = vmul.f32 %v2073, %v2497
      %v2499 = vsub.f32 1.0, %v2498
      %v2500 = vmul.f32 %v2497, %v2499
      %v2501 = vadd.f32 %v2497, %v2500
      %vm2502 = vweird.f32 %v2073
      %vm2503 = vweird.f32 %v2497
      %vm2504 = vmor %vm2502, %vm2503
      %v2505 = vsel %vm2504, %v2497, %v2501
      %v2506 = vand.u32 2147483647, %v2073
      %vm2507 = vcmp.eq.f32.partialorder %v2506, 8.507059e+37
      %v2508 = vand.u32 %v2073, 2147483648
      %v2509 = vor.u32 1.1754944e-38, %v2508
      %v2510 = vsel %vm2507, %v2509, %v2505
      %v2511 = vmul.f32 1.0, %v2510
      %v2512 = vrcp.pop %v2074
      %v2513 = vmul.f32 %v2074, %v2512
      %v2514 = vsub.f32 1.0, %v2513
      %v2515 = vmul.f32 %v2512, %v2514
      %v2516 = vadd.f32 %v2512, %v2515
      %vm2517 = vweird.f32 %v2074
      %vm2518 = vweird.f32 %v2512
      %vm2519 = vmor %vm2517, %vm2518
      %v2520 = vsel %vm2519, %v2512, %v2516
      %v2521 = vand.u32 2147483647, %v2074
      %vm2522 = vcmp.eq.f32.partialorder %v2521, 8.507059e+37
      %v2523 = vand.u32 %v2074, 2147483648
      %v2524 = vor.u32 1.1754944e-38, %v2523
      %v2525 = vsel %vm2522, %v2524, %v2520
      %v2526 = vmul.f32 1.0, %v2525
      %v2527 = vrcp.pop %v2075
      %v2528 = vmul.f32 %v2075, %v2527
      %v2529 = vsub.f32 1.0, %v2528
      %v2530 = vmul.f32 %v2527, %v2529
      %v2531 = vadd.f32 %v2527, %v2530
      %vm2532 = vweird.f32 %v2075
      %vm2533 = vweird.f32 %v2527
      %vm2534 = vmor %vm2532, %vm2533
      %v2535 = vsel %vm2534, %v2527, %v2531
      %v2536 = vand.u32 2147483647, %v2075
      %vm2537 = vcmp.eq.f32.partialorder %v2536, 8.507059e+37
      %v2538 = vand.u32 %v2075, 2147483648
      %v2539 = vor.u32 1.1754944e-38, %v2538
      %v2540 = vsel %vm2537, %v2539, %v2535
      %v2541 = vmul.f32 1.0, %v2540
      %v2542 = vrcp.pop %v2076
      %v2543 = vmul.f32 %v2076, %v2542
      %v2544 = vsub.f32 1.0, %v2543
      %v2545 = vmul.f32 %v2542, %v2544
      %v2546 = vadd.f32 %v2542, %v2545
      %vm2547 = vweird.f32 %v2076
      %vm2548 = vweird.f32 %v2542
      %vm2549 = vmor %vm2547, %vm2548
      %v2550 = vsel %vm2549, %v2542, %v2546
      %v2551 = vand.u32 2147483647, %v2076
      %vm2552 = vcmp.eq.f32.partialorder %v2551, 8.507059e+37
      %v2553 = vand.u32 %v2076, 2147483648
      %v2554 = vor.u32 1.1754944e-38, %v2553
      %v2555 = vsel %vm2552, %v2554, %v2550
      %v2556 = vmul.f32 1.0, %v2555
      %2557 = vadd.xlane.f32.xlu0 %v2091
      %v2558 = vpop.xlane.xlu0 %2557
      %2559 = vadd.xlane.f32.xlu0 %v2106
      %v2560 = vpop.xlane.xlu0 %2559
      %2561 = vadd.xlane.f32.xlu0 %v2121
      %v2562 = vpop.xlane.xlu0 %2561
      %2563 = vadd.xlane.f32.xlu0 %v2136
      %v2564 = vpop.xlane.xlu0 %2563
      %2565 = vadd.xlane.f32.xlu0 %v2151
      %v2566 = vpop.xlane.xlu0 %2565
      %2567 = vadd.xlane.f32.xlu0 %v2166
      %v2568 = vpop.xlane.xlu0 %2567
      %2569 = vadd.xlane.f32.xlu0 %v2181
      %v2570 = vpop.xlane.xlu0 %2569
      %2571 = vadd.xlane.f32.xlu0 %v2196
      %v2572 = vpop.xlane.xlu0 %2571
      %2573 = vadd.xlane.f32.xlu0 %v2211
      %v2574 = vpop.xlane.xlu0 %2573
      %2575 = vadd.xlane.f32.xlu0 %v2226
      %v2576 = vpop.xlane.xlu0 %2575
      %2577 = vadd.xlane.f32.xlu0 %v2241
      %v2578 = vpop.xlane.xlu0 %2577
      %2579 = vadd.xlane.f32.xlu0 %v2256
      %v2580 = vpop.xlane.xlu0 %2579
      %2581 = vadd.xlane.f32.xlu0 %v2271
      %v2582 = vpop.xlane.xlu0 %2581
      %2583 = vadd.xlane.f32.xlu0 %v2286
      %v2584 = vpop.xlane.xlu0 %2583
      %2585 = vadd.xlane.f32.xlu0 %v2301
      %v2586 = vpop.xlane.xlu0 %2585
      %2587 = vadd.xlane.f32.xlu0 %v2316
      %v2588 = vpop.xlane.xlu0 %2587
      %2589 = vadd.xlane.f32.xlu0 %v2331
      %v2590 = vpop.xlane.xlu0 %2589
      %2591 = vadd.xlane.f32.xlu0 %v2346
      %v2592 = vpop.xlane.xlu0 %2591
      %2593 = vadd.xlane.f32.xlu0 %v2361
      %v2594 = vpop.xlane.xlu0 %2593
      %2595 = vadd.xlane.f32.xlu0 %v2376
      %v2596 = vpop.xlane.xlu0 %2595
      %2597 = vadd.xlane.f32.xlu0 %v2391
      %v2598 = vpop.xlane.xlu0 %2597
      %2599 = vadd.xlane.f32.xlu0 %v2406
      %v2600 = vpop.xlane.xlu0 %2599
      %2601 = vadd.xlane.f32.xlu0 %v2421
      %v2602 = vpop.xlane.xlu0 %2601
      %2603 = vadd.xlane.f32.xlu0 %v2436
      %v2604 = vpop.xlane.xlu0 %2603
      %2605 = vadd.xlane.f32.xlu0 %v2451
      %v2606 = vpop.xlane.xlu0 %2605
      %2607 = vadd.xlane.f32.xlu0 %v2466
      %v2608 = vpop.xlane.xlu0 %2607
      %2609 = vadd.xlane.f32.xlu0 %v2481
      %v2610 = vpop.xlane.xlu0 %2609
      %2611 = vadd.xlane.f32.xlu0 %v2496
      %v2612 = vpop.xlane.xlu0 %2611
      %2613 = vadd.xlane.f32.xlu0 %v2511
      %v2614 = vpop.xlane.xlu0 %2613
      %2615 = vadd.xlane.f32.xlu0 %v2526
      %v2616 = vpop.xlane.xlu0 %2615
      %2617 = vadd.xlane.f32.xlu0 %v2541
      %v2618 = vpop.xlane.xlu0 %2617
      %2619 = vadd.xlane.f32.xlu0 %v2556
      %v2620 = vpop.xlane.xlu0 %2619
      %v2621 = vrcp.pop %v2558
      %v2622 = vmul.f32 %v2558, %v2621
      %v2623 = vsub.f32 1.0, %v2622
      %v2624 = vmul.f32 %v2621, %v2623
      %v2625 = vadd.f32 %v2621, %v2624
      %vm2626 = vweird.f32 %v2558
      %vm2627 = vweird.f32 %v2621
      %vm2628 = vmor %vm2626, %vm2627
      %v2629 = vsel %vm2628, %v2621, %v2625
      %v2630 = vand.u32 2147483647, %v2558
      %vm2631 = vcmp.eq.f32.partialorder %v2630, 8.507059e+37
      %v2632 = vand.u32 %v2558, 2147483648
      %v2633 = vor.u32 1.1754944e-38, %v2632
      %v2634 = vsel %vm2631, %v2633, %v2629
      %v2635 = vmul.f32 %v2091, %v2634
      %v2636 = vrcp.pop %v2560
      %v2637 = vmul.f32 %v2560, %v2636
      %v2638 = vsub.f32 1.0, %v2637
      %v2639 = vmul.f32 %v2636, %v2638
      %v2640 = vadd.f32 %v2636, %v2639
      %vm2641 = vweird.f32 %v2560
      %vm2642 = vweird.f32 %v2636
      %vm2643 = vmor %vm2641, %vm2642
      %v2644 = vsel %vm2643, %v2636, %v2640
      %v2645 = vand.u32 2147483647, %v2560
      %vm2646 = vcmp.eq.f32.partialorder %v2645, 8.507059e+37
      %v2647 = vand.u32 %v2560, 2147483648
      %v2648 = vor.u32 1.1754944e-38, %v2647
      %v2649 = vsel %vm2646, %v2648, %v2644
      %v2650 = vmul.f32 %v2106, %v2649
      %v2651 = vrcp.pop %v2562
      %v2652 = vmul.f32 %v2562, %v2651
      %v2653 = vsub.f32 1.0, %v2652
      %v2654 = vmul.f32 %v2651, %v2653
      %v2655 = vadd.f32 %v2651, %v2654
      %vm2656 = vweird.f32 %v2562
      %vm2657 = vweird.f32 %v2651
      %vm2658 = vmor %vm2656, %vm2657
      %v2659 = vsel %vm2658, %v2651, %v2655
      %v2660 = vand.u32 2147483647, %v2562
      %vm2661 = vcmp.eq.f32.partialorder %v2660, 8.507059e+37
      %v2662 = vand.u32 %v2562, 2147483648
      %v2663 = vor.u32 1.1754944e-38, %v2662
      %v2664 = vsel %vm2661, %v2663, %v2659
      %v2665 = vmul.f32 %v2121, %v2664
      %v2666 = vrcp.pop %v2564
      %v2667 = vmul.f32 %v2564, %v2666
      %v2668 = vsub.f32 1.0, %v2667
      %v2669 = vmul.f32 %v2666, %v2668
      %v2670 = vadd.f32 %v2666, %v2669
      %vm2671 = vweird.f32 %v2564
      %vm2672 = vweird.f32 %v2666
      %vm2673 = vmor %vm2671, %vm2672
      %v2674 = vsel %vm2673, %v2666, %v2670
      %v2675 = vand.u32 2147483647, %v2564
      %vm2676 = vcmp.eq.f32.partialorder %v2675, 8.507059e+37
      %v2677 = vand.u32 %v2564, 2147483648
      %v2678 = vor.u32 1.1754944e-38, %v2677
      %v2679 = vsel %vm2676, %v2678, %v2674
      %v2680 = vmul.f32 %v2136, %v2679
      %v2681 = vrcp.pop %v2566
      %v2682 = vmul.f32 %v2566, %v2681
      %v2683 = vsub.f32 1.0, %v2682
      %v2684 = vmul.f32 %v2681, %v2683
      %v2685 = vadd.f32 %v2681, %v2684
      %vm2686 = vweird.f32 %v2566
      %vm2687 = vweird.f32 %v2681
      %vm2688 = vmor %vm2686, %vm2687
      %v2689 = vsel %vm2688, %v2681, %v2685
      %v2690 = vand.u32 2147483647, %v2566
      %vm2691 = vcmp.eq.f32.partialorder %v2690, 8.507059e+37
      %v2692 = vand.u32 %v2566, 2147483648
      %v2693 = vor.u32 1.1754944e-38, %v2692
      %v2694 = vsel %vm2691, %v2693, %v2689
      %v2695 = vmul.f32 %v2151, %v2694
      %v2696 = vrcp.pop %v2568
      %v2697 = vmul.f32 %v2568, %v2696
      %v2698 = vsub.f32 1.0, %v2697
      %v2699 = vmul.f32 %v2696, %v2698
      %v2700 = vadd.f32 %v2696, %v2699
      %vm2701 = vweird.f32 %v2568
      %vm2702 = vweird.f32 %v2696
      %vm2703 = vmor %vm2701, %vm2702
      %v2704 = vsel %vm2703, %v2696, %v2700
      %v2705 = vand.u32 2147483647, %v2568
      %vm2706 = vcmp.eq.f32.partialorder %v2705, 8.507059e+37
      %v2707 = vand.u32 %v2568, 2147483648
      %v2708 = vor.u32 1.1754944e-38, %v2707
      %v2709 = vsel %vm2706, %v2708, %v2704
      %v2710 = vmul.f32 %v2166, %v2709
      %v2711 = vrcp.pop %v2570
      %v2712 = vmul.f32 %v2570, %v2711
      %v2713 = vsub.f32 1.0, %v2712
      %v2714 = vmul.f32 %v2711, %v2713
      %v2715 = vadd.f32 %v2711, %v2714
      %vm2716 = vweird.f32 %v2570
      %vm2717 = vweird.f32 %v2711
      %vm2718 = vmor %vm2716, %vm2717
      %v2719 = vsel %vm2718, %v2711, %v2715
      %v2720 = vand.u32 2147483647, %v2570
      %vm2721 = vcmp.eq.f32.partialorder %v2720, 8.507059e+37
      %v2722 = vand.u32 %v2570, 2147483648
      %v2723 = vor.u32 1.1754944e-38, %v2722
      %v2724 = vsel %vm2721, %v2723, %v2719
      %v2725 = vmul.f32 %v2181, %v2724
      %v2726 = vrcp.pop %v2572
      %v2727 = vmul.f32 %v2572, %v2726
      %v2728 = vsub.f32 1.0, %v2727
      %v2729 = vmul.f32 %v2726, %v2728
      %v2730 = vadd.f32 %v2726, %v2729
      %vm2731 = vweird.f32 %v2572
      %vm2732 = vweird.f32 %v2726
      %vm2733 = vmor %vm2731, %vm2732
      %v2734 = vsel %vm2733, %v2726, %v2730
      %v2735 = vand.u32 2147483647, %v2572
      %vm2736 = vcmp.eq.f32.partialorder %v2735, 8.507059e+37
      %v2737 = vand.u32 %v2572, 2147483648
      %v2738 = vor.u32 1.1754944e-38, %v2737
      %v2739 = vsel %vm2736, %v2738, %v2734
      %v2740 = vmul.f32 %v2196, %v2739
      %v2741 = vrcp.pop %v2574
      %v2742 = vmul.f32 %v2574, %v2741
      %v2743 = vsub.f32 1.0, %v2742
      %v2744 = vmul.f32 %v2741, %v2743
      %v2745 = vadd.f32 %v2741, %v2744
      %vm2746 = vweird.f32 %v2574
      %vm2747 = vweird.f32 %v2741
      %vm2748 = vmor %vm2746, %vm2747
      %v2749 = vsel %vm2748, %v2741, %v2745
      %v2750 = vand.u32 2147483647, %v2574
      %vm2751 = vcmp.eq.f32.partialorder %v2750, 8.507059e+37
      %v2752 = vand.u32 %v2574, 2147483648
      %v2753 = vor.u32 1.1754944e-38, %v2752
      %v2754 = vsel %vm2751, %v2753, %v2749
      %v2755 = vmul.f32 %v2211, %v2754
      %v2756 = vrcp.pop %v2576
      %v2757 = vmul.f32 %v2576, %v2756
      %v2758 = vsub.f32 1.0, %v2757
      %v2759 = vmul.f32 %v2756, %v2758
      %v2760 = vadd.f32 %v2756, %v2759
      %vm2761 = vweird.f32 %v2576
      %vm2762 = vweird.f32 %v2756
      %vm2763 = vmor %vm2761, %vm2762
      %v2764 = vsel %vm2763, %v2756, %v2760
      %v2765 = vand.u32 2147483647, %v2576
      %vm2766 = vcmp.eq.f32.partialorder %v2765, 8.507059e+37
      %v2767 = vand.u32 %v2576, 2147483648
      %v2768 = vor.u32 1.1754944e-38, %v2767
      %v2769 = vsel %vm2766, %v2768, %v2764
      %v2770 = vmul.f32 %v2226, %v2769
      %v2771 = vrcp.pop %v2578
      %v2772 = vmul.f32 %v2578, %v2771
      %v2773 = vsub.f32 1.0, %v2772
      %v2774 = vmul.f32 %v2771, %v2773
      %v2775 = vadd.f32 %v2771, %v2774
      %vm2776 = vweird.f32 %v2578
      %vm2777 = vweird.f32 %v2771
      %vm2778 = vmor %vm2776, %vm2777
      %v2779 = vsel %vm2778, %v2771, %v2775
      %v2780 = vand.u32 2147483647, %v2578
      %vm2781 = vcmp.eq.f32.partialorder %v2780, 8.507059e+37
      %v2782 = vand.u32 %v2578, 2147483648
      %v2783 = vor.u32 1.1754944e-38, %v2782
      %v2784 = vsel %vm2781, %v2783, %v2779
      %v2785 = vmul.f32 %v2241, %v2784
      %v2786 = vrcp.pop %v2580
      %v2787 = vmul.f32 %v2580, %v2786
      %v2788 = vsub.f32 1.0, %v2787
      %v2789 = vmul.f32 %v2786, %v2788
      %v2790 = vadd.f32 %v2786, %v2789
      %vm2791 = vweird.f32 %v2580
      %vm2792 = vweird.f32 %v2786
      %vm2793 = vmor %vm2791, %vm2792
      %v2794 = vsel %vm2793, %v2786, %v2790
      %v2795 = vand.u32 2147483647, %v2580
      %vm2796 = vcmp.eq.f32.partialorder %v2795, 8.507059e+37
      %v2797 = vand.u32 %v2580, 2147483648
      %v2798 = vor.u32 1.1754944e-38, %v2797
      %v2799 = vsel %vm2796, %v2798, %v2794
      %v2800 = vmul.f32 %v2256, %v2799
      %v2801 = vrcp.pop %v2582
      %v2802 = vmul.f32 %v2582, %v2801
      %v2803 = vsub.f32 1.0, %v2802
      %v2804 = vmul.f32 %v2801, %v2803
      %v2805 = vadd.f32 %v2801, %v2804
      %vm2806 = vweird.f32 %v2582
      %vm2807 = vweird.f32 %v2801
      %vm2808 = vmor %vm2806, %vm2807
      %v2809 = vsel %vm2808, %v2801, %v2805
      %v2810 = vand.u32 2147483647, %v2582
      %vm2811 = vcmp.eq.f32.partialorder %v2810, 8.507059e+37
      %v2812 = vand.u32 %v2582, 2147483648
      %v2813 = vor.u32 1.1754944e-38, %v2812
      %v2814 = vsel %vm2811, %v2813, %v2809
      %v2815 = vmul.f32 %v2271, %v2814
      %v2816 = vrcp.pop %v2584
      %v2817 = vmul.f32 %v2584, %v2816
      %v2818 = vsub.f32 1.0, %v2817
      %v2819 = vmul.f32 %v2816, %v2818
      %v2820 = vadd.f32 %v2816, %v2819
      %vm2821 = vweird.f32 %v2584
      %vm2822 = vweird.f32 %v2816
      %vm2823 = vmor %vm2821, %vm2822
      %v2824 = vsel %vm2823, %v2816, %v2820
      %v2825 = vand.u32 2147483647, %v2584
      %vm2826 = vcmp.eq.f32.partialorder %v2825, 8.507059e+37
      %v2827 = vand.u32 %v2584, 2147483648
      %v2828 = vor.u32 1.1754944e-38, %v2827
      %v2829 = vsel %vm2826, %v2828, %v2824
      %v2830 = vmul.f32 %v2286, %v2829
      %v2831 = vrcp.pop %v2586
      %v2832 = vmul.f32 %v2586, %v2831
      %v2833 = vsub.f32 1.0, %v2832
      %v2834 = vmul.f32 %v2831, %v2833
      %v2835 = vadd.f32 %v2831, %v2834
      %vm2836 = vweird.f32 %v2586
      %vm2837 = vweird.f32 %v2831
      %vm2838 = vmor %vm2836, %vm2837
      %v2839 = vsel %vm2838, %v2831, %v2835
      %v2840 = vand.u32 2147483647, %v2586
      %vm2841 = vcmp.eq.f32.partialorder %v2840, 8.507059e+37
      %v2842 = vand.u32 %v2586, 2147483648
      %v2843 = vor.u32 1.1754944e-38, %v2842
      %v2844 = vsel %vm2841, %v2843, %v2839
      %v2845 = vmul.f32 %v2301, %v2844
      %v2846 = vrcp.pop %v2588
      %v2847 = vmul.f32 %v2588, %v2846
      %v2848 = vsub.f32 1.0, %v2847
      %v2849 = vmul.f32 %v2846, %v2848
      %v2850 = vadd.f32 %v2846, %v2849
      %vm2851 = vweird.f32 %v2588
      %vm2852 = vweird.f32 %v2846
      %vm2853 = vmor %vm2851, %vm2852
      %v2854 = vsel %vm2853, %v2846, %v2850
      %v2855 = vand.u32 2147483647, %v2588
      %vm2856 = vcmp.eq.f32.partialorder %v2855, 8.507059e+37
      %v2857 = vand.u32 %v2588, 2147483648
      %v2858 = vor.u32 1.1754944e-38, %v2857
      %v2859 = vsel %vm2856, %v2858, %v2854
      %v2860 = vmul.f32 %v2316, %v2859
      %v2861 = vrcp.pop %v2590
      %v2862 = vmul.f32 %v2590, %v2861
      %v2863 = vsub.f32 1.0, %v2862
      %v2864 = vmul.f32 %v2861, %v2863
      %v2865 = vadd.f32 %v2861, %v2864
      %vm2866 = vweird.f32 %v2590
      %vm2867 = vweird.f32 %v2861
      %vm2868 = vmor %vm2866, %vm2867
      %v2869 = vsel %vm2868, %v2861, %v2865
      %v2870 = vand.u32 2147483647, %v2590
      %vm2871 = vcmp.eq.f32.partialorder %v2870, 8.507059e+37
      %v2872 = vand.u32 %v2590, 2147483648
      %v2873 = vor.u32 1.1754944e-38, %v2872
      %v2874 = vsel %vm2871, %v2873, %v2869
      %v2875 = vmul.f32 %v2331, %v2874
      %v2876 = vrcp.pop %v2592
      %v2877 = vmul.f32 %v2592, %v2876
      %v2878 = vsub.f32 1.0, %v2877
      %v2879 = vmul.f32 %v2876, %v2878
      %v2880 = vadd.f32 %v2876, %v2879
      %vm2881 = vweird.f32 %v2592
      %vm2882 = vweird.f32 %v2876
      %vm2883 = vmor %vm2881, %vm2882
      %v2884 = vsel %vm2883, %v2876, %v2880
      %v2885 = vand.u32 2147483647, %v2592
      %vm2886 = vcmp.eq.f32.partialorder %v2885, 8.507059e+37
      %v2887 = vand.u32 %v2592, 2147483648
      %v2888 = vor.u32 1.1754944e-38, %v2887
      %v2889 = vsel %vm2886, %v2888, %v2884
      %v2890 = vmul.f32 %v2346, %v2889
      %v2891 = vrcp.pop %v2594
      %v2892 = vmul.f32 %v2594, %v2891
      %v2893 = vsub.f32 1.0, %v2892
      %v2894 = vmul.f32 %v2891, %v2893
      %v2895 = vadd.f32 %v2891, %v2894
      %vm2896 = vweird.f32 %v2594
      %vm2897 = vweird.f32 %v2891
      %vm2898 = vmor %vm2896, %vm2897
      %v2899 = vsel %vm2898, %v2891, %v2895
      %v2900 = vand.u32 2147483647, %v2594
      %vm2901 = vcmp.eq.f32.partialorder %v2900, 8.507059e+37
      %v2902 = vand.u32 %v2594, 2147483648
      %v2903 = vor.u32 1.1754944e-38, %v2902
      %v2904 = vsel %vm2901, %v2903, %v2899
      %v2905 = vmul.f32 %v2361, %v2904
      %v2906 = vrcp.pop %v2596
      %v2907 = vmul.f32 %v2596, %v2906
      %v2908 = vsub.f32 1.0, %v2907
      %v2909 = vmul.f32 %v2906, %v2908
      %v2910 = vadd.f32 %v2906, %v2909
      %vm2911 = vweird.f32 %v2596
      %vm2912 = vweird.f32 %v2906
      %vm2913 = vmor %vm2911, %vm2912
      %v2914 = vsel %vm2913, %v2906, %v2910
      %v2915 = vand.u32 2147483647, %v2596
      %vm2916 = vcmp.eq.f32.partialorder %v2915, 8.507059e+37
      %v2917 = vand.u32 %v2596, 2147483648
      %v2918 = vor.u32 1.1754944e-38, %v2917
      %v2919 = vsel %vm2916, %v2918, %v2914
      %v2920 = vmul.f32 %v2376, %v2919
      %v2921 = vrcp.pop %v2598
      %v2922 = vmul.f32 %v2598, %v2921
      %v2923 = vsub.f32 1.0, %v2922
      %v2924 = vmul.f32 %v2921, %v2923
      %v2925 = vadd.f32 %v2921, %v2924
      %vm2926 = vweird.f32 %v2598
      %vm2927 = vweird.f32 %v2921
      %vm2928 = vmor %vm2926, %vm2927
      %v2929 = vsel %vm2928, %v2921, %v2925
      %v2930 = vand.u32 2147483647, %v2598
      %vm2931 = vcmp.eq.f32.partialorder %v2930, 8.507059e+37
      %v2932 = vand.u32 %v2598, 2147483648
      %v2933 = vor.u32 1.1754944e-38, %v2932
      %v2934 = vsel %vm2931, %v2933, %v2929
      %v2935 = vmul.f32 %v2391, %v2934
      %v2936 = vrcp.pop %v2600
      %v2937 = vmul.f32 %v2600, %v2936
      %v2938 = vsub.f32 1.0, %v2937
      %v2939 = vmul.f32 %v2936, %v2938
      %v2940 = vadd.f32 %v2936, %v2939
      %vm2941 = vweird.f32 %v2600
      %vm2942 = vweird.f32 %v2936
      %vm2943 = vmor %vm2941, %vm2942
      %v2944 = vsel %vm2943, %v2936, %v2940
      %v2945 = vand.u32 2147483647, %v2600
      %vm2946 = vcmp.eq.f32.partialorder %v2945, 8.507059e+37
      %v2947 = vand.u32 %v2600, 2147483648
      %v2948 = vor.u32 1.1754944e-38, %v2947
      %v2949 = vsel %vm2946, %v2948, %v2944
      %v2950 = vmul.f32 %v2406, %v2949
      %v2951 = vrcp.pop %v2602
      %v2952 = vmul.f32 %v2602, %v2951
      %v2953 = vsub.f32 1.0, %v2952
      %v2954 = vmul.f32 %v2951, %v2953
      %v2955 = vadd.f32 %v2951, %v2954
      %vm2956 = vweird.f32 %v2602
      %vm2957 = vweird.f32 %v2951
      %vm2958 = vmor %vm2956, %vm2957
      %v2959 = vsel %vm2958, %v2951, %v2955
      %v2960 = vand.u32 2147483647, %v2602
      %vm2961 = vcmp.eq.f32.partialorder %v2960, 8.507059e+37
      %v2962 = vand.u32 %v2602, 2147483648
      %v2963 = vor.u32 1.1754944e-38, %v2962
      %v2964 = vsel %vm2961, %v2963, %v2959
      %v2965 = vmul.f32 %v2421, %v2964
      %v2966 = vrcp.pop %v2604
      %v2967 = vmul.f32 %v2604, %v2966
      %v2968 = vsub.f32 1.0, %v2967
      %v2969 = vmul.f32 %v2966, %v2968
      %v2970 = vadd.f32 %v2966, %v2969
      %vm2971 = vweird.f32 %v2604
      %vm2972 = vweird.f32 %v2966
      %vm2973 = vmor %vm2971, %vm2972
      %v2974 = vsel %vm2973, %v2966, %v2970
      %v2975 = vand.u32 2147483647, %v2604
      %vm2976 = vcmp.eq.f32.partialorder %v2975, 8.507059e+37
      %v2977 = vand.u32 %v2604, 2147483648
      %v2978 = vor.u32 1.1754944e-38, %v2977
      %v2979 = vsel %vm2976, %v2978, %v2974
      %v2980 = vmul.f32 %v2436, %v2979
      %v2981 = vrcp.pop %v2606
      %v2982 = vmul.f32 %v2606, %v2981
      %v2983 = vsub.f32 1.0, %v2982
      %v2984 = vmul.f32 %v2981, %v2983
      %v2985 = vadd.f32 %v2981, %v2984
      %vm2986 = vweird.f32 %v2606
      %vm2987 = vweird.f32 %v2981
      %vm2988 = vmor %vm2986, %vm2987
      %v2989 = vsel %vm2988, %v2981, %v2985
      %v2990 = vand.u32 2147483647, %v2606
      %vm2991 = vcmp.eq.f32.partialorder %v2990, 8.507059e+37
      %v2992 = vand.u32 %v2606, 2147483648
      %v2993 = vor.u32 1.1754944e-38, %v2992
      %v2994 = vsel %vm2991, %v2993, %v2989
      %v2995 = vmul.f32 %v2451, %v2994
      %v2996 = vrcp.pop %v2608
      %v2997 = vmul.f32 %v2608, %v2996
      %v2998 = vsub.f32 1.0, %v2997
      %v2999 = vmul.f32 %v2996, %v2998
      %v3000 = vadd.f32 %v2996, %v2999
      %vm3001 = vweird.f32 %v2608
      %vm3002 = vweird.f32 %v2996
      %vm3003 = vmor %vm3001, %vm3002
      %v3004 = vsel %vm3003, %v2996, %v3000
      %v3005 = vand.u32 2147483647, %v2608
      %vm3006 = vcmp.eq.f32.partialorder %v3005, 8.507059e+37
      %v3007 = vand.u32 %v2608, 2147483648
      %v3008 = vor.u32 1.1754944e-38, %v3007
      %v3009 = vsel %vm3006, %v3008, %v3004
      %v3010 = vmul.f32 %v2466, %v3009
      %v3011 = vrcp.pop %v2610
      %v3012 = vmul.f32 %v2610, %v3011
      %v3013 = vsub.f32 1.0, %v3012
      %v3014 = vmul.f32 %v3011, %v3013
      %v3015 = vadd.f32 %v3011, %v3014
      %vm3016 = vweird.f32 %v2610
      %vm3017 = vweird.f32 %v3011
      %vm3018 = vmor %vm3016, %vm3017
      %v3019 = vsel %vm3018, %v3011, %v3015
      %v3020 = vand.u32 2147483647, %v2610
      %vm3021 = vcmp.eq.f32.partialorder %v3020, 8.507059e+37
      %v3022 = vand.u32 %v2610, 2147483648
      %v3023 = vor.u32 1.1754944e-38, %v3022
      %v3024 = vsel %vm3021, %v3023, %v3019
      %v3025 = vmul.f32 %v2481, %v3024
      %v3026 = vrcp.pop %v2612
      %v3027 = vmul.f32 %v2612, %v3026
      %v3028 = vsub.f32 1.0, %v3027
      %v3029 = vmul.f32 %v3026, %v3028
      %v3030 = vadd.f32 %v3026, %v3029
      %vm3031 = vweird.f32 %v2612
      %vm3032 = vweird.f32 %v3026
      %vm3033 = vmor %vm3031, %vm3032
      %v3034 = vsel %vm3033, %v3026, %v3030
      %v3035 = vand.u32 2147483647, %v2612
      %vm3036 = vcmp.eq.f32.partialorder %v3035, 8.507059e+37
      %v3037 = vand.u32 %v2612, 2147483648
      %v3038 = vor.u32 1.1754944e-38, %v3037
      %v3039 = vsel %vm3036, %v3038, %v3034
      %v3040 = vmul.f32 %v2496, %v3039
      %v3041 = vrcp.pop %v2614
      %v3042 = vmul.f32 %v2614, %v3041
      %v3043 = vsub.f32 1.0, %v3042
      %v3044 = vmul.f32 %v3041, %v3043
      %v3045 = vadd.f32 %v3041, %v3044
      %vm3046 = vweird.f32 %v2614
      %vm3047 = vweird.f32 %v3041
      %vm3048 = vmor %vm3046, %vm3047
      %v3049 = vsel %vm3048, %v3041, %v3045
      %v3050 = vand.u32 2147483647, %v2614
      %vm3051 = vcmp.eq.f32.partialorder %v3050, 8.507059e+37
      %v3052 = vand.u32 %v2614, 2147483648
      %v3053 = vor.u32 1.1754944e-38, %v3052
      %v3054 = vsel %vm3051, %v3053, %v3049
      %v3055 = vmul.f32 %v2511, %v3054
      %v3056 = vrcp.pop %v2616
      %v3057 = vmul.f32 %v2616, %v3056
      %v3058 = vsub.f32 1.0, %v3057
      %v3059 = vmul.f32 %v3056, %v3058
      %v3060 = vadd.f32 %v3056, %v3059
      %vm3061 = vweird.f32 %v2616
      %vm3062 = vweird.f32 %v3056
      %vm3063 = vmor %vm3061, %vm3062
      %v3064 = vsel %vm3063, %v3056, %v3060
      %v3065 = vand.u32 2147483647, %v2616
      %vm3066 = vcmp.eq.f32.partialorder %v3065, 8.507059e+37
      %v3067 = vand.u32 %v2616, 2147483648
      %v3068 = vor.u32 1.1754944e-38, %v3067
      %v3069 = vsel %vm3066, %v3068, %v3064
      %v3070 = vmul.f32 %v2526, %v3069
      %v3071 = vrcp.pop %v2618
      %v3072 = vmul.f32 %v2618, %v3071
      %v3073 = vsub.f32 1.0, %v3072
      %v3074 = vmul.f32 %v3071, %v3073
      %v3075 = vadd.f32 %v3071, %v3074
      %vm3076 = vweird.f32 %v2618
      %vm3077 = vweird.f32 %v3071
      %vm3078 = vmor %vm3076, %vm3077
      %v3079 = vsel %vm3078, %v3071, %v3075
      %v3080 = vand.u32 2147483647, %v2618
      %vm3081 = vcmp.eq.f32.partialorder %v3080, 8.507059e+37
      %v3082 = vand.u32 %v2618, 2147483648
      %v3083 = vor.u32 1.1754944e-38, %v3082
      %v3084 = vsel %vm3081, %v3083, %v3079
      %v3085 = vmul.f32 %v2541, %v3084
      %v3086 = vrcp.pop %v2620
      %v3087 = vmul.f32 %v2620, %v3086
      %v3088 = vsub.f32 1.0, %v3087
      %v3089 = vmul.f32 %v3086, %v3088
      %v3090 = vadd.f32 %v3086, %v3089
      %vm3091 = vweird.f32 %v2620
      %vm3092 = vweird.f32 %v3086
      %vm3093 = vmor %vm3091, %vm3092
      %v3094 = vsel %vm3093, %v3086, %v3090
      %v3095 = vand.u32 2147483647, %v2620
      %vm3096 = vcmp.eq.f32.partialorder %v3095, 8.507059e+37
      %v3097 = vand.u32 %v2620, 2147483648
      %v3098 = vor.u32 1.1754944e-38, %v3097
      %v3099 = vsel %vm3096, %v3098, %v3094
      %v3100 = vmul.f32 %v2556, %v3099
      %3101 = vst [vmem:[%s242] sm:$0xff] %v2635
      %3102 = vst [vmem:[%s242 + $0x8] sm:$0xff] %v2650
      %3103 = vst [vmem:[%s242 + $0x10] sm:$0xff] %v2665
      %3104 = vst [vmem:[%s242 + $0x18] sm:$0xff] %v2680
      %3105 = vst [vmem:[%s242 + $0x20] sm:$0xff] %v2695
      %3106 = vst [vmem:[%s242 + $0x28] sm:$0xff] %v2710
      %3107 = vst [vmem:[%s242 + $0x30] sm:$0xff] %v2725
      %3108 = vst [vmem:[%s242 + $0x38] sm:$0xff] %v2740
      %3109 = vst [vmem:[%s242 + $0x40] sm:$0xff] %v2755
      %3110 = vst [vmem:[%s242 + $0x48] sm:$0xff] %v2770
      %3111 = vst [vmem:[%s242 + $0x50] sm:$0xff] %v2785
      %3112 = vst [vmem:[%s242 + $0x58] sm:$0xff] %v2800
      %3113 = vst [vmem:[%s242 + $0x60] sm:$0xff] %v2815
      %3114 = vst [vmem:[%s242 + $0x68] sm:$0xff] %v2830
      %3115 = vst [vmem:[%s242 + $0x70] sm:$0xff] %v2845
      %3116 = vst [vmem:[%s242 + $0x78] sm:$0xff] %v2860
      %3117 = vst [vmem:[%s242 + $0x80] sm:$0xff] %v2875
      %3118 = vst [vmem:[%s242 + $0x88] sm:$0xff] %v2890
      %3119 = vst [vmem:[%s242 + $0x90] sm:$0xff] %v2905
      %3120 = vst [vmem:[%s242 + $0x98] sm:$0xff] %v2920
      %3121 = vst [vmem:[%s242 + $0xa0] sm:$0xff] %v2935
      %3122 = vst [vmem:[%s242 + $0xa8] sm:$0xff] %v2950
      %3123 = vst [vmem:[%s242 + $0xb0] sm:$0xff] %v2965
      %3124 = vst [vmem:[%s242 + $0xb8] sm:$0xff] %v2980
      %3125 = vst [vmem:[%s242 + $0xc0] sm:$0xff] %v2995
      %3126 = vst [vmem:[%s242 + $0xc8] sm:$0xff] %v3010
      %3127 = vst [vmem:[%s242 + $0xd0] sm:$0xff] %v3025
      %3128 = vst [vmem:[%s242 + $0xd8] sm:$0xff] %v3040
      %3129 = vst [vmem:[%s242 + $0xe0] sm:$0xff] %v3055
      %3130 = vst [vmem:[%s242 + $0xe8] sm:$0xff] %v3070
      %3131 = vst [vmem:[%s242 + $0xf0] sm:$0xff] %v3085
      %3132 = vst [vmem:[%s242 + $0xf8] sm:$0xff] %v3100
      %s3133 = smul.u32 32, %s17
      %p3134 = scmp.lt.s32.totalorder %s3133, 63
      %s3135 = scalar_select %p3134, %s3133, 63
      %s3136 = smul.addr %s3135, 4
      %s3137 = smul.addr %s3136, 8
      %s3138 = scalar_lea.vmem %s4, %s3137
      %s3139 = smul.u32 32, %s17
      %p3140 = scmp.lt.s32.totalorder %s3139, 63
      %s3141 = scalar_select %p3140, %s3139, 63
      %s3142 = smul.addr %s3141, 8
      %s3143 = scalar_lea.vmem %s5, %s3142
      // Predicated region
      $region37: #{gaex_forward.15} parent=35 // pred_check
        %p3144 = pneg %p124
      $region38: #{gaex_forward.15} parent=35 // pred_check_branch
        %3146 = sbr.rel (%p3144) target = $region40
      $region39: #{gaex_forward.15} parent=35 // pred_region
        %s3147 = smul.u32 32, %s17
      $region40: #{gaex_forward.15} parent=35 // pred_fallthru
        _
      // Predicated region
      $region41: #{gaex_forward.15} parent=35 // pred_check
        %p3148 = pneg %p150
      $region42: #{gaex_forward.15} parent=35 // pred_check_branch
        %3150 = sbr.rel (%p3148) target = $region44
      $region43: #{gaex_forward.15} parent=35 // pred_region
        %s3151 = smul.u32 32, %s17
      $region44: #{gaex_forward.15} parent=35 // pred_fallthru
        _
    $region36: #{gaex_forward.15} parent=5 // pred_fallthru
      _
    %p3152 = scmp.le.s32.totalorder 2, %s12
    // Predicated region
    $region45: #{gaex_forward.15} parent=5 // pred_check
      %p3153 = pneg %p3152
    $region46: #{gaex_forward.15} parent=5 // pred_check_branch
      %3155 = sbr.rel (%p3153) target = $region48
    $region47: #{gaex_forward.15} parent=5 // pred_region
      %s3156 = ssub.s32 %s12, 2
      // Predicated region
      $region49: #{gaex_forward.15} parent=47 // pred_check
        %p3157 = pneg %p130
      $region50: #{gaex_forward.15} parent=47 // pred_check_branch
        %3159 = sbr.rel (%p3157) target = $region52
      $region51: #{gaex_forward.15} parent=47 // pred_region
        %s3160 = smul.u32 32, %s18
        %p3161 = scmp.lt.s32.totalorder %s3160, 63
        %s3162 = scalar_select %p3161, %s3160, 63
        %s3163 = smul.addr %s3162, 4
        %s3164 = smul.addr %s3163, 8
        %s3165 = scalar_lea.vmem %s4, %s3164
      $region52: #{gaex_forward.15} parent=47 // pred_fallthru
        _
      // Predicated region
      $region53: #{gaex_forward.15} parent=47 // pred_check
        %p3166 = pneg %p156
      $region54: #{gaex_forward.15} parent=47 // pred_check_branch
        %3168 = sbr.rel (%p3166) target = $region56
      $region55: #{gaex_forward.15} parent=47 // pred_region
        %s3169 = smul.u32 32, %s18
        %p3170 = scmp.lt.s32.totalorder %s3169, 63
        %s3171 = scalar_select %p3170, %s3169, 63
        %s3172 = smul.addr %s3171, 8
        %s3173 = scalar_lea.vmem %s5, %s3172
      $region56: #{gaex_forward.15} parent=47 // pred_fallthru
        _
    $region48: #{gaex_forward.15} parent=5 // pred_fallthru
      _
  $region6: #{gaex_forward.15} parent=0 // loop_footer
    %s16 = sadd.s32 1, %s12
  $region7: #{gaex_forward.15} parent=0 // loop_footer_branch
    %11 = sbr.rel target = $region3
  $region8: #{gaex_forward.15} parent=0 // loop_exit
    _

</llo_original>
